<compile_context>
chip_gen: v7x
topology: tpu7x:2x2x1
jax: 0.10.0
libtpu: 0.0.40
codegen_flags: <defaults>
</compile_context>

<pallas_src>
import math
import jax
import jax.numpy as jnp
from jax import lax
from jax.experimental import pallas as pl
from jax.experimental.pallas import tpu as pltpu


def _mha_kernel(num_heads: int, head_dim: int, tq: int, inv_scale: float):
    H, D, TQ = num_heads, head_dim, tq
    E = H * D

    def kernel(x_ref, wqkv_ref, bqkv_ref, wp_ref, bp_ref, o_ref,
               k_sc, v_sc, acc_sc):
        qi = pl.program_id(1)

        # ---- K/V for the full sequence, once per batch element ------------
        # Head-major (H, N, D) scratch: per-head access below is a cheap
        # leading-axis index, never a lane slice.
        @pl.when(qi == 0)
        def _():
            x_full = x_ref[0]                                     # (N, E)
            for h in range(H):
                k_sc[h] = (jnp.dot(x_full, wqkv_ref[1, h],
                                   preferred_element_type=jnp.float32)
                           + bqkv_ref[1, h])                      # (N, D)
                v_sc[h] = (jnp.dot(x_full, wqkv_ref[2, h],
                                   preferred_element_type=jnp.float32)
                           + bqkv_ref[2, h])                      # (N, D)

        # ---- Q rows for this tile only -------------------------------------
        q_start = pl.multiple_of(qi * TQ, TQ)
        x_q = x_ref[0, pl.ds(q_start, TQ), :]                     # (TQ, E)

        # Output-slab accumulator in VMEM scratch: each head's contribution is
        # written through immediately (bounds vreg live ranges across the
        # unrolled head loop).
        acc_sc[...] = jnp.zeros((TQ, E), jnp.float32)

        for h in range(H):
            q = (jnp.dot(x_q, wqkv_ref[0, h],
                         preferred_element_type=jnp.float32)
                 + bqkv_ref[0, h])                                # (TQ, D)
            k = k_sc[h]                                           # (N, D)
            v = v_sc[h]                                           # (N, D)

            # energy[q, k] = sum_d q[q, d] * k[k, d]   (trans_b matmul)
            energy = lax.dot_general(
                q, k, (((1,), (1,)), ((), ())),
                preferred_element_type=jnp.float32)               # (TQ, N)

            # softmax over keys, THEN scale by 1/sqrt(emb) (matches reference);
            # scale folded into the normalization, division on the EUP.
            m = jnp.max(energy, axis=-1, keepdims=True)
            e = jnp.exp(energy - m)
            denom = jnp.sum(e, axis=-1, keepdims=True)
            att = e * (inv_scale * pl.reciprocal(denom, approx=False))

            out_h = jnp.dot(att, v,
                            preferred_element_type=jnp.float32)   # (TQ, D)

            # Per-head slab of the output projection (no concat, no lane
            # slicing): (TQ, D) @ (D, E) accumulated into the (TQ, E) slab.
            acc_sc[...] += jnp.dot(out_h, wp_ref[h],
                                   preferred_element_type=jnp.float32)

        o_ref[0] = (acc_sc[...] + bp_ref[...]).astype(o_ref.dtype)

    return kernel


def prepare_params(w_qkv, b_qkv, w_proj, b_proj, *, num_heads):
    """Pre-permute PyTorch Linear weights into head-major kernel layout.

    Call ONCE at model init (hoisted out of the per-forward path).
    PyTorch qkv Linear output feature index f = h*D*3 + d*3 + c (the einops
    '(h d qkv)' split is interleaved).
    """
    E = w_qkv.shape[1]
    H = num_heads
    D = E // H

    w_split = w_qkv.reshape(H, D, 3, E)                 # [h, d, c, e]
    b_split = b_qkv.reshape(H, D, 3)                    # [h, d, c]
    # (3, H, E, D): W[c, h, e, d] = w_qkv[h*D*3 + d*3 + c, e]
    wqkv_hm = jnp.transpose(w_split, (2, 0, 3, 1))
    bqkv_hm = jnp.transpose(b_split, (2, 0, 1)).reshape(3, H, 1, D)
    # Projection consumes head-major (h d) columns: (H, D, E) slabs of W^T.
    wp_hm = jnp.transpose(w_proj, (1, 0)).reshape(H, D, E)
    bp = b_proj.reshape(1, E)
    return wqkv_hm, bqkv_hm, wp_hm, bp


def multi_head_attention(x, params, *, num_heads):
    """x: (B, N, E) f32.  params: output of prepare_params."""
    B, N, E = x.shape
    H = num_heads
    D = E // H
    wqkv_hm, bqkv_hm, wp_hm, bp = params
    inv_scale = 1.0 / (float(E) ** 0.5)

    # Query-row tile: bounds the (TQ, N) energy tile per head at large N.
    TQ = N if N <= 128 else 128
    assert N % TQ == 0, "sequence length must be a multiple of the q-tile"
    NQ = N // TQ

    # Explicit VMEM budget: above the v5e/v6e default scoped limit, capped at
    # 48 MiB so it keeps headroom inside v7x's 64 MiB physical VMEM.
    f32 = 4
    est = (2 * N * E * f32                       # x block (double-buffered)
           + 2 * 3 * E * E * f32                 # qkv weights (worst case 2x)
           + 2 * E * E * f32                     # proj weight (worst case 2x)
           + 2 * H * N * max(D, 128) * f32       # K/V scratch (lane-padded)
           + 2 * 2 * TQ * E * f32                # out tile + acc scratch
           + 4 * E * f32)                        # biases
    vmem_limit = int(min(48 * 2**20, max(32 * 2**20, 1.5 * est)))

    def build(single_buffer_weights):
        # Constant-index_map blocks are only DMA'd when their block index
        # changes (never, here); Buffered(1) additionally drops the second
        # VMEM buffer Pallas would otherwise reserve for them.
        resident = ({"pipeline_mode": pl.Buffered(1)}
                    if single_buffer_weights else {})
        in_specs = [
            pl.BlockSpec((1, N, E), lambda b, qi: (b, 0, 0)),            # x
            pl.BlockSpec((3, H, E, D), lambda b, qi: (0, 0, 0, 0), **resident),
            pl.BlockSpec((3, H, 1, D), lambda b, qi: (0, 0, 0, 0), **resident),
            pl.BlockSpec((H, D, E), lambda b, qi: (0, 0, 0), **resident),
            pl.BlockSpec((1, E), lambda b, qi: (0, 0), **resident),
        ]
        return pl.pallas_call(
            _mha_kernel(H, D, TQ, inv_scale),
            out_shape=jax.ShapeDtypeStruct((B, N, E), x.dtype),
            grid=(B, NQ),
            in_specs=in_specs,
            out_specs=pl.BlockSpec((1, TQ, E), lambda b, qi: (b, qi, 0)),
            scratch_shapes=[
                pltpu.VMEM((H, N, D), jnp.float32),   # K, head-major
                pltpu.VMEM((H, N, D), jnp.float32),   # V, head-major
                pltpu.VMEM((TQ, E), jnp.float32),     # output-slab accumulator
            ],
            compiler_params=pltpu.CompilerParams(
                # batch axis "parallel" (megacore sharding on v7x); q-tile
                # axis carries the per-batch K/V scratch -> "arbitrary".
                dimension_semantics=("parallel", "arbitrary"),
                vmem_limit_bytes=vmem_limit,
            ),
        )

    try:
        out = build(True)(x, wqkv_hm, bqkv_hm, wp_hm, bp)
        return jax.block_until_ready(out)
    except Exception:
        # Fallback for JAX builds where pipeline_mode=pl.Buffered(1) is not
        # plumbed through the TPU pallas_call path (double-buffered weights).
        out = build(False)(x, wqkv_hm, bqkv_hm, wp_hm, bp)
        return jax.block_until_ready(out)


def reference_forward(x, w_qkv, b_qkv, w_proj, b_proj, *, num_heads):
    """Pure-JAX reproduction of the PyTorch forward (for validation)."""
    B, N, E = x.shape
    H = num_heads
    D = E // H
    qkv = x @ w_qkv.T + b_qkv                              # (B, N, 3E)
    qkv = qkv.reshape(B, N, H, D, 3)
    qkv = jnp.transpose(qkv, (4, 0, 2, 1, 3))              # (3, B, H, N, D)
    q, k, v = qkv[0], qkv[1], qkv[2]
    energy = jnp.einsum('bhqd,bhkd->bhqk', q, k)
    att = jax.nn.softmax(energy, axis=-1) / (E ** 0.5)
    out = jnp.einsum('bhal,bhlv->bhav', att, v)
    out = jnp.transpose(out, (0, 2, 1, 3)).reshape(B, N, E)
    return out @ w_proj.T + b_proj


if __name__ == "__main__":
    # small shapes consistent with the module: emb divisible by num_heads
    B, N, E, H = 2, 8, 32, 8

    key = jax.random.PRNGKey(0)
    kx, k1, k2, k3, k4 = jax.random.split(key, 5)

    x = jax.random.normal(kx, (B, N, E), dtype=jnp.float32)

    # deterministic parameter init (nn.Linear-style uniform bounds)
    lim = 1.0 / math.sqrt(E)
    w_qkv = jax.random.uniform(k1, (3 * E, E), jnp.float32, -lim, lim)
    b_qkv = jax.random.uniform(k2, (3 * E,), jnp.float32, -lim, lim)
    w_proj = jax.random.uniform(k3, (E, E), jnp.float32, -lim, lim)
    b_proj = jax.random.uniform(k4, (E,), jnp.float32, -lim, lim)

    # weight permutation glue hoisted: done once, not per forward
    params = prepare_params(w_qkv, b_qkv, w_proj, b_proj, num_heads=H)

    out = multi_head_attention(x, params, num_heads=H)
    out = jax.block_until_ready(out)

    ref = reference_forward(x, w_qkv, b_qkv, w_proj, b_proj, num_heads=H)
    assert out.shape == (B, N, E)
    assert jnp.allclose(out, ref, atol=1e-5, rtol=1e-5), "mismatch vs reference"

    print("KERNEL_OK")
</pallas_src>

<mosaic_0001>
module attributes {stable_mosaic.version = 11 : i64} {
  func.func @kernel(%arg0: i32, %arg1: i32, %arg2: memref<1x8x32xf32, #tpu.memory_space<vmem>>, %arg3: memref<3x8x32x4xf32, #tpu.memory_space<vmem>>, %arg4: memref<3x8x1x4xf32, #tpu.memory_space<vmem>>, %arg5: memref<8x4x32xf32, #tpu.memory_space<vmem>>, %arg6: memref<1x32xf32, #tpu.memory_space<vmem>>, %arg7: memref<1x8x32xf32, #tpu.memory_space<vmem>>, %arg8: memref<8x8x4xf32, #tpu.memory_space<vmem>>, %arg9: memref<8x8x4xf32, #tpu.memory_space<vmem>>, %arg10: memref<8x32xf32, #tpu.memory_space<vmem>>) attributes {dimension_semantics = [#tpu.dimension_semantics<parallel>, #tpu.dimension_semantics<arbitrary>], iteration_bounds = array<i64: 2, 1>, scalar_prefetch = 0 : i64, scratch_operands = 3 : i64, tpu.core_type = #tpu.core_type<tc>, window_params = [{transform_indices = @transform_0, window_bounds = array<i64: 1, 8, 32>}, {pipeline_mode = #tpu.pipeline_mode<synchronous>, transform_indices = @transform_1, window_bounds = array<i64: 3, 8, 32, 4>}, {pipeline_mode = #tpu.pipeline_mode<synchronous>, transform_indices = @transform_2, window_bounds = array<i64: 3, 8, 1, 4>}, {pipeline_mode = #tpu.pipeline_mode<synchronous>, transform_indices = @transform_3, window_bounds = array<i64: 8, 4, 32>}, {pipeline_mode = #tpu.pipeline_mode<synchronous>, transform_indices = @transform_4, window_bounds = array<i64: 1, 32>}, {transform_indices = @transform_5, window_bounds = array<i64: 1, 8, 32>}]} {
    %c0_i32 = arith.constant 0 : i32
    %0 = arith.cmpi eq, %arg1, %c0_i32 : i32
    %1 = arith.extui %0 : i1 to i32
    %c0_i32_0 = arith.constant 0 : i32
    %2 = arith.cmpi ne, %1, %c0_i32_0 : i32
    scf.if %2 {
      %c0_228 = arith.constant 0 : index
      %c0_229 = arith.constant 0 : index
      %c0_230 = arith.constant 0 : index
      %265 = vector.load %arg2[%c0_228, %c0_229, %c0_230] : memref<1x8x32xf32, #tpu.memory_space<vmem>>, vector<1x8x32xf32>
      %266 = vector.shape_cast %265 : vector<1x8x32xf32> to vector<8x32xf32>
      %c1_231 = arith.constant 1 : index
      %c0_232 = arith.constant 0 : index
      %c0_233 = arith.constant 0 : index
      %c0_234 = arith.constant 0 : index
      %267 = vector.load %arg3[%c1_231, %c0_232, %c0_233, %c0_234] : memref<3x8x32x4xf32, #tpu.memory_space<vmem>>, vector<1x1x32x4xf32>
      %268 = vector.shape_cast %267 : vector<1x1x32x4xf32> to vector<32x4xf32>
      %cst_235 = arith.constant dense<0.000000e+00> : vector<8x4xf32>
      %269 = tpu.matmul %266, %268, %cst_235 {dimension_numbers = #tpu.dot_dimension_numbers<[1], [0], [0], [1], [0, 0, 1, 1], [], []>} : vector<8x32xf32>, vector<32x4xf32>, vector<8x4xf32> -> vector<8x4xf32>
      %c1_236 = arith.constant 1 : index
      %c0_237 = arith.constant 0 : index
      %c0_238 = arith.constant 0 : index
      %c0_239 = arith.constant 0 : index
      %270 = vector.load %arg4[%c1_236, %c0_237, %c0_238, %c0_239] : memref<3x8x1x4xf32, #tpu.memory_space<vmem>>, vector<1x1x1x4xf32>
      %271 = vector.shape_cast %270 : vector<1x1x1x4xf32> to vector<1x4xf32>
      %272 = vector.broadcast %271 : vector<1x4xf32> to vector<8x4xf32>
      %273 = arith.addf %269, %272 : vector<8x4xf32>
      %c0_240 = arith.constant 0 : index
      %c0_241 = arith.constant 0 : index
      %c0_242 = arith.constant 0 : index
      %274 = vector.load %arg8[%c0_240, %c0_241, %c0_242] : memref<8x8x4xf32, #tpu.memory_space<vmem>>, vector<1x8x4xf32>
      %275 = vector.shape_cast %274 : vector<1x8x4xf32> to vector<8x4xf32>
      %276 = vector.shape_cast %273 : vector<8x4xf32> to vector<1x8x4xf32>
      tpu.vector_store %arg8[%c0_240, %c0_241, %c0_242], %276 {strides = array<i32>} : memref<8x8x4xf32, #tpu.memory_space<vmem>>, vector<1x8x4xf32>,
      %c2_243 = arith.constant 2 : index
      %c0_244 = arith.constant 0 : index
      %c0_245 = arith.constant 0 : index
      %c0_246 = arith.constant 0 : index
      %277 = vector.load %arg3[%c2_243, %c0_244, %c0_245, %c0_246] : memref<3x8x32x4xf32, #tpu.memory_space<vmem>>, vector<1x1x32x4xf32>
      %278 = vector.shape_cast %277 : vector<1x1x32x4xf32> to vector<32x4xf32>
      %cst_247 = arith.constant dense<0.000000e+00> : vector<8x4xf32>
      %279 = tpu.matmul %266, %278, %cst_247 {dimension_numbers = #tpu.dot_dimension_numbers<[1], [0], [0], [1], [0, 0, 1, 1], [], []>} : vector<8x32xf32>, vector<32x4xf32>, vector<8x4xf32> -> vector<8x4xf32>
      %c2_248 = arith.constant 2 : index
      %c0_249 = arith.constant 0 : index
      %c0_250 = arith.constant 0 : index
      %c0_251 = arith.constant 0 : index
      %280 = vector.load %arg4[%c2_248, %c0_249, %c0_250, %c0_251] : memref<3x8x1x4xf32, #tpu.memory_space<vmem>>, vector<1x1x1x4xf32>
      %281 = vector.shape_cast %280 : vector<1x1x1x4xf32> to vector<1x4xf32>
      %282 = vector.broadcast %281 : vector<1x4xf32> to vector<8x4xf32>
      %283 = arith.addf %279, %282 : vector<8x4xf32>
      %c0_252 = arith.constant 0 : index
      %c0_253 = arith.constant 0 : index
      %c0_254 = arith.constant 0 : index
      %284 = vector.load %arg9[%c0_252, %c0_253, %c0_254] : memref<8x8x4xf32, #tpu.memory_space<vmem>>, vector<1x8x4xf32>
      %285 = vector.shape_cast %284 : vector<1x8x4xf32> to vector<8x4xf32>
      %286 = vector.shape_cast %283 : vector<8x4xf32> to vector<1x8x4xf32>
      tpu.vector_store %arg9[%c0_252, %c0_253, %c0_254], %286 {strides = array<i32>} : memref<8x8x4xf32, #tpu.memory_space<vmem>>, vector<1x8x4xf32>,
      %c1_255 = arith.constant 1 : index
      %c1_256 = arith.constant 1 : index
      %c0_257 = arith.constant 0 : index
      %c0_258 = arith.constant 0 : index
      %287 = vector.load %arg3[%c1_255, %c1_256, %c0_257, %c0_258] : memref<3x8x32x4xf32, #tpu.memory_space<vmem>>, vector<1x1x32x4xf32>
      %288 = vector.shape_cast %287 : vector<1x1x32x4xf32> to vector<32x4xf32>
      %cst_259 = arith.constant dense<0.000000e+00> : vector<8x4xf32>
      %289 = tpu.matmul %266, %288, %cst_259 {dimension_numbers = #tpu.dot_dimension_numbers<[1], [0], [0], [1], [0, 0, 1, 1], [], []>} : vector<8x32xf32>, vector<32x4xf32>, vector<8x4xf32> -> vector<8x4xf32>
      %c1_260 = arith.constant 1 : index
      %c1_261 = arith.constant 1 : index
      %c0_262 = arith.constant 0 : index
      %c0_263 = arith.constant 0 : index
      %290 = vector.load %arg4[%c1_260, %c1_261, %c0_262, %c0_263] : memref<3x8x1x4xf32, #tpu.memory_space<vmem>>, vector<1x1x1x4xf32>
      %291 = vector.shape_cast %290 : vector<1x1x1x4xf32> to vector<1x4xf32>
      %292 = vector.broadcast %291 : vector<1x4xf32> to vector<8x4xf32>
      %293 = arith.addf %289, %292 : vector<8x4xf32>
      %c1_264 = arith.constant 1 : index
      %c0_265 = arith.constant 0 : index
      %c0_266 = arith.constant 0 : index
      %294 = vector.load %arg8[%c1_264, %c0_265, %c0_266] : memref<8x8x4xf32, #tpu.memory_space<vmem>>, vector<1x8x4xf32>
      %295 = vector.shape_cast %294 : vector<1x8x4xf32> to vector<8x4xf32>
      %296 = vector.shape_cast %293 : vector<8x4xf32> to vector<1x8x4xf32>
      tpu.vector_store %arg8[%c1_264, %c0_265, %c0_266], %296 {strides = array<i32>} : memref<8x8x4xf32, #tpu.memory_space<vmem>>, vector<1x8x4xf32>,
      %c2_267 = arith.constant 2 : index
      %c1_268 = arith.constant 1 : index
      %c0_269 = arith.constant 0 : index
      %c0_270 = arith.constant 0 : index
      %297 = vector.load %arg3[%c2_267, %c1_268, %c0_269, %c0_270] : memref<3x8x32x4xf32, #tpu.memory_space<vmem>>, vector<1x1x32x4xf32>
      %298 = vector.shape_cast %297 : vector<1x1x32x4xf32> to vector<32x4xf32>
      %cst_271 = arith.constant dense<0.000000e+00> : vector<8x4xf32>
      %299 = tpu.matmul %266, %298, %cst_271 {dimension_numbers = #tpu.dot_dimension_numbers<[1], [0], [0], [1], [0, 0, 1, 1], [], []>} : vector<8x32xf32>, vector<32x4xf32>, vector<8x4xf32> -> vector<8x4xf32>
      %c2_272 = arith.constant 2 : index
      %c1_273 = arith.constant 1 : index
      %c0_274 = arith.constant 0 : index
      %c0_275 = arith.constant 0 : index
      %300 = vector.load %arg4[%c2_272, %c1_273, %c0_274, %c0_275] : memref<3x8x1x4xf32, #tpu.memory_space<vmem>>, vector<1x1x1x4xf32>
      %301 = vector.shape_cast %300 : vector<1x1x1x4xf32> to vector<1x4xf32>
      %302 = vector.broadcast %301 : vector<1x4xf32> to vector<8x4xf32>
      %303 = arith.addf %299, %302 : vector<8x4xf32>
      %c1_276 = arith.constant 1 : index
      %c0_277 = arith.constant 0 : index
      %c0_278 = arith.constant 0 : index
      %304 = vector.load %arg9[%c1_276, %c0_277, %c0_278] : memref<8x8x4xf32, #tpu.memory_space<vmem>>, vector<1x8x4xf32>
      %305 = vector.shape_cast %304 : vector<1x8x4xf32> to vector<8x4xf32>
      %306 = vector.shape_cast %303 : vector<8x4xf32> to vector<1x8x4xf32>
      tpu.vector_store %arg9[%c1_276, %c0_277, %c0_278], %306 {strides = array<i32>} : memref<8x8x4xf32, #tpu.memory_space<vmem>>, vector<1x8x4xf32>,
      %c1_279 = arith.constant 1 : index
      %c2_280 = arith.constant 2 : index
      %c0_281 = arith.constant 0 : index
      %c0_282 = arith.constant 0 : index
      %307 = vector.load %arg3[%c1_279, %c2_280, %c0_281, %c0_282] : memref<3x8x32x4xf32, #tpu.memory_space<vmem>>, vector<1x1x32x4xf32>
      %308 = vector.shape_cast %307 : vector<1x1x32x4xf32> to vector<32x4xf32>
      %cst_283 = arith.constant dense<0.000000e+00> : vector<8x4xf32>
      %309 = tpu.matmul %266, %308, %cst_283 {dimension_numbers = #tpu.dot_dimension_numbers<[1], [0], [0], [1], [0, 0, 1, 1], [], []>} : vector<8x32xf32>, vector<32x4xf32>, vector<8x4xf32> -> vector<8x4xf32>
      %c1_284 = arith.constant 1 : index
      %c2_285 = arith.constant 2 : index
      %c0_286 = arith.constant 0 : index
      %c0_287 = arith.constant 0 : index
      %310 = vector.load %arg4[%c1_284, %c2_285, %c0_286, %c0_287] : memref<3x8x1x4xf32, #tpu.memory_space<vmem>>, vector<1x1x1x4xf32>
      %311 = vector.shape_cast %310 : vector<1x1x1x4xf32> to vector<1x4xf32>
      %312 = vector.broadcast %311 : vector<1x4xf32> to vector<8x4xf32>
      %313 = arith.addf %309, %312 : vector<8x4xf32>
      %c2_288 = arith.constant 2 : index
      %c0_289 = arith.constant 0 : index
      %c0_290 = arith.constant 0 : index
      %314 = vector.load %arg8[%c2_288, %c0_289, %c0_290] : memref<8x8x4xf32, #tpu.memory_space<vmem>>, vector<1x8x4xf32>
      %315 = vector.shape_cast %314 : vector<1x8x4xf32> to vector<8x4xf32>
      %316 = vector.shape_cast %313 : vector<8x4xf32> to vector<1x8x4xf32>
      tpu.vector_store %arg8[%c2_288, %c0_289, %c0_290], %316 {strides = array<i32>} : memref<8x8x4xf32, #tpu.memory_space<vmem>>, vector<1x8x4xf32>,
      %c2_291 = arith.constant 2 : index
      %c2_292 = arith.constant 2 : index
      %c0_293 = arith.constant 0 : index
      %c0_294 = arith.constant 0 : index
      %317 = vector.load %arg3[%c2_291, %c2_292, %c0_293, %c0_294] : memref<3x8x32x4xf32, #tpu.memory_space<vmem>>, vector<1x1x32x4xf32>
      %318 = vector.shape_cast %317 : vector<1x1x32x4xf32> to vector<32x4xf32>
      %cst_295 = arith.constant dense<0.000000e+00> : vector<8x4xf32>
      %319 = tpu.matmul %266, %318, %cst_295 {dimension_numbers = #tpu.dot_dimension_numbers<[1], [0], [0], [1], [0, 0, 1, 1], [], []>} : vector<8x32xf32>, vector<32x4xf32>, vector<8x4xf32> -> vector<8x4xf32>
      %c2_296 = arith.constant 2 : index
      %c2_297 = arith.constant 2 : index
      %c0_298 = arith.constant 0 : index
      %c0_299 = arith.constant 0 : index
      %320 = vector.load %arg4[%c2_296, %c2_297, %c0_298, %c0_299] : memref<3x8x1x4xf32, #tpu.memory_space<vmem>>, vector<1x1x1x4xf32>
      %321 = vector.shape_cast %320 : vector<1x1x1x4xf32> to vector<1x4xf32>
      %322 = vector.broadcast %321 : vector<1x4xf32> to vector<8x4xf32>
      %323 = arith.addf %319, %322 : vector<8x4xf32>
      %c2_300 = arith.constant 2 : index
      %c0_301 = arith.constant 0 : index
      %c0_302 = arith.constant 0 : index
      %324 = vector.load %arg9[%c2_300, %c0_301, %c0_302] : memref<8x8x4xf32, #tpu.memory_space<vmem>>, vector<1x8x4xf32>
      %325 = vector.shape_cast %324 : vector<1x8x4xf32> to vector<8x4xf32>
      %326 = vector.shape_cast %323 : vector<8x4xf32> to vector<1x8x4xf32>
      tpu.vector_store %arg9[%c2_300, %c0_301, %c0_302], %326 {strides = array<i32>} : memref<8x8x4xf32, #tpu.memory_space<vmem>>, vector<1x8x4xf32>,
      %c1_303 = arith.constant 1 : index
      %c3_304 = arith.constant 3 : index
      %c0_305 = arith.constant 0 : index
      %c0_306 = arith.constant 0 : index
      %327 = vector.load %arg3[%c1_303, %c3_304, %c0_305, %c0_306] : memref<3x8x32x4xf32, #tpu.memory_space<vmem>>, vector<1x1x32x4xf32>
      %328 = vector.shape_cast %327 : vector<1x1x32x4xf32> to vector<32x4xf32>
      %cst_307 = arith.constant dense<0.000000e+00> : vector<8x4xf32>
      %329 = tpu.matmul %266, %328, %cst_307 {dimension_numbers = #tpu.dot_dimension_numbers<[1], [0], [0], [1], [0, 0, 1, 1], [], []>} : vector<8x32xf32>, vector<32x4xf32>, vector<8x4xf32> -> vector<8x4xf32>
      %c1_308 = arith.constant 1 : index
      %c3_309 = arith.constant 3 : index
      %c0_310 = arith.constant 0 : index
      %c0_311 = arith.constant 0 : index
      %330 = vector.load %arg4[%c1_308, %c3_309, %c0_310, %c0_311] : memref<3x8x1x4xf32, #tpu.memory_space<vmem>>, vector<1x1x1x4xf32>
      %331 = vector.shape_cast %330 : vector<1x1x1x4xf32> to vector<1x4xf32>
      %332 = vector.broadcast %331 : vector<1x4xf32> to vector<8x4xf32>
      %333 = arith.addf %329, %332 : vector<8x4xf32>
      %c3_312 = arith.constant 3 : index
      %c0_313 = arith.constant 0 : index
      %c0_314 = arith.constant 0 : index
      %334 = vector.load %arg8[%c3_312, %c0_313, %c0_314] : memref<8x8x4xf32, #tpu.memory_space<vmem>>, vector<1x8x4xf32>
      %335 = vector.shape_cast %334 : vector<1x8x4xf32> to vector<8x4xf32>
      %336 = vector.shape_cast %333 : vector<8x4xf32> to vector<1x8x4xf32>
      tpu.vector_store %arg8[%c3_312, %c0_313, %c0_314], %336 {strides = array<i32>} : memref<8x8x4xf32, #tpu.memory_space<vmem>>, vector<1x8x4xf32>,
      %c2_315 = arith.constant 2 : index
      %c3_316 = arith.constant 3 : index
      %c0_317 = arith.constant 0 : index
      %c0_318 = arith.constant 0 : index
      %337 = vector.load %arg3[%c2_315, %c3_316, %c0_317, %c0_318] : memref<3x8x32x4xf32, #tpu.memory_space<vmem>>, vector<1x1x32x4xf32>
      %338 = vector.shape_cast %337 : vector<1x1x32x4xf32> to vector<32x4xf32>
      %cst_319 = arith.constant dense<0.000000e+00> : vector<8x4xf32>
      %339 = tpu.matmul %266, %338, %cst_319 {dimension_numbers = #tpu.dot_dimension_numbers<[1], [0], [0], [1], [0, 0, 1, 1], [], []>} : vector<8x32xf32>, vector<32x4xf32>, vector<8x4xf32> -> vector<8x4xf32>
      %c2_320 = arith.constant 2 : index
      %c3_321 = arith.constant 3 : index
      %c0_322 = arith.constant 0 : index
      %c0_323 = arith.constant 0 : index
      %340 = vector.load %arg4[%c2_320, %c3_321, %c0_322, %c0_323] : memref<3x8x1x4xf32, #tpu.memory_space<vmem>>, vector<1x1x1x4xf32>
      %341 = vector.shape_cast %340 : vector<1x1x1x4xf32> to vector<1x4xf32>
      %342 = vector.broadcast %341 : vector<1x4xf32> to vector<8x4xf32>
      %343 = arith.addf %339, %342 : vector<8x4xf32>
      %c3_324 = arith.constant 3 : index
      %c0_325 = arith.constant 0 : index
      %c0_326 = arith.constant 0 : index
      %344 = vector.load %arg9[%c3_324, %c0_325, %c0_326] : memref<8x8x4xf32, #tpu.memory_space<vmem>>, vector<1x8x4xf32>
      %345 = vector.shape_cast %344 : vector<1x8x4xf32> to vector<8x4xf32>
      %346 = vector.shape_cast %343 : vector<8x4xf32> to vector<1x8x4xf32>
      tpu.vector_store %arg9[%c3_324, %c0_325, %c0_326], %346 {strides = array<i32>} : memref<8x8x4xf32, #tpu.memory_space<vmem>>, vector<1x8x4xf32>,
      %c1_327 = arith.constant 1 : index
      %c4_328 = arith.constant 4 : index
      %c0_329 = arith.constant 0 : index
      %c0_330 = arith.constant 0 : index
      %347 = vector.load %arg3[%c1_327, %c4_328, %c0_329, %c0_330] : memref<3x8x32x4xf32, #tpu.memory_space<vmem>>, vector<1x1x32x4xf32>
      %348 = vector.shape_cast %347 : vector<1x1x32x4xf32> to vector<32x4xf32>
      %cst_331 = arith.constant dense<0.000000e+00> : vector<8x4xf32>
      %349 = tpu.matmul %266, %348, %cst_331 {dimension_numbers = #tpu.dot_dimension_numbers<[1], [0], [0], [1], [0, 0, 1, 1], [], []>} : vector<8x32xf32>, vector<32x4xf32>, vector<8x4xf32> -> vector<8x4xf32>
      %c1_332 = arith.constant 1 : index
      %c4_333 = arith.constant 4 : index
      %c0_334 = arith.constant 0 : index
      %c0_335 = arith.constant 0 : index
      %350 = vector.load %arg4[%c1_332, %c4_333, %c0_334, %c0_335] : memref<3x8x1x4xf32, #tpu.memory_space<vmem>>, vector<1x1x1x4xf32>
      %351 = vector.shape_cast %350 : vector<1x1x1x4xf32> to vector<1x4xf32>
      %352 = vector.broadcast %351 : vector<1x4xf32> to vector<8x4xf32>
      %353 = arith.addf %349, %352 : vector<8x4xf32>
      %c4_336 = arith.constant 4 : index
      %c0_337 = arith.constant 0 : index
      %c0_338 = arith.constant 0 : index
      %354 = vector.load %arg8[%c4_336, %c0_337, %c0_338] : memref<8x8x4xf32, #tpu.memory_space<vmem>>, vector<1x8x4xf32>
      %355 = vector.shape_cast %354 : vector<1x8x4xf32> to vector<8x4xf32>
      %356 = vector.shape_cast %353 : vector<8x4xf32> to vector<1x8x4xf32>
      tpu.vector_store %arg8[%c4_336, %c0_337, %c0_338], %356 {strides = array<i32>} : memref<8x8x4xf32, #tpu.memory_space<vmem>>, vector<1x8x4xf32>,
      %c2_339 = arith.constant 2 : index
      %c4_340 = arith.constant 4 : index
      %c0_341 = arith.constant 0 : index
      %c0_342 = arith.constant 0 : index
      %357 = vector.load %arg3[%c2_339, %c4_340, %c0_341, %c0_342] : memref<3x8x32x4xf32, #tpu.memory_space<vmem>>, vector<1x1x32x4xf32>
      %358 = vector.shape_cast %357 : vector<1x1x32x4xf32> to vector<32x4xf32>
      %cst_343 = arith.constant dense<0.000000e+00> : vector<8x4xf32>
      %359 = tpu.matmul %266, %358, %cst_343 {dimension_numbers = #tpu.dot_dimension_numbers<[1], [0], [0], [1], [0, 0, 1, 1], [], []>} : vector<8x32xf32>, vector<32x4xf32>, vector<8x4xf32> -> vector<8x4xf32>
      %c2_344 = arith.constant 2 : index
      %c4_345 = arith.constant 4 : index
      %c0_346 = arith.constant 0 : index
      %c0_347 = arith.constant 0 : index
      %360 = vector.load %arg4[%c2_344, %c4_345, %c0_346, %c0_347] : memref<3x8x1x4xf32, #tpu.memory_space<vmem>>, vector<1x1x1x4xf32>
      %361 = vector.shape_cast %360 : vector<1x1x1x4xf32> to vector<1x4xf32>
      %362 = vector.broadcast %361 : vector<1x4xf32> to vector<8x4xf32>
      %363 = arith.addf %359, %362 : vector<8x4xf32>
      %c4_348 = arith.constant 4 : index
      %c0_349 = arith.constant 0 : index
      %c0_350 = arith.constant 0 : index
      %364 = vector.load %arg9[%c4_348, %c0_349, %c0_350] : memref<8x8x4xf32, #tpu.memory_space<vmem>>, vector<1x8x4xf32>
      %365 = vector.shape_cast %364 : vector<1x8x4xf32> to vector<8x4xf32>
      %366 = vector.shape_cast %363 : vector<8x4xf32> to vector<1x8x4xf32>
      tpu.vector_store %arg9[%c4_348, %c0_349, %c0_350], %366 {strides = array<i32>} : memref<8x8x4xf32, #tpu.memory_space<vmem>>, vector<1x8x4xf32>,
      %c1_351 = arith.constant 1 : index
      %c5_352 = arith.constant 5 : index
      %c0_353 = arith.constant 0 : index
      %c0_354 = arith.constant 0 : index
      %367 = vector.load %arg3[%c1_351, %c5_352, %c0_353, %c0_354] : memref<3x8x32x4xf32, #tpu.memory_space<vmem>>, vector<1x1x32x4xf32>
      %368 = vector.shape_cast %367 : vector<1x1x32x4xf32> to vector<32x4xf32>
      %cst_355 = arith.constant dense<0.000000e+00> : vector<8x4xf32>
      %369 = tpu.matmul %266, %368, %cst_355 {dimension_numbers = #tpu.dot_dimension_numbers<[1], [0], [0], [1], [0, 0, 1, 1], [], []>} : vector<8x32xf32>, vector<32x4xf32>, vector<8x4xf32> -> vector<8x4xf32>
      %c1_356 = arith.constant 1 : index
      %c5_357 = arith.constant 5 : index
      %c0_358 = arith.constant 0 : index
      %c0_359 = arith.constant 0 : index
      %370 = vector.load %arg4[%c1_356, %c5_357, %c0_358, %c0_359] : memref<3x8x1x4xf32, #tpu.memory_space<vmem>>, vector<1x1x1x4xf32>
      %371 = vector.shape_cast %370 : vector<1x1x1x4xf32> to vector<1x4xf32>
      %372 = vector.broadcast %371 : vector<1x4xf32> to vector<8x4xf32>
      %373 = arith.addf %369, %372 : vector<8x4xf32>
      %c5_360 = arith.constant 5 : index
      %c0_361 = arith.constant 0 : index
      %c0_362 = arith.constant 0 : index
      %374 = vector.load %arg8[%c5_360, %c0_361, %c0_362] : memref<8x8x4xf32, #tpu.memory_space<vmem>>, vector<1x8x4xf32>
      %375 = vector.shape_cast %374 : vector<1x8x4xf32> to vector<8x4xf32>
      %376 = vector.shape_cast %373 : vector<8x4xf32> to vector<1x8x4xf32>
      tpu.vector_store %arg8[%c5_360, %c0_361, %c0_362], %376 {strides = array<i32>} : memref<8x8x4xf32, #tpu.memory_space<vmem>>, vector<1x8x4xf32>,
      %c2_363 = arith.constant 2 : index
      %c5_364 = arith.constant 5 : index
      %c0_365 = arith.constant 0 : index
      %c0_366 = arith.constant 0 : index
      %377 = vector.load %arg3[%c2_363, %c5_364, %c0_365, %c0_366] : memref<3x8x32x4xf32, #tpu.memory_space<vmem>>, vector<1x1x32x4xf32>
      %378 = vector.shape_cast %377 : vector<1x1x32x4xf32> to vector<32x4xf32>
      %cst_367 = arith.constant dense<0.000000e+00> : vector<8x4xf32>
      %379 = tpu.matmul %266, %378, %cst_367 {dimension_numbers = #tpu.dot_dimension_numbers<[1], [0], [0], [1], [0, 0, 1, 1], [], []>} : vector<8x32xf32>, vector<32x4xf32>, vector<8x4xf32> -> vector<8x4xf32>
      %c2_368 = arith.constant 2 : index
      %c5_369 = arith.constant 5 : index
      %c0_370 = arith.constant 0 : index
      %c0_371 = arith.constant 0 : index
      %380 = vector.load %arg4[%c2_368, %c5_369, %c0_370, %c0_371] : memref<3x8x1x4xf32, #tpu.memory_space<vmem>>, vector<1x1x1x4xf32>
      %381 = vector.shape_cast %380 : vector<1x1x1x4xf32> to vector<1x4xf32>
      %382 = vector.broadcast %381 : vector<1x4xf32> to vector<8x4xf32>
      %383 = arith.addf %379, %382 : vector<8x4xf32>
      %c5_372 = arith.constant 5 : index
      %c0_373 = arith.constant 0 : index
      %c0_374 = arith.constant 0 : index
      %384 = vector.load %arg9[%c5_372, %c0_373, %c0_374] : memref<8x8x4xf32, #tpu.memory_space<vmem>>, vector<1x8x4xf32>
      %385 = vector.shape_cast %384 : vector<1x8x4xf32> to vector<8x4xf32>
      %386 = vector.shape_cast %383 : vector<8x4xf32> to vector<1x8x4xf32>
      tpu.vector_store %arg9[%c5_372, %c0_373, %c0_374], %386 {strides = array<i32>} : memref<8x8x4xf32, #tpu.memory_space<vmem>>, vector<1x8x4xf32>,
      %c1_375 = arith.constant 1 : index
      %c6_376 = arith.constant 6 : index
      %c0_377 = arith.constant 0 : index
      %c0_378 = arith.constant 0 : index
      %387 = vector.load %arg3[%c1_375, %c6_376, %c0_377, %c0_378] : memref<3x8x32x4xf32, #tpu.memory_space<vmem>>, vector<1x1x32x4xf32>
      %388 = vector.shape_cast %387 : vector<1x1x32x4xf32> to vector<32x4xf32>
      %cst_379 = arith.constant dense<0.000000e+00> : vector<8x4xf32>
      %389 = tpu.matmul %266, %388, %cst_379 {dimension_numbers = #tpu.dot_dimension_numbers<[1], [0], [0], [1], [0, 0, 1, 1], [], []>} : vector<8x32xf32>, vector<32x4xf32>, vector<8x4xf32> -> vector<8x4xf32>
      %c1_380 = arith.constant 1 : index
      %c6_381 = arith.constant 6 : index
      %c0_382 = arith.constant 0 : index
      %c0_383 = arith.constant 0 : index
      %390 = vector.load %arg4[%c1_380, %c6_381, %c0_382, %c0_383] : memref<3x8x1x4xf32, #tpu.memory_space<vmem>>, vector<1x1x1x4xf32>
      %391 = vector.shape_cast %390 : vector<1x1x1x4xf32> to vector<1x4xf32>
      %392 = vector.broadcast %391 : vector<1x4xf32> to vector<8x4xf32>
      %393 = arith.addf %389, %392 : vector<8x4xf32>
      %c6_384 = arith.constant 6 : index
      %c0_385 = arith.constant 0 : index
      %c0_386 = arith.constant 0 : index
      %394 = vector.load %arg8[%c6_384, %c0_385, %c0_386] : memref<8x8x4xf32, #tpu.memory_space<vmem>>, vector<1x8x4xf32>
      %395 = vector.shape_cast %394 : vector<1x8x4xf32> to vector<8x4xf32>
      %396 = vector.shape_cast %393 : vector<8x4xf32> to vector<1x8x4xf32>
      tpu.vector_store %arg8[%c6_384, %c0_385, %c0_386], %396 {strides = array<i32>} : memref<8x8x4xf32, #tpu.memory_space<vmem>>, vector<1x8x4xf32>,
      %c2_387 = arith.constant 2 : index
      %c6_388 = arith.constant 6 : index
      %c0_389 = arith.constant 0 : index
      %c0_390 = arith.constant 0 : index
      %397 = vector.load %arg3[%c2_387, %c6_388, %c0_389, %c0_390] : memref<3x8x32x4xf32, #tpu.memory_space<vmem>>, vector<1x1x32x4xf32>
      %398 = vector.shape_cast %397 : vector<1x1x32x4xf32> to vector<32x4xf32>
      %cst_391 = arith.constant dense<0.000000e+00> : vector<8x4xf32>
      %399 = tpu.matmul %266, %398, %cst_391 {dimension_numbers = #tpu.dot_dimension_numbers<[1], [0], [0], [1], [0, 0, 1, 1], [], []>} : vector<8x32xf32>, vector<32x4xf32>, vector<8x4xf32> -> vector<8x4xf32>
      %c2_392 = arith.constant 2 : index
      %c6_393 = arith.constant 6 : index
      %c0_394 = arith.constant 0 : index
      %c0_395 = arith.constant 0 : index
      %400 = vector.load %arg4[%c2_392, %c6_393, %c0_394, %c0_395] : memref<3x8x1x4xf32, #tpu.memory_space<vmem>>, vector<1x1x1x4xf32>
      %401 = vector.shape_cast %400 : vector<1x1x1x4xf32> to vector<1x4xf32>
      %402 = vector.broadcast %401 : vector<1x4xf32> to vector<8x4xf32>
      %403 = arith.addf %399, %402 : vector<8x4xf32>
      %c6_396 = arith.constant 6 : index
      %c0_397 = arith.constant 0 : index
      %c0_398 = arith.constant 0 : index
      %404 = vector.load %arg9[%c6_396, %c0_397, %c0_398] : memref<8x8x4xf32, #tpu.memory_space<vmem>>, vector<1x8x4xf32>
      %405 = vector.shape_cast %404 : vector<1x8x4xf32> to vector<8x4xf32>
      %406 = vector.shape_cast %403 : vector<8x4xf32> to vector<1x8x4xf32>
      tpu.vector_store %arg9[%c6_396, %c0_397, %c0_398], %406 {strides = array<i32>} : memref<8x8x4xf32, #tpu.memory_space<vmem>>, vector<1x8x4xf32>,
      %c1_399 = arith.constant 1 : index
      %c7_400 = arith.constant 7 : index
      %c0_401 = arith.constant 0 : index
      %c0_402 = arith.constant 0 : index
      %407 = vector.load %arg3[%c1_399, %c7_400, %c0_401, %c0_402] : memref<3x8x32x4xf32, #tpu.memory_space<vmem>>, vector<1x1x32x4xf32>
      %408 = vector.shape_cast %407 : vector<1x1x32x4xf32> to vector<32x4xf32>
      %cst_403 = arith.constant dense<0.000000e+00> : vector<8x4xf32>
      %409 = tpu.matmul %266, %408, %cst_403 {dimension_numbers = #tpu.dot_dimension_numbers<[1], [0], [0], [1], [0, 0, 1, 1], [], []>} : vector<8x32xf32>, vector<32x4xf32>, vector<8x4xf32> -> vector<8x4xf32>
      %c1_404 = arith.constant 1 : index
      %c7_405 = arith.constant 7 : index
      %c0_406 = arith.constant 0 : index
      %c0_407 = arith.constant 0 : index
      %410 = vector.load %arg4[%c1_404, %c7_405, %c0_406, %c0_407] : memref<3x8x1x4xf32, #tpu.memory_space<vmem>>, vector<1x1x1x4xf32>
      %411 = vector.shape_cast %410 : vector<1x1x1x4xf32> to vector<1x4xf32>
      %412 = vector.broadcast %411 : vector<1x4xf32> to vector<8x4xf32>
      %413 = arith.addf %409, %412 : vector<8x4xf32>
      %c7_408 = arith.constant 7 : index
      %c0_409 = arith.constant 0 : index
      %c0_410 = arith.constant 0 : index
      %414 = vector.load %arg8[%c7_408, %c0_409, %c0_410] : memref<8x8x4xf32, #tpu.memory_space<vmem>>, vector<1x8x4xf32>
      %415 = vector.shape_cast %414 : vector<1x8x4xf32> to vector<8x4xf32>
      %416 = vector.shape_cast %413 : vector<8x4xf32> to vector<1x8x4xf32>
      tpu.vector_store %arg8[%c7_408, %c0_409, %c0_410], %416 {strides = array<i32>} : memref<8x8x4xf32, #tpu.memory_space<vmem>>, vector<1x8x4xf32>,
      %c2_411 = arith.constant 2 : index
      %c7_412 = arith.constant 7 : index
      %c0_413 = arith.constant 0 : index
      %c0_414 = arith.constant 0 : index
      %417 = vector.load %arg3[%c2_411, %c7_412, %c0_413, %c0_414] : memref<3x8x32x4xf32, #tpu.memory_space<vmem>>, vector<1x1x32x4xf32>
      %418 = vector.shape_cast %417 : vector<1x1x32x4xf32> to vector<32x4xf32>
      %cst_415 = arith.constant dense<0.000000e+00> : vector<8x4xf32>
      %419 = tpu.matmul %266, %418, %cst_415 {dimension_numbers = #tpu.dot_dimension_numbers<[1], [0], [0], [1], [0, 0, 1, 1], [], []>} : vector<8x32xf32>, vector<32x4xf32>, vector<8x4xf32> -> vector<8x4xf32>
      %c2_416 = arith.constant 2 : index
      %c7_417 = arith.constant 7 : index
      %c0_418 = arith.constant 0 : index
      %c0_419 = arith.constant 0 : index
      %420 = vector.load %arg4[%c2_416, %c7_417, %c0_418, %c0_419] : memref<3x8x1x4xf32, #tpu.memory_space<vmem>>, vector<1x1x1x4xf32>
      %421 = vector.shape_cast %420 : vector<1x1x1x4xf32> to vector<1x4xf32>
      %422 = vector.broadcast %421 : vector<1x4xf32> to vector<8x4xf32>
      %423 = arith.addf %419, %422 : vector<8x4xf32>
      %c7_420 = arith.constant 7 : index
      %c0_421 = arith.constant 0 : index
      %c0_422 = arith.constant 0 : index
      %424 = vector.load %arg9[%c7_420, %c0_421, %c0_422] : memref<8x8x4xf32, #tpu.memory_space<vmem>>, vector<1x8x4xf32>
      %425 = vector.shape_cast %424 : vector<1x8x4xf32> to vector<8x4xf32>
      %426 = vector.shape_cast %423 : vector<8x4xf32> to vector<1x8x4xf32>
      tpu.vector_store %arg9[%c7_420, %c0_421, %c0_422], %426 {strides = array<i32>} : memref<8x8x4xf32, #tpu.memory_space<vmem>>, vector<1x8x4xf32>,
    } else {
    }
    %c8_i32 = arith.constant 8 : i32
    %3 = arith.muli %arg1, %c8_i32 : i32
    %4 = tpu.assume_multiple %3, 8 : i32
    %c0 = arith.constant 0 : index
    %5 = arith.index_cast %4 : i32 to index
    %c0_1 = arith.constant 0 : index
    %6 = vector.load %arg2[%c0, %5, %c0_1] : memref<1x8x32xf32, #tpu.memory_space<vmem>>, vector<1x8x32xf32>
    %7 = vector.shape_cast %6 : vector<1x8x32xf32> to vector<8x32xf32>
    %cst = arith.constant 0.000000e+00 : f32
    %8 = vector.broadcast %cst : f32 to vector<8x32xf32>
    %c0_2 = arith.constant 0 : index
    %c0_3 = arith.constant 0 : index
    %9 = vector.load %arg10[%c0_2, %c0_3] : memref<8x32xf32, #tpu.memory_space<vmem>>, vector<8x32xf32>
    tpu.vector_store %arg10[%c0_2, %c0_3], %8 {strides = array<i32>} : memref<8x32xf32, #tpu.memory_space<vmem>>, vector<8x32xf32>,
    %c0_4 = arith.constant 0 : index
    %c0_5 = arith.constant 0 : index
    %c0_6 = arith.constant 0 : index
    %c0_7 = arith.constant 0 : index
    %10 = vector.load %arg3[%c0_4, %c0_5, %c0_6, %c0_7] : memref<3x8x32x4xf32, #tpu.memory_space<vmem>>, vector<1x1x32x4xf32>
    %11 = vector.shape_cast %10 : vector<1x1x32x4xf32> to vector<32x4xf32>
    %cst_8 = arith.constant dense<0.000000e+00> : vector<8x4xf32>
    %12 = tpu.matmul %7, %11, %cst_8 {dimension_numbers = #tpu.dot_dimension_numbers<[1], [0], [0], [1], [0, 0, 1, 1], [], []>} : vector<8x32xf32>, vector<32x4xf32>, vector<8x4xf32> -> vector<8x4xf32>
    %c0_9 = arith.constant 0 : index
    %c0_10 = arith.constant 0 : index
    %c0_11 = arith.constant 0 : index
    %c0_12 = arith.constant 0 : index
    %13 = vector.load %arg4[%c0_9, %c0_10, %c0_11, %c0_12] : memref<3x8x1x4xf32, #tpu.memory_space<vmem>>, vector<1x1x1x4xf32>
    %14 = vector.shape_cast %13 : vector<1x1x1x4xf32> to vector<1x4xf32>
    %15 = vector.broadcast %14 : vector<1x4xf32> to vector<8x4xf32>
    %16 = arith.addf %12, %15 : vector<8x4xf32>
    %c0_13 = arith.constant 0 : index
    %c0_14 = arith.constant 0 : index
    %c0_15 = arith.constant 0 : index
    %17 = vector.load %arg8[%c0_13, %c0_14, %c0_15] : memref<8x8x4xf32, #tpu.memory_space<vmem>>, vector<1x8x4xf32>
    %18 = vector.shape_cast %17 : vector<1x8x4xf32> to vector<8x4xf32>
    %c0_16 = arith.constant 0 : index
    %c0_17 = arith.constant 0 : index
    %c0_18 = arith.constant 0 : index
    %19 = vector.load %arg9[%c0_16, %c0_17, %c0_18] : memref<8x8x4xf32, #tpu.memory_space<vmem>>, vector<1x8x4xf32>
    %20 = vector.shape_cast %19 : vector<1x8x4xf32> to vector<8x4xf32>
    %cst_19 = arith.constant dense<0.000000e+00> : vector<8x8xf32>
    %21 = tpu.matmul %16, %18, %cst_19 {dimension_numbers = #tpu.dot_dimension_numbers<[1], [1], [0], [0], [0, 0, 1, 0], [], []>} : vector<8x4xf32>, vector<8x4xf32>, vector<8x8xf32> -> vector<8x8xf32>
    %cst_20 = arith.constant dense<0xFF800000> : vector<8xf32>
    %22 = vector.multi_reduction <maximumf>, %21, %cst_20 [1] : vector<8x8xf32> to vector<8xf32>
    %23 = vector.shape_cast %22 : vector<8xf32> to vector<8x1xf32>
    %24 = vector.broadcast %23 : vector<8x1xf32> to vector<8x8xf32>
    %25 = arith.subf %21, %24 : vector<8x8xf32>
    %26 = math.exp %25 : vector<8x8xf32>
    %cst_21 = arith.constant dense<0.000000e+00> : vector<8xf32>
    %27 = vector.multi_reduction <add>, %26, %cst_21 [1] : vector<8x8xf32> to vector<8xf32>
    %28 = vector.shape_cast %27 : vector<8xf32> to vector<8x1xf32>
    %29 = tpu.reciprocal %28 : vector<8x1xf32> -> vector<8x1xf32>
    %cst_22 = arith.constant 0.176776692 : f32
    %30 = vector.broadcast %cst_22 : f32 to vector<8x1xf32>
    %31 = arith.mulf %30, %29 : vector<8x1xf32>
    %32 = vector.broadcast %31 : vector<8x1xf32> to vector<8x8xf32>
    %33 = arith.mulf %26, %32 : vector<8x8xf32>
    %cst_23 = arith.constant dense<0.000000e+00> : vector<8x4xf32>
    %34 = tpu.matmul %33, %20, %cst_23 {dimension_numbers = #tpu.dot_dimension_numbers<[1], [0], [0], [1], [0, 0, 1, 1], [], []>} : vector<8x8xf32>, vector<8x4xf32>, vector<8x4xf32> -> vector<8x4xf32>
    %c0_24 = arith.constant 0 : index
    %c0_25 = arith.constant 0 : index
    %35 = vector.load %arg10[%c0_24, %c0_25] : memref<8x32xf32, #tpu.memory_space<vmem>>, vector<8x32xf32>
    %c0_26 = arith.constant 0 : index
    %c0_27 = arith.constant 0 : index
    %c0_28 = arith.constant 0 : index
    %36 = vector.load %arg5[%c0_26, %c0_27, %c0_28] : memref<8x4x32xf32, #tpu.memory_space<vmem>>, vector<1x4x32xf32>
    %37 = vector.shape_cast %36 : vector<1x4x32xf32> to vector<4x32xf32>
    %cst_29 = arith.constant dense<0.000000e+00> : vector<8x32xf32>
    %38 = tpu.matmul %34, %37, %cst_29 {dimension_numbers = #tpu.dot_dimension_numbers<[1], [0], [0], [1], [0, 0, 1, 1], [], []>} : vector<8x4xf32>, vector<4x32xf32>, vector<8x32xf32> -> vector<8x32xf32>
    %39 = arith.addf %35, %38 : vector<8x32xf32>
    %c0_30 = arith.constant 0 : index
    %c0_31 = arith.constant 0 : index
    %40 = vector.load %arg10[%c0_30, %c0_31] : memref<8x32xf32, #tpu.memory_space<vmem>>, vector<8x32xf32>
    tpu.vector_store %arg10[%c0_30, %c0_31], %39 {strides = array<i32>} : memref<8x32xf32, #tpu.memory_space<vmem>>, vector<8x32xf32>,
    %c0_32 = arith.constant 0 : index
    %c1 = arith.constant 1 : index
    %c0_33 = arith.constant 0 : index
    %c0_34 = arith.constant 0 : index
    %41 = vector.load %arg3[%c0_32, %c1, %c0_33, %c0_34] : memref<3x8x32x4xf32, #tpu.memory_space<vmem>>, vector<1x1x32x4xf32>
    %42 = vector.shape_cast %41 : vector<1x1x32x4xf32> to vector<32x4xf32>
    %cst_35 = arith.constant dense<0.000000e+00> : vector<8x4xf32>
    %43 = tpu.matmul %7, %42, %cst_35 {dimension_numbers = #tpu.dot_dimension_numbers<[1], [0], [0], [1], [0, 0, 1, 1], [], []>} : vector<8x32xf32>, vector<32x4xf32>, vector<8x4xf32> -> vector<8x4xf32>
    %c0_36 = arith.constant 0 : index
    %c1_37 = arith.constant 1 : index
    %c0_38 = arith.constant 0 : index
    %c0_39 = arith.constant 0 : index
    %44 = vector.load %arg4[%c0_36, %c1_37, %c0_38, %c0_39] : memref<3x8x1x4xf32, #tpu.memory_space<vmem>>, vector<1x1x1x4xf32>
    %45 = vector.shape_cast %44 : vector<1x1x1x4xf32> to vector<1x4xf32>
    %46 = vector.broadcast %45 : vector<1x4xf32> to vector<8x4xf32>
    %47 = arith.addf %43, %46 : vector<8x4xf32>
    %c1_40 = arith.constant 1 : index
    %c0_41 = arith.constant 0 : index
    %c0_42 = arith.constant 0 : index
    %48 = vector.load %arg8[%c1_40, %c0_41, %c0_42] : memref<8x8x4xf32, #tpu.memory_space<vmem>>, vector<1x8x4xf32>
    %49 = vector.shape_cast %48 : vector<1x8x4xf32> to vector<8x4xf32>
    %c1_43 = arith.constant 1 : index
    %c0_44 = arith.constant 0 : index
    %c0_45 = arith.constant 0 : index
    %50 = vector.load %arg9[%c1_43, %c0_44, %c0_45] : memref<8x8x4xf32, #tpu.memory_space<vmem>>, vector<1x8x4xf32>
    %51 = vector.shape_cast %50 : vector<1x8x4xf32> to vector<8x4xf32>
    %cst_46 = arith.constant dense<0.000000e+00> : vector<8x8xf32>
    %52 = tpu.matmul %47, %49, %cst_46 {dimension_numbers = #tpu.dot_dimension_numbers<[1], [1], [0], [0], [0, 0, 1, 0], [], []>} : vector<8x4xf32>, vector<8x4xf32>, vector<8x8xf32> -> vector<8x8xf32>
    %cst_47 = arith.constant dense<0xFF800000> : vector<8xf32>
    %53 = vector.multi_reduction <maximumf>, %52, %cst_47 [1] : vector<8x8xf32> to vector<8xf32>
    %54 = vector.shape_cast %53 : vector<8xf32> to vector<8x1xf32>
    %55 = vector.broadcast %54 : vector<8x1xf32> to vector<8x8xf32>
    %56 = arith.subf %52, %55 : vector<8x8xf32>
    %57 = math.exp %56 : vector<8x8xf32>
    %cst_48 = arith.constant dense<0.000000e+00> : vector<8xf32>
    %58 = vector.multi_reduction <add>, %57, %cst_48 [1] : vector<8x8xf32> to vector<8xf32>
    %59 = vector.shape_cast %58 : vector<8xf32> to vector<8x1xf32>
    %60 = tpu.reciprocal %59 : vector<8x1xf32> -> vector<8x1xf32>
    %cst_49 = arith.constant 0.176776692 : f32
    %61 = vector.broadcast %cst_49 : f32 to vector<8x1xf32>
    %62 = arith.mulf %61, %60 : vector<8x1xf32>
    %63 = vector.broadcast %62 : vector<8x1xf32> to vector<8x8xf32>
    %64 = arith.mulf %57, %63 : vector<8x8xf32>
    %cst_50 = arith.constant dense<0.000000e+00> : vector<8x4xf32>
    %65 = tpu.matmul %64, %51, %cst_50 {dimension_numbers = #tpu.dot_dimension_numbers<[1], [0], [0], [1], [0, 0, 1, 1], [], []>} : vector<8x8xf32>, vector<8x4xf32>, vector<8x4xf32> -> vector<8x4xf32>
    %c0_51 = arith.constant 0 : index
    %c0_52 = arith.constant 0 : index
    %66 = vector.load %arg10[%c0_51, %c0_52] : memref<8x32xf32, #tpu.memory_space<vmem>>, vector<8x32xf32>
    %c1_53 = arith.constant 1 : index
    %c0_54 = arith.constant 0 : index
    %c0_55 = arith.constant 0 : index
    %67 = vector.load %arg5[%c1_53, %c0_54, %c0_55] : memref<8x4x32xf32, #tpu.memory_space<vmem>>, vector<1x4x32xf32>
    %68 = vector.shape_cast %67 : vector<1x4x32xf32> to vector<4x32xf32>
    %cst_56 = arith.constant dense<0.000000e+00> : vector<8x32xf32>
    %69 = tpu.matmul %65, %68, %cst_56 {dimension_numbers = #tpu.dot_dimension_numbers<[1], [0], [0], [1], [0, 0, 1, 1], [], []>} : vector<8x4xf32>, vector<4x32xf32>, vector<8x32xf32> -> vector<8x32xf32>
    %70 = arith.addf %66, %69 : vector<8x32xf32>
    %c0_57 = arith.constant 0 : index
    %c0_58 = arith.constant 0 : index
    %71 = vector.load %arg10[%c0_57, %c0_58] : memref<8x32xf32, #tpu.memory_space<vmem>>, vector<8x32xf32>
    tpu.vector_store %arg10[%c0_57, %c0_58], %70 {strides = array<i32>} : memref<8x32xf32, #tpu.memory_space<vmem>>, vector<8x32xf32>,
    %c0_59 = arith.constant 0 : index
    %c2 = arith.constant 2 : index
    %c0_60 = arith.constant 0 : index
    %c0_61 = arith.constant 0 : index
    %72 = vector.load %arg3[%c0_59, %c2, %c0_60, %c0_61] : memref<3x8x32x4xf32, #tpu.memory_space<vmem>>, vector<1x1x32x4xf32>
    %73 = vector.shape_cast %72 : vector<1x1x32x4xf32> to vector<32x4xf32>
    %cst_62 = arith.constant dense<0.000000e+00> : vector<8x4xf32>
    %74 = tpu.matmul %7, %73, %cst_62 {dimension_numbers = #tpu.dot_dimension_numbers<[1], [0], [0], [1], [0, 0, 1, 1], [], []>} : vector<8x32xf32>, vector<32x4xf32>, vector<8x4xf32> -> vector<8x4xf32>
    %c0_63 = arith.constant 0 : index
    %c2_64 = arith.constant 2 : index
    %c0_65 = arith.constant 0 : index
    %c0_66 = arith.constant 0 : index
    %75 = vector.load %arg4[%c0_63, %c2_64, %c0_65, %c0_66] : memref<3x8x1x4xf32, #tpu.memory_space<vmem>>, vector<1x1x1x4xf32>
    %76 = vector.shape_cast %75 : vector<1x1x1x4xf32> to vector<1x4xf32>
    %77 = vector.broadcast %76 : vector<1x4xf32> to vector<8x4xf32>
    %78 = arith.addf %74, %77 : vector<8x4xf32>
    %c2_67 = arith.constant 2 : index
    %c0_68 = arith.constant 0 : index
    %c0_69 = arith.constant 0 : index
    %79 = vector.load %arg8[%c2_67, %c0_68, %c0_69] : memref<8x8x4xf32, #tpu.memory_space<vmem>>, vector<1x8x4xf32>
    %80 = vector.shape_cast %79 : vector<1x8x4xf32> to vector<8x4xf32>
    %c2_70 = arith.constant 2 : index
    %c0_71 = arith.constant 0 : index
    %c0_72 = arith.constant 0 : index
    %81 = vector.load %arg9[%c2_70, %c0_71, %c0_72] : memref<8x8x4xf32, #tpu.memory_space<vmem>>, vector<1x8x4xf32>
    %82 = vector.shape_cast %81 : vector<1x8x4xf32> to vector<8x4xf32>
    %cst_73 = arith.constant dense<0.000000e+00> : vector<8x8xf32>
    %83 = tpu.matmul %78, %80, %cst_73 {dimension_numbers = #tpu.dot_dimension_numbers<[1], [1], [0], [0], [0, 0, 1, 0], [], []>} : vector<8x4xf32>, vector<8x4xf32>, vector<8x8xf32> -> vector<8x8xf32>
    %cst_74 = arith.constant dense<0xFF800000> : vector<8xf32>
    %84 = vector.multi_reduction <maximumf>, %83, %cst_74 [1] : vector<8x8xf32> to vector<8xf32>
    %85 = vector.shape_cast %84 : vector<8xf32> to vector<8x1xf32>
    %86 = vector.broadcast %85 : vector<8x1xf32> to vector<8x8xf32>
    %87 = arith.subf %83, %86 : vector<8x8xf32>
    %88 = math.exp %87 : vector<8x8xf32>
    %cst_75 = arith.constant dense<0.000000e+00> : vector<8xf32>
    %89 = vector.multi_reduction <add>, %88, %cst_75 [1] : vector<8x8xf32> to vector<8xf32>
    %90 = vector.shape_cast %89 : vector<8xf32> to vector<8x1xf32>
    %91 = tpu.reciprocal %90 : vector<8x1xf32> -> vector<8x1xf32>
    %cst_76 = arith.constant 0.176776692 : f32
    %92 = vector.broadcast %cst_76 : f32 to vector<8x1xf32>
    %93 = arith.mulf %92, %91 : vector<8x1xf32>
    %94 = vector.broadcast %93 : vector<8x1xf32> to vector<8x8xf32>
    %95 = arith.mulf %88, %94 : vector<8x8xf32>
    %cst_77 = arith.constant dense<0.000000e+00> : vector<8x4xf32>
    %96 = tpu.matmul %95, %82, %cst_77 {dimension_numbers = #tpu.dot_dimension_numbers<[1], [0], [0], [1], [0, 0, 1, 1], [], []>} : vector<8x8xf32>, vector<8x4xf32>, vector<8x4xf32> -> vector<8x4xf32>
    %c0_78 = arith.constant 0 : index
    %c0_79 = arith.constant 0 : index
    %97 = vector.load %arg10[%c0_78, %c0_79] : memref<8x32xf32, #tpu.memory_space<vmem>>, vector<8x32xf32>
    %c2_80 = arith.constant 2 : index
    %c0_81 = arith.constant 0 : index
    %c0_82 = arith.constant 0 : index
    %98 = vector.load %arg5[%c2_80, %c0_81, %c0_82] : memref<8x4x32xf32, #tpu.memory_space<vmem>>, vector<1x4x32xf32>
    %99 = vector.shape_cast %98 : vector<1x4x32xf32> to vector<4x32xf32>
    %cst_83 = arith.constant dense<0.000000e+00> : vector<8x32xf32>
    %100 = tpu.matmul %96, %99, %cst_83 {dimension_numbers = #tpu.dot_dimension_numbers<[1], [0], [0], [1], [0, 0, 1, 1], [], []>} : vector<8x4xf32>, vector<4x32xf32>, vector<8x32xf32> -> vector<8x32xf32>
    %101 = arith.addf %97, %100 : vector<8x32xf32>
    %c0_84 = arith.constant 0 : index
    %c0_85 = arith.constant 0 : index
    %102 = vector.load %arg10[%c0_84, %c0_85] : memref<8x32xf32, #tpu.memory_space<vmem>>, vector<8x32xf32>
    tpu.vector_store %arg10[%c0_84, %c0_85], %101 {strides = array<i32>} : memref<8x32xf32, #tpu.memory_space<vmem>>, vector<8x32xf32>,
    %c0_86 = arith.constant 0 : index
    %c3 = arith.constant 3 : index
    %c0_87 = arith.constant 0 : index
    %c0_88 = arith.constant 0 : index
    %103 = vector.load %arg3[%c0_86, %c3, %c0_87, %c0_88] : memref<3x8x32x4xf32, #tpu.memory_space<vmem>>, vector<1x1x32x4xf32>
    %104 = vector.shape_cast %103 : vector<1x1x32x4xf32> to vector<32x4xf32>
    %cst_89 = arith.constant dense<0.000000e+00> : vector<8x4xf32>
    %105 = tpu.matmul %7, %104, %cst_89 {dimension_numbers = #tpu.dot_dimension_numbers<[1], [0], [0], [1], [0, 0, 1, 1], [], []>} : vector<8x32xf32>, vector<32x4xf32>, vector<8x4xf32> -> vector<8x4xf32>
    %c0_90 = arith.constant 0 : index
    %c3_91 = arith.constant 3 : index
    %c0_92 = arith.constant 0 : index
    %c0_93 = arith.constant 0 : index
    %106 = vector.load %arg4[%c0_90, %c3_91, %c0_92, %c0_93] : memref<3x8x1x4xf32, #tpu.memory_space<vmem>>, vector<1x1x1x4xf32>
    %107 = vector.shape_cast %106 : vector<1x1x1x4xf32> to vector<1x4xf32>
    %108 = vector.broadcast %107 : vector<1x4xf32> to vector<8x4xf32>
    %109 = arith.addf %105, %108 : vector<8x4xf32>
    %c3_94 = arith.constant 3 : index
    %c0_95 = arith.constant 0 : index
    %c0_96 = arith.constant 0 : index
    %110 = vector.load %arg8[%c3_94, %c0_95, %c0_96] : memref<8x8x4xf32, #tpu.memory_space<vmem>>, vector<1x8x4xf32>
    %111 = vector.shape_cast %110 : vector<1x8x4xf32> to vector<8x4xf32>
    %c3_97 = arith.constant 3 : index
    %c0_98 = arith.constant 0 : index
    %c0_99 = arith.constant 0 : index
    %112 = vector.load %arg9[%c3_97, %c0_98, %c0_99] : memref<8x8x4xf32, #tpu.memory_space<vmem>>, vector<1x8x4xf32>
    %113 = vector.shape_cast %112 : vector<1x8x4xf32> to vector<8x4xf32>
    %cst_100 = arith.constant dense<0.000000e+00> : vector<8x8xf32>
    %114 = tpu.matmul %109, %111, %cst_100 {dimension_numbers = #tpu.dot_dimension_numbers<[1], [1], [0], [0], [0, 0, 1, 0], [], []>} : vector<8x4xf32>, vector<8x4xf32>, vector<8x8xf32> -> vector<8x8xf32>
    %cst_101 = arith.constant dense<0xFF800000> : vector<8xf32>
    %115 = vector.multi_reduction <maximumf>, %114, %cst_101 [1] : vector<8x8xf32> to vector<8xf32>
    %116 = vector.shape_cast %115 : vector<8xf32> to vector<8x1xf32>
    %117 = vector.broadcast %116 : vector<8x1xf32> to vector<8x8xf32>
    %118 = arith.subf %114, %117 : vector<8x8xf32>
    %119 = math.exp %118 : vector<8x8xf32>
    %cst_102 = arith.constant dense<0.000000e+00> : vector<8xf32>
    %120 = vector.multi_reduction <add>, %119, %cst_102 [1] : vector<8x8xf32> to vector<8xf32>
    %121 = vector.shape_cast %120 : vector<8xf32> to vector<8x1xf32>
    %122 = tpu.reciprocal %121 : vector<8x1xf32> -> vector<8x1xf32>
    %cst_103 = arith.constant 0.176776692 : f32
    %123 = vector.broadcast %cst_103 : f32 to vector<8x1xf32>
    %124 = arith.mulf %123, %122 : vector<8x1xf32>
    %125 = vector.broadcast %124 : vector<8x1xf32> to vector<8x8xf32>
    %126 = arith.mulf %119, %125 : vector<8x8xf32>
    %cst_104 = arith.constant dense<0.000000e+00> : vector<8x4xf32>
    %127 = tpu.matmul %126, %113, %cst_104 {dimension_numbers = #tpu.dot_dimension_numbers<[1], [0], [0], [1], [0, 0, 1, 1], [], []>} : vector<8x8xf32>, vector<8x4xf32>, vector<8x4xf32> -> vector<8x4xf32>
    %c0_105 = arith.constant 0 : index
    %c0_106 = arith.constant 0 : index
    %128 = vector.load %arg10[%c0_105, %c0_106] : memref<8x32xf32, #tpu.memory_space<vmem>>, vector<8x32xf32>
    %c3_107 = arith.constant 3 : index
    %c0_108 = arith.constant 0 : index
    %c0_109 = arith.constant 0 : index
    %129 = vector.load %arg5[%c3_107, %c0_108, %c0_109] : memref<8x4x32xf32, #tpu.memory_space<vmem>>, vector<1x4x32xf32>
    %130 = vector.shape_cast %129 : vector<1x4x32xf32> to vector<4x32xf32>
    %cst_110 = arith.constant dense<0.000000e+00> : vector<8x32xf32>
    %131 = tpu.matmul %127, %130, %cst_110 {dimension_numbers = #tpu.dot_dimension_numbers<[1], [0], [0], [1], [0, 0, 1, 1], [], []>} : vector<8x4xf32>, vector<4x32xf32>, vector<8x32xf32> -> vector<8x32xf32>
    %132 = arith.addf %128, %131 : vector<8x32xf32>
    %c0_111 = arith.constant 0 : index
    %c0_112 = arith.constant 0 : index
    %133 = vector.load %arg10[%c0_111, %c0_112] : memref<8x32xf32, #tpu.memory_space<vmem>>, vector<8x32xf32>
    tpu.vector_store %arg10[%c0_111, %c0_112], %132 {strides = array<i32>} : memref<8x32xf32, #tpu.memory_space<vmem>>, vector<8x32xf32>,
    %c0_113 = arith.constant 0 : index
    %c4 = arith.constant 4 : index
    %c0_114 = arith.constant 0 : index
    %c0_115 = arith.constant 0 : index
    %134 = vector.load %arg3[%c0_113, %c4, %c0_114, %c0_115] : memref<3x8x32x4xf32, #tpu.memory_space<vmem>>, vector<1x1x32x4xf32>
    %135 = vector.shape_cast %134 : vector<1x1x32x4xf32> to vector<32x4xf32>
    %cst_116 = arith.constant dense<0.000000e+00> : vector<8x4xf32>
    %136 = tpu.matmul %7, %135, %cst_116 {dimension_numbers = #tpu.dot_dimension_numbers<[1], [0], [0], [1], [0, 0, 1, 1], [], []>} : vector<8x32xf32>, vector<32x4xf32>, vector<8x4xf32> -> vector<8x4xf32>
    %c0_117 = arith.constant 0 : index
    %c4_118 = arith.constant 4 : index
    %c0_119 = arith.constant 0 : index
    %c0_120 = arith.constant 0 : index
    %137 = vector.load %arg4[%c0_117, %c4_118, %c0_119, %c0_120] : memref<3x8x1x4xf32, #tpu.memory_space<vmem>>, vector<1x1x1x4xf32>
    %138 = vector.shape_cast %137 : vector<1x1x1x4xf32> to vector<1x4xf32>
    %139 = vector.broadcast %138 : vector<1x4xf32> to vector<8x4xf32>
    %140 = arith.addf %136, %139 : vector<8x4xf32>
    %c4_121 = arith.constant 4 : index
    %c0_122 = arith.constant 0 : index
    %c0_123 = arith.constant 0 : index
    %141 = vector.load %arg8[%c4_121, %c0_122, %c0_123] : memref<8x8x4xf32, #tpu.memory_space<vmem>>, vector<1x8x4xf32>
    %142 = vector.shape_cast %141 : vector<1x8x4xf32> to vector<8x4xf32>
    %c4_124 = arith.constant 4 : index
    %c0_125 = arith.constant 0 : index
    %c0_126 = arith.constant 0 : index
    %143 = vector.load %arg9[%c4_124, %c0_125, %c0_126] : memref<8x8x4xf32, #tpu.memory_space<vmem>>, vector<1x8x4xf32>
    %144 = vector.shape_cast %143 : vector<1x8x4xf32> to vector<8x4xf32>
    %cst_127 = arith.constant dense<0.000000e+00> : vector<8x8xf32>
    %145 = tpu.matmul %140, %142, %cst_127 {dimension_numbers = #tpu.dot_dimension_numbers<[1], [1], [0], [0], [0, 0, 1, 0], [], []>} : vector<8x4xf32>, vector<8x4xf32>, vector<8x8xf32> -> vector<8x8xf32>
    %cst_128 = arith.constant dense<0xFF800000> : vector<8xf32>
    %146 = vector.multi_reduction <maximumf>, %145, %cst_128 [1] : vector<8x8xf32> to vector<8xf32>
    %147 = vector.shape_cast %146 : vector<8xf32> to vector<8x1xf32>
    %148 = vector.broadcast %147 : vector<8x1xf32> to vector<8x8xf32>
    %149 = arith.subf %145, %148 : vector<8x8xf32>
    %150 = math.exp %149 : vector<8x8xf32>
    %cst_129 = arith.constant dense<0.000000e+00> : vector<8xf32>
    %151 = vector.multi_reduction <add>, %150, %cst_129 [1] : vector<8x8xf32> to vector<8xf32>
    %152 = vector.shape_cast %151 : vector<8xf32> to vector<8x1xf32>
    %153 = tpu.reciprocal %152 : vector<8x1xf32> -> vector<8x1xf32>
    %cst_130 = arith.constant 0.176776692 : f32
    %154 = vector.broadcast %cst_130 : f32 to vector<8x1xf32>
    %155 = arith.mulf %154, %153 : vector<8x1xf32>
    %156 = vector.broadcast %155 : vector<8x1xf32> to vector<8x8xf32>
    %157 = arith.mulf %150, %156 : vector<8x8xf32>
    %cst_131 = arith.constant dense<0.000000e+00> : vector<8x4xf32>
    %158 = tpu.matmul %157, %144, %cst_131 {dimension_numbers = #tpu.dot_dimension_numbers<[1], [0], [0], [1], [0, 0, 1, 1], [], []>} : vector<8x8xf32>, vector<8x4xf32>, vector<8x4xf32> -> vector<8x4xf32>
    %c0_132 = arith.constant 0 : index
    %c0_133 = arith.constant 0 : index
    %159 = vector.load %arg10[%c0_132, %c0_133] : memref<8x32xf32, #tpu.memory_space<vmem>>, vector<8x32xf32>
    %c4_134 = arith.constant 4 : index
    %c0_135 = arith.constant 0 : index
    %c0_136 = arith.constant 0 : index
    %160 = vector.load %arg5[%c4_134, %c0_135, %c0_136] : memref<8x4x32xf32, #tpu.memory_space<vmem>>, vector<1x4x32xf32>
    %161 = vector.shape_cast %160 : vector<1x4x32xf32> to vector<4x32xf32>
    %cst_137 = arith.constant dense<0.000000e+00> : vector<8x32xf32>
    %162 = tpu.matmul %158, %161, %cst_137 {dimension_numbers = #tpu.dot_dimension_numbers<[1], [0], [0], [1], [0, 0, 1, 1], [], []>} : vector<8x4xf32>, vector<4x32xf32>, vector<8x32xf32> -> vector<8x32xf32>
    %163 = arith.addf %159, %162 : vector<8x32xf32>
    %c0_138 = arith.constant 0 : index
    %c0_139 = arith.constant 0 : index
    %164 = vector.load %arg10[%c0_138, %c0_139] : memref<8x32xf32, #tpu.memory_space<vmem>>, vector<8x32xf32>
    tpu.vector_store %arg10[%c0_138, %c0_139], %163 {strides = array<i32>} : memref<8x32xf32, #tpu.memory_space<vmem>>, vector<8x32xf32>,
    %c0_140 = arith.constant 0 : index
    %c5 = arith.constant 5 : index
    %c0_141 = arith.constant 0 : index
    %c0_142 = arith.constant 0 : index
    %165 = vector.load %arg3[%c0_140, %c5, %c0_141, %c0_142] : memref<3x8x32x4xf32, #tpu.memory_space<vmem>>, vector<1x1x32x4xf32>
    %166 = vector.shape_cast %165 : vector<1x1x32x4xf32> to vector<32x4xf32>
    %cst_143 = arith.constant dense<0.000000e+00> : vector<8x4xf32>
    %167 = tpu.matmul %7, %166, %cst_143 {dimension_numbers = #tpu.dot_dimension_numbers<[1], [0], [0], [1], [0, 0, 1, 1], [], []>} : vector<8x32xf32>, vector<32x4xf32>, vector<8x4xf32> -> vector<8x4xf32>
    %c0_144 = arith.constant 0 : index
    %c5_145 = arith.constant 5 : index
    %c0_146 = arith.constant 0 : index
    %c0_147 = arith.constant 0 : index
    %168 = vector.load %arg4[%c0_144, %c5_145, %c0_146, %c0_147] : memref<3x8x1x4xf32, #tpu.memory_space<vmem>>, vector<1x1x1x4xf32>
    %169 = vector.shape_cast %168 : vector<1x1x1x4xf32> to vector<1x4xf32>
    %170 = vector.broadcast %169 : vector<1x4xf32> to vector<8x4xf32>
    %171 = arith.addf %167, %170 : vector<8x4xf32>
    %c5_148 = arith.constant 5 : index
    %c0_149 = arith.constant 0 : index
    %c0_150 = arith.constant 0 : index
    %172 = vector.load %arg8[%c5_148, %c0_149, %c0_150] : memref<8x8x4xf32, #tpu.memory_space<vmem>>, vector<1x8x4xf32>
    %173 = vector.shape_cast %172 : vector<1x8x4xf32> to vector<8x4xf32>
    %c5_151 = arith.constant 5 : index
    %c0_152 = arith.constant 0 : index
    %c0_153 = arith.constant 0 : index
    %174 = vector.load %arg9[%c5_151, %c0_152, %c0_153] : memref<8x8x4xf32, #tpu.memory_space<vmem>>, vector<1x8x4xf32>
    %175 = vector.shape_cast %174 : vector<1x8x4xf32> to vector<8x4xf32>
    %cst_154 = arith.constant dense<0.000000e+00> : vector<8x8xf32>
    %176 = tpu.matmul %171, %173, %cst_154 {dimension_numbers = #tpu.dot_dimension_numbers<[1], [1], [0], [0], [0, 0, 1, 0], [], []>} : vector<8x4xf32>, vector<8x4xf32>, vector<8x8xf32> -> vector<8x8xf32>
    %cst_155 = arith.constant dense<0xFF800000> : vector<8xf32>
    %177 = vector.multi_reduction <maximumf>, %176, %cst_155 [1] : vector<8x8xf32> to vector<8xf32>
    %178 = vector.shape_cast %177 : vector<8xf32> to vector<8x1xf32>
    %179 = vector.broadcast %178 : vector<8x1xf32> to vector<8x8xf32>
    %180 = arith.subf %176, %179 : vector<8x8xf32>
    %181 = math.exp %180 : vector<8x8xf32>
    %cst_156 = arith.constant dense<0.000000e+00> : vector<8xf32>
    %182 = vector.multi_reduction <add>, %181, %cst_156 [1] : vector<8x8xf32> to vector<8xf32>
    %183 = vector.shape_cast %182 : vector<8xf32> to vector<8x1xf32>
    %184 = tpu.reciprocal %183 : vector<8x1xf32> -> vector<8x1xf32>
    %cst_157 = arith.constant 0.176776692 : f32
    %185 = vector.broadcast %cst_157 : f32 to vector<8x1xf32>
    %186 = arith.mulf %185, %184 : vector<8x1xf32>
    %187 = vector.broadcast %186 : vector<8x1xf32> to vector<8x8xf32>
    %188 = arith.mulf %181, %187 : vector<8x8xf32>
    %cst_158 = arith.constant dense<0.000000e+00> : vector<8x4xf32>
    %189 = tpu.matmul %188, %175, %cst_158 {dimension_numbers = #tpu.dot_dimension_numbers<[1], [0], [0], [1], [0, 0, 1, 1], [], []>} : vector<8x8xf32>, vector<8x4xf32>, vector<8x4xf32> -> vector<8x4xf32>
    %c0_159 = arith.constant 0 : index
    %c0_160 = arith.constant 0 : index
    %190 = vector.load %arg10[%c0_159, %c0_160] : memref<8x32xf32, #tpu.memory_space<vmem>>, vector<8x32xf32>
    %c5_161 = arith.constant 5 : index
    %c0_162 = arith.constant 0 : index
    %c0_163 = arith.constant 0 : index
    %191 = vector.load %arg5[%c5_161, %c0_162, %c0_163] : memref<8x4x32xf32, #tpu.memory_space<vmem>>, vector<1x4x32xf32>
    %192 = vector.shape_cast %191 : vector<1x4x32xf32> to vector<4x32xf32>
    %cst_164 = arith.constant dense<0.000000e+00> : vector<8x32xf32>
    %193 = tpu.matmul %189, %192, %cst_164 {dimension_numbers = #tpu.dot_dimension_numbers<[1], [0], [0], [1], [0, 0, 1, 1], [], []>} : vector<8x4xf32>, vector<4x32xf32>, vector<8x32xf32> -> vector<8x32xf32>
    %194 = arith.addf %190, %193 : vector<8x32xf32>
    %c0_165 = arith.constant 0 : index
    %c0_166 = arith.constant 0 : index
    %195 = vector.load %arg10[%c0_165, %c0_166] : memref<8x32xf32, #tpu.memory_space<vmem>>, vector<8x32xf32>
    tpu.vector_store %arg10[%c0_165, %c0_166], %194 {strides = array<i32>} : memref<8x32xf32, #tpu.memory_space<vmem>>, vector<8x32xf32>,
    %c0_167 = arith.constant 0 : index
    %c6 = arith.constant 6 : index
    %c0_168 = arith.constant 0 : index
    %c0_169 = arith.constant 0 : index
    %196 = vector.load %arg3[%c0_167, %c6, %c0_168, %c0_169] : memref<3x8x32x4xf32, #tpu.memory_space<vmem>>, vector<1x1x32x4xf32>
    %197 = vector.shape_cast %196 : vector<1x1x32x4xf32> to vector<32x4xf32>
    %cst_170 = arith.constant dense<0.000000e+00> : vector<8x4xf32>
    %198 = tpu.matmul %7, %197, %cst_170 {dimension_numbers = #tpu.dot_dimension_numbers<[1], [0], [0], [1], [0, 0, 1, 1], [], []>} : vector<8x32xf32>, vector<32x4xf32>, vector<8x4xf32> -> vector<8x4xf32>
    %c0_171 = arith.constant 0 : index
    %c6_172 = arith.constant 6 : index
    %c0_173 = arith.constant 0 : index
    %c0_174 = arith.constant 0 : index
    %199 = vector.load %arg4[%c0_171, %c6_172, %c0_173, %c0_174] : memref<3x8x1x4xf32, #tpu.memory_space<vmem>>, vector<1x1x1x4xf32>
    %200 = vector.shape_cast %199 : vector<1x1x1x4xf32> to vector<1x4xf32>
    %201 = vector.broadcast %200 : vector<1x4xf32> to vector<8x4xf32>
    %202 = arith.addf %198, %201 : vector<8x4xf32>
    %c6_175 = arith.constant 6 : index
    %c0_176 = arith.constant 0 : index
    %c0_177 = arith.constant 0 : index
    %203 = vector.load %arg8[%c6_175, %c0_176, %c0_177] : memref<8x8x4xf32, #tpu.memory_space<vmem>>, vector<1x8x4xf32>
    %204 = vector.shape_cast %203 : vector<1x8x4xf32> to vector<8x4xf32>
    %c6_178 = arith.constant 6 : index
    %c0_179 = arith.constant 0 : index
    %c0_180 = arith.constant 0 : index
    %205 = vector.load %arg9[%c6_178, %c0_179, %c0_180] : memref<8x8x4xf32, #tpu.memory_space<vmem>>, vector<1x8x4xf32>
    %206 = vector.shape_cast %205 : vector<1x8x4xf32> to vector<8x4xf32>
    %cst_181 = arith.constant dense<0.000000e+00> : vector<8x8xf32>
    %207 = tpu.matmul %202, %204, %cst_181 {dimension_numbers = #tpu.dot_dimension_numbers<[1], [1], [0], [0], [0, 0, 1, 0], [], []>} : vector<8x4xf32>, vector<8x4xf32>, vector<8x8xf32> -> vector<8x8xf32>
    %cst_182 = arith.constant dense<0xFF800000> : vector<8xf32>
    %208 = vector.multi_reduction <maximumf>, %207, %cst_182 [1] : vector<8x8xf32> to vector<8xf32>
    %209 = vector.shape_cast %208 : vector<8xf32> to vector<8x1xf32>
    %210 = vector.broadcast %209 : vector<8x1xf32> to vector<8x8xf32>
    %211 = arith.subf %207, %210 : vector<8x8xf32>
    %212 = math.exp %211 : vector<8x8xf32>
    %cst_183 = arith.constant dense<0.000000e+00> : vector<8xf32>
    %213 = vector.multi_reduction <add>, %212, %cst_183 [1] : vector<8x8xf32> to vector<8xf32>
    %214 = vector.shape_cast %213 : vector<8xf32> to vector<8x1xf32>
    %215 = tpu.reciprocal %214 : vector<8x1xf32> -> vector<8x1xf32>
    %cst_184 = arith.constant 0.176776692 : f32
    %216 = vector.broadcast %cst_184 : f32 to vector<8x1xf32>
    %217 = arith.mulf %216, %215 : vector<8x1xf32>
    %218 = vector.broadcast %217 : vector<8x1xf32> to vector<8x8xf32>
    %219 = arith.mulf %212, %218 : vector<8x8xf32>
    %cst_185 = arith.constant dense<0.000000e+00> : vector<8x4xf32>
    %220 = tpu.matmul %219, %206, %cst_185 {dimension_numbers = #tpu.dot_dimension_numbers<[1], [0], [0], [1], [0, 0, 1, 1], [], []>} : vector<8x8xf32>, vector<8x4xf32>, vector<8x4xf32> -> vector<8x4xf32>
    %c0_186 = arith.constant 0 : index
    %c0_187 = arith.constant 0 : index
    %221 = vector.load %arg10[%c0_186, %c0_187] : memref<8x32xf32, #tpu.memory_space<vmem>>, vector<8x32xf32>
    %c6_188 = arith.constant 6 : index
    %c0_189 = arith.constant 0 : index
    %c0_190 = arith.constant 0 : index
    %222 = vector.load %arg5[%c6_188, %c0_189, %c0_190] : memref<8x4x32xf32, #tpu.memory_space<vmem>>, vector<1x4x32xf32>
    %223 = vector.shape_cast %222 : vector<1x4x32xf32> to vector<4x32xf32>
    %cst_191 = arith.constant dense<0.000000e+00> : vector<8x32xf32>
    %224 = tpu.matmul %220, %223, %cst_191 {dimension_numbers = #tpu.dot_dimension_numbers<[1], [0], [0], [1], [0, 0, 1, 1], [], []>} : vector<8x4xf32>, vector<4x32xf32>, vector<8x32xf32> -> vector<8x32xf32>
    %225 = arith.addf %221, %224 : vector<8x32xf32>
    %c0_192 = arith.constant 0 : index
    %c0_193 = arith.constant 0 : index
    %226 = vector.load %arg10[%c0_192, %c0_193] : memref<8x32xf32, #tpu.memory_space<vmem>>, vector<8x32xf32>
    tpu.vector_store %arg10[%c0_192, %c0_193], %225 {strides = array<i32>} : memref<8x32xf32, #tpu.memory_space<vmem>>, vector<8x32xf32>,
    %c0_194 = arith.constant 0 : index
    %c7 = arith.constant 7 : index
    %c0_195 = arith.constant 0 : index
    %c0_196 = arith.constant 0 : index
    %227 = vector.load %arg3[%c0_194, %c7, %c0_195, %c0_196] : memref<3x8x32x4xf32, #tpu.memory_space<vmem>>, vector<1x1x32x4xf32>
    %228 = vector.shape_cast %227 : vector<1x1x32x4xf32> to vector<32x4xf32>
    %cst_197 = arith.constant dense<0.000000e+00> : vector<8x4xf32>
    %229 = tpu.matmul %7, %228, %cst_197 {dimension_numbers = #tpu.dot_dimension_numbers<[1], [0], [0], [1], [0, 0, 1, 1], [], []>} : vector<8x32xf32>, vector<32x4xf32>, vector<8x4xf32> -> vector<8x4xf32>
    %c0_198 = arith.constant 0 : index
    %c7_199 = arith.constant 7 : index
    %c0_200 = arith.constant 0 : index
    %c0_201 = arith.constant 0 : index
    %230 = vector.load %arg4[%c0_198, %c7_199, %c0_200, %c0_201] : memref<3x8x1x4xf32, #tpu.memory_space<vmem>>, vector<1x1x1x4xf32>
    %231 = vector.shape_cast %230 : vector<1x1x1x4xf32> to vector<1x4xf32>
    %232 = vector.broadcast %231 : vector<1x4xf32> to vector<8x4xf32>
    %233 = arith.addf %229, %232 : vector<8x4xf32>
    %c7_202 = arith.constant 7 : index
    %c0_203 = arith.constant 0 : index
    %c0_204 = arith.constant 0 : index
    %234 = vector.load %arg8[%c7_202, %c0_203, %c0_204] : memref<8x8x4xf32, #tpu.memory_space<vmem>>, vector<1x8x4xf32>
    %235 = vector.shape_cast %234 : vector<1x8x4xf32> to vector<8x4xf32>
    %c7_205 = arith.constant 7 : index
    %c0_206 = arith.constant 0 : index
    %c0_207 = arith.constant 0 : index
    %236 = vector.load %arg9[%c7_205, %c0_206, %c0_207] : memref<8x8x4xf32, #tpu.memory_space<vmem>>, vector<1x8x4xf32>
    %237 = vector.shape_cast %236 : vector<1x8x4xf32> to vector<8x4xf32>
    %cst_208 = arith.constant dense<0.000000e+00> : vector<8x8xf32>
    %238 = tpu.matmul %233, %235, %cst_208 {dimension_numbers = #tpu.dot_dimension_numbers<[1], [1], [0], [0], [0, 0, 1, 0], [], []>} : vector<8x4xf32>, vector<8x4xf32>, vector<8x8xf32> -> vector<8x8xf32>
    %cst_209 = arith.constant dense<0xFF800000> : vector<8xf32>
    %239 = vector.multi_reduction <maximumf>, %238, %cst_209 [1] : vector<8x8xf32> to vector<8xf32>
    %240 = vector.shape_cast %239 : vector<8xf32> to vector<8x1xf32>
    %241 = vector.broadcast %240 : vector<8x1xf32> to vector<8x8xf32>
    %242 = arith.subf %238, %241 : vector<8x8xf32>
    %243 = math.exp %242 : vector<8x8xf32>
    %cst_210 = arith.constant dense<0.000000e+00> : vector<8xf32>
    %244 = vector.multi_reduction <add>, %243, %cst_210 [1] : vector<8x8xf32> to vector<8xf32>
    %245 = vector.shape_cast %244 : vector<8xf32> to vector<8x1xf32>
    %246 = tpu.reciprocal %245 : vector<8x1xf32> -> vector<8x1xf32>
    %cst_211 = arith.constant 0.176776692 : f32
    %247 = vector.broadcast %cst_211 : f32 to vector<8x1xf32>
    %248 = arith.mulf %247, %246 : vector<8x1xf32>
    %249 = vector.broadcast %248 : vector<8x1xf32> to vector<8x8xf32>
    %250 = arith.mulf %243, %249 : vector<8x8xf32>
    %cst_212 = arith.constant dense<0.000000e+00> : vector<8x4xf32>
    %251 = tpu.matmul %250, %237, %cst_212 {dimension_numbers = #tpu.dot_dimension_numbers<[1], [0], [0], [1], [0, 0, 1, 1], [], []>} : vector<8x8xf32>, vector<8x4xf32>, vector<8x4xf32> -> vector<8x4xf32>
    %c0_213 = arith.constant 0 : index
    %c0_214 = arith.constant 0 : index
    %252 = vector.load %arg10[%c0_213, %c0_214] : memref<8x32xf32, #tpu.memory_space<vmem>>, vector<8x32xf32>
    %c7_215 = arith.constant 7 : index
    %c0_216 = arith.constant 0 : index
    %c0_217 = arith.constant 0 : index
    %253 = vector.load %arg5[%c7_215, %c0_216, %c0_217] : memref<8x4x32xf32, #tpu.memory_space<vmem>>, vector<1x4x32xf32>
    %254 = vector.shape_cast %253 : vector<1x4x32xf32> to vector<4x32xf32>
    %cst_218 = arith.constant dense<0.000000e+00> : vector<8x32xf32>
    %255 = tpu.matmul %251, %254, %cst_218 {dimension_numbers = #tpu.dot_dimension_numbers<[1], [0], [0], [1], [0, 0, 1, 1], [], []>} : vector<8x4xf32>, vector<4x32xf32>, vector<8x32xf32> -> vector<8x32xf32>
    %256 = arith.addf %252, %255 : vector<8x32xf32>
    %c0_219 = arith.constant 0 : index
    %c0_220 = arith.constant 0 : index
    %257 = vector.load %arg10[%c0_219, %c0_220] : memref<8x32xf32, #tpu.memory_space<vmem>>, vector<8x32xf32>
    tpu.vector_store %arg10[%c0_219, %c0_220], %256 {strides = array<i32>} : memref<8x32xf32, #tpu.memory_space<vmem>>, vector<8x32xf32>,
    %c0_221 = arith.constant 0 : index
    %c0_222 = arith.constant 0 : index
    %258 = vector.load %arg10[%c0_221, %c0_222] : memref<8x32xf32, #tpu.memory_space<vmem>>, vector<8x32xf32>
    %c0_223 = arith.constant 0 : index
    %c0_224 = arith.constant 0 : index
    %259 = vector.load %arg6[%c0_223, %c0_224] : memref<1x32xf32, #tpu.memory_space<vmem>>, vector<1x32xf32>
    %260 = vector.broadcast %259 : vector<1x32xf32> to vector<8x32xf32>
    %261 = arith.addf %258, %260 : vector<8x32xf32>
    %c0_225 = arith.constant 0 : index
    %c0_226 = arith.constant 0 : index
    %c0_227 = arith.constant 0 : index
    %262 = vector.load %arg7[%c0_225, %c0_226, %c0_227] : memref<1x8x32xf32, #tpu.memory_space<vmem>>, vector<1x8x32xf32>
    %263 = vector.shape_cast %262 : vector<1x8x32xf32> to vector<8x32xf32>
    %264 = vector.shape_cast %261 : vector<8x32xf32> to vector<1x8x32xf32>
    tpu.vector_store %arg7[%c0_225, %c0_226, %c0_227], %264 {strides = array<i32>} : memref<1x8x32xf32, #tpu.memory_space<vmem>>, vector<1x8x32xf32>,
    return
  }
  func.func @transform_0(%arg0: i32, %arg1: i32) -> (i32, i32, i32) {
    %c0_i32 = arith.constant 0 : i32
    %c0_i32_0 = arith.constant 0 : i32
    %c0_i32_1 = arith.constant 0 : i32
    return %arg0, %c0_i32, %c0_i32_0 : i32, i32, i32
  }
  func.func @transform_1(%arg0: i32, %arg1: i32) -> (i32, i32, i32, i32) {
    %c0_i32 = arith.constant 0 : i32
    %c0_i32_0 = arith.constant 0 : i32
    %c0_i32_1 = arith.constant 0 : i32
    %c0_i32_2 = arith.constant 0 : i32
    %c0_i32_3 = arith.constant 0 : i32
    return %c0_i32, %c0_i32_0, %c0_i32_1, %c0_i32_2 : i32, i32, i32, i32
  }
  func.func @transform_2(%arg0: i32, %arg1: i32) -> (i32, i32, i32, i32) {
    %c0_i32 = arith.constant 0 : i32
    %c0_i32_0 = arith.constant 0 : i32
    %c0_i32_1 = arith.constant 0 : i32
    %c0_i32_2 = arith.constant 0 : i32
    %c0_i32_3 = arith.constant 0 : i32
    return %c0_i32, %c0_i32_0, %c0_i32_1, %c0_i32_2 : i32, i32, i32, i32
  }
  func.func @transform_3(%arg0: i32, %arg1: i32) -> (i32, i32, i32) {
    %c0_i32 = arith.constant 0 : i32
    %c0_i32_0 = arith.constant 0 : i32
    %c0_i32_1 = arith.constant 0 : i32
    %c0_i32_2 = arith.constant 0 : i32
    return %c0_i32, %c0_i32_0, %c0_i32_1 : i32, i32, i32
  }
  func.func @transform_4(%arg0: i32, %arg1: i32) -> (i32, i32) {
    %c0_i32 = arith.constant 0 : i32
    %c0_i32_0 = arith.constant 0 : i32
    %c0_i32_1 = arith.constant 0 : i32
    return %c0_i32, %c0_i32_0 : i32, i32
  }
  func.func @transform_5(%arg0: i32, %arg1: i32) -> (i32, i32, i32) {
    %c0_i32 = arith.constant 0 : i32
    %c0_i32_0 = arith.constant 0 : i32
    return %arg0, %arg1, %c0_i32 : i32, i32, i32
  }
}

module attributes {stable_mosaic.version = 11 : i64} {
  func.func @kernel(%arg0: i32, %arg1: i32, %arg2: memref<1x8x32xf32, #tpu.memory_space<vmem>>, %arg3: memref<3x8x32x4xf32, #tpu.memory_space<vmem>>, %arg4: memref<3x8x1x4xf32, #tpu.memory_space<vmem>>, %arg5: memref<8x4x32xf32, #tpu.memory_space<vmem>>, %arg6: memref<1x32xf32, #tpu.memory_space<vmem>>, %arg7: memref<1x8x32xf32, #tpu.memory_space<vmem>>, %arg8: memref<8x8x4xf32, #tpu.memory_space<vmem>>, %arg9: memref<8x8x4xf32, #tpu.memory_space<vmem>>, %arg10: memref<8x32xf32, #tpu.memory_space<vmem>>) attributes {dimension_semantics = [#tpu.dimension_semantics<parallel>, #tpu.dimension_semantics<arbitrary>], iteration_bounds = array<i64: 2, 1>, scalar_prefetch = 0 : i64, scratch_operands = 3 : i64, tpu.core_type = #tpu.core_type<tc>, window_params = [{transform_indices = @transform_0, window_bounds = array<i64: 1, 8, 32>}, {pipeline_mode = #tpu.pipeline_mode<synchronous>, transform_indices = @transform_1, window_bounds = array<i64: 3, 8, 32, 4>}, {pipeline_mode = #tpu.pipeline_mode<synchronous>, transform_indices = @transform_2, window_bounds = array<i64: 3, 8, 1, 4>}, {pipeline_mode = #tpu.pipeline_mode<synchronous>, transform_indices = @transform_3, window_bounds = array<i64: 8, 4, 32>}, {pipeline_mode = #tpu.pipeline_mode<synchronous>, transform_indices = @transform_4, window_bounds = array<i64: 1, 32>}, {transform_indices = @transform_5, window_bounds = array<i64: 1, 8, 32>}]} {
    %c0_i32 = arith.constant 0 : i32
    %0 = arith.cmpi eq, %arg1, %c0_i32 : i32
    %1 = arith.extui %0 : i1 to i32
    %c0_i32_0 = arith.constant 0 : i32
    %2 = arith.cmpi ne, %1, %c0_i32_0 : i32
    scf.if %2 {
      %c0_228 = arith.constant 0 : index
      %c0_229 = arith.constant 0 : index
      %c0_230 = arith.constant 0 : index
      %265 = vector.load %arg2[%c0_228, %c0_229, %c0_230] : memref<1x8x32xf32, #tpu.memory_space<vmem>>, vector<1x8x32xf32>
      %266 = vector.shape_cast %265 : vector<1x8x32xf32> to vector<8x32xf32>
      %c1_231 = arith.constant 1 : index
      %c0_232 = arith.constant 0 : index
      %c0_233 = arith.constant 0 : index
      %c0_234 = arith.constant 0 : index
      %267 = vector.load %arg3[%c1_231, %c0_232, %c0_233, %c0_234] : memref<3x8x32x4xf32, #tpu.memory_space<vmem>>, vector<1x1x32x4xf32>
      %268 = vector.shape_cast %267 : vector<1x1x32x4xf32> to vector<32x4xf32>
      %cst_235 = arith.constant dense<0.000000e+00> : vector<8x4xf32>
      %269 = tpu.matmul %266, %268, %cst_235 {dimension_numbers = #tpu.dot_dimension_numbers<[1], [0], [0], [1], [0, 0, 1, 1], [], []>} : vector<8x32xf32>, vector<32x4xf32>, vector<8x4xf32> -> vector<8x4xf32>
      %c1_236 = arith.constant 1 : index
      %c0_237 = arith.constant 0 : index
      %c0_238 = arith.constant 0 : index
      %c0_239 = arith.constant 0 : index
      %270 = vector.load %arg4[%c1_236, %c0_237, %c0_238, %c0_239] : memref<3x8x1x4xf32, #tpu.memory_space<vmem>>, vector<1x1x1x4xf32>
      %271 = vector.shape_cast %270 : vector<1x1x1x4xf32> to vector<1x4xf32>
      %272 = vector.broadcast %271 : vector<1x4xf32> to vector<8x4xf32>
      %273 = arith.addf %269, %272 : vector<8x4xf32>
      %c0_240 = arith.constant 0 : index
      %c0_241 = arith.constant 0 : index
      %c0_242 = arith.constant 0 : index
      %274 = vector.load %arg8[%c0_240, %c0_241, %c0_242] : memref<8x8x4xf32, #tpu.memory_space<vmem>>, vector<1x8x4xf32>
      %275 = vector.shape_cast %274 : vector<1x8x4xf32> to vector<8x4xf32>
      %276 = vector.shape_cast %273 : vector<8x4xf32> to vector<1x8x4xf32>
      tpu.vector_store %arg8[%c0_240, %c0_241, %c0_242], %276 {strides = array<i32>} : memref<8x8x4xf32, #tpu.memory_space<vmem>>, vector<1x8x4xf32>,
      %c2_243 = arith.constant 2 : index
      %c0_244 = arith.constant 0 : index
      %c0_245 = arith.constant 0 : index
      %c0_246 = arith.constant 0 : index
      %277 = vector.load %arg3[%c2_243, %c0_244, %c0_245, %c0_246] : memref<3x8x32x4xf32, #tpu.memory_space<vmem>>, vector<1x1x32x4xf32>
      %278 = vector.shape_cast %277 : vector<1x1x32x4xf32> to vector<32x4xf32>
      %cst_247 = arith.constant dense<0.000000e+00> : vector<8x4xf32>
      %279 = tpu.matmul %266, %278, %cst_247 {dimension_numbers = #tpu.dot_dimension_numbers<[1], [0], [0], [1], [0, 0, 1, 1], [], []>} : vector<8x32xf32>, vector<32x4xf32>, vector<8x4xf32> -> vector<8x4xf32>
      %c2_248 = arith.constant 2 : index
      %c0_249 = arith.constant 0 : index
      %c0_250 = arith.constant 0 : index
      %c0_251 = arith.constant 0 : index
      %280 = vector.load %arg4[%c2_248, %c0_249, %c0_250, %c0_251] : memref<3x8x1x4xf32, #tpu.memory_space<vmem>>, vector<1x1x1x4xf32>
      %281 = vector.shape_cast %280 : vector<1x1x1x4xf32> to vector<1x4xf32>
      %282 = vector.broadcast %281 : vector<1x4xf32> to vector<8x4xf32>
      %283 = arith.addf %279, %282 : vector<8x4xf32>
      %c0_252 = arith.constant 0 : index
      %c0_253 = arith.constant 0 : index
      %c0_254 = arith.constant 0 : index
      %284 = vector.load %arg9[%c0_252, %c0_253, %c0_254] : memref<8x8x4xf32, #tpu.memory_space<vmem>>, vector<1x8x4xf32>
      %285 = vector.shape_cast %284 : vector<1x8x4xf32> to vector<8x4xf32>
      %286 = vector.shape_cast %283 : vector<8x4xf32> to vector<1x8x4xf32>
      tpu.vector_store %arg9[%c0_252, %c0_253, %c0_254], %286 {strides = array<i32>} : memref<8x8x4xf32, #tpu.memory_space<vmem>>, vector<1x8x4xf32>,
      %c1_255 = arith.constant 1 : index
      %c1_256 = arith.constant 1 : index
      %c0_257 = arith.constant 0 : index
      %c0_258 = arith.constant 0 : index
      %287 = vector.load %arg3[%c1_255, %c1_256, %c0_257, %c0_258] : memref<3x8x32x4xf32, #tpu.memory_space<vmem>>, vector<1x1x32x4xf32>
      %288 = vector.shape_cast %287 : vector<1x1x32x4xf32> to vector<32x4xf32>
      %cst_259 = arith.constant dense<0.000000e+00> : vector<8x4xf32>
      %289 = tpu.matmul %266, %288, %cst_259 {dimension_numbers = #tpu.dot_dimension_numbers<[1], [0], [0], [1], [0, 0, 1, 1], [], []>} : vector<8x32xf32>, vector<32x4xf32>, vector<8x4xf32> -> vector<8x4xf32>
      %c1_260 = arith.constant 1 : index
      %c1_261 = arith.constant 1 : index
      %c0_262 = arith.constant 0 : index
      %c0_263 = arith.constant 0 : index
      %290 = vector.load %arg4[%c1_260, %c1_261, %c0_262, %c0_263] : memref<3x8x1x4xf32, #tpu.memory_space<vmem>>, vector<1x1x1x4xf32>
      %291 = vector.shape_cast %290 : vector<1x1x1x4xf32> to vector<1x4xf32>
      %292 = vector.broadcast %291 : vector<1x4xf32> to vector<8x4xf32>
      %293 = arith.addf %289, %292 : vector<8x4xf32>
      %c1_264 = arith.constant 1 : index
      %c0_265 = arith.constant 0 : index
      %c0_266 = arith.constant 0 : index
      %294 = vector.load %arg8[%c1_264, %c0_265, %c0_266] : memref<8x8x4xf32, #tpu.memory_space<vmem>>, vector<1x8x4xf32>
      %295 = vector.shape_cast %294 : vector<1x8x4xf32> to vector<8x4xf32>
      %296 = vector.shape_cast %293 : vector<8x4xf32> to vector<1x8x4xf32>
      tpu.vector_store %arg8[%c1_264, %c0_265, %c0_266], %296 {strides = array<i32>} : memref<8x8x4xf32, #tpu.memory_space<vmem>>, vector<1x8x4xf32>,
      %c2_267 = arith.constant 2 : index
      %c1_268 = arith.constant 1 : index
      %c0_269 = arith.constant 0 : index
      %c0_270 = arith.constant 0 : index
      %297 = vector.load %arg3[%c2_267, %c1_268, %c0_269, %c0_270] : memref<3x8x32x4xf32, #tpu.memory_space<vmem>>, vector<1x1x32x4xf32>
      %298 = vector.shape_cast %297 : vector<1x1x32x4xf32> to vector<32x4xf32>
      %cst_271 = arith.constant dense<0.000000e+00> : vector<8x4xf32>
      %299 = tpu.matmul %266, %298, %cst_271 {dimension_numbers = #tpu.dot_dimension_numbers<[1], [0], [0], [1], [0, 0, 1, 1], [], []>} : vector<8x32xf32>, vector<32x4xf32>, vector<8x4xf32> -> vector<8x4xf32>
      %c2_272 = arith.constant 2 : index
      %c1_273 = arith.constant 1 : index
      %c0_274 = arith.constant 0 : index
      %c0_275 = arith.constant 0 : index
      %300 = vector.load %arg4[%c2_272, %c1_273, %c0_274, %c0_275] : memref<3x8x1x4xf32, #tpu.memory_space<vmem>>, vector<1x1x1x4xf32>
      %301 = vector.shape_cast %300 : vector<1x1x1x4xf32> to vector<1x4xf32>
      %302 = vector.broadcast %301 : vector<1x4xf32> to vector<8x4xf32>
      %303 = arith.addf %299, %302 : vector<8x4xf32>
      %c1_276 = arith.constant 1 : index
      %c0_277 = arith.constant 0 : index
      %c0_278 = arith.constant 0 : index
      %304 = vector.load %arg9[%c1_276, %c0_277, %c0_278] : memref<8x8x4xf32, #tpu.memory_space<vmem>>, vector<1x8x4xf32>
      %305 = vector.shape_cast %304 : vector<1x8x4xf32> to vector<8x4xf32>
      %306 = vector.shape_cast %303 : vector<8x4xf32> to vector<1x8x4xf32>
      tpu.vector_store %arg9[%c1_276, %c0_277, %c0_278], %306 {strides = array<i32>} : memref<8x8x4xf32, #tpu.memory_space<vmem>>, vector<1x8x4xf32>,
      %c1_279 = arith.constant 1 : index
      %c2_280 = arith.constant 2 : index
      %c0_281 = arith.constant 0 : index
      %c0_282 = arith.constant 0 : index
      %307 = vector.load %arg3[%c1_279, %c2_280, %c0_281, %c0_282] : memref<3x8x32x4xf32, #tpu.memory_space<vmem>>, vector<1x1x32x4xf32>
      %308 = vector.shape_cast %307 : vector<1x1x32x4xf32> to vector<32x4xf32>
      %cst_283 = arith.constant dense<0.000000e+00> : vector<8x4xf32>
      %309 = tpu.matmul %266, %308, %cst_283 {dimension_numbers = #tpu.dot_dimension_numbers<[1], [0], [0], [1], [0, 0, 1, 1], [], []>} : vector<8x32xf32>, vector<32x4xf32>, vector<8x4xf32> -> vector<8x4xf32>
      %c1_284 = arith.constant 1 : index
      %c2_285 = arith.constant 2 : index
      %c0_286 = arith.constant 0 : index
      %c0_287 = arith.constant 0 : index
      %310 = vector.load %arg4[%c1_284, %c2_285, %c0_286, %c0_287] : memref<3x8x1x4xf32, #tpu.memory_space<vmem>>, vector<1x1x1x4xf32>
      %311 = vector.shape_cast %310 : vector<1x1x1x4xf32> to vector<1x4xf32>
      %312 = vector.broadcast %311 : vector<1x4xf32> to vector<8x4xf32>
      %313 = arith.addf %309, %312 : vector<8x4xf32>
      %c2_288 = arith.constant 2 : index
      %c0_289 = arith.constant 0 : index
      %c0_290 = arith.constant 0 : index
      %314 = vector.load %arg8[%c2_288, %c0_289, %c0_290] : memref<8x8x4xf32, #tpu.memory_space<vmem>>, vector<1x8x4xf32>
      %315 = vector.shape_cast %314 : vector<1x8x4xf32> to vector<8x4xf32>
      %316 = vector.shape_cast %313 : vector<8x4xf32> to vector<1x8x4xf32>
      tpu.vector_store %arg8[%c2_288, %c0_289, %c0_290], %316 {strides = array<i32>} : memref<8x8x4xf32, #tpu.memory_space<vmem>>, vector<1x8x4xf32>,
      %c2_291 = arith.constant 2 : index
      %c2_292 = arith.constant 2 : index
      %c0_293 = arith.constant 0 : index
      %c0_294 = arith.constant 0 : index
      %317 = vector.load %arg3[%c2_291, %c2_292, %c0_293, %c0_294] : memref<3x8x32x4xf32, #tpu.memory_space<vmem>>, vector<1x1x32x4xf32>
      %318 = vector.shape_cast %317 : vector<1x1x32x4xf32> to vector<32x4xf32>
      %cst_295 = arith.constant dense<0.000000e+00> : vector<8x4xf32>
      %319 = tpu.matmul %266, %318, %cst_295 {dimension_numbers = #tpu.dot_dimension_numbers<[1], [0], [0], [1], [0, 0, 1, 1], [], []>} : vector<8x32xf32>, vector<32x4xf32>, vector<8x4xf32> -> vector<8x4xf32>
      %c2_296 = arith.constant 2 : index
      %c2_297 = arith.constant 2 : index
      %c0_298 = arith.constant 0 : index
      %c0_299 = arith.constant 0 : index
      %320 = vector.load %arg4[%c2_296, %c2_297, %c0_298, %c0_299] : memref<3x8x1x4xf32, #tpu.memory_space<vmem>>, vector<1x1x1x4xf32>
      %321 = vector.shape_cast %320 : vector<1x1x1x4xf32> to vector<1x4xf32>
      %322 = vector.broadcast %321 : vector<1x4xf32> to vector<8x4xf32>
      %323 = arith.addf %319, %322 : vector<8x4xf32>
      %c2_300 = arith.constant 2 : index
      %c0_301 = arith.constant 0 : index
      %c0_302 = arith.constant 0 : index
      %324 = vector.load %arg9[%c2_300, %c0_301, %c0_302] : memref<8x8x4xf32, #tpu.memory_space<vmem>>, vector<1x8x4xf32>
      %325 = vector.shape_cast %324 : vector<1x8x4xf32> to vector<8x4xf32>
      %326 = vector.shape_cast %323 : vector<8x4xf32> to vector<1x8x4xf32>
      tpu.vector_store %arg9[%c2_300, %c0_301, %c0_302], %326 {strides = array<i32>} : memref<8x8x4xf32, #tpu.memory_space<vmem>>, vector<1x8x4xf32>,
      %c1_303 = arith.constant 1 : index
      %c3_304 = arith.constant 3 : index
      %c0_305 = arith.constant 0 : index
      %c0_306 = arith.constant 0 : index
      %327 = vector.load %arg3[%c1_303, %c3_304, %c0_305, %c0_306] : memref<3x8x32x4xf32, #tpu.memory_space<vmem>>, vector<1x1x32x4xf32>
      %328 = vector.shape_cast %327 : vector<1x1x32x4xf32> to vector<32x4xf32>
      %cst_307 = arith.constant dense<0.000000e+00> : vector<8x4xf32>
      %329 = tpu.matmul %266, %328, %cst_307 {dimension_numbers = #tpu.dot_dimension_numbers<[1], [0], [0], [1], [0, 0, 1, 1], [], []>} : vector<8x32xf32>, vector<32x4xf32>, vector<8x4xf32> -> vector<8x4xf32>
      %c1_308 = arith.constant 1 : index
      %c3_309 = arith.constant 3 : index
      %c0_310 = arith.constant 0 : index
      %c0_311 = arith.constant 0 : index
      %330 = vector.load %arg4[%c1_308, %c3_309, %c0_310, %c0_311] : memref<3x8x1x4xf32, #tpu.memory_space<vmem>>, vector<1x1x1x4xf32>
      %331 = vector.shape_cast %330 : vector<1x1x1x4xf32> to vector<1x4xf32>
      %332 = vector.broadcast %331 : vector<1x4xf32> to vector<8x4xf32>
      %333 = arith.addf %329, %332 : vector<8x4xf32>
      %c3_312 = arith.constant 3 : index
      %c0_313 = arith.constant 0 : index
      %c0_314 = arith.constant 0 : index
      %334 = vector.load %arg8[%c3_312, %c0_313, %c0_314] : memref<8x8x4xf32, #tpu.memory_space<vmem>>, vector<1x8x4xf32>
      %335 = vector.shape_cast %334 : vector<1x8x4xf32> to vector<8x4xf32>
      %336 = vector.shape_cast %333 : vector<8x4xf32> to vector<1x8x4xf32>
      tpu.vector_store %arg8[%c3_312, %c0_313, %c0_314], %336 {strides = array<i32>} : memref<8x8x4xf32, #tpu.memory_space<vmem>>, vector<1x8x4xf32>,
      %c2_315 = arith.constant 2 : index
      %c3_316 = arith.constant 3 : index
      %c0_317 = arith.constant 0 : index
      %c0_318 = arith.constant 0 : index
      %337 = vector.load %arg3[%c2_315, %c3_316, %c0_317, %c0_318] : memref<3x8x32x4xf32, #tpu.memory_space<vmem>>, vector<1x1x32x4xf32>
      %338 = vector.shape_cast %337 : vector<1x1x32x4xf32> to vector<32x4xf32>
      %cst_319 = arith.constant dense<0.000000e+00> : vector<8x4xf32>
      %339 = tpu.matmul %266, %338, %cst_319 {dimension_numbers = #tpu.dot_dimension_numbers<[1], [0], [0], [1], [0, 0, 1, 1], [], []>} : vector<8x32xf32>, vector<32x4xf32>, vector<8x4xf32> -> vector<8x4xf32>
      %c2_320 = arith.constant 2 : index
      %c3_321 = arith.constant 3 : index
      %c0_322 = arith.constant 0 : index
      %c0_323 = arith.constant 0 : index
      %340 = vector.load %arg4[%c2_320, %c3_321, %c0_322, %c0_323] : memref<3x8x1x4xf32, #tpu.memory_space<vmem>>, vector<1x1x1x4xf32>
      %341 = vector.shape_cast %340 : vector<1x1x1x4xf32> to vector<1x4xf32>
      %342 = vector.broadcast %341 : vector<1x4xf32> to vector<8x4xf32>
      %343 = arith.addf %339, %342 : vector<8x4xf32>
      %c3_324 = arith.constant 3 : index
      %c0_325 = arith.constant 0 : index
      %c0_326 = arith.constant 0 : index
      %344 = vector.load %arg9[%c3_324, %c0_325, %c0_326] : memref<8x8x4xf32, #tpu.memory_space<vmem>>, vector<1x8x4xf32>
      %345 = vector.shape_cast %344 : vector<1x8x4xf32> to vector<8x4xf32>
      %346 = vector.shape_cast %343 : vector<8x4xf32> to vector<1x8x4xf32>
      tpu.vector_store %arg9[%c3_324, %c0_325, %c0_326], %346 {strides = array<i32>} : memref<8x8x4xf32, #tpu.memory_space<vmem>>, vector<1x8x4xf32>,
      %c1_327 = arith.constant 1 : index
      %c4_328 = arith.constant 4 : index
      %c0_329 = arith.constant 0 : index
      %c0_330 = arith.constant 0 : index
      %347 = vector.load %arg3[%c1_327, %c4_328, %c0_329, %c0_330] : memref<3x8x32x4xf32, #tpu.memory_space<vmem>>, vector<1x1x32x4xf32>
      %348 = vector.shape_cast %347 : vector<1x1x32x4xf32> to vector<32x4xf32>
      %cst_331 = arith.constant dense<0.000000e+00> : vector<8x4xf32>
      %349 = tpu.matmul %266, %348, %cst_331 {dimension_numbers = #tpu.dot_dimension_numbers<[1], [0], [0], [1], [0, 0, 1, 1], [], []>} : vector<8x32xf32>, vector<32x4xf32>, vector<8x4xf32> -> vector<8x4xf32>
      %c1_332 = arith.constant 1 : index
      %c4_333 = arith.constant 4 : index
      %c0_334 = arith.constant 0 : index
      %c0_335 = arith.constant 0 : index
      %350 = vector.load %arg4[%c1_332, %c4_333, %c0_334, %c0_335] : memref<3x8x1x4xf32, #tpu.memory_space<vmem>>, vector<1x1x1x4xf32>
      %351 = vector.shape_cast %350 : vector<1x1x1x4xf32> to vector<1x4xf32>
      %352 = vector.broadcast %351 : vector<1x4xf32> to vector<8x4xf32>
      %353 = arith.addf %349, %352 : vector<8x4xf32>
      %c4_336 = arith.constant 4 : index
      %c0_337 = arith.constant 0 : index
      %c0_338 = arith.constant 0 : index
      %354 = vector.load %arg8[%c4_336, %c0_337, %c0_338] : memref<8x8x4xf32, #tpu.memory_space<vmem>>, vector<1x8x4xf32>
      %355 = vector.shape_cast %354 : vector<1x8x4xf32> to vector<8x4xf32>
      %356 = vector.shape_cast %353 : vector<8x4xf32> to vector<1x8x4xf32>
      tpu.vector_store %arg8[%c4_336, %c0_337, %c0_338], %356 {strides = array<i32>} : memref<8x8x4xf32, #tpu.memory_space<vmem>>, vector<1x8x4xf32>,
      %c2_339 = arith.constant 2 : index
      %c4_340 = arith.constant 4 : index
      %c0_341 = arith.constant 0 : index
      %c0_342 = arith.constant 0 : index
      %357 = vector.load %arg3[%c2_339, %c4_340, %c0_341, %c0_342] : memref<3x8x32x4xf32, #tpu.memory_space<vmem>>, vector<1x1x32x4xf32>
      %358 = vector.shape_cast %357 : vector<1x1x32x4xf32> to vector<32x4xf32>
      %cst_343 = arith.constant dense<0.000000e+00> : vector<8x4xf32>
      %359 = tpu.matmul %266, %358, %cst_343 {dimension_numbers = #tpu.dot_dimension_numbers<[1], [0], [0], [1], [0, 0, 1, 1], [], []>} : vector<8x32xf32>, vector<32x4xf32>, vector<8x4xf32> -> vector<8x4xf32>
      %c2_344 = arith.constant 2 : index
      %c4_345 = arith.constant 4 : index
      %c0_346 = arith.constant 0 : index
      %c0_347 = arith.constant 0 : index
      %360 = vector.load %arg4[%c2_344, %c4_345, %c0_346, %c0_347] : memref<3x8x1x4xf32, #tpu.memory_space<vmem>>, vector<1x1x1x4xf32>
      %361 = vector.shape_cast %360 : vector<1x1x1x4xf32> to vector<1x4xf32>
      %362 = vector.broadcast %361 : vector<1x4xf32> to vector<8x4xf32>
      %363 = arith.addf %359, %362 : vector<8x4xf32>
      %c4_348 = arith.constant 4 : index
      %c0_349 = arith.constant 0 : index
      %c0_350 = arith.constant 0 : index
      %364 = vector.load %arg9[%c4_348, %c0_349, %c0_350] : memref<8x8x4xf32, #tpu.memory_space<vmem>>, vector<1x8x4xf32>
      %365 = vector.shape_cast %364 : vector<1x8x4xf32> to vector<8x4xf32>
      %366 = vector.shape_cast %363 : vector<8x4xf32> to vector<1x8x4xf32>
      tpu.vector_store %arg9[%c4_348, %c0_349, %c0_350], %366 {strides = array<i32>} : memref<8x8x4xf32, #tpu.memory_space<vmem>>, vector<1x8x4xf32>,
      %c1_351 = arith.constant 1 : index
      %c5_352 = arith.constant 5 : index
      %c0_353 = arith.constant 0 : index
      %c0_354 = arith.constant 0 : index
      %367 = vector.load %arg3[%c1_351, %c5_352, %c0_353, %c0_354] : memref<3x8x32x4xf32, #tpu.memory_space<vmem>>, vector<1x1x32x4xf32>
      %368 = vector.shape_cast %367 : vector<1x1x32x4xf32> to vector<32x4xf32>
      %cst_355 = arith.constant dense<0.000000e+00> : vector<8x4xf32>
      %369 = tpu.matmul %266, %368, %cst_355 {dimension_numbers = #tpu.dot_dimension_numbers<[1], [0], [0], [1], [0, 0, 1, 1], [], []>} : vector<8x32xf32>, vector<32x4xf32>, vector<8x4xf32> -> vector<8x4xf32>
      %c1_356 = arith.constant 1 : index
      %c5_357 = arith.constant 5 : index
      %c0_358 = arith.constant 0 : index
      %c0_359 = arith.constant 0 : index
      %370 = vector.load %arg4[%c1_356, %c5_357, %c0_358, %c0_359] : memref<3x8x1x4xf32, #tpu.memory_space<vmem>>, vector<1x1x1x4xf32>
      %371 = vector.shape_cast %370 : vector<1x1x1x4xf32> to vector<1x4xf32>
      %372 = vector.broadcast %371 : vector<1x4xf32> to vector<8x4xf32>
      %373 = arith.addf %369, %372 : vector<8x4xf32>
      %c5_360 = arith.constant 5 : index
      %c0_361 = arith.constant 0 : index
      %c0_362 = arith.constant 0 : index
      %374 = vector.load %arg8[%c5_360, %c0_361, %c0_362] : memref<8x8x4xf32, #tpu.memory_space<vmem>>, vector<1x8x4xf32>
      %375 = vector.shape_cast %374 : vector<1x8x4xf32> to vector<8x4xf32>
      %376 = vector.shape_cast %373 : vector<8x4xf32> to vector<1x8x4xf32>
      tpu.vector_store %arg8[%c5_360, %c0_361, %c0_362], %376 {strides = array<i32>} : memref<8x8x4xf32, #tpu.memory_space<vmem>>, vector<1x8x4xf32>,
      %c2_363 = arith.constant 2 : index
      %c5_364 = arith.constant 5 : index
      %c0_365 = arith.constant 0 : index
      %c0_366 = arith.constant 0 : index
      %377 = vector.load %arg3[%c2_363, %c5_364, %c0_365, %c0_366] : memref<3x8x32x4xf32, #tpu.memory_space<vmem>>, vector<1x1x32x4xf32>
      %378 = vector.shape_cast %377 : vector<1x1x32x4xf32> to vector<32x4xf32>
      %cst_367 = arith.constant dense<0.000000e+00> : vector<8x4xf32>
      %379 = tpu.matmul %266, %378, %cst_367 {dimension_numbers = #tpu.dot_dimension_numbers<[1], [0], [0], [1], [0, 0, 1, 1], [], []>} : vector<8x32xf32>, vector<32x4xf32>, vector<8x4xf32> -> vector<8x4xf32>
      %c2_368 = arith.constant 2 : index
      %c5_369 = arith.constant 5 : index
      %c0_370 = arith.constant 0 : index
      %c0_371 = arith.constant 0 : index
      %380 = vector.load %arg4[%c2_368, %c5_369, %c0_370, %c0_371] : memref<3x8x1x4xf32, #tpu.memory_space<vmem>>, vector<1x1x1x4xf32>
      %381 = vector.shape_cast %380 : vector<1x1x1x4xf32> to vector<1x4xf32>
      %382 = vector.broadcast %381 : vector<1x4xf32> to vector<8x4xf32>
      %383 = arith.addf %379, %382 : vector<8x4xf32>
      %c5_372 = arith.constant 5 : index
      %c0_373 = arith.constant 0 : index
      %c0_374 = arith.constant 0 : index
      %384 = vector.load %arg9[%c5_372, %c0_373, %c0_374] : memref<8x8x4xf32, #tpu.memory_space<vmem>>, vector<1x8x4xf32>
      %385 = vector.shape_cast %384 : vector<1x8x4xf32> to vector<8x4xf32>
      %386 = vector.shape_cast %383 : vector<8x4xf32> to vector<1x8x4xf32>
      tpu.vector_store %arg9[%c5_372, %c0_373, %c0_374], %386 {strides = array<i32>} : memref<8x8x4xf32, #tpu.memory_space<vmem>>, vector<1x8x4xf32>,
      %c1_375 = arith.constant 1 : index
      %c6_376 = arith.constant 6 : index
      %c0_377 = arith.constant 0 : index
      %c0_378 = arith.constant 0 : index
      %387 = vector.load %arg3[%c1_375, %c6_376, %c0_377, %c0_378] : memref<3x8x32x4xf32, #tpu.memory_space<vmem>>, vector<1x1x32x4xf32>
      %388 = vector.shape_cast %387 : vector<1x1x32x4xf32> to vector<32x4xf32>
      %cst_379 = arith.constant dense<0.000000e+00> : vector<8x4xf32>
      %389 = tpu.matmul %266, %388, %cst_379 {dimension_numbers = #tpu.dot_dimension_numbers<[1], [0], [0], [1], [0, 0, 1, 1], [], []>} : vector<8x32xf32>, vector<32x4xf32>, vector<8x4xf32> -> vector<8x4xf32>
      %c1_380 = arith.constant 1 : index
      %c6_381 = arith.constant 6 : index
      %c0_382 = arith.constant 0 : index
      %c0_383 = arith.constant 0 : index
      %390 = vector.load %arg4[%c1_380, %c6_381, %c0_382, %c0_383] : memref<3x8x1x4xf32, #tpu.memory_space<vmem>>, vector<1x1x1x4xf32>
      %391 = vector.shape_cast %390 : vector<1x1x1x4xf32> to vector<1x4xf32>
      %392 = vector.broadcast %391 : vector<1x4xf32> to vector<8x4xf32>
      %393 = arith.addf %389, %392 : vector<8x4xf32>
      %c6_384 = arith.constant 6 : index
      %c0_385 = arith.constant 0 : index
      %c0_386 = arith.constant 0 : index
      %394 = vector.load %arg8[%c6_384, %c0_385, %c0_386] : memref<8x8x4xf32, #tpu.memory_space<vmem>>, vector<1x8x4xf32>
      %395 = vector.shape_cast %394 : vector<1x8x4xf32> to vector<8x4xf32>
      %396 = vector.shape_cast %393 : vector<8x4xf32> to vector<1x8x4xf32>
      tpu.vector_store %arg8[%c6_384, %c0_385, %c0_386], %396 {strides = array<i32>} : memref<8x8x4xf32, #tpu.memory_space<vmem>>, vector<1x8x4xf32>,
      %c2_387 = arith.constant 2 : index
      %c6_388 = arith.constant 6 : index
      %c0_389 = arith.constant 0 : index
      %c0_390 = arith.constant 0 : index
      %397 = vector.load %arg3[%c2_387, %c6_388, %c0_389, %c0_390] : memref<3x8x32x4xf32, #tpu.memory_space<vmem>>, vector<1x1x32x4xf32>
      %398 = vector.shape_cast %397 : vector<1x1x32x4xf32> to vector<32x4xf32>
      %cst_391 = arith.constant dense<0.000000e+00> : vector<8x4xf32>
      %399 = tpu.matmul %266, %398, %cst_391 {dimension_numbers = #tpu.dot_dimension_numbers<[1], [0], [0], [1], [0, 0, 1, 1], [], []>} : vector<8x32xf32>, vector<32x4xf32>, vector<8x4xf32> -> vector<8x4xf32>
      %c2_392 = arith.constant 2 : index
      %c6_393 = arith.constant 6 : index
      %c0_394 = arith.constant 0 : index
      %c0_395 = arith.constant 0 : index
      %400 = vector.load %arg4[%c2_392, %c6_393, %c0_394, %c0_395] : memref<3x8x1x4xf32, #tpu.memory_space<vmem>>, vector<1x1x1x4xf32>
      %401 = vector.shape_cast %400 : vector<1x1x1x4xf32> to vector<1x4xf32>
      %402 = vector.broadcast %401 : vector<1x4xf32> to vector<8x4xf32>
      %403 = arith.addf %399, %402 : vector<8x4xf32>
      %c6_396 = arith.constant 6 : index
      %c0_397 = arith.constant 0 : index
      %c0_398 = arith.constant 0 : index
      %404 = vector.load %arg9[%c6_396, %c0_397, %c0_398] : memref<8x8x4xf32, #tpu.memory_space<vmem>>, vector<1x8x4xf32>
      %405 = vector.shape_cast %404 : vector<1x8x4xf32> to vector<8x4xf32>
      %406 = vector.shape_cast %403 : vector<8x4xf32> to vector<1x8x4xf32>
      tpu.vector_store %arg9[%c6_396, %c0_397, %c0_398], %406 {strides = array<i32>} : memref<8x8x4xf32, #tpu.memory_space<vmem>>, vector<1x8x4xf32>,
      %c1_399 = arith.constant 1 : index
      %c7_400 = arith.constant 7 : index
      %c0_401 = arith.constant 0 : index
      %c0_402 = arith.constant 0 : index
      %407 = vector.load %arg3[%c1_399, %c7_400, %c0_401, %c0_402] : memref<3x8x32x4xf32, #tpu.memory_space<vmem>>, vector<1x1x32x4xf32>
      %408 = vector.shape_cast %407 : vector<1x1x32x4xf32> to vector<32x4xf32>
      %cst_403 = arith.constant dense<0.000000e+00> : vector<8x4xf32>
      %409 = tpu.matmul %266, %408, %cst_403 {dimension_numbers = #tpu.dot_dimension_numbers<[1], [0], [0], [1], [0, 0, 1, 1], [], []>} : vector<8x32xf32>, vector<32x4xf32>, vector<8x4xf32> -> vector<8x4xf32>
      %c1_404 = arith.constant 1 : index
      %c7_405 = arith.constant 7 : index
      %c0_406 = arith.constant 0 : index
      %c0_407 = arith.constant 0 : index
      %410 = vector.load %arg4[%c1_404, %c7_405, %c0_406, %c0_407] : memref<3x8x1x4xf32, #tpu.memory_space<vmem>>, vector<1x1x1x4xf32>
      %411 = vector.shape_cast %410 : vector<1x1x1x4xf32> to vector<1x4xf32>
      %412 = vector.broadcast %411 : vector<1x4xf32> to vector<8x4xf32>
      %413 = arith.addf %409, %412 : vector<8x4xf32>
      %c7_408 = arith.constant 7 : index
      %c0_409 = arith.constant 0 : index
      %c0_410 = arith.constant 0 : index
      %414 = vector.load %arg8[%c7_408, %c0_409, %c0_410] : memref<8x8x4xf32, #tpu.memory_space<vmem>>, vector<1x8x4xf32>
      %415 = vector.shape_cast %414 : vector<1x8x4xf32> to vector<8x4xf32>
      %416 = vector.shape_cast %413 : vector<8x4xf32> to vector<1x8x4xf32>
      tpu.vector_store %arg8[%c7_408, %c0_409, %c0_410], %416 {strides = array<i32>} : memref<8x8x4xf32, #tpu.memory_space<vmem>>, vector<1x8x4xf32>,
      %c2_411 = arith.constant 2 : index
      %c7_412 = arith.constant 7 : index
      %c0_413 = arith.constant 0 : index
      %c0_414 = arith.constant 0 : index
      %417 = vector.load %arg3[%c2_411, %c7_412, %c0_413, %c0_414] : memref<3x8x32x4xf32, #tpu.memory_space<vmem>>, vector<1x1x32x4xf32>
      %418 = vector.shape_cast %417 : vector<1x1x32x4xf32> to vector<32x4xf32>
      %cst_415 = arith.constant dense<0.000000e+00> : vector<8x4xf32>
      %419 = tpu.matmul %266, %418, %cst_415 {dimension_numbers = #tpu.dot_dimension_numbers<[1], [0], [0], [1], [0, 0, 1, 1], [], []>} : vector<8x32xf32>, vector<32x4xf32>, vector<8x4xf32> -> vector<8x4xf32>
      %c2_416 = arith.constant 2 : index
      %c7_417 = arith.constant 7 : index
      %c0_418 = arith.constant 0 : index
      %c0_419 = arith.constant 0 : index
      %420 = vector.load %arg4[%c2_416, %c7_417, %c0_418, %c0_419] : memref<3x8x1x4xf32, #tpu.memory_space<vmem>>, vector<1x1x1x4xf32>
      %421 = vector.shape_cast %420 : vector<1x1x1x4xf32> to vector<1x4xf32>
      %422 = vector.broadcast %421 : vector<1x4xf32> to vector<8x4xf32>
      %423 = arith.addf %419, %422 : vector<8x4xf32>
      %c7_420 = arith.constant 7 : index
      %c0_421 = arith.constant 0 : index
      %c0_422 = arith.constant 0 : index
      %424 = vector.load %arg9[%c7_420, %c0_421, %c0_422] : memref<8x8x4xf32, #tpu.memory_space<vmem>>, vector<1x8x4xf32>
      %425 = vector.shape_cast %424 : vector<1x8x4xf32> to vector<8x4xf32>
      %426 = vector.shape_cast %423 : vector<8x4xf32> to vector<1x8x4xf32>
      tpu.vector_store %arg9[%c7_420, %c0_421, %c0_422], %426 {strides = array<i32>} : memref<8x8x4xf32, #tpu.memory_space<vmem>>, vector<1x8x4xf32>,
    } else {
    }
    %c8_i32 = arith.constant 8 : i32
    %3 = arith.muli %arg1, %c8_i32 : i32
    %4 = tpu.assume_multiple %3, 8 : i32
    %c0 = arith.constant 0 : index
    %5 = arith.index_cast %4 : i32 to index
    %c0_1 = arith.constant 0 : index
    %6 = vector.load %arg2[%c0, %5, %c0_1] : memref<1x8x32xf32, #tpu.memory_space<vmem>>, vector<1x8x32xf32>
    %7 = vector.shape_cast %6 : vector<1x8x32xf32> to vector<8x32xf32>
    %cst = arith.constant 0.000000e+00 : f32
    %8 = vector.broadcast %cst : f32 to vector<8x32xf32>
    %c0_2 = arith.constant 0 : index
    %c0_3 = arith.constant 0 : index
    %9 = vector.load %arg10[%c0_2, %c0_3] : memref<8x32xf32, #tpu.memory_space<vmem>>, vector<8x32xf32>
    tpu.vector_store %arg10[%c0_2, %c0_3], %8 {strides = array<i32>} : memref<8x32xf32, #tpu.memory_space<vmem>>, vector<8x32xf32>,
    %c0_4 = arith.constant 0 : index
    %c0_5 = arith.constant 0 : index
    %c0_6 = arith.constant 0 : index
    %c0_7 = arith.constant 0 : index
    %10 = vector.load %arg3[%c0_4, %c0_5, %c0_6, %c0_7] : memref<3x8x32x4xf32, #tpu.memory_space<vmem>>, vector<1x1x32x4xf32>
    %11 = vector.shape_cast %10 : vector<1x1x32x4xf32> to vector<32x4xf32>
    %cst_8 = arith.constant dense<0.000000e+00> : vector<8x4xf32>
    %12 = tpu.matmul %7, %11, %cst_8 {dimension_numbers = #tpu.dot_dimension_numbers<[1], [0], [0], [1], [0, 0, 1, 1], [], []>} : vector<8x32xf32>, vector<32x4xf32>, vector<8x4xf32> -> vector<8x4xf32>
    %c0_9 = arith.constant 0 : index
    %c0_10 = arith.constant 0 : index
    %c0_11 = arith.constant 0 : index
    %c0_12 = arith.constant 0 : index
    %13 = vector.load %arg4[%c0_9, %c0_10, %c0_11, %c0_12] : memref<3x8x1x4xf32, #tpu.memory_space<vmem>>, vector<1x1x1x4xf32>
    %14 = vector.shape_cast %13 : vector<1x1x1x4xf32> to vector<1x4xf32>
    %15 = vector.broadcast %14 : vector<1x4xf32> to vector<8x4xf32>
    %16 = arith.addf %12, %15 : vector<8x4xf32>
    %c0_13 = arith.constant 0 : index
    %c0_14 = arith.constant 0 : index
    %c0_15 = arith.constant 0 : index
    %17 = vector.load %arg8[%c0_13, %c0_14, %c0_15] : memref<8x8x4xf32, #tpu.memory_space<vmem>>, vector<1x8x4xf32>
    %18 = vector.shape_cast %17 : vector<1x8x4xf32> to vector<8x4xf32>
    %c0_16 = arith.constant 0 : index
    %c0_17 = arith.constant 0 : index
    %c0_18 = arith.constant 0 : index
    %19 = vector.load %arg9[%c0_16, %c0_17, %c0_18] : memref<8x8x4xf32, #tpu.memory_space<vmem>>, vector<1x8x4xf32>
    %20 = vector.shape_cast %19 : vector<1x8x4xf32> to vector<8x4xf32>
    %cst_19 = arith.constant dense<0.000000e+00> : vector<8x8xf32>
    %21 = tpu.matmul %16, %18, %cst_19 {dimension_numbers = #tpu.dot_dimension_numbers<[1], [1], [0], [0], [0, 0, 1, 0], [], []>} : vector<8x4xf32>, vector<8x4xf32>, vector<8x8xf32> -> vector<8x8xf32>
    %cst_20 = arith.constant dense<0xFF800000> : vector<8xf32>
    %22 = vector.multi_reduction <maximumf>, %21, %cst_20 [1] : vector<8x8xf32> to vector<8xf32>
    %23 = vector.shape_cast %22 : vector<8xf32> to vector<8x1xf32>
    %24 = vector.broadcast %23 : vector<8x1xf32> to vector<8x8xf32>
    %25 = arith.subf %21, %24 : vector<8x8xf32>
    %26 = math.exp %25 : vector<8x8xf32>
    %cst_21 = arith.constant dense<0.000000e+00> : vector<8xf32>
    %27 = vector.multi_reduction <add>, %26, %cst_21 [1] : vector<8x8xf32> to vector<8xf32>
    %28 = vector.shape_cast %27 : vector<8xf32> to vector<8x1xf32>
    %29 = tpu.reciprocal %28 : vector<8x1xf32> -> vector<8x1xf32>
    %cst_22 = arith.constant 0.176776692 : f32
    %30 = vector.broadcast %cst_22 : f32 to vector<8x1xf32>
    %31 = arith.mulf %30, %29 : vector<8x1xf32>
    %32 = vector.broadcast %31 : vector<8x1xf32> to vector<8x8xf32>
    %33 = arith.mulf %26, %32 : vector<8x8xf32>
    %cst_23 = arith.constant dense<0.000000e+00> : vector<8x4xf32>
    %34 = tpu.matmul %33, %20, %cst_23 {dimension_numbers = #tpu.dot_dimension_numbers<[1], [0], [0], [1], [0, 0, 1, 1], [], []>} : vector<8x8xf32>, vector<8x4xf32>, vector<8x4xf32> -> vector<8x4xf32>
    %c0_24 = arith.constant 0 : index
    %c0_25 = arith.constant 0 : index
    %35 = vector.load %arg10[%c0_24, %c0_25] : memref<8x32xf32, #tpu.memory_space<vmem>>, vector<8x32xf32>
    %c0_26 = arith.constant 0 : index
    %c0_27 = arith.constant 0 : index
    %c0_28 = arith.constant 0 : index
    %36 = vector.load %arg5[%c0_26, %c0_27, %c0_28] : memref<8x4x32xf32, #tpu.memory_space<vmem>>, vector<1x4x32xf32>
    %37 = vector.shape_cast %36 : vector<1x4x32xf32> to vector<4x32xf32>
    %cst_29 = arith.constant dense<0.000000e+00> : vector<8x32xf32>
    %38 = tpu.matmul %34, %37, %cst_29 {dimension_numbers = #tpu.dot_dimension_numbers<[1], [0], [0], [1], [0, 0, 1, 1], [], []>} : vector<8x4xf32>, vector<4x32xf32>, vector<8x32xf32> -> vector<8x32xf32>
    %39 = arith.addf %35, %38 : vector<8x32xf32>
    %c0_30 = arith.constant 0 : index
    %c0_31 = arith.constant 0 : index
    %40 = vector.load %arg10[%c0_30, %c0_31] : memref<8x32xf32, #tpu.memory_space<vmem>>, vector<8x32xf32>
    tpu.vector_store %arg10[%c0_30, %c0_31], %39 {strides = array<i32>} : memref<8x32xf32, #tpu.memory_space<vmem>>, vector<8x32xf32>,
    %c0_32 = arith.constant 0 : index
    %c1 = arith.constant 1 : index
    %c0_33 = arith.constant 0 : index
    %c0_34 = arith.constant 0 : index
    %41 = vector.load %arg3[%c0_32, %c1, %c0_33, %c0_34] : memref<3x8x32x4xf32, #tpu.memory_space<vmem>>, vector<1x1x32x4xf32>
    %42 = vector.shape_cast %41 : vector<1x1x32x4xf32> to vector<32x4xf32>
    %cst_35 = arith.constant dense<0.000000e+00> : vector<8x4xf32>
    %43 = tpu.matmul %7, %42, %cst_35 {dimension_numbers = #tpu.dot_dimension_numbers<[1], [0], [0], [1], [0, 0, 1, 1], [], []>} : vector<8x32xf32>, vector<32x4xf32>, vector<8x4xf32> -> vector<8x4xf32>
    %c0_36 = arith.constant 0 : index
    %c1_37 = arith.constant 1 : index
    %c0_38 = arith.constant 0 : index
    %c0_39 = arith.constant 0 : index
    %44 = vector.load %arg4[%c0_36, %c1_37, %c0_38, %c0_39] : memref<3x8x1x4xf32, #tpu.memory_space<vmem>>, vector<1x1x1x4xf32>
    %45 = vector.shape_cast %44 : vector<1x1x1x4xf32> to vector<1x4xf32>
    %46 = vector.broadcast %45 : vector<1x4xf32> to vector<8x4xf32>
    %47 = arith.addf %43, %46 : vector<8x4xf32>
    %c1_40 = arith.constant 1 : index
    %c0_41 = arith.constant 0 : index
    %c0_42 = arith.constant 0 : index
    %48 = vector.load %arg8[%c1_40, %c0_41, %c0_42] : memref<8x8x4xf32, #tpu.memory_space<vmem>>, vector<1x8x4xf32>
    %49 = vector.shape_cast %48 : vector<1x8x4xf32> to vector<8x4xf32>
    %c1_43 = arith.constant 1 : index
    %c0_44 = arith.constant 0 : index
    %c0_45 = arith.constant 0 : index
    %50 = vector.load %arg9[%c1_43, %c0_44, %c0_45] : memref<8x8x4xf32, #tpu.memory_space<vmem>>, vector<1x8x4xf32>
    %51 = vector.shape_cast %50 : vector<1x8x4xf32> to vector<8x4xf32>
    %cst_46 = arith.constant dense<0.000000e+00> : vector<8x8xf32>
    %52 = tpu.matmul %47, %49, %cst_46 {dimension_numbers = #tpu.dot_dimension_numbers<[1], [1], [0], [0], [0, 0, 1, 0], [], []>} : vector<8x4xf32>, vector<8x4xf32>, vector<8x8xf32> -> vector<8x8xf32>
    %cst_47 = arith.constant dense<0xFF800000> : vector<8xf32>
    %53 = vector.multi_reduction <maximumf>, %52, %cst_47 [1] : vector<8x8xf32> to vector<8xf32>
    %54 = vector.shape_cast %53 : vector<8xf32> to vector<8x1xf32>
    %55 = vector.broadcast %54 : vector<8x1xf32> to vector<8x8xf32>
    %56 = arith.subf %52, %55 : vector<8x8xf32>
    %57 = math.exp %56 : vector<8x8xf32>
    %cst_48 = arith.constant dense<0.000000e+00> : vector<8xf32>
    %58 = vector.multi_reduction <add>, %57, %cst_48 [1] : vector<8x8xf32> to vector<8xf32>
    %59 = vector.shape_cast %58 : vector<8xf32> to vector<8x1xf32>
    %60 = tpu.reciprocal %59 : vector<8x1xf32> -> vector<8x1xf32>
    %cst_49 = arith.constant 0.176776692 : f32
    %61 = vector.broadcast %cst_49 : f32 to vector<8x1xf32>
    %62 = arith.mulf %61, %60 : vector<8x1xf32>
    %63 = vector.broadcast %62 : vector<8x1xf32> to vector<8x8xf32>
    %64 = arith.mulf %57, %63 : vector<8x8xf32>
    %cst_50 = arith.constant dense<0.000000e+00> : vector<8x4xf32>
    %65 = tpu.matmul %64, %51, %cst_50 {dimension_numbers = #tpu.dot_dimension_numbers<[1], [0], [0], [1], [0, 0, 1, 1], [], []>} : vector<8x8xf32>, vector<8x4xf32>, vector<8x4xf32> -> vector<8x4xf32>
    %c0_51 = arith.constant 0 : index
    %c0_52 = arith.constant 0 : index
    %66 = vector.load %arg10[%c0_51, %c0_52] : memref<8x32xf32, #tpu.memory_space<vmem>>, vector<8x32xf32>
    %c1_53 = arith.constant 1 : index
    %c0_54 = arith.constant 0 : index
    %c0_55 = arith.constant 0 : index
    %67 = vector.load %arg5[%c1_53, %c0_54, %c0_55] : memref<8x4x32xf32, #tpu.memory_space<vmem>>, vector<1x4x32xf32>
    %68 = vector.shape_cast %67 : vector<1x4x32xf32> to vector<4x32xf32>
    %cst_56 = arith.constant dense<0.000000e+00> : vector<8x32xf32>
    %69 = tpu.matmul %65, %68, %cst_56 {dimension_numbers = #tpu.dot_dimension_numbers<[1], [0], [0], [1], [0, 0, 1, 1], [], []>} : vector<8x4xf32>, vector<4x32xf32>, vector<8x32xf32> -> vector<8x32xf32>
    %70 = arith.addf %66, %69 : vector<8x32xf32>
    %c0_57 = arith.constant 0 : index
    %c0_58 = arith.constant 0 : index
    %71 = vector.load %arg10[%c0_57, %c0_58] : memref<8x32xf32, #tpu.memory_space<vmem>>, vector<8x32xf32>
    tpu.vector_store %arg10[%c0_57, %c0_58], %70 {strides = array<i32>} : memref<8x32xf32, #tpu.memory_space<vmem>>, vector<8x32xf32>,
    %c0_59 = arith.constant 0 : index
    %c2 = arith.constant 2 : index
    %c0_60 = arith.constant 0 : index
    %c0_61 = arith.constant 0 : index
    %72 = vector.load %arg3[%c0_59, %c2, %c0_60, %c0_61] : memref<3x8x32x4xf32, #tpu.memory_space<vmem>>, vector<1x1x32x4xf32>
    %73 = vector.shape_cast %72 : vector<1x1x32x4xf32> to vector<32x4xf32>
    %cst_62 = arith.constant dense<0.000000e+00> : vector<8x4xf32>
    %74 = tpu.matmul %7, %73, %cst_62 {dimension_numbers = #tpu.dot_dimension_numbers<[1], [0], [0], [1], [0, 0, 1, 1], [], []>} : vector<8x32xf32>, vector<32x4xf32>, vector<8x4xf32> -> vector<8x4xf32>
    %c0_63 = arith.constant 0 : index
    %c2_64 = arith.constant 2 : index
    %c0_65 = arith.constant 0 : index
    %c0_66 = arith.constant 0 : index
    %75 = vector.load %arg4[%c0_63, %c2_64, %c0_65, %c0_66] : memref<3x8x1x4xf32, #tpu.memory_space<vmem>>, vector<1x1x1x4xf32>
    %76 = vector.shape_cast %75 : vector<1x1x1x4xf32> to vector<1x4xf32>
    %77 = vector.broadcast %76 : vector<1x4xf32> to vector<8x4xf32>
    %78 = arith.addf %74, %77 : vector<8x4xf32>
    %c2_67 = arith.constant 2 : index
    %c0_68 = arith.constant 0 : index
    %c0_69 = arith.constant 0 : index
    %79 = vector.load %arg8[%c2_67, %c0_68, %c0_69] : memref<8x8x4xf32, #tpu.memory_space<vmem>>, vector<1x8x4xf32>
    %80 = vector.shape_cast %79 : vector<1x8x4xf32> to vector<8x4xf32>
    %c2_70 = arith.constant 2 : index
    %c0_71 = arith.constant 0 : index
    %c0_72 = arith.constant 0 : index
    %81 = vector.load %arg9[%c2_70, %c0_71, %c0_72] : memref<8x8x4xf32, #tpu.memory_space<vmem>>, vector<1x8x4xf32>
    %82 = vector.shape_cast %81 : vector<1x8x4xf32> to vector<8x4xf32>
    %cst_73 = arith.constant dense<0.000000e+00> : vector<8x8xf32>
    %83 = tpu.matmul %78, %80, %cst_73 {dimension_numbers = #tpu.dot_dimension_numbers<[1], [1], [0], [0], [0, 0, 1, 0], [], []>} : vector<8x4xf32>, vector<8x4xf32>, vector<8x8xf32> -> vector<8x8xf32>
    %cst_74 = arith.constant dense<0xFF800000> : vector<8xf32>
    %84 = vector.multi_reduction <maximumf>, %83, %cst_74 [1] : vector<8x8xf32> to vector<8xf32>
    %85 = vector.shape_cast %84 : vector<8xf32> to vector<8x1xf32>
    %86 = vector.broadcast %85 : vector<8x1xf32> to vector<8x8xf32>
    %87 = arith.subf %83, %86 : vector<8x8xf32>
    %88 = math.exp %87 : vector<8x8xf32>
    %cst_75 = arith.constant dense<0.000000e+00> : vector<8xf32>
    %89 = vector.multi_reduction <add>, %88, %cst_75 [1] : vector<8x8xf32> to vector<8xf32>
    %90 = vector.shape_cast %89 : vector<8xf32> to vector<8x1xf32>
    %91 = tpu.reciprocal %90 : vector<8x1xf32> -> vector<8x1xf32>
    %cst_76 = arith.constant 0.176776692 : f32
    %92 = vector.broadcast %cst_76 : f32 to vector<8x1xf32>
    %93 = arith.mulf %92, %91 : vector<8x1xf32>
    %94 = vector.broadcast %93 : vector<8x1xf32> to vector<8x8xf32>
    %95 = arith.mulf %88, %94 : vector<8x8xf32>
    %cst_77 = arith.constant dense<0.000000e+00> : vector<8x4xf32>
    %96 = tpu.matmul %95, %82, %cst_77 {dimension_numbers = #tpu.dot_dimension_numbers<[1], [0], [0], [1], [0, 0, 1, 1], [], []>} : vector<8x8xf32>, vector<8x4xf32>, vector<8x4xf32> -> vector<8x4xf32>
    %c0_78 = arith.constant 0 : index
    %c0_79 = arith.constant 0 : index
    %97 = vector.load %arg10[%c0_78, %c0_79] : memref<8x32xf32, #tpu.memory_space<vmem>>, vector<8x32xf32>
    %c2_80 = arith.constant 2 : index
    %c0_81 = arith.constant 0 : index
    %c0_82 = arith.constant 0 : index
    %98 = vector.load %arg5[%c2_80, %c0_81, %c0_82] : memref<8x4x32xf32, #tpu.memory_space<vmem>>, vector<1x4x32xf32>
    %99 = vector.shape_cast %98 : vector<1x4x32xf32> to vector<4x32xf32>
    %cst_83 = arith.constant dense<0.000000e+00> : vector<8x32xf32>
    %100 = tpu.matmul %96, %99, %cst_83 {dimension_numbers = #tpu.dot_dimension_numbers<[1], [0], [0], [1], [0, 0, 1, 1], [], []>} : vector<8x4xf32>, vector<4x32xf32>, vector<8x32xf32> -> vector<8x32xf32>
    %101 = arith.addf %97, %100 : vector<8x32xf32>
    %c0_84 = arith.constant 0 : index
    %c0_85 = arith.constant 0 : index
    %102 = vector.load %arg10[%c0_84, %c0_85] : memref<8x32xf32, #tpu.memory_space<vmem>>, vector<8x32xf32>
    tpu.vector_store %arg10[%c0_84, %c0_85], %101 {strides = array<i32>} : memref<8x32xf32, #tpu.memory_space<vmem>>, vector<8x32xf32>,
    %c0_86 = arith.constant 0 : index
    %c3 = arith.constant 3 : index
    %c0_87 = arith.constant 0 : index
    %c0_88 = arith.constant 0 : index
    %103 = vector.load %arg3[%c0_86, %c3, %c0_87, %c0_88] : memref<3x8x32x4xf32, #tpu.memory_space<vmem>>, vector<1x1x32x4xf32>
    %104 = vector.shape_cast %103 : vector<1x1x32x4xf32> to vector<32x4xf32>
    %cst_89 = arith.constant dense<0.000000e+00> : vector<8x4xf32>
    %105 = tpu.matmul %7, %104, %cst_89 {dimension_numbers = #tpu.dot_dimension_numbers<[1], [0], [0], [1], [0, 0, 1, 1], [], []>} : vector<8x32xf32>, vector<32x4xf32>, vector<8x4xf32> -> vector<8x4xf32>
    %c0_90 = arith.constant 0 : index
    %c3_91 = arith.constant 3 : index
    %c0_92 = arith.constant 0 : index
    %c0_93 = arith.constant 0 : index
    %106 = vector.load %arg4[%c0_90, %c3_91, %c0_92, %c0_93] : memref<3x8x1x4xf32, #tpu.memory_space<vmem>>, vector<1x1x1x4xf32>
    %107 = vector.shape_cast %106 : vector<1x1x1x4xf32> to vector<1x4xf32>
    %108 = vector.broadcast %107 : vector<1x4xf32> to vector<8x4xf32>
    %109 = arith.addf %105, %108 : vector<8x4xf32>
    %c3_94 = arith.constant 3 : index
    %c0_95 = arith.constant 0 : index
    %c0_96 = arith.constant 0 : index
    %110 = vector.load %arg8[%c3_94, %c0_95, %c0_96] : memref<8x8x4xf32, #tpu.memory_space<vmem>>, vector<1x8x4xf32>
    %111 = vector.shape_cast %110 : vector<1x8x4xf32> to vector<8x4xf32>
    %c3_97 = arith.constant 3 : index
    %c0_98 = arith.constant 0 : index
    %c0_99 = arith.constant 0 : index
    %112 = vector.load %arg9[%c3_97, %c0_98, %c0_99] : memref<8x8x4xf32, #tpu.memory_space<vmem>>, vector<1x8x4xf32>
    %113 = vector.shape_cast %112 : vector<1x8x4xf32> to vector<8x4xf32>
    %cst_100 = arith.constant dense<0.000000e+00> : vector<8x8xf32>
    %114 = tpu.matmul %109, %111, %cst_100 {dimension_numbers = #tpu.dot_dimension_numbers<[1], [1], [0], [0], [0, 0, 1, 0], [], []>} : vector<8x4xf32>, vector<8x4xf32>, vector<8x8xf32> -> vector<8x8xf32>
    %cst_101 = arith.constant dense<0xFF800000> : vector<8xf32>
    %115 = vector.multi_reduction <maximumf>, %114, %cst_101 [1] : vector<8x8xf32> to vector<8xf32>
    %116 = vector.shape_cast %115 : vector<8xf32> to vector<8x1xf32>
    %117 = vector.broadcast %116 : vector<8x1xf32> to vector<8x8xf32>
    %118 = arith.subf %114, %117 : vector<8x8xf32>
    %119 = math.exp %118 : vector<8x8xf32>
    %cst_102 = arith.constant dense<0.000000e+00> : vector<8xf32>
    %120 = vector.multi_reduction <add>, %119, %cst_102 [1] : vector<8x8xf32> to vector<8xf32>
    %121 = vector.shape_cast %120 : vector<8xf32> to vector<8x1xf32>
    %122 = tpu.reciprocal %121 : vector<8x1xf32> -> vector<8x1xf32>
    %cst_103 = arith.constant 0.176776692 : f32
    %123 = vector.broadcast %cst_103 : f32 to vector<8x1xf32>
    %124 = arith.mulf %123, %122 : vector<8x1xf32>
    %125 = vector.broadcast %124 : vector<8x1xf32> to vector<8x8xf32>
    %126 = arith.mulf %119, %125 : vector<8x8xf32>
    %cst_104 = arith.constant dense<0.000000e+00> : vector<8x4xf32>
    %127 = tpu.matmul %126, %113, %cst_104 {dimension_numbers = #tpu.dot_dimension_numbers<[1], [0], [0], [1], [0, 0, 1, 1], [], []>} : vector<8x8xf32>, vector<8x4xf32>, vector<8x4xf32> -> vector<8x4xf32>
    %c0_105 = arith.constant 0 : index
    %c0_106 = arith.constant 0 : index
    %128 = vector.load %arg10[%c0_105, %c0_106] : memref<8x32xf32, #tpu.memory_space<vmem>>, vector<8x32xf32>
    %c3_107 = arith.constant 3 : index
    %c0_108 = arith.constant 0 : index
    %c0_109 = arith.constant 0 : index
    %129 = vector.load %arg5[%c3_107, %c0_108, %c0_109] : memref<8x4x32xf32, #tpu.memory_space<vmem>>, vector<1x4x32xf32>
    %130 = vector.shape_cast %129 : vector<1x4x32xf32> to vector<4x32xf32>
    %cst_110 = arith.constant dense<0.000000e+00> : vector<8x32xf32>
    %131 = tpu.matmul %127, %130, %cst_110 {dimension_numbers = #tpu.dot_dimension_numbers<[1], [0], [0], [1], [0, 0, 1, 1], [], []>} : vector<8x4xf32>, vector<4x32xf32>, vector<8x32xf32> -> vector<8x32xf32>
    %132 = arith.addf %128, %131 : vector<8x32xf32>
    %c0_111 = arith.constant 0 : index
    %c0_112 = arith.constant 0 : index
    %133 = vector.load %arg10[%c0_111, %c0_112] : memref<8x32xf32, #tpu.memory_space<vmem>>, vector<8x32xf32>
    tpu.vector_store %arg10[%c0_111, %c0_112], %132 {strides = array<i32>} : memref<8x32xf32, #tpu.memory_space<vmem>>, vector<8x32xf32>,
    %c0_113 = arith.constant 0 : index
    %c4 = arith.constant 4 : index
    %c0_114 = arith.constant 0 : index
    %c0_115 = arith.constant 0 : index
    %134 = vector.load %arg3[%c0_113, %c4, %c0_114, %c0_115] : memref<3x8x32x4xf32, #tpu.memory_space<vmem>>, vector<1x1x32x4xf32>
    %135 = vector.shape_cast %134 : vector<1x1x32x4xf32> to vector<32x4xf32>
    %cst_116 = arith.constant dense<0.000000e+00> : vector<8x4xf32>
    %136 = tpu.matmul %7, %135, %cst_116 {dimension_numbers = #tpu.dot_dimension_numbers<[1], [0], [0], [1], [0, 0, 1, 1], [], []>} : vector<8x32xf32>, vector<32x4xf32>, vector<8x4xf32> -> vector<8x4xf32>
    %c0_117 = arith.constant 0 : index
    %c4_118 = arith.constant 4 : index
    %c0_119 = arith.constant 0 : index
    %c0_120 = arith.constant 0 : index
    %137 = vector.load %arg4[%c0_117, %c4_118, %c0_119, %c0_120] : memref<3x8x1x4xf32, #tpu.memory_space<vmem>>, vector<1x1x1x4xf32>
    %138 = vector.shape_cast %137 : vector<1x1x1x4xf32> to vector<1x4xf32>
    %139 = vector.broadcast %138 : vector<1x4xf32> to vector<8x4xf32>
    %140 = arith.addf %136, %139 : vector<8x4xf32>
    %c4_121 = arith.constant 4 : index
    %c0_122 = arith.constant 0 : index
    %c0_123 = arith.constant 0 : index
    %141 = vector.load %arg8[%c4_121, %c0_122, %c0_123] : memref<8x8x4xf32, #tpu.memory_space<vmem>>, vector<1x8x4xf32>
    %142 = vector.shape_cast %141 : vector<1x8x4xf32> to vector<8x4xf32>
    %c4_124 = arith.constant 4 : index
    %c0_125 = arith.constant 0 : index
    %c0_126 = arith.constant 0 : index
    %143 = vector.load %arg9[%c4_124, %c0_125, %c0_126] : memref<8x8x4xf32, #tpu.memory_space<vmem>>, vector<1x8x4xf32>
    %144 = vector.shape_cast %143 : vector<1x8x4xf32> to vector<8x4xf32>
    %cst_127 = arith.constant dense<0.000000e+00> : vector<8x8xf32>
    %145 = tpu.matmul %140, %142, %cst_127 {dimension_numbers = #tpu.dot_dimension_numbers<[1], [1], [0], [0], [0, 0, 1, 0], [], []>} : vector<8x4xf32>, vector<8x4xf32>, vector<8x8xf32> -> vector<8x8xf32>
    %cst_128 = arith.constant dense<0xFF800000> : vector<8xf32>
    %146 = vector.multi_reduction <maximumf>, %145, %cst_128 [1] : vector<8x8xf32> to vector<8xf32>
    %147 = vector.shape_cast %146 : vector<8xf32> to vector<8x1xf32>
    %148 = vector.broadcast %147 : vector<8x1xf32> to vector<8x8xf32>
    %149 = arith.subf %145, %148 : vector<8x8xf32>
    %150 = math.exp %149 : vector<8x8xf32>
    %cst_129 = arith.constant dense<0.000000e+00> : vector<8xf32>
    %151 = vector.multi_reduction <add>, %150, %cst_129 [1] : vector<8x8xf32> to vector<8xf32>
    %152 = vector.shape_cast %151 : vector<8xf32> to vector<8x1xf32>
    %153 = tpu.reciprocal %152 : vector<8x1xf32> -> vector<8x1xf32>
    %cst_130 = arith.constant 0.176776692 : f32
    %154 = vector.broadcast %cst_130 : f32 to vector<8x1xf32>
    %155 = arith.mulf %154, %153 : vector<8x1xf32>
    %156 = vector.broadcast %155 : vector<8x1xf32> to vector<8x8xf32>
    %157 = arith.mulf %150, %156 : vector<8x8xf32>
    %cst_131 = arith.constant dense<0.000000e+00> : vector<8x4xf32>
    %158 = tpu.matmul %157, %144, %cst_131 {dimension_numbers = #tpu.dot_dimension_numbers<[1], [0], [0], [1], [0, 0, 1, 1], [], []>} : vector<8x8xf32>, vector<8x4xf32>, vector<8x4xf32> -> vector<8x4xf32>
    %c0_132 = arith.constant 0 : index
    %c0_133 = arith.constant 0 : index
    %159 = vector.load %arg10[%c0_132, %c0_133] : memref<8x32xf32, #tpu.memory_space<vmem>>, vector<8x32xf32>
    %c4_134 = arith.constant 4 : index
    %c0_135 = arith.constant 0 : index
    %c0_136 = arith.constant 0 : index
    %160 = vector.load %arg5[%c4_134, %c0_135, %c0_136] : memref<8x4x32xf32, #tpu.memory_space<vmem>>, vector<1x4x32xf32>
    %161 = vector.shape_cast %160 : vector<1x4x32xf32> to vector<4x32xf32>
    %cst_137 = arith.constant dense<0.000000e+00> : vector<8x32xf32>
    %162 = tpu.matmul %158, %161, %cst_137 {dimension_numbers = #tpu.dot_dimension_numbers<[1], [0], [0], [1], [0, 0, 1, 1], [], []>} : vector<8x4xf32>, vector<4x32xf32>, vector<8x32xf32> -> vector<8x32xf32>
    %163 = arith.addf %159, %162 : vector<8x32xf32>
    %c0_138 = arith.constant 0 : index
    %c0_139 = arith.constant 0 : index
    %164 = vector.load %arg10[%c0_138, %c0_139] : memref<8x32xf32, #tpu.memory_space<vmem>>, vector<8x32xf32>
    tpu.vector_store %arg10[%c0_138, %c0_139], %163 {strides = array<i32>} : memref<8x32xf32, #tpu.memory_space<vmem>>, vector<8x32xf32>,
    %c0_140 = arith.constant 0 : index
    %c5 = arith.constant 5 : index
    %c0_141 = arith.constant 0 : index
    %c0_142 = arith.constant 0 : index
    %165 = vector.load %arg3[%c0_140, %c5, %c0_141, %c0_142] : memref<3x8x32x4xf32, #tpu.memory_space<vmem>>, vector<1x1x32x4xf32>
    %166 = vector.shape_cast %165 : vector<1x1x32x4xf32> to vector<32x4xf32>
    %cst_143 = arith.constant dense<0.000000e+00> : vector<8x4xf32>
    %167 = tpu.matmul %7, %166, %cst_143 {dimension_numbers = #tpu.dot_dimension_numbers<[1], [0], [0], [1], [0, 0, 1, 1], [], []>} : vector<8x32xf32>, vector<32x4xf32>, vector<8x4xf32> -> vector<8x4xf32>
    %c0_144 = arith.constant 0 : index
    %c5_145 = arith.constant 5 : index
    %c0_146 = arith.constant 0 : index
    %c0_147 = arith.constant 0 : index
    %168 = vector.load %arg4[%c0_144, %c5_145, %c0_146, %c0_147] : memref<3x8x1x4xf32, #tpu.memory_space<vmem>>, vector<1x1x1x4xf32>
    %169 = vector.shape_cast %168 : vector<1x1x1x4xf32> to vector<1x4xf32>
    %170 = vector.broadcast %169 : vector<1x4xf32> to vector<8x4xf32>
    %171 = arith.addf %167, %170 : vector<8x4xf32>
    %c5_148 = arith.constant 5 : index
    %c0_149 = arith.constant 0 : index
    %c0_150 = arith.constant 0 : index
    %172 = vector.load %arg8[%c5_148, %c0_149, %c0_150] : memref<8x8x4xf32, #tpu.memory_space<vmem>>, vector<1x8x4xf32>
    %173 = vector.shape_cast %172 : vector<1x8x4xf32> to vector<8x4xf32>
    %c5_151 = arith.constant 5 : index
    %c0_152 = arith.constant 0 : index
    %c0_153 = arith.constant 0 : index
    %174 = vector.load %arg9[%c5_151, %c0_152, %c0_153] : memref<8x8x4xf32, #tpu.memory_space<vmem>>, vector<1x8x4xf32>
    %175 = vector.shape_cast %174 : vector<1x8x4xf32> to vector<8x4xf32>
    %cst_154 = arith.constant dense<0.000000e+00> : vector<8x8xf32>
    %176 = tpu.matmul %171, %173, %cst_154 {dimension_numbers = #tpu.dot_dimension_numbers<[1], [1], [0], [0], [0, 0, 1, 0], [], []>} : vector<8x4xf32>, vector<8x4xf32>, vector<8x8xf32> -> vector<8x8xf32>
    %cst_155 = arith.constant dense<0xFF800000> : vector<8xf32>
    %177 = vector.multi_reduction <maximumf>, %176, %cst_155 [1] : vector<8x8xf32> to vector<8xf32>
    %178 = vector.shape_cast %177 : vector<8xf32> to vector<8x1xf32>
    %179 = vector.broadcast %178 : vector<8x1xf32> to vector<8x8xf32>
    %180 = arith.subf %176, %179 : vector<8x8xf32>
    %181 = math.exp %180 : vector<8x8xf32>
    %cst_156 = arith.constant dense<0.000000e+00> : vector<8xf32>
    %182 = vector.multi_reduction <add>, %181, %cst_156 [1] : vector<8x8xf32> to vector<8xf32>
    %183 = vector.shape_cast %182 : vector<8xf32> to vector<8x1xf32>
    %184 = tpu.reciprocal %183 : vector<8x1xf32> -> vector<8x1xf32>
    %cst_157 = arith.constant 0.176776692 : f32
    %185 = vector.broadcast %cst_157 : f32 to vector<8x1xf32>
    %186 = arith.mulf %185, %184 : vector<8x1xf32>
    %187 = vector.broadcast %186 : vector<8x1xf32> to vector<8x8xf32>
    %188 = arith.mulf %181, %187 : vector<8x8xf32>
    %cst_158 = arith.constant dense<0.000000e+00> : vector<8x4xf32>
    %189 = tpu.matmul %188, %175, %cst_158 {dimension_numbers = #tpu.dot_dimension_numbers<[1], [0], [0], [1], [0, 0, 1, 1], [], []>} : vector<8x8xf32>, vector<8x4xf32>, vector<8x4xf32> -> vector<8x4xf32>
    %c0_159 = arith.constant 0 : index
    %c0_160 = arith.constant 0 : index
    %190 = vector.load %arg10[%c0_159, %c0_160] : memref<8x32xf32, #tpu.memory_space<vmem>>, vector<8x32xf32>
    %c5_161 = arith.constant 5 : index
    %c0_162 = arith.constant 0 : index
    %c0_163 = arith.constant 0 : index
    %191 = vector.load %arg5[%c5_161, %c0_162, %c0_163] : memref<8x4x32xf32, #tpu.memory_space<vmem>>, vector<1x4x32xf32>
    %192 = vector.shape_cast %191 : vector<1x4x32xf32> to vector<4x32xf32>
    %cst_164 = arith.constant dense<0.000000e+00> : vector<8x32xf32>
    %193 = tpu.matmul %189, %192, %cst_164 {dimension_numbers = #tpu.dot_dimension_numbers<[1], [0], [0], [1], [0, 0, 1, 1], [], []>} : vector<8x4xf32>, vector<4x32xf32>, vector<8x32xf32> -> vector<8x32xf32>
    %194 = arith.addf %190, %193 : vector<8x32xf32>
    %c0_165 = arith.constant 0 : index
    %c0_166 = arith.constant 0 : index
    %195 = vector.load %arg10[%c0_165, %c0_166] : memref<8x32xf32, #tpu.memory_space<vmem>>, vector<8x32xf32>
    tpu.vector_store %arg10[%c0_165, %c0_166], %194 {strides = array<i32>} : memref<8x32xf32, #tpu.memory_space<vmem>>, vector<8x32xf32>,
    %c0_167 = arith.constant 0 : index
    %c6 = arith.constant 6 : index
    %c0_168 = arith.constant 0 : index
    %c0_169 = arith.constant 0 : index
    %196 = vector.load %arg3[%c0_167, %c6, %c0_168, %c0_169] : memref<3x8x32x4xf32, #tpu.memory_space<vmem>>, vector<1x1x32x4xf32>
    %197 = vector.shape_cast %196 : vector<1x1x32x4xf32> to vector<32x4xf32>
    %cst_170 = arith.constant dense<0.000000e+00> : vector<8x4xf32>
    %198 = tpu.matmul %7, %197, %cst_170 {dimension_numbers = #tpu.dot_dimension_numbers<[1], [0], [0], [1], [0, 0, 1, 1], [], []>} : vector<8x32xf32>, vector<32x4xf32>, vector<8x4xf32> -> vector<8x4xf32>
    %c0_171 = arith.constant 0 : index
    %c6_172 = arith.constant 6 : index
    %c0_173 = arith.constant 0 : index
    %c0_174 = arith.constant 0 : index
    %199 = vector.load %arg4[%c0_171, %c6_172, %c0_173, %c0_174] : memref<3x8x1x4xf32, #tpu.memory_space<vmem>>, vector<1x1x1x4xf32>
    %200 = vector.shape_cast %199 : vector<1x1x1x4xf32> to vector<1x4xf32>
    %201 = vector.broadcast %200 : vector<1x4xf32> to vector<8x4xf32>
    %202 = arith.addf %198, %201 : vector<8x4xf32>
    %c6_175 = arith.constant 6 : index
    %c0_176 = arith.constant 0 : index
    %c0_177 = arith.constant 0 : index
    %203 = vector.load %arg8[%c6_175, %c0_176, %c0_177] : memref<8x8x4xf32, #tpu.memory_space<vmem>>, vector<1x8x4xf32>
    %204 = vector.shape_cast %203 : vector<1x8x4xf32> to vector<8x4xf32>
    %c6_178 = arith.constant 6 : index
    %c0_179 = arith.constant 0 : index
    %c0_180 = arith.constant 0 : index
    %205 = vector.load %arg9[%c6_178, %c0_179, %c0_180] : memref<8x8x4xf32, #tpu.memory_space<vmem>>, vector<1x8x4xf32>
    %206 = vector.shape_cast %205 : vector<1x8x4xf32> to vector<8x4xf32>
    %cst_181 = arith.constant dense<0.000000e+00> : vector<8x8xf32>
    %207 = tpu.matmul %202, %204, %cst_181 {dimension_numbers = #tpu.dot_dimension_numbers<[1], [1], [0], [0], [0, 0, 1, 0], [], []>} : vector<8x4xf32>, vector<8x4xf32>, vector<8x8xf32> -> vector<8x8xf32>
    %cst_182 = arith.constant dense<0xFF800000> : vector<8xf32>
    %208 = vector.multi_reduction <maximumf>, %207, %cst_182 [1] : vector<8x8xf32> to vector<8xf32>
    %209 = vector.shape_cast %208 : vector<8xf32> to vector<8x1xf32>
    %210 = vector.broadcast %209 : vector<8x1xf32> to vector<8x8xf32>
    %211 = arith.subf %207, %210 : vector<8x8xf32>
    %212 = math.exp %211 : vector<8x8xf32>
    %cst_183 = arith.constant dense<0.000000e+00> : vector<8xf32>
    %213 = vector.multi_reduction <add>, %212, %cst_183 [1] : vector<8x8xf32> to vector<8xf32>
    %214 = vector.shape_cast %213 : vector<8xf32> to vector<8x1xf32>
    %215 = tpu.reciprocal %214 : vector<8x1xf32> -> vector<8x1xf32>
    %cst_184 = arith.constant 0.176776692 : f32
    %216 = vector.broadcast %cst_184 : f32 to vector<8x1xf32>
    %217 = arith.mulf %216, %215 : vector<8x1xf32>
    %218 = vector.broadcast %217 : vector<8x1xf32> to vector<8x8xf32>
    %219 = arith.mulf %212, %218 : vector<8x8xf32>
    %cst_185 = arith.constant dense<0.000000e+00> : vector<8x4xf32>
    %220 = tpu.matmul %219, %206, %cst_185 {dimension_numbers = #tpu.dot_dimension_numbers<[1], [0], [0], [1], [0, 0, 1, 1], [], []>} : vector<8x8xf32>, vector<8x4xf32>, vector<8x4xf32> -> vector<8x4xf32>
    %c0_186 = arith.constant 0 : index
    %c0_187 = arith.constant 0 : index
    %221 = vector.load %arg10[%c0_186, %c0_187] : memref<8x32xf32, #tpu.memory_space<vmem>>, vector<8x32xf32>
    %c6_188 = arith.constant 6 : index
    %c0_189 = arith.constant 0 : index
    %c0_190 = arith.constant 0 : index
    %222 = vector.load %arg5[%c6_188, %c0_189, %c0_190] : memref<8x4x32xf32, #tpu.memory_space<vmem>>, vector<1x4x32xf32>
    %223 = vector.shape_cast %222 : vector<1x4x32xf32> to vector<4x32xf32>
    %cst_191 = arith.constant dense<0.000000e+00> : vector<8x32xf32>
    %224 = tpu.matmul %220, %223, %cst_191 {dimension_numbers = #tpu.dot_dimension_numbers<[1], [0], [0], [1], [0, 0, 1, 1], [], []>} : vector<8x4xf32>, vector<4x32xf32>, vector<8x32xf32> -> vector<8x32xf32>
    %225 = arith.addf %221, %224 : vector<8x32xf32>
    %c0_192 = arith.constant 0 : index
    %c0_193 = arith.constant 0 : index
    %226 = vector.load %arg10[%c0_192, %c0_193] : memref<8x32xf32, #tpu.memory_space<vmem>>, vector<8x32xf32>
    tpu.vector_store %arg10[%c0_192, %c0_193], %225 {strides = array<i32>} : memref<8x32xf32, #tpu.memory_space<vmem>>, vector<8x32xf32>,
    %c0_194 = arith.constant 0 : index
    %c7 = arith.constant 7 : index
    %c0_195 = arith.constant 0 : index
    %c0_196 = arith.constant 0 : index
    %227 = vector.load %arg3[%c0_194, %c7, %c0_195, %c0_196] : memref<3x8x32x4xf32, #tpu.memory_space<vmem>>, vector<1x1x32x4xf32>
    %228 = vector.shape_cast %227 : vector<1x1x32x4xf32> to vector<32x4xf32>
    %cst_197 = arith.constant dense<0.000000e+00> : vector<8x4xf32>
    %229 = tpu.matmul %7, %228, %cst_197 {dimension_numbers = #tpu.dot_dimension_numbers<[1], [0], [0], [1], [0, 0, 1, 1], [], []>} : vector<8x32xf32>, vector<32x4xf32>, vector<8x4xf32> -> vector<8x4xf32>
    %c0_198 = arith.constant 0 : index
    %c7_199 = arith.constant 7 : index
    %c0_200 = arith.constant 0 : index
    %c0_201 = arith.constant 0 : index
    %230 = vector.load %arg4[%c0_198, %c7_199, %c0_200, %c0_201] : memref<3x8x1x4xf32, #tpu.memory_space<vmem>>, vector<1x1x1x4xf32>
    %231 = vector.shape_cast %230 : vector<1x1x1x4xf32> to vector<1x4xf32>
    %232 = vector.broadcast %231 : vector<1x4xf32> to vector<8x4xf32>
    %233 = arith.addf %229, %232 : vector<8x4xf32>
    %c7_202 = arith.constant 7 : index
    %c0_203 = arith.constant 0 : index
    %c0_204 = arith.constant 0 : index
    %234 = vector.load %arg8[%c7_202, %c0_203, %c0_204] : memref<8x8x4xf32, #tpu.memory_space<vmem>>, vector<1x8x4xf32>
    %235 = vector.shape_cast %234 : vector<1x8x4xf32> to vector<8x4xf32>
    %c7_205 = arith.constant 7 : index
    %c0_206 = arith.constant 0 : index
    %c0_207 = arith.constant 0 : index
    %236 = vector.load %arg9[%c7_205, %c0_206, %c0_207] : memref<8x8x4xf32, #tpu.memory_space<vmem>>, vector<1x8x4xf32>
    %237 = vector.shape_cast %236 : vector<1x8x4xf32> to vector<8x4xf32>
    %cst_208 = arith.constant dense<0.000000e+00> : vector<8x8xf32>
    %238 = tpu.matmul %233, %235, %cst_208 {dimension_numbers = #tpu.dot_dimension_numbers<[1], [1], [0], [0], [0, 0, 1, 0], [], []>} : vector<8x4xf32>, vector<8x4xf32>, vector<8x8xf32> -> vector<8x8xf32>
    %cst_209 = arith.constant dense<0xFF800000> : vector<8xf32>
    %239 = vector.multi_reduction <maximumf>, %238, %cst_209 [1] : vector<8x8xf32> to vector<8xf32>
    %240 = vector.shape_cast %239 : vector<8xf32> to vector<8x1xf32>
    %241 = vector.broadcast %240 : vector<8x1xf32> to vector<8x8xf32>
    %242 = arith.subf %238, %241 : vector<8x8xf32>
    %243 = math.exp %242 : vector<8x8xf32>
    %cst_210 = arith.constant dense<0.000000e+00> : vector<8xf32>
    %244 = vector.multi_reduction <add>, %243, %cst_210 [1] : vector<8x8xf32> to vector<8xf32>
    %245 = vector.shape_cast %244 : vector<8xf32> to vector<8x1xf32>
    %246 = tpu.reciprocal %245 : vector<8x1xf32> -> vector<8x1xf32>
    %cst_211 = arith.constant 0.176776692 : f32
    %247 = vector.broadcast %cst_211 : f32 to vector<8x1xf32>
    %248 = arith.mulf %247, %246 : vector<8x1xf32>
    %249 = vector.broadcast %248 : vector<8x1xf32> to vector<8x8xf32>
    %250 = arith.mulf %243, %249 : vector<8x8xf32>
    %cst_212 = arith.constant dense<0.000000e+00> : vector<8x4xf32>
    %251 = tpu.matmul %250, %237, %cst_212 {dimension_numbers = #tpu.dot_dimension_numbers<[1], [0], [0], [1], [0, 0, 1, 1], [], []>} : vector<8x8xf32>, vector<8x4xf32>, vector<8x4xf32> -> vector<8x4xf32>
    %c0_213 = arith.constant 0 : index
    %c0_214 = arith.constant 0 : index
    %252 = vector.load %arg10[%c0_213, %c0_214] : memref<8x32xf32, #tpu.memory_space<vmem>>, vector<8x32xf32>
    %c7_215 = arith.constant 7 : index
    %c0_216 = arith.constant 0 : index
    %c0_217 = arith.constant 0 : index
    %253 = vector.load %arg5[%c7_215, %c0_216, %c0_217] : memref<8x4x32xf32, #tpu.memory_space<vmem>>, vector<1x4x32xf32>
    %254 = vector.shape_cast %253 : vector<1x4x32xf32> to vector<4x32xf32>
    %cst_218 = arith.constant dense<0.000000e+00> : vector<8x32xf32>
    %255 = tpu.matmul %251, %254, %cst_218 {dimension_numbers = #tpu.dot_dimension_numbers<[1], [0], [0], [1], [0, 0, 1, 1], [], []>} : vector<8x4xf32>, vector<4x32xf32>, vector<8x32xf32> -> vector<8x32xf32>
    %256 = arith.addf %252, %255 : vector<8x32xf32>
    %c0_219 = arith.constant 0 : index
    %c0_220 = arith.constant 0 : index
    %257 = vector.load %arg10[%c0_219, %c0_220] : memref<8x32xf32, #tpu.memory_space<vmem>>, vector<8x32xf32>
    tpu.vector_store %arg10[%c0_219, %c0_220], %256 {strides = array<i32>} : memref<8x32xf32, #tpu.memory_space<vmem>>, vector<8x32xf32>,
    %c0_221 = arith.constant 0 : index
    %c0_222 = arith.constant 0 : index
    %258 = vector.load %arg10[%c0_221, %c0_222] : memref<8x32xf32, #tpu.memory_space<vmem>>, vector<8x32xf32>
    %c0_223 = arith.constant 0 : index
    %c0_224 = arith.constant 0 : index
    %259 = vector.load %arg6[%c0_223, %c0_224] : memref<1x32xf32, #tpu.memory_space<vmem>>, vector<1x32xf32>
    %260 = vector.broadcast %259 : vector<1x32xf32> to vector<8x32xf32>
    %261 = arith.addf %258, %260 : vector<8x32xf32>
    %c0_225 = arith.constant 0 : index
    %c0_226 = arith.constant 0 : index
    %c0_227 = arith.constant 0 : index
    %262 = vector.load %arg7[%c0_225, %c0_226, %c0_227] : memref<1x8x32xf32, #tpu.memory_space<vmem>>, vector<1x8x32xf32>
    %263 = vector.shape_cast %262 : vector<1x8x32xf32> to vector<8x32xf32>
    %264 = vector.shape_cast %261 : vector<8x32xf32> to vector<1x8x32xf32>
    tpu.vector_store %arg7[%c0_225, %c0_226, %c0_227], %264 {strides = array<i32>} : memref<1x8x32xf32, #tpu.memory_space<vmem>>, vector<1x8x32xf32>,
    return
  }
  func.func @transform_0(%arg0: i32, %arg1: i32) -> (i32, i32, i32) {
    %c0_i32 = arith.constant 0 : i32
    %c0_i32_0 = arith.constant 0 : i32
    %c0_i32_1 = arith.constant 0 : i32
    return %arg0, %c0_i32, %c0_i32_0 : i32, i32, i32
  }
  func.func @transform_1(%arg0: i32, %arg1: i32) -> (i32, i32, i32, i32) {
    %c0_i32 = arith.constant 0 : i32
    %c0_i32_0 = arith.constant 0 : i32
    %c0_i32_1 = arith.constant 0 : i32
    %c0_i32_2 = arith.constant 0 : i32
    %c0_i32_3 = arith.constant 0 : i32
    return %c0_i32, %c0_i32_0, %c0_i32_1, %c0_i32_2 : i32, i32, i32, i32
  }
  func.func @transform_2(%arg0: i32, %arg1: i32) -> (i32, i32, i32, i32) {
    %c0_i32 = arith.constant 0 : i32
    %c0_i32_0 = arith.constant 0 : i32
    %c0_i32_1 = arith.constant 0 : i32
    %c0_i32_2 = arith.constant 0 : i32
    %c0_i32_3 = arith.constant 0 : i32
    return %c0_i32, %c0_i32_0, %c0_i32_1, %c0_i32_2 : i32, i32, i32, i32
  }
  func.func @transform_3(%arg0: i32, %arg1: i32) -> (i32, i32, i32) {
    %c0_i32 = arith.constant 0 : i32
    %c0_i32_0 = arith.constant 0 : i32
    %c0_i32_1 = arith.constant 0 : i32
    %c0_i32_2 = arith.constant 0 : i32
    return %c0_i32, %c0_i32_0, %c0_i32_1 : i32, i32, i32
  }
  func.func @transform_4(%arg0: i32, %arg1: i32) -> (i32, i32) {
    %c0_i32 = arith.constant 0 : i32
    %c0_i32_0 = arith.constant 0 : i32
    %c0_i32_1 = arith.constant 0 : i32
    return %c0_i32, %c0_i32_0 : i32, i32
  }
  func.func @transform_5(%arg0: i32, %arg1: i32) -> (i32, i32, i32) {
    %c0_i32 = arith.constant 0 : i32
    %c0_i32_0 = arith.constant 0 : i32
    return %arg0, %arg1, %c0_i32 : i32, i32, i32
  }
}

</mosaic_0001>

<llo_original>
// kernel: tpu_custom_call.1
$region0: #{tpu_custom_call.1}
  #allocation0 [shape = 'u32[]', space=smem, size = 0x4, offset = 0x4, fixed_abs, tag = 'smem constant byte address 0x4 - core index']
  #allocation1 [shape = 'u32[144,128]{1,0:T(1,128)}', space=vmem, size = 0x12000, scoped, tag = 'internal scratch']
  #allocation2 [shape = 'f32[8,8,4]{2,1,0:T(8,128)}', space=vmem, size = 0x8000, scoped, tag = 'scratch operand']
  #allocation3 [shape = 'f32[8,8,4]{2,1,0:T(8,128)}', space=vmem, size = 0x8000, scoped, tag = 'scratch operand']
  #allocation4 [shape = 'f32[8,32]{1,0:T(8,128)}', space=vmem, size = 0x1000, scoped, tag = 'scratch operand']
  %s0 = inlined_call_operand.vmem [shape: f32[2,8,32], index: 0, kind: input, shape index: {}]
  %s1 = inlined_call_operand.vmem [shape: f32[3,8,32,4], index: 1, kind: input, shape index: {}]
  %s2 = inlined_call_operand.vmem [shape: f32[3,8,1,4], index: 2, kind: input, shape index: {}]
  %s3 = inlined_call_operand.vmem [shape: f32[8,4,32], index: 3, kind: input, shape index: {}]
  %s4 = inlined_call_operand.vmem [shape: f32[1,32], index: 4, kind: input, shape index: {}]
  %s5 = inlined_call_operand.hbm [shape: f32[2,8,32], index: 5, kind: output, shape index: {}]
  %s6 = sld [smem:[#allocation0]]
  $region57: #{tpu_custom_call.1} parent=0
    _
  %s8 = ssub.s32 1, %s6
  %s9 = scalar_select 0, %s8, %s6
  $region1: #{tpu_custom_call.1} parent=0
    #allocation5 [shape = 'u8[8192]{0}', space=vmem, size = 0x2000, scoped, tag = 'output window, operand 0']
    #allocation6 [shape = 's32[2]{0}', space=sflag, size = 0x8, scoped, tag = 'scoped memory for tpu_custom_call.1']
    %10 = vsyncpa [#allocation6], 0
    %s11 = scalar_lea.sflag [#allocation6], 1
    %12 = vsyncpa %s11, 0
    loop: start=0, step=1, limit=4
    $region2: #{tpu_custom_call.1} parent=1 // loop_pre_header
      _
    $region3: #{tpu_custom_call.1} parent=1 // loop_header
      %s14 = sphi 0, %s18
      %p15 = scmp.ge.s32.totalorder %s14, 4
      %s21 = sphi 0, %s33
      %s22 = sphi 0, %s29
      %s23 = sphi 0, %s21
      %s24 = sphi 0, %s22
      %s25 = sphi 0, %s23
      %s26 = sphi 0, %s24
      %s36 = sphi 0, %s38
      %s39 = sphi 0, %s36
      %s40 = sphi 0, %s39
      %s56 = sphi 0, %s40
      %s60 = sphi 0, %s60
      %s62 = sphi 0, %s60
      %s63 = sphi 0, %s62
      %s77 = sphi 0, %s63
      %s81 = sphi 0, %s81
      %s83 = sphi 0, %s81
      %s84 = sphi 0, %s83
      %s98 = sphi 0, %s84
      %s102 = sphi 0, %s102
      %s104 = sphi 0, %s102
      %s105 = sphi 0, %s104
      %s119 = sphi 0, %s105
      %s123 = sphi 0, %s123
      %s125 = sphi 0, %s123
      %s126 = sphi 0, %s125
      %s140 = sphi 0, %s126
      %s148 = sphi 0, %s150
      %s151 = sphi 0, %s148
      %s152 = sphi 0, %s151
      %s168 = sphi 0, %s152
    $region4: #{tpu_custom_call.1} parent=1 // loop_header_branch
      %17 = sbr.rel (%p15) target = $region8
    $region5: #{tpu_custom_call.1} parent=1 // loop_body
      %s19 = ssub.s32 %s14, 1
      %s20 = ssub.s32 %s14, 2
      %s27 = sadd.s32 1, %s22
      %p28 = scmp.ge.s32.totalorder %s27, 1
      %s29 = scalar_select %p28, 0, %s27
      %s30 = sadd.s32 1, %s21
      %s31 = scalar_select %p28, %s30, %s21
      %p32 = scmp.ge.s32.totalorder %s31, 2
      %s33 = scalar_select %p32, 0, %s31
      %s34 = ssub.s32 %s21, %s33
      %p35 = scmp.eq.s32.totalorder %s34, 0
      %s37 = sadd.s32 %s36, 1
      %s38 = scalar_select %p35, %s36, %s37
      %p41 = pneg %p35
      %p42 = scmp.eq.s32.totalorder %s14, 1
      %p43 = por %p41, %p42
      %p44 = scmp.ne.s32.totalorder %s36, %s39
      %p45 = scmp.eq.s32.totalorder %s14, 0
      %p46 = por %p44, %p45
      %p47 = scmp.ne.s32.totalorder %s36, %s39
      %p48 = scmp.eq.s32.totalorder %s19, 1
      %p49 = por %p47, %p48
      %p50 = scmp.ne.s32.totalorder %s39, %s40
      %p51 = scmp.eq.s32.totalorder %s19, 0
      %p52 = por %p50, %p51
      %p53 = scmp.ne.s32.totalorder %s39, %s40
      %p54 = scmp.eq.s32.totalorder %s20, 1
      %p55 = por %p53, %p54
      %p57 = scmp.ne.s32.totalorder %s40, %s56
      %p58 = scmp.eq.s32.totalorder %s20, 0
      %p59 = por %p57, %p58
      %s61 = sadd.s32 %s60, 1
      %p64 = scmp.eq.s32.totalorder %s14, 1
      %p65 = scmp.ne.s32.totalorder %s60, %s62
      %p66 = scmp.eq.s32.totalorder %s14, 0
      %p67 = por %p65, %p66
      %p68 = scmp.ne.s32.totalorder %s60, %s62
      %p69 = scmp.eq.s32.totalorder %s19, 1
      %p70 = por %p68, %p69
      %p71 = scmp.ne.s32.totalorder %s62, %s63
      %p72 = scmp.eq.s32.totalorder %s19, 0
      %p73 = por %p71, %p72
      %p74 = scmp.ne.s32.totalorder %s62, %s63
      %p75 = scmp.eq.s32.totalorder %s20, 1
      %p76 = por %p74, %p75
      %p78 = scmp.ne.s32.totalorder %s63, %s77
      %p79 = scmp.eq.s32.totalorder %s20, 0
      %p80 = por %p78, %p79
      %s82 = sadd.s32 %s81, 1
      %p85 = scmp.eq.s32.totalorder %s14, 1
      %p86 = scmp.ne.s32.totalorder %s81, %s83
      %p87 = scmp.eq.s32.totalorder %s14, 0
      %p88 = por %p86, %p87
      %p89 = scmp.ne.s32.totalorder %s81, %s83
      %p90 = scmp.eq.s32.totalorder %s19, 1
      %p91 = por %p89, %p90
      %p92 = scmp.ne.s32.totalorder %s83, %s84
      %p93 = scmp.eq.s32.totalorder %s19, 0
      %p94 = por %p92, %p93
      %p95 = scmp.ne.s32.totalorder %s83, %s84
      %p96 = scmp.eq.s32.totalorder %s20, 1
      %p97 = por %p95, %p96
      %p99 = scmp.ne.s32.totalorder %s84, %s98
      %p100 = scmp.eq.s32.totalorder %s20, 0
      %p101 = por %p99, %p100
      %s103 = sadd.s32 %s102, 1
      %p106 = scmp.eq.s32.totalorder %s14, 1
      %p107 = scmp.ne.s32.totalorder %s102, %s104
      %p108 = scmp.eq.s32.totalorder %s14, 0
      %p109 = por %p107, %p108
      %p110 = scmp.ne.s32.totalorder %s102, %s104
      %p111 = scmp.eq.s32.totalorder %s19, 1
      %p112 = por %p110, %p111
      %p113 = scmp.ne.s32.totalorder %s104, %s105
      %p114 = scmp.eq.s32.totalorder %s19, 0
      %p115 = por %p113, %p114
      %p116 = scmp.ne.s32.totalorder %s104, %s105
      %p117 = scmp.eq.s32.totalorder %s20, 1
      %p118 = por %p116, %p117
      %p120 = scmp.ne.s32.totalorder %s105, %s119
      %p121 = scmp.eq.s32.totalorder %s20, 0
      %p122 = por %p120, %p121
      %s124 = sadd.s32 %s123, 1
      %p127 = scmp.eq.s32.totalorder %s14, 1
      %p128 = scmp.ne.s32.totalorder %s123, %s125
      %p129 = scmp.eq.s32.totalorder %s14, 0
      %p130 = por %p128, %p129
      %p131 = scmp.ne.s32.totalorder %s123, %s125
      %p132 = scmp.eq.s32.totalorder %s19, 1
      %p133 = por %p131, %p132
      %p134 = scmp.ne.s32.totalorder %s125, %s126
      %p135 = scmp.eq.s32.totalorder %s19, 0
      %p136 = por %p134, %p135
      %p137 = scmp.ne.s32.totalorder %s125, %s126
      %p138 = scmp.eq.s32.totalorder %s20, 1
      %p139 = por %p137, %p138
      %p141 = scmp.ne.s32.totalorder %s126, %s140
      %p142 = scmp.eq.s32.totalorder %s20, 0
      %p143 = por %p141, %p142
      %s144 = ssub.s32 %s21, %s33
      %s145 = ssub.s32 %s22, %s29
      %s146 = sor.u32 %s144, %s145
      %p147 = scmp.eq.s32.totalorder %s146, 0
      %s149 = sadd.s32 %s148, 1
      %s150 = scalar_select %p147, %s148, %s149
      %p153 = pneg %p147
      %p154 = scmp.eq.s32.totalorder %s14, 1
      %p155 = por %p153, %p154
      %p156 = scmp.ne.s32.totalorder %s148, %s151
      %p157 = scmp.eq.s32.totalorder %s14, 0
      %p158 = por %p156, %p157
      %p159 = scmp.ne.s32.totalorder %s148, %s151
      %p160 = scmp.eq.s32.totalorder %s19, 1
      %p161 = por %p159, %p160
      %p162 = scmp.ne.s32.totalorder %s151, %s152
      %p163 = scmp.eq.s32.totalorder %s19, 0
      %p164 = por %p162, %p163
      %p165 = scmp.ne.s32.totalorder %s151, %s152
      %p166 = scmp.eq.s32.totalorder %s20, 1
      %p167 = por %p165, %p166
      %p169 = scmp.ne.s32.totalorder %s152, %s168
      %p170 = scmp.eq.s32.totalorder %s20, 0
      %p171 = por %p169, %p170
      %p172 = scmp.le.s32.totalorder 1, %s14
      %p173 = scmp.lt.s32.totalorder %s14, 3
      %p174 = pnand %p172, %p173
      %p175 = pneg %p174
      // Predicated region
      $region9: #{tpu_custom_call.1} parent=5 // pred_check
        _
      $region10: #{tpu_custom_call.1} parent=5 // pred_check_branch
        %177 = sbr.rel (%p174) target = $region12
      $region11: #{tpu_custom_call.1} parent=5 // pred_region
        %s178 = ssub.s32 %s14, 1
        // Predicated region
        $region13: #{tpu_custom_call.1} parent=11 // pred_check
          %p179 = pneg %p73
        $region14: #{tpu_custom_call.1} parent=11 // pred_check_branch
          %181 = sbr.rel (%p179) target = $region16
        $region15: #{tpu_custom_call.1} parent=11 // pred_region
          _
        $region16: #{tpu_custom_call.1} parent=11 // pred_fallthru
          _
        // Predicated region
        $region17: #{tpu_custom_call.1} parent=11 // pred_check
          %p182 = pneg %p94
        $region18: #{tpu_custom_call.1} parent=11 // pred_check_branch
          %184 = sbr.rel (%p182) target = $region20
        $region19: #{tpu_custom_call.1} parent=11 // pred_region
          _
        $region20: #{tpu_custom_call.1} parent=11 // pred_fallthru
          _
        // Predicated region
        $region21: #{tpu_custom_call.1} parent=11 // pred_check
          %p185 = pneg %p115
        $region22: #{tpu_custom_call.1} parent=11 // pred_check_branch
          %187 = sbr.rel (%p185) target = $region24
        $region23: #{tpu_custom_call.1} parent=11 // pred_region
          _
        $region24: #{tpu_custom_call.1} parent=11 // pred_fallthru
          _
        // Predicated region
        $region25: #{tpu_custom_call.1} parent=11 // pred_check
          %p188 = pneg %p136
        $region26: #{tpu_custom_call.1} parent=11 // pred_check_branch
          %190 = sbr.rel (%p188) target = $region28
        $region27: #{tpu_custom_call.1} parent=11 // pred_region
          _
        $region28: #{tpu_custom_call.1} parent=11 // pred_fallthru
          _
      $region12: #{tpu_custom_call.1} parent=5 // pred_fallthru
        _
      %p191 = scmp.lt.s32.totalorder %s14, 2
      // Predicated region
      $region29: #{tpu_custom_call.1} parent=5 // pred_check
        %p192 = pneg %p191
      $region30: #{tpu_custom_call.1} parent=5 // pred_check_branch
        %194 = sbr.rel (%p192) target = $region32
      $region31: #{tpu_custom_call.1} parent=5 // pred_region
        // Predicated region
        $region33: #{tpu_custom_call.1} parent=31 // pred_check
          %p195 = pneg %p46
        $region34: #{tpu_custom_call.1} parent=31 // pred_check_branch
          %197 = sbr.rel (%p195) target = $region36
        $region35: #{tpu_custom_call.1} parent=31 // pred_region
          %p198 = scmp.lt.s32.totalorder %s21, 1
          %s199 = scalar_select %p198, %s21, 1
          %s200 = smul.addr %s199, 8
          %s201 = scalar_lea.vmem %s0, %s200
        $region36: #{tpu_custom_call.1} parent=31 // pred_fallthru
          _
      $region32: #{tpu_custom_call.1} parent=5 // pred_fallthru
        _
      %p202 = scmp.le.s32.totalorder 1, %s14
      %p203 = scmp.lt.s32.totalorder %s14, 3
      %p204 = pnand %p202, %p203
      %p205 = pneg %p204
      // Predicated region
      $region37: #{tpu_custom_call.1} parent=5 // pred_check
        _
      $region38: #{tpu_custom_call.1} parent=5 // pred_check_branch
        %207 = sbr.rel (%p204) target = $region40
      $region39: #{tpu_custom_call.1} parent=5 // pred_region
        %s208 = ssub.s32 %s14, 1
        %p209 = scmp.lt.s32.totalorder %s23, 1
        %s210 = scalar_select %p209, %s23, 1
        %s211 = smul.addr %s210, 8
        %s212 = scalar_lea.vmem %s0, %s211
        %p213 = pneg %p52
        %p214 = pneg %p49
        %p215 = pneg %p73
        %p216 = pneg %p70
        %p217 = pneg %p94
        %p218 = pneg %p91
        %p219 = pneg %p115
        %p220 = pneg %p112
        %p221 = pneg %p136
        %p222 = pneg %p133
        %p223 = pneg %p164
        %p224 = pneg %p161
        %s225 = sand.u32 %s151, 1
        %s226 = scalar_lea.sflag [#allocation6], %s225
        %s227 = sand.u32 %s151, 1
        %s228 = smul.addr %s227, 8
        %s229 = scalar_lea.vmem [#allocation5], %s228
        %p230 = scmp.lt.s32.totalorder %s23, 1
        %s231 = scalar_select %p230, %s23, 1
        %s232 = smul.addr %s231, 8
        %s233 = scalar_lea.vmem %s0, %s232
        %p234 = scmp.eq.s32.totalorder %s24, 0
        // Predicated region
        $region41: #{tpu_custom_call.1} parent=39 // pred_check
          %p235 = pneg %p234
        $region42: #{tpu_custom_call.1} parent=39 // pred_check_branch
          %237 = sbr.rel (%p235) target = $region44
        $region43: #{tpu_custom_call.1} parent=39 // pred_region
          %v238 = vld [vmem:[%s233] sm:$0xff]
          %s239 = scalar_lea.vmem %s1, 256
          %v240 = vld [vmem:[%s239] sm:$0xff]
          %v241 = vld [vmem:[%s239 + $0x8] sm:$0xff]
          %v242 = vld [vmem:[%s239 + $0x10] sm:$0xff]
          %v243 = vld [vmem:[%s239 + $0x18] sm:$0xff]
          %s244 = scalar_lea.vmem %s2, 8
          %v245 = vld [vmem:[%s244] sm:$0x1]
          %v247 = vlaneseq
          %v248 = vshrl.u32 %v247, 7
          %v249 = vsub.s32 0, %v248
          %v250 = vrot.slane %v245, %v249
          %vm252 = vcmask 261120
          %v254 = vsel %vm252, %v238, 0
          %256 = vmatprep.subr.mxu0 0.0
          %257 = vmatpush1.msra.mxu0 %v240
          %258 = vmatprep.subr.mxu0 0.0
          %259 = vmatpush1.msra.mxu0 %v241
          %260 = vmatprep.subr.mxu0 0.0
          %261 = vmatpush1.msra.mxu0 %v242
          %262 = vmatprep.subr.mxu0 0.0
          %263 = vmatpush1.msra.mxu0 %v243
          %264 = vmatprep.subr.mxu0 0.0
          %265 = vmatpush1.msra.mxu0 0.0
          %266 = vmatprep.subr.mxu0 0.0
          %267 = vmatpush1.msra.mxu0 0.0
          %268 = vmatprep.subr.mxu0 0.0
          %269 = vmatpush1.msra.mxu0 0.0
          %270 = vmatprep.subr.mxu0 0.0
          %271 = vmatpush1.msra.mxu0 0.0
          %272 = vmatprep.subr.mxu0 0.0
          %273 = vmatpush1.msra.mxu0 0.0
          %274 = vmatprep.subr.mxu0 0.0
          %275 = vmatpush1.msra.mxu0 0.0
          %276 = vmatprep.subr.mxu0 0.0
          %277 = vmatpush1.msra.mxu0 0.0
          %278 = vmatprep.subr.mxu0 0.0
          %279 = vmatpush1.msra.mxu0 0.0
          %280 = vmatprep.subr.mxu0 0.0
          %281 = vmatpush1.msra.mxu0 0.0
          %282 = vmatprep.subr.mxu0 0.0
          %283 = vmatpush1.msra.mxu0 0.0
          %284 = vmatprep.subr.mxu0 0.0
          %285 = vmatpush1.msra.mxu0 0.0
          %286 = vmatprep.subr.mxu0 0.0
          %287 = vmatpush1.msra.mxu0 0.0
          %288 = vmatprep.subr.mxu0 0.0
          %289 = vmatpush1.msra.mxu0 0.0
          %290 = vmatprep.subr.mxu0 0.0
          %291 = vmatpush1.msra.mxu0 0.0
          %292 = vmatprep.subr.mxu0 0.0
          %293 = vmatpush1.msra.mxu0 0.0
          %294 = vmatprep.subr.mxu0 0.0
          %295 = vmatpush1.msra.mxu0 0.0
          %296 = vmatprep.subr.mxu0 0.0
          %297 = vmatpush1.msra.mxu0 0.0
          %298 = vmatprep.subr.mxu0 0.0
          %299 = vmatpush1.msra.mxu0 0.0
          %300 = vmatprep.subr.mxu0 0.0
          %301 = vmatpush1.msra.mxu0 0.0
          %302 = vmatprep.subr.mxu0 0.0
          %303 = vmatpush1.msra.mxu0 0.0
          %304 = vmatprep.subr.mxu0 0.0
          %305 = vmatpush1.msra.mxu0 0.0
          %306 = vmatprep.subr.mxu0 0.0
          %307 = vmatpush1.msra.mxu0 0.0
          %308 = vmatprep.subr.mxu0 0.0
          %309 = vmatpush1.msra.mxu0 0.0
          %310 = vmatprep.subr.mxu0 0.0
          %311 = vmatpush1.msra.mxu0 0.0
          %312 = vmatprep.subr.mxu0 0.0
          %313 = vmatpush1.msra.mxu0 0.0
          %314 = vmatprep.subr.mxu0 0.0
          %315 = vmatpush1.msra.mxu0 0.0
          %316 = vmatprep.subr.mxu0 0.0
          %317 = vmatpush1.msra.mxu0 0.0
          %318 = vmatprep.subr.mxu0 0.0
          %319 = vmatpush1.msra.mxu0 0.0
          %320 = vmatprep.mubr.f32.mxu0 0.0
          %321 = vmatmul.mubr.f32.gmra.mrb[0].mxu0 %v254
          %v322 = vpop.f32.mrb[0].mxu0
          %v323 = vadd.f32 %v250, %v322
          %v324 = vpop.f32.mrb[0].mxu0
          %325 = vdwg.mxu0
          %vm326 = vcmask 31744
          %327 = vst.msk [vmem:[#allocation2] sm:$0xff] %vm326, %v323
          %s328 = scalar_lea.vmem %s1, 512
          %v329 = vld [vmem:[%s328] sm:$0xff]
          %v330 = vld [vmem:[%s328 + $0x8] sm:$0xff]
          %v331 = vld [vmem:[%s328 + $0x10] sm:$0xff]
          %v332 = vld [vmem:[%s328 + $0x18] sm:$0xff]
          %s333 = scalar_lea.vmem %s2, 16
          %v334 = vld [vmem:[%s333] sm:$0x1]
          %v336 = vlaneseq
          %v337 = vshrl.u32 %v336, 7
          %v338 = vsub.s32 0, %v337
          %v339 = vrot.slane %v334, %v338
          %341 = vmatprep.subr.mxu0 0.0
          %342 = vmatpush1.msra.mxu0 %v329
          %343 = vmatprep.subr.mxu0 0.0
          %344 = vmatpush1.msra.mxu0 %v330
          %345 = vmatprep.subr.mxu0 0.0
          %346 = vmatpush1.msra.mxu0 %v331
          %347 = vmatprep.subr.mxu0 0.0
          %348 = vmatpush1.msra.mxu0 %v332
          %349 = vmatprep.subr.mxu0 0.0
          %350 = vmatpush1.msra.mxu0 0.0
          %351 = vmatprep.subr.mxu0 0.0
          %352 = vmatpush1.msra.mxu0 0.0
          %353 = vmatprep.subr.mxu0 0.0
          %354 = vmatpush1.msra.mxu0 0.0
          %355 = vmatprep.subr.mxu0 0.0
          %356 = vmatpush1.msra.mxu0 0.0
          %357 = vmatprep.subr.mxu0 0.0
          %358 = vmatpush1.msra.mxu0 0.0
          %359 = vmatprep.subr.mxu0 0.0
          %360 = vmatpush1.msra.mxu0 0.0
          %361 = vmatprep.subr.mxu0 0.0
          %362 = vmatpush1.msra.mxu0 0.0
          %363 = vmatprep.subr.mxu0 0.0
          %364 = vmatpush1.msra.mxu0 0.0
          %365 = vmatprep.subr.mxu0 0.0
          %366 = vmatpush1.msra.mxu0 0.0
          %367 = vmatprep.subr.mxu0 0.0
          %368 = vmatpush1.msra.mxu0 0.0
          %369 = vmatprep.subr.mxu0 0.0
          %370 = vmatpush1.msra.mxu0 0.0
          %371 = vmatprep.subr.mxu0 0.0
          %372 = vmatpush1.msra.mxu0 0.0
          %373 = vmatprep.subr.mxu0 0.0
          %374 = vmatpush1.msra.mxu0 0.0
          %375 = vmatprep.subr.mxu0 0.0
          %376 = vmatpush1.msra.mxu0 0.0
          %377 = vmatprep.subr.mxu0 0.0
          %378 = vmatpush1.msra.mxu0 0.0
          %379 = vmatprep.subr.mxu0 0.0
          %380 = vmatpush1.msra.mxu0 0.0
          %381 = vmatprep.subr.mxu0 0.0
          %382 = vmatpush1.msra.mxu0 0.0
          %383 = vmatprep.subr.mxu0 0.0
          %384 = vmatpush1.msra.mxu0 0.0
          %385 = vmatprep.subr.mxu0 0.0
          %386 = vmatpush1.msra.mxu0 0.0
          %387 = vmatprep.subr.mxu0 0.0
          %388 = vmatpush1.msra.mxu0 0.0
          %389 = vmatprep.subr.mxu0 0.0
          %390 = vmatpush1.msra.mxu0 0.0
          %391 = vmatprep.subr.mxu0 0.0
          %392 = vmatpush1.msra.mxu0 0.0
          %393 = vmatprep.subr.mxu0 0.0
          %394 = vmatpush1.msra.mxu0 0.0
          %395 = vmatprep.subr.mxu0 0.0
          %396 = vmatpush1.msra.mxu0 0.0
          %397 = vmatprep.subr.mxu0 0.0
          %398 = vmatpush1.msra.mxu0 0.0
          %399 = vmatprep.subr.mxu0 0.0
          %400 = vmatpush1.msra.mxu0 0.0
          %401 = vmatprep.subr.mxu0 0.0
          %402 = vmatpush1.msra.mxu0 0.0
          %403 = vmatprep.subr.mxu0 0.0
          %404 = vmatpush1.msra.mxu0 0.0
          %405 = vmatprep.mubr.f32.mxu0 0.0
          %406 = vmatmul.mubr.f32.gmra.mrb[0].mxu0 %v254
          %v407 = vpop.f32.mrb[0].mxu0
          %v408 = vadd.f32 %v339, %v407
          %v409 = vpop.f32.mrb[0].mxu0
          %410 = vdwg.mxu0
          %411 = vst.msk [vmem:[#allocation3] sm:$0xff] %vm326, %v408
          %s412 = scalar_lea.vmem %s1, 288
          %v413 = vld [vmem:[%s412] sm:$0xff]
          %v414 = vld [vmem:[%s412 + $0x8] sm:$0xff]
          %v415 = vld [vmem:[%s412 + $0x10] sm:$0xff]
          %v416 = vld [vmem:[%s412 + $0x18] sm:$0xff]
          %s417 = scalar_lea.vmem %s2, 9
          %v418 = vld [vmem:[%s417] sm:$0x1]
          %v420 = vlaneseq
          %v421 = vshrl.u32 %v420, 7
          %v422 = vsub.s32 0, %v421
          %v423 = vrot.slane %v418, %v422
          %425 = vmatprep.subr.mxu0 0.0
          %426 = vmatpush1.msra.mxu0 %v413
          %427 = vmatprep.subr.mxu0 0.0
          %428 = vmatpush1.msra.mxu0 %v414
          %429 = vmatprep.subr.mxu0 0.0
          %430 = vmatpush1.msra.mxu0 %v415
          %431 = vmatprep.subr.mxu0 0.0
          %432 = vmatpush1.msra.mxu0 %v416
          %433 = vmatprep.subr.mxu0 0.0
          %434 = vmatpush1.msra.mxu0 0.0
          %435 = vmatprep.subr.mxu0 0.0
          %436 = vmatpush1.msra.mxu0 0.0
          %437 = vmatprep.subr.mxu0 0.0
          %438 = vmatpush1.msra.mxu0 0.0
          %439 = vmatprep.subr.mxu0 0.0
          %440 = vmatpush1.msra.mxu0 0.0
          %441 = vmatprep.subr.mxu0 0.0
          %442 = vmatpush1.msra.mxu0 0.0
          %443 = vmatprep.subr.mxu0 0.0
          %444 = vmatpush1.msra.mxu0 0.0
          %445 = vmatprep.subr.mxu0 0.0
          %446 = vmatpush1.msra.mxu0 0.0
          %447 = vmatprep.subr.mxu0 0.0
          %448 = vmatpush1.msra.mxu0 0.0
          %449 = vmatprep.subr.mxu0 0.0
          %450 = vmatpush1.msra.mxu0 0.0
          %451 = vmatprep.subr.mxu0 0.0
          %452 = vmatpush1.msra.mxu0 0.0
          %453 = vmatprep.subr.mxu0 0.0
          %454 = vmatpush1.msra.mxu0 0.0
          %455 = vmatprep.subr.mxu0 0.0
          %456 = vmatpush1.msra.mxu0 0.0
          %457 = vmatprep.subr.mxu0 0.0
          %458 = vmatpush1.msra.mxu0 0.0
          %459 = vmatprep.subr.mxu0 0.0
          %460 = vmatpush1.msra.mxu0 0.0
          %461 = vmatprep.subr.mxu0 0.0
          %462 = vmatpush1.msra.mxu0 0.0
          %463 = vmatprep.subr.mxu0 0.0
          %464 = vmatpush1.msra.mxu0 0.0
          %465 = vmatprep.subr.mxu0 0.0
          %466 = vmatpush1.msra.mxu0 0.0
          %467 = vmatprep.subr.mxu0 0.0
          %468 = vmatpush1.msra.mxu0 0.0
          %469 = vmatprep.subr.mxu0 0.0
          %470 = vmatpush1.msra.mxu0 0.0
          %471 = vmatprep.subr.mxu0 0.0
          %472 = vmatpush1.msra.mxu0 0.0
          %473 = vmatprep.subr.mxu0 0.0
          %474 = vmatpush1.msra.mxu0 0.0
          %475 = vmatprep.subr.mxu0 0.0
          %476 = vmatpush1.msra.mxu0 0.0
          %477 = vmatprep.subr.mxu0 0.0
          %478 = vmatpush1.msra.mxu0 0.0
          %479 = vmatprep.subr.mxu0 0.0
          %480 = vmatpush1.msra.mxu0 0.0
          %481 = vmatprep.subr.mxu0 0.0
          %482 = vmatpush1.msra.mxu0 0.0
          %483 = vmatprep.subr.mxu0 0.0
          %484 = vmatpush1.msra.mxu0 0.0
          %485 = vmatprep.subr.mxu0 0.0
          %486 = vmatpush1.msra.mxu0 0.0
          %487 = vmatprep.subr.mxu0 0.0
          %488 = vmatpush1.msra.mxu0 0.0
          %489 = vmatprep.mubr.f32.mxu0 0.0
          %490 = vmatmul.mubr.f32.gmra.mrb[0].mxu0 %v254
          %v491 = vpop.f32.mrb[0].mxu0
          %v492 = vadd.f32 %v423, %v491
          %v493 = vpop.f32.mrb[0].mxu0
          %494 = vdwg.mxu0
          %s495 = scalar_lea.vmem [#allocation2], 8
          %496 = vst.msk [vmem:[%s495] sm:$0xff] %vm326, %v492
          %s497 = scalar_lea.vmem %s1, 544
          %v498 = vld [vmem:[%s497] sm:$0xff]
          %v499 = vld [vmem:[%s497 + $0x8] sm:$0xff]
          %v500 = vld [vmem:[%s497 + $0x10] sm:$0xff]
          %v501 = vld [vmem:[%s497 + $0x18] sm:$0xff]
          %s502 = scalar_lea.vmem %s2, 17
          %v503 = vld [vmem:[%s502] sm:$0x1]
          %v505 = vlaneseq
          %v506 = vshrl.u32 %v505, 7
          %v507 = vsub.s32 0, %v506
          %v508 = vrot.slane %v503, %v507
          %510 = vmatprep.subr.mxu0 0.0
          %511 = vmatpush1.msra.mxu0 %v498
          %512 = vmatprep.subr.mxu0 0.0
          %513 = vmatpush1.msra.mxu0 %v499
          %514 = vmatprep.subr.mxu0 0.0
          %515 = vmatpush1.msra.mxu0 %v500
          %516 = vmatprep.subr.mxu0 0.0
          %517 = vmatpush1.msra.mxu0 %v501
          %518 = vmatprep.subr.mxu0 0.0
          %519 = vmatpush1.msra.mxu0 0.0
          %520 = vmatprep.subr.mxu0 0.0
          %521 = vmatpush1.msra.mxu0 0.0
          %522 = vmatprep.subr.mxu0 0.0
          %523 = vmatpush1.msra.mxu0 0.0
          %524 = vmatprep.subr.mxu0 0.0
          %525 = vmatpush1.msra.mxu0 0.0
          %526 = vmatprep.subr.mxu0 0.0
          %527 = vmatpush1.msra.mxu0 0.0
          %528 = vmatprep.subr.mxu0 0.0
          %529 = vmatpush1.msra.mxu0 0.0
          %530 = vmatprep.subr.mxu0 0.0
          %531 = vmatpush1.msra.mxu0 0.0
          %532 = vmatprep.subr.mxu0 0.0
          %533 = vmatpush1.msra.mxu0 0.0
          %534 = vmatprep.subr.mxu0 0.0
          %535 = vmatpush1.msra.mxu0 0.0
          %536 = vmatprep.subr.mxu0 0.0
          %537 = vmatpush1.msra.mxu0 0.0
          %538 = vmatprep.subr.mxu0 0.0
          %539 = vmatpush1.msra.mxu0 0.0
          %540 = vmatprep.subr.mxu0 0.0
          %541 = vmatpush1.msra.mxu0 0.0
          %542 = vmatprep.subr.mxu0 0.0
          %543 = vmatpush1.msra.mxu0 0.0
          %544 = vmatprep.subr.mxu0 0.0
          %545 = vmatpush1.msra.mxu0 0.0
          %546 = vmatprep.subr.mxu0 0.0
          %547 = vmatpush1.msra.mxu0 0.0
          %548 = vmatprep.subr.mxu0 0.0
          %549 = vmatpush1.msra.mxu0 0.0
          %550 = vmatprep.subr.mxu0 0.0
          %551 = vmatpush1.msra.mxu0 0.0
          %552 = vmatprep.subr.mxu0 0.0
          %553 = vmatpush1.msra.mxu0 0.0
          %554 = vmatprep.subr.mxu0 0.0
          %555 = vmatpush1.msra.mxu0 0.0
          %556 = vmatprep.subr.mxu0 0.0
          %557 = vmatpush1.msra.mxu0 0.0
          %558 = vmatprep.subr.mxu0 0.0
          %559 = vmatpush1.msra.mxu0 0.0
          %560 = vmatprep.subr.mxu0 0.0
          %561 = vmatpush1.msra.mxu0 0.0
          %562 = vmatprep.subr.mxu0 0.0
          %563 = vmatpush1.msra.mxu0 0.0
          %564 = vmatprep.subr.mxu0 0.0
          %565 = vmatpush1.msra.mxu0 0.0
          %566 = vmatprep.subr.mxu0 0.0
          %567 = vmatpush1.msra.mxu0 0.0
          %568 = vmatprep.subr.mxu0 0.0
          %569 = vmatpush1.msra.mxu0 0.0
          %570 = vmatprep.subr.mxu0 0.0
          %571 = vmatpush1.msra.mxu0 0.0
          %572 = vmatprep.subr.mxu0 0.0
          %573 = vmatpush1.msra.mxu0 0.0
          %574 = vmatprep.mubr.f32.mxu0 0.0
          %575 = vmatmul.mubr.f32.gmra.mrb[0].mxu0 %v254
          %v576 = vpop.f32.mrb[0].mxu0
          %v577 = vadd.f32 %v508, %v576
          %v578 = vpop.f32.mrb[0].mxu0
          %579 = vdwg.mxu0
          %s580 = scalar_lea.vmem [#allocation3], 8
          %581 = vst.msk [vmem:[%s580] sm:$0xff] %vm326, %v577
          %s582 = scalar_lea.vmem %s1, 320
          %v583 = vld [vmem:[%s582] sm:$0xff]
          %v584 = vld [vmem:[%s582 + $0x8] sm:$0xff]
          %v585 = vld [vmem:[%s582 + $0x10] sm:$0xff]
          %v586 = vld [vmem:[%s582 + $0x18] sm:$0xff]
          %s587 = scalar_lea.vmem %s2, 10
          %v588 = vld [vmem:[%s587] sm:$0x1]
          %v590 = vlaneseq
          %v591 = vshrl.u32 %v590, 7
          %v592 = vsub.s32 0, %v591
          %v593 = vrot.slane %v588, %v592
          %595 = vmatprep.subr.mxu0 0.0
          %596 = vmatpush1.msra.mxu0 %v583
          %597 = vmatprep.subr.mxu0 0.0
          %598 = vmatpush1.msra.mxu0 %v584
          %599 = vmatprep.subr.mxu0 0.0
          %600 = vmatpush1.msra.mxu0 %v585
          %601 = vmatprep.subr.mxu0 0.0
          %602 = vmatpush1.msra.mxu0 %v586
          %603 = vmatprep.subr.mxu0 0.0
          %604 = vmatpush1.msra.mxu0 0.0
          %605 = vmatprep.subr.mxu0 0.0
          %606 = vmatpush1.msra.mxu0 0.0
          %607 = vmatprep.subr.mxu0 0.0
          %608 = vmatpush1.msra.mxu0 0.0
          %609 = vmatprep.subr.mxu0 0.0
          %610 = vmatpush1.msra.mxu0 0.0
          %611 = vmatprep.subr.mxu0 0.0
          %612 = vmatpush1.msra.mxu0 0.0
          %613 = vmatprep.subr.mxu0 0.0
          %614 = vmatpush1.msra.mxu0 0.0
          %615 = vmatprep.subr.mxu0 0.0
          %616 = vmatpush1.msra.mxu0 0.0
          %617 = vmatprep.subr.mxu0 0.0
          %618 = vmatpush1.msra.mxu0 0.0
          %619 = vmatprep.subr.mxu0 0.0
          %620 = vmatpush1.msra.mxu0 0.0
          %621 = vmatprep.subr.mxu0 0.0
          %622 = vmatpush1.msra.mxu0 0.0
          %623 = vmatprep.subr.mxu0 0.0
          %624 = vmatpush1.msra.mxu0 0.0
          %625 = vmatprep.subr.mxu0 0.0
          %626 = vmatpush1.msra.mxu0 0.0
          %627 = vmatprep.subr.mxu0 0.0
          %628 = vmatpush1.msra.mxu0 0.0
          %629 = vmatprep.subr.mxu0 0.0
          %630 = vmatpush1.msra.mxu0 0.0
          %631 = vmatprep.subr.mxu0 0.0
          %632 = vmatpush1.msra.mxu0 0.0
          %633 = vmatprep.subr.mxu0 0.0
          %634 = vmatpush1.msra.mxu0 0.0
          %635 = vmatprep.subr.mxu0 0.0
          %636 = vmatpush1.msra.mxu0 0.0
          %637 = vmatprep.subr.mxu0 0.0
          %638 = vmatpush1.msra.mxu0 0.0
          %639 = vmatprep.subr.mxu0 0.0
          %640 = vmatpush1.msra.mxu0 0.0
          %641 = vmatprep.subr.mxu0 0.0
          %642 = vmatpush1.msra.mxu0 0.0
          %643 = vmatprep.subr.mxu0 0.0
          %644 = vmatpush1.msra.mxu0 0.0
          %645 = vmatprep.subr.mxu0 0.0
          %646 = vmatpush1.msra.mxu0 0.0
          %647 = vmatprep.subr.mxu0 0.0
          %648 = vmatpush1.msra.mxu0 0.0
          %649 = vmatprep.subr.mxu0 0.0
          %650 = vmatpush1.msra.mxu0 0.0
          %651 = vmatprep.subr.mxu0 0.0
          %652 = vmatpush1.msra.mxu0 0.0
          %653 = vmatprep.subr.mxu0 0.0
          %654 = vmatpush1.msra.mxu0 0.0
          %655 = vmatprep.subr.mxu0 0.0
          %656 = vmatpush1.msra.mxu0 0.0
          %657 = vmatprep.subr.mxu0 0.0
          %658 = vmatpush1.msra.mxu0 0.0
          %659 = vmatprep.mubr.f32.mxu0 0.0
          %660 = vmatmul.mubr.f32.gmra.mrb[0].mxu0 %v254
          %v661 = vpop.f32.mrb[0].mxu0
          %v662 = vadd.f32 %v593, %v661
          %v663 = vpop.f32.mrb[0].mxu0
          %664 = vdwg.mxu0
          %s665 = scalar_lea.vmem [#allocation2], 16
          %666 = vst.msk [vmem:[%s665] sm:$0xff] %vm326, %v662
          %s667 = scalar_lea.vmem %s1, 576
          %v668 = vld [vmem:[%s667] sm:$0xff]
          %v669 = vld [vmem:[%s667 + $0x8] sm:$0xff]
          %v670 = vld [vmem:[%s667 + $0x10] sm:$0xff]
          %v671 = vld [vmem:[%s667 + $0x18] sm:$0xff]
          %s672 = scalar_lea.vmem %s2, 18
          %v673 = vld [vmem:[%s672] sm:$0x1]
          %v675 = vlaneseq
          %v676 = vshrl.u32 %v675, 7
          %v677 = vsub.s32 0, %v676
          %v678 = vrot.slane %v673, %v677
          %680 = vmatprep.subr.mxu0 0.0
          %681 = vmatpush1.msra.mxu0 %v668
          %682 = vmatprep.subr.mxu0 0.0
          %683 = vmatpush1.msra.mxu0 %v669
          %684 = vmatprep.subr.mxu0 0.0
          %685 = vmatpush1.msra.mxu0 %v670
          %686 = vmatprep.subr.mxu0 0.0
          %687 = vmatpush1.msra.mxu0 %v671
          %688 = vmatprep.subr.mxu0 0.0
          %689 = vmatpush1.msra.mxu0 0.0
          %690 = vmatprep.subr.mxu0 0.0
          %691 = vmatpush1.msra.mxu0 0.0
          %692 = vmatprep.subr.mxu0 0.0
          %693 = vmatpush1.msra.mxu0 0.0
          %694 = vmatprep.subr.mxu0 0.0
          %695 = vmatpush1.msra.mxu0 0.0
          %696 = vmatprep.subr.mxu0 0.0
          %697 = vmatpush1.msra.mxu0 0.0
          %698 = vmatprep.subr.mxu0 0.0
          %699 = vmatpush1.msra.mxu0 0.0
          %700 = vmatprep.subr.mxu0 0.0
          %701 = vmatpush1.msra.mxu0 0.0
          %702 = vmatprep.subr.mxu0 0.0
          %703 = vmatpush1.msra.mxu0 0.0
          %704 = vmatprep.subr.mxu0 0.0
          %705 = vmatpush1.msra.mxu0 0.0
          %706 = vmatprep.subr.mxu0 0.0
          %707 = vmatpush1.msra.mxu0 0.0
          %708 = vmatprep.subr.mxu0 0.0
          %709 = vmatpush1.msra.mxu0 0.0
          %710 = vmatprep.subr.mxu0 0.0
          %711 = vmatpush1.msra.mxu0 0.0
          %712 = vmatprep.subr.mxu0 0.0
          %713 = vmatpush1.msra.mxu0 0.0
          %714 = vmatprep.subr.mxu0 0.0
          %715 = vmatpush1.msra.mxu0 0.0
          %716 = vmatprep.subr.mxu0 0.0
          %717 = vmatpush1.msra.mxu0 0.0
          %718 = vmatprep.subr.mxu0 0.0
          %719 = vmatpush1.msra.mxu0 0.0
          %720 = vmatprep.subr.mxu0 0.0
          %721 = vmatpush1.msra.mxu0 0.0
          %722 = vmatprep.subr.mxu0 0.0
          %723 = vmatpush1.msra.mxu0 0.0
          %724 = vmatprep.subr.mxu0 0.0
          %725 = vmatpush1.msra.mxu0 0.0
          %726 = vmatprep.subr.mxu0 0.0
          %727 = vmatpush1.msra.mxu0 0.0
          %728 = vmatprep.subr.mxu0 0.0
          %729 = vmatpush1.msra.mxu0 0.0
          %730 = vmatprep.subr.mxu0 0.0
          %731 = vmatpush1.msra.mxu0 0.0
          %732 = vmatprep.subr.mxu0 0.0
          %733 = vmatpush1.msra.mxu0 0.0
          %734 = vmatprep.subr.mxu0 0.0
          %735 = vmatpush1.msra.mxu0 0.0
          %736 = vmatprep.subr.mxu0 0.0
          %737 = vmatpush1.msra.mxu0 0.0
          %738 = vmatprep.subr.mxu0 0.0
          %739 = vmatpush1.msra.mxu0 0.0
          %740 = vmatprep.subr.mxu0 0.0
          %741 = vmatpush1.msra.mxu0 0.0
          %742 = vmatprep.subr.mxu0 0.0
          %743 = vmatpush1.msra.mxu0 0.0
          %744 = vmatprep.mubr.f32.mxu0 0.0
          %745 = vmatmul.mubr.f32.gmra.mrb[0].mxu0 %v254
          %v746 = vpop.f32.mrb[0].mxu0
          %v747 = vadd.f32 %v678, %v746
          %v748 = vpop.f32.mrb[0].mxu0
          %749 = vdwg.mxu0
          %s750 = scalar_lea.vmem [#allocation3], 16
          %751 = vst.msk [vmem:[%s750] sm:$0xff] %vm326, %v747
          %s752 = scalar_lea.vmem %s1, 352
          %v753 = vld [vmem:[%s752] sm:$0xff]
          %v754 = vld [vmem:[%s752 + $0x8] sm:$0xff]
          %v755 = vld [vmem:[%s752 + $0x10] sm:$0xff]
          %v756 = vld [vmem:[%s752 + $0x18] sm:$0xff]
          %s757 = scalar_lea.vmem %s2, 11
          %v758 = vld [vmem:[%s757] sm:$0x1]
          %v760 = vlaneseq
          %v761 = vshrl.u32 %v760, 7
          %v762 = vsub.s32 0, %v761
          %v763 = vrot.slane %v758, %v762
          %765 = vmatprep.subr.mxu0 0.0
          %766 = vmatpush1.msra.mxu0 %v753
          %767 = vmatprep.subr.mxu0 0.0
          %768 = vmatpush1.msra.mxu0 %v754
          %769 = vmatprep.subr.mxu0 0.0
          %770 = vmatpush1.msra.mxu0 %v755
          %771 = vmatprep.subr.mxu0 0.0
          %772 = vmatpush1.msra.mxu0 %v756
          %773 = vmatprep.subr.mxu0 0.0
          %774 = vmatpush1.msra.mxu0 0.0
          %775 = vmatprep.subr.mxu0 0.0
          %776 = vmatpush1.msra.mxu0 0.0
          %777 = vmatprep.subr.mxu0 0.0
          %778 = vmatpush1.msra.mxu0 0.0
          %779 = vmatprep.subr.mxu0 0.0
          %780 = vmatpush1.msra.mxu0 0.0
          %781 = vmatprep.subr.mxu0 0.0
          %782 = vmatpush1.msra.mxu0 0.0
          %783 = vmatprep.subr.mxu0 0.0
          %784 = vmatpush1.msra.mxu0 0.0
          %785 = vmatprep.subr.mxu0 0.0
          %786 = vmatpush1.msra.mxu0 0.0
          %787 = vmatprep.subr.mxu0 0.0
          %788 = vmatpush1.msra.mxu0 0.0
          %789 = vmatprep.subr.mxu0 0.0
          %790 = vmatpush1.msra.mxu0 0.0
          %791 = vmatprep.subr.mxu0 0.0
          %792 = vmatpush1.msra.mxu0 0.0
          %793 = vmatprep.subr.mxu0 0.0
          %794 = vmatpush1.msra.mxu0 0.0
          %795 = vmatprep.subr.mxu0 0.0
          %796 = vmatpush1.msra.mxu0 0.0
          %797 = vmatprep.subr.mxu0 0.0
          %798 = vmatpush1.msra.mxu0 0.0
          %799 = vmatprep.subr.mxu0 0.0
          %800 = vmatpush1.msra.mxu0 0.0
          %801 = vmatprep.subr.mxu0 0.0
          %802 = vmatpush1.msra.mxu0 0.0
          %803 = vmatprep.subr.mxu0 0.0
          %804 = vmatpush1.msra.mxu0 0.0
          %805 = vmatprep.subr.mxu0 0.0
          %806 = vmatpush1.msra.mxu0 0.0
          %807 = vmatprep.subr.mxu0 0.0
          %808 = vmatpush1.msra.mxu0 0.0
          %809 = vmatprep.subr.mxu0 0.0
          %810 = vmatpush1.msra.mxu0 0.0
          %811 = vmatprep.subr.mxu0 0.0
          %812 = vmatpush1.msra.mxu0 0.0
          %813 = vmatprep.subr.mxu0 0.0
          %814 = vmatpush1.msra.mxu0 0.0
          %815 = vmatprep.subr.mxu0 0.0
          %816 = vmatpush1.msra.mxu0 0.0
          %817 = vmatprep.subr.mxu0 0.0
          %818 = vmatpush1.msra.mxu0 0.0
          %819 = vmatprep.subr.mxu0 0.0
          %820 = vmatpush1.msra.mxu0 0.0
          %821 = vmatprep.subr.mxu0 0.0
          %822 = vmatpush1.msra.mxu0 0.0
          %823 = vmatprep.subr.mxu0 0.0
          %824 = vmatpush1.msra.mxu0 0.0
          %825 = vmatprep.subr.mxu0 0.0
          %826 = vmatpush1.msra.mxu0 0.0
          %827 = vmatprep.subr.mxu0 0.0
          %828 = vmatpush1.msra.mxu0 0.0
          %829 = vmatprep.mubr.f32.mxu0 0.0
          %830 = vmatmul.mubr.f32.gmra.mrb[0].mxu0 %v254
          %v831 = vpop.f32.mrb[0].mxu0
          %v832 = vadd.f32 %v763, %v831
          %v833 = vpop.f32.mrb[0].mxu0
          %834 = vdwg.mxu0
          %s835 = scalar_lea.vmem [#allocation2], 24
          %836 = vst.msk [vmem:[%s835] sm:$0xff] %vm326, %v832
          %s837 = scalar_lea.vmem %s1, 608
          %v838 = vld [vmem:[%s837] sm:$0xff]
          %v839 = vld [vmem:[%s837 + $0x8] sm:$0xff]
          %v840 = vld [vmem:[%s837 + $0x10] sm:$0xff]
          %v841 = vld [vmem:[%s837 + $0x18] sm:$0xff]
          %s842 = scalar_lea.vmem %s2, 19
          %v843 = vld [vmem:[%s842] sm:$0x1]
          %v845 = vlaneseq
          %v846 = vshrl.u32 %v845, 7
          %v847 = vsub.s32 0, %v846
          %v848 = vrot.slane %v843, %v847
          %850 = vmatprep.subr.mxu0 0.0
          %851 = vmatpush1.msra.mxu0 %v838
          %852 = vmatprep.subr.mxu0 0.0
          %853 = vmatpush1.msra.mxu0 %v839
          %854 = vmatprep.subr.mxu0 0.0
          %855 = vmatpush1.msra.mxu0 %v840
          %856 = vmatprep.subr.mxu0 0.0
          %857 = vmatpush1.msra.mxu0 %v841
          %858 = vmatprep.subr.mxu0 0.0
          %859 = vmatpush1.msra.mxu0 0.0
          %860 = vmatprep.subr.mxu0 0.0
          %861 = vmatpush1.msra.mxu0 0.0
          %862 = vmatprep.subr.mxu0 0.0
          %863 = vmatpush1.msra.mxu0 0.0
          %864 = vmatprep.subr.mxu0 0.0
          %865 = vmatpush1.msra.mxu0 0.0
          %866 = vmatprep.subr.mxu0 0.0
          %867 = vmatpush1.msra.mxu0 0.0
          %868 = vmatprep.subr.mxu0 0.0
          %869 = vmatpush1.msra.mxu0 0.0
          %870 = vmatprep.subr.mxu0 0.0
          %871 = vmatpush1.msra.mxu0 0.0
          %872 = vmatprep.subr.mxu0 0.0
          %873 = vmatpush1.msra.mxu0 0.0
          %874 = vmatprep.subr.mxu0 0.0
          %875 = vmatpush1.msra.mxu0 0.0
          %876 = vmatprep.subr.mxu0 0.0
          %877 = vmatpush1.msra.mxu0 0.0
          %878 = vmatprep.subr.mxu0 0.0
          %879 = vmatpush1.msra.mxu0 0.0
          %880 = vmatprep.subr.mxu0 0.0
          %881 = vmatpush1.msra.mxu0 0.0
          %882 = vmatprep.subr.mxu0 0.0
          %883 = vmatpush1.msra.mxu0 0.0
          %884 = vmatprep.subr.mxu0 0.0
          %885 = vmatpush1.msra.mxu0 0.0
          %886 = vmatprep.subr.mxu0 0.0
          %887 = vmatpush1.msra.mxu0 0.0
          %888 = vmatprep.subr.mxu0 0.0
          %889 = vmatpush1.msra.mxu0 0.0
          %890 = vmatprep.subr.mxu0 0.0
          %891 = vmatpush1.msra.mxu0 0.0
          %892 = vmatprep.subr.mxu0 0.0
          %893 = vmatpush1.msra.mxu0 0.0
          %894 = vmatprep.subr.mxu0 0.0
          %895 = vmatpush1.msra.mxu0 0.0
          %896 = vmatprep.subr.mxu0 0.0
          %897 = vmatpush1.msra.mxu0 0.0
          %898 = vmatprep.subr.mxu0 0.0
          %899 = vmatpush1.msra.mxu0 0.0
          %900 = vmatprep.subr.mxu0 0.0
          %901 = vmatpush1.msra.mxu0 0.0
          %902 = vmatprep.subr.mxu0 0.0
          %903 = vmatpush1.msra.mxu0 0.0
          %904 = vmatprep.subr.mxu0 0.0
          %905 = vmatpush1.msra.mxu0 0.0
          %906 = vmatprep.subr.mxu0 0.0
          %907 = vmatpush1.msra.mxu0 0.0
          %908 = vmatprep.subr.mxu0 0.0
          %909 = vmatpush1.msra.mxu0 0.0
          %910 = vmatprep.subr.mxu0 0.0
          %911 = vmatpush1.msra.mxu0 0.0
          %912 = vmatprep.subr.mxu0 0.0
          %913 = vmatpush1.msra.mxu0 0.0
          %914 = vmatprep.mubr.f32.mxu0 0.0
          %915 = vmatmul.mubr.f32.gmra.mrb[0].mxu0 %v254
          %v916 = vpop.f32.mrb[0].mxu0
          %v917 = vadd.f32 %v848, %v916
          %v918 = vpop.f32.mrb[0].mxu0
          %919 = vdwg.mxu0
          %s920 = scalar_lea.vmem [#allocation3], 24
          %921 = vst.msk [vmem:[%s920] sm:$0xff] %vm326, %v917
          %s922 = scalar_lea.vmem %s1, 384
          %v923 = vld [vmem:[%s922] sm:$0xff]
          %v924 = vld [vmem:[%s922 + $0x8] sm:$0xff]
          %v925 = vld [vmem:[%s922 + $0x10] sm:$0xff]
          %v926 = vld [vmem:[%s922 + $0x18] sm:$0xff]
          %s927 = scalar_lea.vmem %s2, 12
          %v928 = vld [vmem:[%s927] sm:$0x1]
          %v930 = vlaneseq
          %v931 = vshrl.u32 %v930, 7
          %v932 = vsub.s32 0, %v931
          %v933 = vrot.slane %v928, %v932
          %935 = vmatprep.subr.mxu0 0.0
          %936 = vmatpush1.msra.mxu0 %v923
          %937 = vmatprep.subr.mxu0 0.0
          %938 = vmatpush1.msra.mxu0 %v924
          %939 = vmatprep.subr.mxu0 0.0
          %940 = vmatpush1.msra.mxu0 %v925
          %941 = vmatprep.subr.mxu0 0.0
          %942 = vmatpush1.msra.mxu0 %v926
          %943 = vmatprep.subr.mxu0 0.0
          %944 = vmatpush1.msra.mxu0 0.0
          %945 = vmatprep.subr.mxu0 0.0
          %946 = vmatpush1.msra.mxu0 0.0
          %947 = vmatprep.subr.mxu0 0.0
          %948 = vmatpush1.msra.mxu0 0.0
          %949 = vmatprep.subr.mxu0 0.0
          %950 = vmatpush1.msra.mxu0 0.0
          %951 = vmatprep.subr.mxu0 0.0
          %952 = vmatpush1.msra.mxu0 0.0
          %953 = vmatprep.subr.mxu0 0.0
          %954 = vmatpush1.msra.mxu0 0.0
          %955 = vmatprep.subr.mxu0 0.0
          %956 = vmatpush1.msra.mxu0 0.0
          %957 = vmatprep.subr.mxu0 0.0
          %958 = vmatpush1.msra.mxu0 0.0
          %959 = vmatprep.subr.mxu0 0.0
          %960 = vmatpush1.msra.mxu0 0.0
          %961 = vmatprep.subr.mxu0 0.0
          %962 = vmatpush1.msra.mxu0 0.0
          %963 = vmatprep.subr.mxu0 0.0
          %964 = vmatpush1.msra.mxu0 0.0
          %965 = vmatprep.subr.mxu0 0.0
          %966 = vmatpush1.msra.mxu0 0.0
          %967 = vmatprep.subr.mxu0 0.0
          %968 = vmatpush1.msra.mxu0 0.0
          %969 = vmatprep.subr.mxu0 0.0
          %970 = vmatpush1.msra.mxu0 0.0
          %971 = vmatprep.subr.mxu0 0.0
          %972 = vmatpush1.msra.mxu0 0.0
          %973 = vmatprep.subr.mxu0 0.0
          %974 = vmatpush1.msra.mxu0 0.0
          %975 = vmatprep.subr.mxu0 0.0
          %976 = vmatpush1.msra.mxu0 0.0
          %977 = vmatprep.subr.mxu0 0.0
          %978 = vmatpush1.msra.mxu0 0.0
          %979 = vmatprep.subr.mxu0 0.0
          %980 = vmatpush1.msra.mxu0 0.0
          %981 = vmatprep.subr.mxu0 0.0
          %982 = vmatpush1.msra.mxu0 0.0
          %983 = vmatprep.subr.mxu0 0.0
          %984 = vmatpush1.msra.mxu0 0.0
          %985 = vmatprep.subr.mxu0 0.0
          %986 = vmatpush1.msra.mxu0 0.0
          %987 = vmatprep.subr.mxu0 0.0
          %988 = vmatpush1.msra.mxu0 0.0
          %989 = vmatprep.subr.mxu0 0.0
          %990 = vmatpush1.msra.mxu0 0.0
          %991 = vmatprep.subr.mxu0 0.0
          %992 = vmatpush1.msra.mxu0 0.0
          %993 = vmatprep.subr.mxu0 0.0
          %994 = vmatpush1.msra.mxu0 0.0
          %995 = vmatprep.subr.mxu0 0.0
          %996 = vmatpush1.msra.mxu0 0.0
          %997 = vmatprep.subr.mxu0 0.0
          %998 = vmatpush1.msra.mxu0 0.0
          %999 = vmatprep.mubr.f32.mxu0 0.0
          %1000 = vmatmul.mubr.f32.gmra.mrb[0].mxu0 %v254
          %v1001 = vpop.f32.mrb[0].mxu0
          %v1002 = vadd.f32 %v933, %v1001
          %v1003 = vpop.f32.mrb[0].mxu0
          %1004 = vdwg.mxu0
          %s1005 = scalar_lea.vmem [#allocation2], 32
          %1006 = vst.msk [vmem:[%s1005] sm:$0xff] %vm326, %v1002
          %s1007 = scalar_lea.vmem %s1, 640
          %v1008 = vld [vmem:[%s1007] sm:$0xff]
          %v1009 = vld [vmem:[%s1007 + $0x8] sm:$0xff]
          %v1010 = vld [vmem:[%s1007 + $0x10] sm:$0xff]
          %v1011 = vld [vmem:[%s1007 + $0x18] sm:$0xff]
          %s1012 = scalar_lea.vmem %s2, 20
          %v1013 = vld [vmem:[%s1012] sm:$0x1]
          %v1015 = vlaneseq
          %v1016 = vshrl.u32 %v1015, 7
          %v1017 = vsub.s32 0, %v1016
          %v1018 = vrot.slane %v1013, %v1017
          %1020 = vmatprep.subr.mxu0 0.0
          %1021 = vmatpush1.msra.mxu0 %v1008
          %1022 = vmatprep.subr.mxu0 0.0
          %1023 = vmatpush1.msra.mxu0 %v1009
          %1024 = vmatprep.subr.mxu0 0.0
          %1025 = vmatpush1.msra.mxu0 %v1010
          %1026 = vmatprep.subr.mxu0 0.0
          %1027 = vmatpush1.msra.mxu0 %v1011
          %1028 = vmatprep.subr.mxu0 0.0
          %1029 = vmatpush1.msra.mxu0 0.0
          %1030 = vmatprep.subr.mxu0 0.0
          %1031 = vmatpush1.msra.mxu0 0.0
          %1032 = vmatprep.subr.mxu0 0.0
          %1033 = vmatpush1.msra.mxu0 0.0
          %1034 = vmatprep.subr.mxu0 0.0
          %1035 = vmatpush1.msra.mxu0 0.0
          %1036 = vmatprep.subr.mxu0 0.0
          %1037 = vmatpush1.msra.mxu0 0.0
          %1038 = vmatprep.subr.mxu0 0.0
          %1039 = vmatpush1.msra.mxu0 0.0
          %1040 = vmatprep.subr.mxu0 0.0
          %1041 = vmatpush1.msra.mxu0 0.0
          %1042 = vmatprep.subr.mxu0 0.0
          %1043 = vmatpush1.msra.mxu0 0.0
          %1044 = vmatprep.subr.mxu0 0.0
          %1045 = vmatpush1.msra.mxu0 0.0
          %1046 = vmatprep.subr.mxu0 0.0
          %1047 = vmatpush1.msra.mxu0 0.0
          %1048 = vmatprep.subr.mxu0 0.0
          %1049 = vmatpush1.msra.mxu0 0.0
          %1050 = vmatprep.subr.mxu0 0.0
          %1051 = vmatpush1.msra.mxu0 0.0
          %1052 = vmatprep.subr.mxu0 0.0
          %1053 = vmatpush1.msra.mxu0 0.0
          %1054 = vmatprep.subr.mxu0 0.0
          %1055 = vmatpush1.msra.mxu0 0.0
          %1056 = vmatprep.subr.mxu0 0.0
          %1057 = vmatpush1.msra.mxu0 0.0
          %1058 = vmatprep.subr.mxu0 0.0
          %1059 = vmatpush1.msra.mxu0 0.0
          %1060 = vmatprep.subr.mxu0 0.0
          %1061 = vmatpush1.msra.mxu0 0.0
          %1062 = vmatprep.subr.mxu0 0.0
          %1063 = vmatpush1.msra.mxu0 0.0
          %1064 = vmatprep.subr.mxu0 0.0
          %1065 = vmatpush1.msra.mxu0 0.0
          %1066 = vmatprep.subr.mxu0 0.0
          %1067 = vmatpush1.msra.mxu0 0.0
          %1068 = vmatprep.subr.mxu0 0.0
          %1069 = vmatpush1.msra.mxu0 0.0
          %1070 = vmatprep.subr.mxu0 0.0
          %1071 = vmatpush1.msra.mxu0 0.0
          %1072 = vmatprep.subr.mxu0 0.0
          %1073 = vmatpush1.msra.mxu0 0.0
          %1074 = vmatprep.subr.mxu0 0.0
          %1075 = vmatpush1.msra.mxu0 0.0
          %1076 = vmatprep.subr.mxu0 0.0
          %1077 = vmatpush1.msra.mxu0 0.0
          %1078 = vmatprep.subr.mxu0 0.0
          %1079 = vmatpush1.msra.mxu0 0.0
          %1080 = vmatprep.subr.mxu0 0.0
          %1081 = vmatpush1.msra.mxu0 0.0
          %1082 = vmatprep.subr.mxu0 0.0
          %1083 = vmatpush1.msra.mxu0 0.0
          %1084 = vmatprep.mubr.f32.mxu0 0.0
          %1085 = vmatmul.mubr.f32.gmra.mrb[0].mxu0 %v254
          %v1086 = vpop.f32.mrb[0].mxu0
          %v1087 = vadd.f32 %v1018, %v1086
          %v1088 = vpop.f32.mrb[0].mxu0
          %1089 = vdwg.mxu0
          %s1090 = scalar_lea.vmem [#allocation3], 32
          %1091 = vst.msk [vmem:[%s1090] sm:$0xff] %vm326, %v1087
          %s1092 = scalar_lea.vmem %s1, 416
          %v1093 = vld [vmem:[%s1092] sm:$0xff]
          %v1094 = vld [vmem:[%s1092 + $0x8] sm:$0xff]
          %v1095 = vld [vmem:[%s1092 + $0x10] sm:$0xff]
          %v1096 = vld [vmem:[%s1092 + $0x18] sm:$0xff]
          %s1097 = scalar_lea.vmem %s2, 13
          %v1098 = vld [vmem:[%s1097] sm:$0x1]
          %v1100 = vlaneseq
          %v1101 = vshrl.u32 %v1100, 7
          %v1102 = vsub.s32 0, %v1101
          %v1103 = vrot.slane %v1098, %v1102
          %1105 = vmatprep.subr.mxu0 0.0
          %1106 = vmatpush1.msra.mxu0 %v1093
          %1107 = vmatprep.subr.mxu0 0.0
          %1108 = vmatpush1.msra.mxu0 %v1094
          %1109 = vmatprep.subr.mxu0 0.0
          %1110 = vmatpush1.msra.mxu0 %v1095
          %1111 = vmatprep.subr.mxu0 0.0
          %1112 = vmatpush1.msra.mxu0 %v1096
          %1113 = vmatprep.subr.mxu0 0.0
          %1114 = vmatpush1.msra.mxu0 0.0
          %1115 = vmatprep.subr.mxu0 0.0
          %1116 = vmatpush1.msra.mxu0 0.0
          %1117 = vmatprep.subr.mxu0 0.0
          %1118 = vmatpush1.msra.mxu0 0.0
          %1119 = vmatprep.subr.mxu0 0.0
          %1120 = vmatpush1.msra.mxu0 0.0
          %1121 = vmatprep.subr.mxu0 0.0
          %1122 = vmatpush1.msra.mxu0 0.0
          %1123 = vmatprep.subr.mxu0 0.0
          %1124 = vmatpush1.msra.mxu0 0.0
          %1125 = vmatprep.subr.mxu0 0.0
          %1126 = vmatpush1.msra.mxu0 0.0
          %1127 = vmatprep.subr.mxu0 0.0
          %1128 = vmatpush1.msra.mxu0 0.0
          %1129 = vmatprep.subr.mxu0 0.0
          %1130 = vmatpush1.msra.mxu0 0.0
          %1131 = vmatprep.subr.mxu0 0.0
          %1132 = vmatpush1.msra.mxu0 0.0
          %1133 = vmatprep.subr.mxu0 0.0
          %1134 = vmatpush1.msra.mxu0 0.0
          %1135 = vmatprep.subr.mxu0 0.0
          %1136 = vmatpush1.msra.mxu0 0.0
          %1137 = vmatprep.subr.mxu0 0.0
          %1138 = vmatpush1.msra.mxu0 0.0
          %1139 = vmatprep.subr.mxu0 0.0
          %1140 = vmatpush1.msra.mxu0 0.0
          %1141 = vmatprep.subr.mxu0 0.0
          %1142 = vmatpush1.msra.mxu0 0.0
          %1143 = vmatprep.subr.mxu0 0.0
          %1144 = vmatpush1.msra.mxu0 0.0
          %1145 = vmatprep.subr.mxu0 0.0
          %1146 = vmatpush1.msra.mxu0 0.0
          %1147 = vmatprep.subr.mxu0 0.0
          %1148 = vmatpush1.msra.mxu0 0.0
          %1149 = vmatprep.subr.mxu0 0.0
          %1150 = vmatpush1.msra.mxu0 0.0
          %1151 = vmatprep.subr.mxu0 0.0
          %1152 = vmatpush1.msra.mxu0 0.0
          %1153 = vmatprep.subr.mxu0 0.0
          %1154 = vmatpush1.msra.mxu0 0.0
          %1155 = vmatprep.subr.mxu0 0.0
          %1156 = vmatpush1.msra.mxu0 0.0
          %1157 = vmatprep.subr.mxu0 0.0
          %1158 = vmatpush1.msra.mxu0 0.0
          %1159 = vmatprep.subr.mxu0 0.0
          %1160 = vmatpush1.msra.mxu0 0.0
          %1161 = vmatprep.subr.mxu0 0.0
          %1162 = vmatpush1.msra.mxu0 0.0
          %1163 = vmatprep.subr.mxu0 0.0
          %1164 = vmatpush1.msra.mxu0 0.0
          %1165 = vmatprep.subr.mxu0 0.0
          %1166 = vmatpush1.msra.mxu0 0.0
          %1167 = vmatprep.subr.mxu0 0.0
          %1168 = vmatpush1.msra.mxu0 0.0
          %1169 = vmatprep.mubr.f32.mxu0 0.0
          %1170 = vmatmul.mubr.f32.gmra.mrb[0].mxu0 %v254
          %v1171 = vpop.f32.mrb[0].mxu0
          %v1172 = vadd.f32 %v1103, %v1171
          %v1173 = vpop.f32.mrb[0].mxu0
          %1174 = vdwg.mxu0
          %s1175 = scalar_lea.vmem [#allocation2], 40
          %1176 = vst.msk [vmem:[%s1175] sm:$0xff] %vm326, %v1172
          %s1177 = scalar_lea.vmem %s1, 672
          %v1178 = vld [vmem:[%s1177] sm:$0xff]
          %v1179 = vld [vmem:[%s1177 + $0x8] sm:$0xff]
          %v1180 = vld [vmem:[%s1177 + $0x10] sm:$0xff]
          %v1181 = vld [vmem:[%s1177 + $0x18] sm:$0xff]
          %s1182 = scalar_lea.vmem %s2, 21
          %v1183 = vld [vmem:[%s1182] sm:$0x1]
          %v1185 = vlaneseq
          %v1186 = vshrl.u32 %v1185, 7
          %v1187 = vsub.s32 0, %v1186
          %v1188 = vrot.slane %v1183, %v1187
          %1190 = vmatprep.subr.mxu0 0.0
          %1191 = vmatpush1.msra.mxu0 %v1178
          %1192 = vmatprep.subr.mxu0 0.0
          %1193 = vmatpush1.msra.mxu0 %v1179
          %1194 = vmatprep.subr.mxu0 0.0
          %1195 = vmatpush1.msra.mxu0 %v1180
          %1196 = vmatprep.subr.mxu0 0.0
          %1197 = vmatpush1.msra.mxu0 %v1181
          %1198 = vmatprep.subr.mxu0 0.0
          %1199 = vmatpush1.msra.mxu0 0.0
          %1200 = vmatprep.subr.mxu0 0.0
          %1201 = vmatpush1.msra.mxu0 0.0
          %1202 = vmatprep.subr.mxu0 0.0
          %1203 = vmatpush1.msra.mxu0 0.0
          %1204 = vmatprep.subr.mxu0 0.0
          %1205 = vmatpush1.msra.mxu0 0.0
          %1206 = vmatprep.subr.mxu0 0.0
          %1207 = vmatpush1.msra.mxu0 0.0
          %1208 = vmatprep.subr.mxu0 0.0
          %1209 = vmatpush1.msra.mxu0 0.0
          %1210 = vmatprep.subr.mxu0 0.0
          %1211 = vmatpush1.msra.mxu0 0.0
          %1212 = vmatprep.subr.mxu0 0.0
          %1213 = vmatpush1.msra.mxu0 0.0
          %1214 = vmatprep.subr.mxu0 0.0
          %1215 = vmatpush1.msra.mxu0 0.0
          %1216 = vmatprep.subr.mxu0 0.0
          %1217 = vmatpush1.msra.mxu0 0.0
          %1218 = vmatprep.subr.mxu0 0.0
          %1219 = vmatpush1.msra.mxu0 0.0
          %1220 = vmatprep.subr.mxu0 0.0
          %1221 = vmatpush1.msra.mxu0 0.0
          %1222 = vmatprep.subr.mxu0 0.0
          %1223 = vmatpush1.msra.mxu0 0.0
          %1224 = vmatprep.subr.mxu0 0.0
          %1225 = vmatpush1.msra.mxu0 0.0
          %1226 = vmatprep.subr.mxu0 0.0
          %1227 = vmatpush1.msra.mxu0 0.0
          %1228 = vmatprep.subr.mxu0 0.0
          %1229 = vmatpush1.msra.mxu0 0.0
          %1230 = vmatprep.subr.mxu0 0.0
          %1231 = vmatpush1.msra.mxu0 0.0
          %1232 = vmatprep.subr.mxu0 0.0
          %1233 = vmatpush1.msra.mxu0 0.0
          %1234 = vmatprep.subr.mxu0 0.0
          %1235 = vmatpush1.msra.mxu0 0.0
          %1236 = vmatprep.subr.mxu0 0.0
          %1237 = vmatpush1.msra.mxu0 0.0
          %1238 = vmatprep.subr.mxu0 0.0
          %1239 = vmatpush1.msra.mxu0 0.0
          %1240 = vmatprep.subr.mxu0 0.0
          %1241 = vmatpush1.msra.mxu0 0.0
          %1242 = vmatprep.subr.mxu0 0.0
          %1243 = vmatpush1.msra.mxu0 0.0
          %1244 = vmatprep.subr.mxu0 0.0
          %1245 = vmatpush1.msra.mxu0 0.0
          %1246 = vmatprep.subr.mxu0 0.0
          %1247 = vmatpush1.msra.mxu0 0.0
          %1248 = vmatprep.subr.mxu0 0.0
          %1249 = vmatpush1.msra.mxu0 0.0
          %1250 = vmatprep.subr.mxu0 0.0
          %1251 = vmatpush1.msra.mxu0 0.0
          %1252 = vmatprep.subr.mxu0 0.0
          %1253 = vmatpush1.msra.mxu0 0.0
          %1254 = vmatprep.mubr.f32.mxu0 0.0
          %1255 = vmatmul.mubr.f32.gmra.mrb[0].mxu0 %v254
          %v1256 = vpop.f32.mrb[0].mxu0
          %v1257 = vadd.f32 %v1188, %v1256
          %v1258 = vpop.f32.mrb[0].mxu0
          %1259 = vdwg.mxu0
          %s1260 = scalar_lea.vmem [#allocation3], 40
          %1261 = vst.msk [vmem:[%s1260] sm:$0xff] %vm326, %v1257
          %s1262 = scalar_lea.vmem %s1, 448
          %v1263 = vld [vmem:[%s1262] sm:$0xff]
          %v1264 = vld [vmem:[%s1262 + $0x8] sm:$0xff]
          %v1265 = vld [vmem:[%s1262 + $0x10] sm:$0xff]
          %v1266 = vld [vmem:[%s1262 + $0x18] sm:$0xff]
          %s1267 = scalar_lea.vmem %s2, 14
          %v1268 = vld [vmem:[%s1267] sm:$0x1]
          %v1270 = vlaneseq
          %v1271 = vshrl.u32 %v1270, 7
          %v1272 = vsub.s32 0, %v1271
          %v1273 = vrot.slane %v1268, %v1272
          %1275 = vmatprep.subr.mxu0 0.0
          %1276 = vmatpush1.msra.mxu0 %v1263
          %1277 = vmatprep.subr.mxu0 0.0
          %1278 = vmatpush1.msra.mxu0 %v1264
          %1279 = vmatprep.subr.mxu0 0.0
          %1280 = vmatpush1.msra.mxu0 %v1265
          %1281 = vmatprep.subr.mxu0 0.0
          %1282 = vmatpush1.msra.mxu0 %v1266
          %1283 = vmatprep.subr.mxu0 0.0
          %1284 = vmatpush1.msra.mxu0 0.0
          %1285 = vmatprep.subr.mxu0 0.0
          %1286 = vmatpush1.msra.mxu0 0.0
          %1287 = vmatprep.subr.mxu0 0.0
          %1288 = vmatpush1.msra.mxu0 0.0
          %1289 = vmatprep.subr.mxu0 0.0
          %1290 = vmatpush1.msra.mxu0 0.0
          %1291 = vmatprep.subr.mxu0 0.0
          %1292 = vmatpush1.msra.mxu0 0.0
          %1293 = vmatprep.subr.mxu0 0.0
          %1294 = vmatpush1.msra.mxu0 0.0
          %1295 = vmatprep.subr.mxu0 0.0
          %1296 = vmatpush1.msra.mxu0 0.0
          %1297 = vmatprep.subr.mxu0 0.0
          %1298 = vmatpush1.msra.mxu0 0.0
          %1299 = vmatprep.subr.mxu0 0.0
          %1300 = vmatpush1.msra.mxu0 0.0
          %1301 = vmatprep.subr.mxu0 0.0
          %1302 = vmatpush1.msra.mxu0 0.0
          %1303 = vmatprep.subr.mxu0 0.0
          %1304 = vmatpush1.msra.mxu0 0.0
          %1305 = vmatprep.subr.mxu0 0.0
          %1306 = vmatpush1.msra.mxu0 0.0
          %1307 = vmatprep.subr.mxu0 0.0
          %1308 = vmatpush1.msra.mxu0 0.0
          %1309 = vmatprep.subr.mxu0 0.0
          %1310 = vmatpush1.msra.mxu0 0.0
          %1311 = vmatprep.subr.mxu0 0.0
          %1312 = vmatpush1.msra.mxu0 0.0
          %1313 = vmatprep.subr.mxu0 0.0
          %1314 = vmatpush1.msra.mxu0 0.0
          %1315 = vmatprep.subr.mxu0 0.0
          %1316 = vmatpush1.msra.mxu0 0.0
          %1317 = vmatprep.subr.mxu0 0.0
          %1318 = vmatpush1.msra.mxu0 0.0
          %1319 = vmatprep.subr.mxu0 0.0
          %1320 = vmatpush1.msra.mxu0 0.0
          %1321 = vmatprep.subr.mxu0 0.0
          %1322 = vmatpush1.msra.mxu0 0.0
          %1323 = vmatprep.subr.mxu0 0.0
          %1324 = vmatpush1.msra.mxu0 0.0
          %1325 = vmatprep.subr.mxu0 0.0
          %1326 = vmatpush1.msra.mxu0 0.0
          %1327 = vmatprep.subr.mxu0 0.0
          %1328 = vmatpush1.msra.mxu0 0.0
          %1329 = vmatprep.subr.mxu0 0.0
          %1330 = vmatpush1.msra.mxu0 0.0
          %1331 = vmatprep.subr.mxu0 0.0
          %1332 = vmatpush1.msra.mxu0 0.0
          %1333 = vmatprep.subr.mxu0 0.0
          %1334 = vmatpush1.msra.mxu0 0.0
          %1335 = vmatprep.subr.mxu0 0.0
          %1336 = vmatpush1.msra.mxu0 0.0
          %1337 = vmatprep.subr.mxu0 0.0
          %1338 = vmatpush1.msra.mxu0 0.0
          %1339 = vmatprep.mubr.f32.mxu0 0.0
          %1340 = vmatmul.mubr.f32.gmra.mrb[0].mxu0 %v254
          %v1341 = vpop.f32.mrb[0].mxu0
          %v1342 = vadd.f32 %v1273, %v1341
          %v1343 = vpop.f32.mrb[0].mxu0
          %1344 = vdwg.mxu0
          %s1345 = scalar_lea.vmem [#allocation2], 48
          %1346 = vst.msk [vmem:[%s1345] sm:$0xff] %vm326, %v1342
          %s1347 = scalar_lea.vmem %s1, 704
          %v1348 = vld [vmem:[%s1347] sm:$0xff]
          %v1349 = vld [vmem:[%s1347 + $0x8] sm:$0xff]
          %v1350 = vld [vmem:[%s1347 + $0x10] sm:$0xff]
          %v1351 = vld [vmem:[%s1347 + $0x18] sm:$0xff]
          %s1352 = scalar_lea.vmem %s2, 22
          %v1353 = vld [vmem:[%s1352] sm:$0x1]
          %v1355 = vlaneseq
          %v1356 = vshrl.u32 %v1355, 7
          %v1357 = vsub.s32 0, %v1356
          %v1358 = vrot.slane %v1353, %v1357
          %1360 = vmatprep.subr.mxu0 0.0
          %1361 = vmatpush1.msra.mxu0 %v1348
          %1362 = vmatprep.subr.mxu0 0.0
          %1363 = vmatpush1.msra.mxu0 %v1349
          %1364 = vmatprep.subr.mxu0 0.0
          %1365 = vmatpush1.msra.mxu0 %v1350
          %1366 = vmatprep.subr.mxu0 0.0
          %1367 = vmatpush1.msra.mxu0 %v1351
          %1368 = vmatprep.subr.mxu0 0.0
          %1369 = vmatpush1.msra.mxu0 0.0
          %1370 = vmatprep.subr.mxu0 0.0
          %1371 = vmatpush1.msra.mxu0 0.0
          %1372 = vmatprep.subr.mxu0 0.0
          %1373 = vmatpush1.msra.mxu0 0.0
          %1374 = vmatprep.subr.mxu0 0.0
          %1375 = vmatpush1.msra.mxu0 0.0
          %1376 = vmatprep.subr.mxu0 0.0
          %1377 = vmatpush1.msra.mxu0 0.0
          %1378 = vmatprep.subr.mxu0 0.0
          %1379 = vmatpush1.msra.mxu0 0.0
          %1380 = vmatprep.subr.mxu0 0.0
          %1381 = vmatpush1.msra.mxu0 0.0
          %1382 = vmatprep.subr.mxu0 0.0
          %1383 = vmatpush1.msra.mxu0 0.0
          %1384 = vmatprep.subr.mxu0 0.0
          %1385 = vmatpush1.msra.mxu0 0.0
          %1386 = vmatprep.subr.mxu0 0.0
          %1387 = vmatpush1.msra.mxu0 0.0
          %1388 = vmatprep.subr.mxu0 0.0
          %1389 = vmatpush1.msra.mxu0 0.0
          %1390 = vmatprep.subr.mxu0 0.0
          %1391 = vmatpush1.msra.mxu0 0.0
          %1392 = vmatprep.subr.mxu0 0.0
          %1393 = vmatpush1.msra.mxu0 0.0
          %1394 = vmatprep.subr.mxu0 0.0
          %1395 = vmatpush1.msra.mxu0 0.0
          %1396 = vmatprep.subr.mxu0 0.0
          %1397 = vmatpush1.msra.mxu0 0.0
          %1398 = vmatprep.subr.mxu0 0.0
          %1399 = vmatpush1.msra.mxu0 0.0
          %1400 = vmatprep.subr.mxu0 0.0
          %1401 = vmatpush1.msra.mxu0 0.0
          %1402 = vmatprep.subr.mxu0 0.0
          %1403 = vmatpush1.msra.mxu0 0.0
          %1404 = vmatprep.subr.mxu0 0.0
          %1405 = vmatpush1.msra.mxu0 0.0
          %1406 = vmatprep.subr.mxu0 0.0
          %1407 = vmatpush1.msra.mxu0 0.0
          %1408 = vmatprep.subr.mxu0 0.0
          %1409 = vmatpush1.msra.mxu0 0.0
          %1410 = vmatprep.subr.mxu0 0.0
          %1411 = vmatpush1.msra.mxu0 0.0
          %1412 = vmatprep.subr.mxu0 0.0
          %1413 = vmatpush1.msra.mxu0 0.0
          %1414 = vmatprep.subr.mxu0 0.0
          %1415 = vmatpush1.msra.mxu0 0.0
          %1416 = vmatprep.subr.mxu0 0.0
          %1417 = vmatpush1.msra.mxu0 0.0
          %1418 = vmatprep.subr.mxu0 0.0
          %1419 = vmatpush1.msra.mxu0 0.0
          %1420 = vmatprep.subr.mxu0 0.0
          %1421 = vmatpush1.msra.mxu0 0.0
          %1422 = vmatprep.subr.mxu0 0.0
          %1423 = vmatpush1.msra.mxu0 0.0
          %1424 = vmatprep.mubr.f32.mxu0 0.0
          %1425 = vmatmul.mubr.f32.gmra.mrb[0].mxu0 %v254
          %v1426 = vpop.f32.mrb[0].mxu0
          %v1427 = vadd.f32 %v1358, %v1426
          %v1428 = vpop.f32.mrb[0].mxu0
          %1429 = vdwg.mxu0
          %s1430 = scalar_lea.vmem [#allocation3], 48
          %1431 = vst.msk [vmem:[%s1430] sm:$0xff] %vm326, %v1427
          %s1432 = scalar_lea.vmem %s1, 480
          %v1433 = vld [vmem:[%s1432] sm:$0xff]
          %v1434 = vld [vmem:[%s1432 + $0x8] sm:$0xff]
          %v1435 = vld [vmem:[%s1432 + $0x10] sm:$0xff]
          %v1436 = vld [vmem:[%s1432 + $0x18] sm:$0xff]
          %s1437 = scalar_lea.vmem %s2, 15
          %v1438 = vld [vmem:[%s1437] sm:$0x1]
          %v1440 = vlaneseq
          %v1441 = vshrl.u32 %v1440, 7
          %v1442 = vsub.s32 0, %v1441
          %v1443 = vrot.slane %v1438, %v1442
          %1445 = vmatprep.subr.mxu0 0.0
          %1446 = vmatpush1.msra.mxu0 %v1433
          %1447 = vmatprep.subr.mxu0 0.0
          %1448 = vmatpush1.msra.mxu0 %v1434
          %1449 = vmatprep.subr.mxu0 0.0
          %1450 = vmatpush1.msra.mxu0 %v1435
          %1451 = vmatprep.subr.mxu0 0.0
          %1452 = vmatpush1.msra.mxu0 %v1436
          %1453 = vmatprep.subr.mxu0 0.0
          %1454 = vmatpush1.msra.mxu0 0.0
          %1455 = vmatprep.subr.mxu0 0.0
          %1456 = vmatpush1.msra.mxu0 0.0
          %1457 = vmatprep.subr.mxu0 0.0
          %1458 = vmatpush1.msra.mxu0 0.0
          %1459 = vmatprep.subr.mxu0 0.0
          %1460 = vmatpush1.msra.mxu0 0.0
          %1461 = vmatprep.subr.mxu0 0.0
          %1462 = vmatpush1.msra.mxu0 0.0
          %1463 = vmatprep.subr.mxu0 0.0
          %1464 = vmatpush1.msra.mxu0 0.0
          %1465 = vmatprep.subr.mxu0 0.0
          %1466 = vmatpush1.msra.mxu0 0.0
          %1467 = vmatprep.subr.mxu0 0.0
          %1468 = vmatpush1.msra.mxu0 0.0
          %1469 = vmatprep.subr.mxu0 0.0
          %1470 = vmatpush1.msra.mxu0 0.0
          %1471 = vmatprep.subr.mxu0 0.0
          %1472 = vmatpush1.msra.mxu0 0.0
          %1473 = vmatprep.subr.mxu0 0.0
          %1474 = vmatpush1.msra.mxu0 0.0
          %1475 = vmatprep.subr.mxu0 0.0
          %1476 = vmatpush1.msra.mxu0 0.0
          %1477 = vmatprep.subr.mxu0 0.0
          %1478 = vmatpush1.msra.mxu0 0.0
          %1479 = vmatprep.subr.mxu0 0.0
          %1480 = vmatpush1.msra.mxu0 0.0
          %1481 = vmatprep.subr.mxu0 0.0
          %1482 = vmatpush1.msra.mxu0 0.0
          %1483 = vmatprep.subr.mxu0 0.0
          %1484 = vmatpush1.msra.mxu0 0.0
          %1485 = vmatprep.subr.mxu0 0.0
          %1486 = vmatpush1.msra.mxu0 0.0
          %1487 = vmatprep.subr.mxu0 0.0
          %1488 = vmatpush1.msra.mxu0 0.0
          %1489 = vmatprep.subr.mxu0 0.0
          %1490 = vmatpush1.msra.mxu0 0.0
          %1491 = vmatprep.subr.mxu0 0.0
          %1492 = vmatpush1.msra.mxu0 0.0
          %1493 = vmatprep.subr.mxu0 0.0
          %1494 = vmatpush1.msra.mxu0 0.0
          %1495 = vmatprep.subr.mxu0 0.0
          %1496 = vmatpush1.msra.mxu0 0.0
          %1497 = vmatprep.subr.mxu0 0.0
          %1498 = vmatpush1.msra.mxu0 0.0
          %1499 = vmatprep.subr.mxu0 0.0
          %1500 = vmatpush1.msra.mxu0 0.0
          %1501 = vmatprep.subr.mxu0 0.0
          %1502 = vmatpush1.msra.mxu0 0.0
          %1503 = vmatprep.subr.mxu0 0.0
          %1504 = vmatpush1.msra.mxu0 0.0
          %1505 = vmatprep.subr.mxu0 0.0
          %1506 = vmatpush1.msra.mxu0 0.0
          %1507 = vmatprep.subr.mxu0 0.0
          %1508 = vmatpush1.msra.mxu0 0.0
          %1509 = vmatprep.mubr.f32.mxu0 0.0
          %1510 = vmatmul.mubr.f32.gmra.mrb[0].mxu0 %v254
          %v1511 = vpop.f32.mrb[0].mxu0
          %v1512 = vadd.f32 %v1443, %v1511
          %v1513 = vpop.f32.mrb[0].mxu0
          %1514 = vdwg.mxu0
          %s1515 = scalar_lea.vmem [#allocation2], 56
          %1516 = vst.msk [vmem:[%s1515] sm:$0xff] %vm326, %v1512
          %s1517 = scalar_lea.vmem %s1, 736
          %v1518 = vld [vmem:[%s1517] sm:$0xff]
          %v1519 = vld [vmem:[%s1517 + $0x8] sm:$0xff]
          %v1520 = vld [vmem:[%s1517 + $0x10] sm:$0xff]
          %v1521 = vld [vmem:[%s1517 + $0x18] sm:$0xff]
          %s1522 = scalar_lea.vmem %s2, 23
          %v1523 = vld [vmem:[%s1522] sm:$0x1]
          %v1525 = vlaneseq
          %v1526 = vshrl.u32 %v1525, 7
          %v1527 = vsub.s32 0, %v1526
          %v1528 = vrot.slane %v1523, %v1527
          %1530 = vmatprep.subr.mxu0 0.0
          %1531 = vmatpush1.msra.mxu0 %v1518
          %1532 = vmatprep.subr.mxu0 0.0
          %1533 = vmatpush1.msra.mxu0 %v1519
          %1534 = vmatprep.subr.mxu0 0.0
          %1535 = vmatpush1.msra.mxu0 %v1520
          %1536 = vmatprep.subr.mxu0 0.0
          %1537 = vmatpush1.msra.mxu0 %v1521
          %1538 = vmatprep.subr.mxu0 0.0
          %1539 = vmatpush1.msra.mxu0 0.0
          %1540 = vmatprep.subr.mxu0 0.0
          %1541 = vmatpush1.msra.mxu0 0.0
          %1542 = vmatprep.subr.mxu0 0.0
          %1543 = vmatpush1.msra.mxu0 0.0
          %1544 = vmatprep.subr.mxu0 0.0
          %1545 = vmatpush1.msra.mxu0 0.0
          %1546 = vmatprep.subr.mxu0 0.0
          %1547 = vmatpush1.msra.mxu0 0.0
          %1548 = vmatprep.subr.mxu0 0.0
          %1549 = vmatpush1.msra.mxu0 0.0
          %1550 = vmatprep.subr.mxu0 0.0
          %1551 = vmatpush1.msra.mxu0 0.0
          %1552 = vmatprep.subr.mxu0 0.0
          %1553 = vmatpush1.msra.mxu0 0.0
          %1554 = vmatprep.subr.mxu0 0.0
          %1555 = vmatpush1.msra.mxu0 0.0
          %1556 = vmatprep.subr.mxu0 0.0
          %1557 = vmatpush1.msra.mxu0 0.0
          %1558 = vmatprep.subr.mxu0 0.0
          %1559 = vmatpush1.msra.mxu0 0.0
          %1560 = vmatprep.subr.mxu0 0.0
          %1561 = vmatpush1.msra.mxu0 0.0
          %1562 = vmatprep.subr.mxu0 0.0
          %1563 = vmatpush1.msra.mxu0 0.0
          %1564 = vmatprep.subr.mxu0 0.0
          %1565 = vmatpush1.msra.mxu0 0.0
          %1566 = vmatprep.subr.mxu0 0.0
          %1567 = vmatpush1.msra.mxu0 0.0
          %1568 = vmatprep.subr.mxu0 0.0
          %1569 = vmatpush1.msra.mxu0 0.0
          %1570 = vmatprep.subr.mxu0 0.0
          %1571 = vmatpush1.msra.mxu0 0.0
          %1572 = vmatprep.subr.mxu0 0.0
          %1573 = vmatpush1.msra.mxu0 0.0
          %1574 = vmatprep.subr.mxu0 0.0
          %1575 = vmatpush1.msra.mxu0 0.0
          %1576 = vmatprep.subr.mxu0 0.0
          %1577 = vmatpush1.msra.mxu0 0.0
          %1578 = vmatprep.subr.mxu0 0.0
          %1579 = vmatpush1.msra.mxu0 0.0
          %1580 = vmatprep.subr.mxu0 0.0
          %1581 = vmatpush1.msra.mxu0 0.0
          %1582 = vmatprep.subr.mxu0 0.0
          %1583 = vmatpush1.msra.mxu0 0.0
          %1584 = vmatprep.subr.mxu0 0.0
          %1585 = vmatpush1.msra.mxu0 0.0
          %1586 = vmatprep.subr.mxu0 0.0
          %1587 = vmatpush1.msra.mxu0 0.0
          %1588 = vmatprep.subr.mxu0 0.0
          %1589 = vmatpush1.msra.mxu0 0.0
          %1590 = vmatprep.subr.mxu0 0.0
          %1591 = vmatpush1.msra.mxu0 0.0
          %1592 = vmatprep.subr.mxu0 0.0
          %1593 = vmatpush1.msra.mxu0 0.0
          %1594 = vmatprep.mubr.f32.mxu0 0.0
          %1595 = vmatmul.mubr.f32.gmra.mrb[0].mxu0 %v254
          %v1596 = vpop.f32.mrb[0].mxu0
          %v1597 = vadd.f32 %v1528, %v1596
          %v1598 = vpop.f32.mrb[0].mxu0
          %1599 = vdwg.mxu0
          %s1600 = scalar_lea.vmem [#allocation3], 56
          %1601 = vst.msk [vmem:[%s1600] sm:$0xff] %vm326, %v1597
        $region44: #{tpu_custom_call.1} parent=39 // pred_fallthru
          _
        %s1602 = smul.u32 %s24, 8
        %s1603 = scalar_lea.vmem %s233, %s1602
        %v1604 = vld [vmem:[%s1603] sm:$0xff]
        %vm1605 = vcmask 261120
        %1606 = vst.msk [vmem:[#allocation4] sm:$0xff] %vm1605, 0.0
        %v1607 = vld [vmem:[%s1] sm:$0xff]
        %v1608 = vld [vmem:[%s1 + $0x8] sm:$0xff]
        %v1609 = vld [vmem:[%s1 + $0x10] sm:$0xff]
        %v1610 = vld [vmem:[%s1 + $0x18] sm:$0xff]
        %v1611 = vld [vmem:[%s2] sm:$0x1]
        %v1613 = vlaneseq
        %v1614 = vshrl.u32 %v1613, 7
        %v1615 = vsub.s32 0, %v1614
        %v1616 = vrot.slane %v1611, %v1615
        %v1619 = vsel %vm1605, %v1604, 0
        %1621 = vmatprep.subr.mxu0 0.0
        %1622 = vmatpush1.msra.mxu0 %v1607
        %1623 = vmatprep.subr.mxu0 0.0
        %1624 = vmatpush1.msra.mxu0 %v1608
        %1625 = vmatprep.subr.mxu0 0.0
        %1626 = vmatpush1.msra.mxu0 %v1609
        %1627 = vmatprep.subr.mxu0 0.0
        %1628 = vmatpush1.msra.mxu0 %v1610
        %1629 = vmatprep.subr.mxu0 0.0
        %1630 = vmatpush1.msra.mxu0 0.0
        %1631 = vmatprep.subr.mxu0 0.0
        %1632 = vmatpush1.msra.mxu0 0.0
        %1633 = vmatprep.subr.mxu0 0.0
        %1634 = vmatpush1.msra.mxu0 0.0
        %1635 = vmatprep.subr.mxu0 0.0
        %1636 = vmatpush1.msra.mxu0 0.0
        %1637 = vmatprep.subr.mxu0 0.0
        %1638 = vmatpush1.msra.mxu0 0.0
        %1639 = vmatprep.subr.mxu0 0.0
        %1640 = vmatpush1.msra.mxu0 0.0
        %1641 = vmatprep.subr.mxu0 0.0
        %1642 = vmatpush1.msra.mxu0 0.0
        %1643 = vmatprep.subr.mxu0 0.0
        %1644 = vmatpush1.msra.mxu0 0.0
        %1645 = vmatprep.subr.mxu0 0.0
        %1646 = vmatpush1.msra.mxu0 0.0
        %1647 = vmatprep.subr.mxu0 0.0
        %1648 = vmatpush1.msra.mxu0 0.0
        %1649 = vmatprep.subr.mxu0 0.0
        %1650 = vmatpush1.msra.mxu0 0.0
        %1651 = vmatprep.subr.mxu0 0.0
        %1652 = vmatpush1.msra.mxu0 0.0
        %1653 = vmatprep.subr.mxu0 0.0
        %1654 = vmatpush1.msra.mxu0 0.0
        %1655 = vmatprep.subr.mxu0 0.0
        %1656 = vmatpush1.msra.mxu0 0.0
        %1657 = vmatprep.subr.mxu0 0.0
        %1658 = vmatpush1.msra.mxu0 0.0
        %1659 = vmatprep.subr.mxu0 0.0
        %1660 = vmatpush1.msra.mxu0 0.0
        %1661 = vmatprep.subr.mxu0 0.0
        %1662 = vmatpush1.msra.mxu0 0.0
        %1663 = vmatprep.subr.mxu0 0.0
        %1664 = vmatpush1.msra.mxu0 0.0
        %1665 = vmatprep.subr.mxu0 0.0
        %1666 = vmatpush1.msra.mxu0 0.0
        %1667 = vmatprep.subr.mxu0 0.0
        %1668 = vmatpush1.msra.mxu0 0.0
        %1669 = vmatprep.subr.mxu0 0.0
        %1670 = vmatpush1.msra.mxu0 0.0
        %1671 = vmatprep.subr.mxu0 0.0
        %1672 = vmatpush1.msra.mxu0 0.0
        %1673 = vmatprep.subr.mxu0 0.0
        %1674 = vmatpush1.msra.mxu0 0.0
        %1675 = vmatprep.subr.mxu0 0.0
        %1676 = vmatpush1.msra.mxu0 0.0
        %1677 = vmatprep.subr.mxu0 0.0
        %1678 = vmatpush1.msra.mxu0 0.0
        %1679 = vmatprep.subr.mxu0 0.0
        %1680 = vmatpush1.msra.mxu0 0.0
        %1681 = vmatprep.subr.mxu0 0.0
        %1682 = vmatpush1.msra.mxu0 0.0
        %1683 = vmatprep.subr.mxu0 0.0
        %1684 = vmatpush1.msra.mxu0 0.0
        %1685 = vmatprep.mubr.f32.mxu0 0.0
        %1686 = vmatmul.mubr.f32.gmra.mrb[0].mxu0 %v1619
        %v1687 = vpop.f32.mrb[0].mxu0
        %v1688 = vadd.f32 %v1616, %v1687
        %v1689 = vpop.f32.mrb[0].mxu0
        %1690 = vdwg.mxu0
        %v1691 = vld [vmem:[#allocation2] sm:$0xff]
        %v1692 = vld [vmem:[#allocation3] sm:$0xff]
        %vm1693 = vcmask 31744
        %v1695 = vsel %vm1693, %v1688, 0
        %v1698 = vsel %vm1693, %v1691, 0
        %1700 = vmatprep.subr.mxu0 0.0
        %1701 = vmatpush1.xpose.msra.mxu0 %v1698
        %1702 = vmatprep.subr.mxu0 0.0
        %1703 = vmatpush1.xpose.msra.mxu0 0.0
        %1704 = vmatprep.subr.mxu0 0.0
        %1705 = vmatpush1.xpose.msra.mxu0 0.0
        %1706 = vmatprep.subr.mxu0 0.0
        %1707 = vmatpush1.xpose.msra.mxu0 0.0
        %1708 = vmatprep.subr.mxu0 0.0
        %1709 = vmatpush1.xpose.msra.mxu0 0.0
        %1710 = vmatprep.subr.mxu0 0.0
        %1711 = vmatpush1.xpose.msra.mxu0 0.0
        %1712 = vmatprep.subr.mxu0 0.0
        %1713 = vmatpush1.xpose.msra.mxu0 0.0
        %1714 = vmatprep.subr.mxu0 0.0
        %1715 = vmatpush1.xpose.msra.mxu0 0.0
        %1716 = vmatprep.subr.mxu0 0.0
        %1717 = vmatpush1.xpose.msra.mxu0 0.0
        %1718 = vmatprep.subr.mxu0 0.0
        %1719 = vmatpush1.xpose.msra.mxu0 0.0
        %1720 = vmatprep.subr.mxu0 0.0
        %1721 = vmatpush1.xpose.msra.mxu0 0.0
        %1722 = vmatprep.subr.mxu0 0.0
        %1723 = vmatpush1.xpose.msra.mxu0 0.0
        %1724 = vmatprep.subr.mxu0 0.0
        %1725 = vmatpush1.xpose.msra.mxu0 0.0
        %1726 = vmatprep.subr.mxu0 0.0
        %1727 = vmatpush1.xpose.msra.mxu0 0.0
        %1728 = vmatprep.subr.mxu0 0.0
        %1729 = vmatpush1.xpose.msra.mxu0 0.0
        %1730 = vmatprep.subr.mxu0 0.0
        %1731 = vmatpush1.xpose.msra.mxu0 0.0
        %1732 = vmatprep.subr.mxu0 0.0
        %1733 = vmatpush1.xpose.msra.mxu0 0.0
        %1734 = vmatprep.subr.mxu0 0.0
        %1735 = vmatpush1.xpose.msra.mxu0 0.0
        %1736 = vmatprep.subr.mxu0 0.0
        %1737 = vmatpush1.xpose.msra.mxu0 0.0
        %1738 = vmatprep.subr.mxu0 0.0
        %1739 = vmatpush1.xpose.msra.mxu0 0.0
        %1740 = vmatprep.subr.mxu0 0.0
        %1741 = vmatpush1.xpose.msra.mxu0 0.0
        %1742 = vmatprep.subr.mxu0 0.0
        %1743 = vmatpush1.xpose.msra.mxu0 0.0
        %1744 = vmatprep.subr.mxu0 0.0
        %1745 = vmatpush1.xpose.msra.mxu0 0.0
        %1746 = vmatprep.subr.mxu0 0.0
        %1747 = vmatpush1.xpose.msra.mxu0 0.0
        %1748 = vmatprep.subr.mxu0 0.0
        %1749 = vmatpush1.xpose.msra.mxu0 0.0
        %1750 = vmatprep.subr.mxu0 0.0
        %1751 = vmatpush1.xpose.msra.mxu0 0.0
        %1752 = vmatprep.subr.mxu0 0.0
        %1753 = vmatpush1.xpose.msra.mxu0 0.0
        %1754 = vmatprep.subr.mxu0 0.0
        %1755 = vmatpush1.xpose.msra.mxu0 0.0
        %1756 = vmatprep.subr.mxu0 0.0
        %1757 = vmatpush1.xpose.msra.mxu0 0.0
        %1758 = vmatprep.subr.mxu0 0.0
        %1759 = vmatpush1.xpose.msra.mxu0 0.0
        %1760 = vmatprep.subr.mxu0 0.0
        %1761 = vmatpush1.xpose.msra.mxu0 0.0
        %1762 = vmatprep.subr.mxu0 0.0
        %1763 = vmatpush1.xpose.msra.mxu0 0.0
        %1764 = vmatprep.mubr.f32.mxu0 0.0
        %1765 = vmatmul.mubr.f32.gmra.mrb[0].mxu0 %v1695
        %v1766 = vpop.f32.mrb[0].mxu0
        %v1767 = vadd.f32 0.0, %v1766
        %v1768 = vpop.f32.mrb[0].mxu0
        %1769 = vdwg.mxu0
        %vm1770 = vcmask 64512
        %v1771 = vsel %vm1770, %v1767, -inf
        %1772 = vmax.xlane.f32.xlu0 %v1771
        %v1773 = vpop.xlane.xlu0 %1772
        %v1774 = vsub.f32 %v1767, %v1773
        %v1775 = vmul.f32 %v1774, 1.442695
        %v1776 = vpow.pop %v1775
        %v1777 = vsel %vm1770, %v1776, 0.0
        %1778 = vadd.xlane.f32.xlu0 %v1777
        %v1779 = vpop.xlane.xlu0 %1778
        %v1780 = vrcp.pop %v1779
        %v1781 = vmul.f32 %v1780, 0.17677669
        %v1782 = vmul.f32 %v1776, %v1781
        %v1784 = vsel %vm1770, %v1782, 0
        %1786 = vmatprep.subr.mxu0 0.0
        %1787 = vmatpush1.msra.mxu0 %v1692
        %1788 = vmatprep.subr.mxu0 0.0
        %1789 = vmatpush1.msra.mxu0 0.0
        %1790 = vmatprep.subr.mxu0 0.0
        %1791 = vmatpush1.msra.mxu0 0.0
        %1792 = vmatprep.subr.mxu0 0.0
        %1793 = vmatpush1.msra.mxu0 0.0
        %1794 = vmatprep.subr.mxu0 0.0
        %1795 = vmatpush1.msra.mxu0 0.0
        %1796 = vmatprep.subr.mxu0 0.0
        %1797 = vmatpush1.msra.mxu0 0.0
        %1798 = vmatprep.subr.mxu0 0.0
        %1799 = vmatpush1.msra.mxu0 0.0
        %1800 = vmatprep.subr.mxu0 0.0
        %1801 = vmatpush1.msra.mxu0 0.0
        %1802 = vmatprep.subr.mxu0 0.0
        %1803 = vmatpush1.msra.mxu0 0.0
        %1804 = vmatprep.subr.mxu0 0.0
        %1805 = vmatpush1.msra.mxu0 0.0
        %1806 = vmatprep.subr.mxu0 0.0
        %1807 = vmatpush1.msra.mxu0 0.0
        %1808 = vmatprep.subr.mxu0 0.0
        %1809 = vmatpush1.msra.mxu0 0.0
        %1810 = vmatprep.subr.mxu0 0.0
        %1811 = vmatpush1.msra.mxu0 0.0
        %1812 = vmatprep.subr.mxu0 0.0
        %1813 = vmatpush1.msra.mxu0 0.0
        %1814 = vmatprep.subr.mxu0 0.0
        %1815 = vmatpush1.msra.mxu0 0.0
        %1816 = vmatprep.subr.mxu0 0.0
        %1817 = vmatpush1.msra.mxu0 0.0
        %1818 = vmatprep.subr.mxu0 0.0
        %1819 = vmatpush1.msra.mxu0 0.0
        %1820 = vmatprep.subr.mxu0 0.0
        %1821 = vmatpush1.msra.mxu0 0.0
        %1822 = vmatprep.subr.mxu0 0.0
        %1823 = vmatpush1.msra.mxu0 0.0
        %1824 = vmatprep.subr.mxu0 0.0
        %1825 = vmatpush1.msra.mxu0 0.0
        %1826 = vmatprep.subr.mxu0 0.0
        %1827 = vmatpush1.msra.mxu0 0.0
        %1828 = vmatprep.subr.mxu0 0.0
        %1829 = vmatpush1.msra.mxu0 0.0
        %1830 = vmatprep.subr.mxu0 0.0
        %1831 = vmatpush1.msra.mxu0 0.0
        %1832 = vmatprep.subr.mxu0 0.0
        %1833 = vmatpush1.msra.mxu0 0.0
        %1834 = vmatprep.subr.mxu0 0.0
        %1835 = vmatpush1.msra.mxu0 0.0
        %1836 = vmatprep.subr.mxu0 0.0
        %1837 = vmatpush1.msra.mxu0 0.0
        %1838 = vmatprep.subr.mxu0 0.0
        %1839 = vmatpush1.msra.mxu0 0.0
        %1840 = vmatprep.subr.mxu0 0.0
        %1841 = vmatpush1.msra.mxu0 0.0
        %1842 = vmatprep.subr.mxu0 0.0
        %1843 = vmatpush1.msra.mxu0 0.0
        %1844 = vmatprep.subr.mxu0 0.0
        %1845 = vmatpush1.msra.mxu0 0.0
        %1846 = vmatprep.subr.mxu0 0.0
        %1847 = vmatpush1.msra.mxu0 0.0
        %1848 = vmatprep.subr.mxu0 0.0
        %1849 = vmatpush1.msra.mxu0 0.0
        %1850 = vmatprep.mubr.f32.mxu0 0.0
        %1851 = vmatmul.mubr.f32.gmra.mrb[0].mxu0 %v1784
        %v1852 = vpop.f32.mrb[0].mxu0
        %v1853 = vadd.f32 0.0, %v1852
        %v1854 = vpop.f32.mrb[0].mxu0
        %1855 = vdwg.mxu0
        %v1856 = vld [vmem:[#allocation4] sm:$0xff]
        %v1857 = vld [vmem:[%s3] sm:$0xf]
        %v1859 = vsel %vm1693, %v1853, 0
        %vm1861 = vcmask 1043456
        %v1863 = vsel %vm1861, %v1857, 0
        %1865 = vmatprep.subr.mxu0 0.0
        %1866 = vmatpush1.msra.mxu0 %v1863
        %1867 = vmatprep.subr.mxu0 0.0
        %1868 = vmatpush1.msra.mxu0 0.0
        %1869 = vmatprep.subr.mxu0 0.0
        %1870 = vmatpush1.msra.mxu0 0.0
        %1871 = vmatprep.subr.mxu0 0.0
        %1872 = vmatpush1.msra.mxu0 0.0
        %1873 = vmatprep.subr.mxu0 0.0
        %1874 = vmatpush1.msra.mxu0 0.0
        %1875 = vmatprep.subr.mxu0 0.0
        %1876 = vmatpush1.msra.mxu0 0.0
        %1877 = vmatprep.subr.mxu0 0.0
        %1878 = vmatpush1.msra.mxu0 0.0
        %1879 = vmatprep.subr.mxu0 0.0
        %1880 = vmatpush1.msra.mxu0 0.0
        %1881 = vmatprep.subr.mxu0 0.0
        %1882 = vmatpush1.msra.mxu0 0.0
        %1883 = vmatprep.subr.mxu0 0.0
        %1884 = vmatpush1.msra.mxu0 0.0
        %1885 = vmatprep.subr.mxu0 0.0
        %1886 = vmatpush1.msra.mxu0 0.0
        %1887 = vmatprep.subr.mxu0 0.0
        %1888 = vmatpush1.msra.mxu0 0.0
        %1889 = vmatprep.subr.mxu0 0.0
        %1890 = vmatpush1.msra.mxu0 0.0
        %1891 = vmatprep.subr.mxu0 0.0
        %1892 = vmatpush1.msra.mxu0 0.0
        %1893 = vmatprep.subr.mxu0 0.0
        %1894 = vmatpush1.msra.mxu0 0.0
        %1895 = vmatprep.subr.mxu0 0.0
        %1896 = vmatpush1.msra.mxu0 0.0
        %1897 = vmatprep.subr.mxu0 0.0
        %1898 = vmatpush1.msra.mxu0 0.0
        %1899 = vmatprep.subr.mxu0 0.0
        %1900 = vmatpush1.msra.mxu0 0.0
        %1901 = vmatprep.subr.mxu0 0.0
        %1902 = vmatpush1.msra.mxu0 0.0
        %1903 = vmatprep.subr.mxu0 0.0
        %1904 = vmatpush1.msra.mxu0 0.0
        %1905 = vmatprep.subr.mxu0 0.0
        %1906 = vmatpush1.msra.mxu0 0.0
        %1907 = vmatprep.subr.mxu0 0.0
        %1908 = vmatpush1.msra.mxu0 0.0
        %1909 = vmatprep.subr.mxu0 0.0
        %1910 = vmatpush1.msra.mxu0 0.0
        %1911 = vmatprep.subr.mxu0 0.0
        %1912 = vmatpush1.msra.mxu0 0.0
        %1913 = vmatprep.subr.mxu0 0.0
        %1914 = vmatpush1.msra.mxu0 0.0
        %1915 = vmatprep.subr.mxu0 0.0
        %1916 = vmatpush1.msra.mxu0 0.0
        %1917 = vmatprep.subr.mxu0 0.0
        %1918 = vmatpush1.msra.mxu0 0.0
        %1919 = vmatprep.subr.mxu0 0.0
        %1920 = vmatpush1.msra.mxu0 0.0
        %1921 = vmatprep.subr.mxu0 0.0
        %1922 = vmatpush1.msra.mxu0 0.0
        %1923 = vmatprep.subr.mxu0 0.0
        %1924 = vmatpush1.msra.mxu0 0.0
        %1925 = vmatprep.subr.mxu0 0.0
        %1926 = vmatpush1.msra.mxu0 0.0
        %1927 = vmatprep.subr.mxu0 0.0
        %1928 = vmatpush1.msra.mxu0 0.0
        %1929 = vmatprep.mubr.f32.mxu0 0.0
        %1930 = vmatmul.mubr.f32.gmra.mrb[0].mxu0 %v1859
        %v1931 = vpop.f32.mrb[0].mxu0
        %v1932 = vadd.f32 0.0, %v1931
        %v1933 = vpop.f32.mrb[0].mxu0
        %1934 = vdwg.mxu0
        %v1935 = vadd.f32 %v1856, %v1932
        %1936 = vst.msk [vmem:[#allocation4] sm:$0xff] %vm1605, %v1935
        %s1937 = scalar_lea.vmem %s1, 32
        %v1938 = vld [vmem:[%s1937] sm:$0xff]
        %v1939 = vld [vmem:[%s1937 + $0x8] sm:$0xff]
        %v1940 = vld [vmem:[%s1937 + $0x10] sm:$0xff]
        %v1941 = vld [vmem:[%s1937 + $0x18] sm:$0xff]
        %s1942 = scalar_lea.vmem %s2, 1
        %v1943 = vld [vmem:[%s1942] sm:$0x1]
        %v1945 = vlaneseq
        %v1946 = vshrl.u32 %v1945, 7
        %v1947 = vsub.s32 0, %v1946
        %v1948 = vrot.slane %v1943, %v1947
        %1950 = vmatprep.subr.mxu0 0.0
        %1951 = vmatpush1.msra.mxu0 %v1938
        %1952 = vmatprep.subr.mxu0 0.0
        %1953 = vmatpush1.msra.mxu0 %v1939
        %1954 = vmatprep.subr.mxu0 0.0
        %1955 = vmatpush1.msra.mxu0 %v1940
        %1956 = vmatprep.subr.mxu0 0.0
        %1957 = vmatpush1.msra.mxu0 %v1941
        %1958 = vmatprep.subr.mxu0 0.0
        %1959 = vmatpush1.msra.mxu0 0.0
        %1960 = vmatprep.subr.mxu0 0.0
        %1961 = vmatpush1.msra.mxu0 0.0
        %1962 = vmatprep.subr.mxu0 0.0
        %1963 = vmatpush1.msra.mxu0 0.0
        %1964 = vmatprep.subr.mxu0 0.0
        %1965 = vmatpush1.msra.mxu0 0.0
        %1966 = vmatprep.subr.mxu0 0.0
        %1967 = vmatpush1.msra.mxu0 0.0
        %1968 = vmatprep.subr.mxu0 0.0
        %1969 = vmatpush1.msra.mxu0 0.0
        %1970 = vmatprep.subr.mxu0 0.0
        %1971 = vmatpush1.msra.mxu0 0.0
        %1972 = vmatprep.subr.mxu0 0.0
        %1973 = vmatpush1.msra.mxu0 0.0
        %1974 = vmatprep.subr.mxu0 0.0
        %1975 = vmatpush1.msra.mxu0 0.0
        %1976 = vmatprep.subr.mxu0 0.0
        %1977 = vmatpush1.msra.mxu0 0.0
        %1978 = vmatprep.subr.mxu0 0.0
        %1979 = vmatpush1.msra.mxu0 0.0
        %1980 = vmatprep.subr.mxu0 0.0
        %1981 = vmatpush1.msra.mxu0 0.0
        %1982 = vmatprep.subr.mxu0 0.0
        %1983 = vmatpush1.msra.mxu0 0.0
        %1984 = vmatprep.subr.mxu0 0.0
        %1985 = vmatpush1.msra.mxu0 0.0
        %1986 = vmatprep.subr.mxu0 0.0
        %1987 = vmatpush1.msra.mxu0 0.0
        %1988 = vmatprep.subr.mxu0 0.0
        %1989 = vmatpush1.msra.mxu0 0.0
        %1990 = vmatprep.subr.mxu0 0.0
        %1991 = vmatpush1.msra.mxu0 0.0
        %1992 = vmatprep.subr.mxu0 0.0
        %1993 = vmatpush1.msra.mxu0 0.0
        %1994 = vmatprep.subr.mxu0 0.0
        %1995 = vmatpush1.msra.mxu0 0.0
        %1996 = vmatprep.subr.mxu0 0.0
        %1997 = vmatpush1.msra.mxu0 0.0
        %1998 = vmatprep.subr.mxu0 0.0
        %1999 = vmatpush1.msra.mxu0 0.0
        %2000 = vmatprep.subr.mxu0 0.0
        %2001 = vmatpush1.msra.mxu0 0.0
        %2002 = vmatprep.subr.mxu0 0.0
        %2003 = vmatpush1.msra.mxu0 0.0
        %2004 = vmatprep.subr.mxu0 0.0
        %2005 = vmatpush1.msra.mxu0 0.0
        %2006 = vmatprep.subr.mxu0 0.0
        %2007 = vmatpush1.msra.mxu0 0.0
        %2008 = vmatprep.subr.mxu0 0.0
        %2009 = vmatpush1.msra.mxu0 0.0
        %2010 = vmatprep.subr.mxu0 0.0
        %2011 = vmatpush1.msra.mxu0 0.0
        %2012 = vmatprep.subr.mxu0 0.0
        %2013 = vmatpush1.msra.mxu0 0.0
        %2014 = vmatprep.mubr.f32.mxu0 0.0
        %2015 = vmatmul.mubr.f32.gmra.mrb[0].mxu0 %v1619
        %v2016 = vpop.f32.mrb[0].mxu0
        %v2017 = vadd.f32 %v1948, %v2016
        %v2018 = vpop.f32.mrb[0].mxu0
        %2019 = vdwg.mxu0
        %s2020 = scalar_lea.vmem [#allocation2], 8
        %v2021 = vld [vmem:[%s2020] sm:$0xff]
        %s2022 = scalar_lea.vmem [#allocation3], 8
        %v2023 = vld [vmem:[%s2022] sm:$0xff]
        %v2025 = vsel %vm1693, %v2017, 0
        %v2028 = vsel %vm1693, %v2021, 0
        %2030 = vmatprep.subr.mxu0 0.0
        %2031 = vmatpush1.xpose.msra.mxu0 %v2028
        %2032 = vmatprep.subr.mxu0 0.0
        %2033 = vmatpush1.xpose.msra.mxu0 0.0
        %2034 = vmatprep.subr.mxu0 0.0
        %2035 = vmatpush1.xpose.msra.mxu0 0.0
        %2036 = vmatprep.subr.mxu0 0.0
        %2037 = vmatpush1.xpose.msra.mxu0 0.0
        %2038 = vmatprep.subr.mxu0 0.0
        %2039 = vmatpush1.xpose.msra.mxu0 0.0
        %2040 = vmatprep.subr.mxu0 0.0
        %2041 = vmatpush1.xpose.msra.mxu0 0.0
        %2042 = vmatprep.subr.mxu0 0.0
        %2043 = vmatpush1.xpose.msra.mxu0 0.0
        %2044 = vmatprep.subr.mxu0 0.0
        %2045 = vmatpush1.xpose.msra.mxu0 0.0
        %2046 = vmatprep.subr.mxu0 0.0
        %2047 = vmatpush1.xpose.msra.mxu0 0.0
        %2048 = vmatprep.subr.mxu0 0.0
        %2049 = vmatpush1.xpose.msra.mxu0 0.0
        %2050 = vmatprep.subr.mxu0 0.0
        %2051 = vmatpush1.xpose.msra.mxu0 0.0
        %2052 = vmatprep.subr.mxu0 0.0
        %2053 = vmatpush1.xpose.msra.mxu0 0.0
        %2054 = vmatprep.subr.mxu0 0.0
        %2055 = vmatpush1.xpose.msra.mxu0 0.0
        %2056 = vmatprep.subr.mxu0 0.0
        %2057 = vmatpush1.xpose.msra.mxu0 0.0
        %2058 = vmatprep.subr.mxu0 0.0
        %2059 = vmatpush1.xpose.msra.mxu0 0.0
        %2060 = vmatprep.subr.mxu0 0.0
        %2061 = vmatpush1.xpose.msra.mxu0 0.0
        %2062 = vmatprep.subr.mxu0 0.0
        %2063 = vmatpush1.xpose.msra.mxu0 0.0
        %2064 = vmatprep.subr.mxu0 0.0
        %2065 = vmatpush1.xpose.msra.mxu0 0.0
        %2066 = vmatprep.subr.mxu0 0.0
        %2067 = vmatpush1.xpose.msra.mxu0 0.0
        %2068 = vmatprep.subr.mxu0 0.0
        %2069 = vmatpush1.xpose.msra.mxu0 0.0
        %2070 = vmatprep.subr.mxu0 0.0
        %2071 = vmatpush1.xpose.msra.mxu0 0.0
        %2072 = vmatprep.subr.mxu0 0.0
        %2073 = vmatpush1.xpose.msra.mxu0 0.0
        %2074 = vmatprep.subr.mxu0 0.0
        %2075 = vmatpush1.xpose.msra.mxu0 0.0
        %2076 = vmatprep.subr.mxu0 0.0
        %2077 = vmatpush1.xpose.msra.mxu0 0.0
        %2078 = vmatprep.subr.mxu0 0.0
        %2079 = vmatpush1.xpose.msra.mxu0 0.0
        %2080 = vmatprep.subr.mxu0 0.0
        %2081 = vmatpush1.xpose.msra.mxu0 0.0
        %2082 = vmatprep.subr.mxu0 0.0
        %2083 = vmatpush1.xpose.msra.mxu0 0.0
        %2084 = vmatprep.subr.mxu0 0.0
        %2085 = vmatpush1.xpose.msra.mxu0 0.0
        %2086 = vmatprep.subr.mxu0 0.0
        %2087 = vmatpush1.xpose.msra.mxu0 0.0
        %2088 = vmatprep.subr.mxu0 0.0
        %2089 = vmatpush1.xpose.msra.mxu0 0.0
        %2090 = vmatprep.subr.mxu0 0.0
        %2091 = vmatpush1.xpose.msra.mxu0 0.0
        %2092 = vmatprep.subr.mxu0 0.0
        %2093 = vmatpush1.xpose.msra.mxu0 0.0
        %2094 = vmatprep.mubr.f32.mxu0 0.0
        %2095 = vmatmul.mubr.f32.gmra.mrb[0].mxu0 %v2025
        %v2096 = vpop.f32.mrb[0].mxu0
        %v2097 = vadd.f32 0.0, %v2096
        %v2098 = vpop.f32.mrb[0].mxu0
        %2099 = vdwg.mxu0
        %v2100 = vsel %vm1770, %v2097, -inf
        %2101 = vmax.xlane.f32.xlu0 %v2100
        %v2102 = vpop.xlane.xlu0 %2101
        %v2103 = vsub.f32 %v2097, %v2102
        %v2104 = vmul.f32 %v2103, 1.442695
        %v2105 = vpow.pop %v2104
        %v2106 = vsel %vm1770, %v2105, 0.0
        %2107 = vadd.xlane.f32.xlu0 %v2106
        %v2108 = vpop.xlane.xlu0 %2107
        %v2109 = vrcp.pop %v2108
        %v2110 = vmul.f32 %v2109, 0.17677669
        %v2111 = vmul.f32 %v2105, %v2110
        %v2113 = vsel %vm1770, %v2111, 0
        %2115 = vmatprep.subr.mxu0 0.0
        %2116 = vmatpush1.msra.mxu0 %v2023
        %2117 = vmatprep.subr.mxu0 0.0
        %2118 = vmatpush1.msra.mxu0 0.0
        %2119 = vmatprep.subr.mxu0 0.0
        %2120 = vmatpush1.msra.mxu0 0.0
        %2121 = vmatprep.subr.mxu0 0.0
        %2122 = vmatpush1.msra.mxu0 0.0
        %2123 = vmatprep.subr.mxu0 0.0
        %2124 = vmatpush1.msra.mxu0 0.0
        %2125 = vmatprep.subr.mxu0 0.0
        %2126 = vmatpush1.msra.mxu0 0.0
        %2127 = vmatprep.subr.mxu0 0.0
        %2128 = vmatpush1.msra.mxu0 0.0
        %2129 = vmatprep.subr.mxu0 0.0
        %2130 = vmatpush1.msra.mxu0 0.0
        %2131 = vmatprep.subr.mxu0 0.0
        %2132 = vmatpush1.msra.mxu0 0.0
        %2133 = vmatprep.subr.mxu0 0.0
        %2134 = vmatpush1.msra.mxu0 0.0
        %2135 = vmatprep.subr.mxu0 0.0
        %2136 = vmatpush1.msra.mxu0 0.0
        %2137 = vmatprep.subr.mxu0 0.0
        %2138 = vmatpush1.msra.mxu0 0.0
        %2139 = vmatprep.subr.mxu0 0.0
        %2140 = vmatpush1.msra.mxu0 0.0
        %2141 = vmatprep.subr.mxu0 0.0
        %2142 = vmatpush1.msra.mxu0 0.0
        %2143 = vmatprep.subr.mxu0 0.0
        %2144 = vmatpush1.msra.mxu0 0.0
        %2145 = vmatprep.subr.mxu0 0.0
        %2146 = vmatpush1.msra.mxu0 0.0
        %2147 = vmatprep.subr.mxu0 0.0
        %2148 = vmatpush1.msra.mxu0 0.0
        %2149 = vmatprep.subr.mxu0 0.0
        %2150 = vmatpush1.msra.mxu0 0.0
        %2151 = vmatprep.subr.mxu0 0.0
        %2152 = vmatpush1.msra.mxu0 0.0
        %2153 = vmatprep.subr.mxu0 0.0
        %2154 = vmatpush1.msra.mxu0 0.0
        %2155 = vmatprep.subr.mxu0 0.0
        %2156 = vmatpush1.msra.mxu0 0.0
        %2157 = vmatprep.subr.mxu0 0.0
        %2158 = vmatpush1.msra.mxu0 0.0
        %2159 = vmatprep.subr.mxu0 0.0
        %2160 = vmatpush1.msra.mxu0 0.0
        %2161 = vmatprep.subr.mxu0 0.0
        %2162 = vmatpush1.msra.mxu0 0.0
        %2163 = vmatprep.subr.mxu0 0.0
        %2164 = vmatpush1.msra.mxu0 0.0
        %2165 = vmatprep.subr.mxu0 0.0
        %2166 = vmatpush1.msra.mxu0 0.0
        %2167 = vmatprep.subr.mxu0 0.0
        %2168 = vmatpush1.msra.mxu0 0.0
        %2169 = vmatprep.subr.mxu0 0.0
        %2170 = vmatpush1.msra.mxu0 0.0
        %2171 = vmatprep.subr.mxu0 0.0
        %2172 = vmatpush1.msra.mxu0 0.0
        %2173 = vmatprep.subr.mxu0 0.0
        %2174 = vmatpush1.msra.mxu0 0.0
        %2175 = vmatprep.subr.mxu0 0.0
        %2176 = vmatpush1.msra.mxu0 0.0
        %2177 = vmatprep.subr.mxu0 0.0
        %2178 = vmatpush1.msra.mxu0 0.0
        %2179 = vmatprep.mubr.f32.mxu0 0.0
        %2180 = vmatmul.mubr.f32.gmra.mrb[0].mxu0 %v2113
        %v2181 = vpop.f32.mrb[0].mxu0
        %v2182 = vadd.f32 0.0, %v2181
        %v2183 = vpop.f32.mrb[0].mxu0
        %2184 = vdwg.mxu0
        %v2185 = vld [vmem:[#allocation4] sm:$0xff]
        %s2186 = scalar_lea.vmem %s3, 4
        %v2187 = vld [vmem:[%s2186] sm:$0xf]
        %v2189 = vsel %vm1693, %v2182, 0
        %v2192 = vsel %vm1861, %v2187, 0
        %2194 = vmatprep.subr.mxu0 0.0
        %2195 = vmatpush1.msra.mxu0 %v2192
        %2196 = vmatprep.subr.mxu0 0.0
        %2197 = vmatpush1.msra.mxu0 0.0
        %2198 = vmatprep.subr.mxu0 0.0
        %2199 = vmatpush1.msra.mxu0 0.0
        %2200 = vmatprep.subr.mxu0 0.0
        %2201 = vmatpush1.msra.mxu0 0.0
        %2202 = vmatprep.subr.mxu0 0.0
        %2203 = vmatpush1.msra.mxu0 0.0
        %2204 = vmatprep.subr.mxu0 0.0
        %2205 = vmatpush1.msra.mxu0 0.0
        %2206 = vmatprep.subr.mxu0 0.0
        %2207 = vmatpush1.msra.mxu0 0.0
        %2208 = vmatprep.subr.mxu0 0.0
        %2209 = vmatpush1.msra.mxu0 0.0
        %2210 = vmatprep.subr.mxu0 0.0
        %2211 = vmatpush1.msra.mxu0 0.0
        %2212 = vmatprep.subr.mxu0 0.0
        %2213 = vmatpush1.msra.mxu0 0.0
        %2214 = vmatprep.subr.mxu0 0.0
        %2215 = vmatpush1.msra.mxu0 0.0
        %2216 = vmatprep.subr.mxu0 0.0
        %2217 = vmatpush1.msra.mxu0 0.0
        %2218 = vmatprep.subr.mxu0 0.0
        %2219 = vmatpush1.msra.mxu0 0.0
        %2220 = vmatprep.subr.mxu0 0.0
        %2221 = vmatpush1.msra.mxu0 0.0
        %2222 = vmatprep.subr.mxu0 0.0
        %2223 = vmatpush1.msra.mxu0 0.0
        %2224 = vmatprep.subr.mxu0 0.0
        %2225 = vmatpush1.msra.mxu0 0.0
        %2226 = vmatprep.subr.mxu0 0.0
        %2227 = vmatpush1.msra.mxu0 0.0
        %2228 = vmatprep.subr.mxu0 0.0
        %2229 = vmatpush1.msra.mxu0 0.0
        %2230 = vmatprep.subr.mxu0 0.0
        %2231 = vmatpush1.msra.mxu0 0.0
        %2232 = vmatprep.subr.mxu0 0.0
        %2233 = vmatpush1.msra.mxu0 0.0
        %2234 = vmatprep.subr.mxu0 0.0
        %2235 = vmatpush1.msra.mxu0 0.0
        %2236 = vmatprep.subr.mxu0 0.0
        %2237 = vmatpush1.msra.mxu0 0.0
        %2238 = vmatprep.subr.mxu0 0.0
        %2239 = vmatpush1.msra.mxu0 0.0
        %2240 = vmatprep.subr.mxu0 0.0
        %2241 = vmatpush1.msra.mxu0 0.0
        %2242 = vmatprep.subr.mxu0 0.0
        %2243 = vmatpush1.msra.mxu0 0.0
        %2244 = vmatprep.subr.mxu0 0.0
        %2245 = vmatpush1.msra.mxu0 0.0
        %2246 = vmatprep.subr.mxu0 0.0
        %2247 = vmatpush1.msra.mxu0 0.0
        %2248 = vmatprep.subr.mxu0 0.0
        %2249 = vmatpush1.msra.mxu0 0.0
        %2250 = vmatprep.subr.mxu0 0.0
        %2251 = vmatpush1.msra.mxu0 0.0
        %2252 = vmatprep.subr.mxu0 0.0
        %2253 = vmatpush1.msra.mxu0 0.0
        %2254 = vmatprep.subr.mxu0 0.0
        %2255 = vmatpush1.msra.mxu0 0.0
        %2256 = vmatprep.subr.mxu0 0.0
        %2257 = vmatpush1.msra.mxu0 0.0
        %2258 = vmatprep.mubr.f32.mxu0 0.0
        %2259 = vmatmul.mubr.f32.gmra.mrb[0].mxu0 %v2189
        %v2260 = vpop.f32.mrb[0].mxu0
        %v2261 = vadd.f32 0.0, %v2260
        %v2262 = vpop.f32.mrb[0].mxu0
        %2263 = vdwg.mxu0
        %v2264 = vadd.f32 %v2185, %v2261
        %2265 = vst.msk [vmem:[#allocation4] sm:$0xff] %vm1605, %v2264
        %s2266 = scalar_lea.vmem %s1, 64
        %v2267 = vld [vmem:[%s2266] sm:$0xff]
        %v2268 = vld [vmem:[%s2266 + $0x8] sm:$0xff]
        %v2269 = vld [vmem:[%s2266 + $0x10] sm:$0xff]
        %v2270 = vld [vmem:[%s2266 + $0x18] sm:$0xff]
        %s2271 = scalar_lea.vmem %s2, 2
        %v2272 = vld [vmem:[%s2271] sm:$0x1]
        %v2274 = vlaneseq
        %v2275 = vshrl.u32 %v2274, 7
        %v2276 = vsub.s32 0, %v2275
        %v2277 = vrot.slane %v2272, %v2276
        %2279 = vmatprep.subr.mxu0 0.0
        %2280 = vmatpush1.msra.mxu0 %v2267
        %2281 = vmatprep.subr.mxu0 0.0
        %2282 = vmatpush1.msra.mxu0 %v2268
        %2283 = vmatprep.subr.mxu0 0.0
        %2284 = vmatpush1.msra.mxu0 %v2269
        %2285 = vmatprep.subr.mxu0 0.0
        %2286 = vmatpush1.msra.mxu0 %v2270
        %2287 = vmatprep.subr.mxu0 0.0
        %2288 = vmatpush1.msra.mxu0 0.0
        %2289 = vmatprep.subr.mxu0 0.0
        %2290 = vmatpush1.msra.mxu0 0.0
        %2291 = vmatprep.subr.mxu0 0.0
        %2292 = vmatpush1.msra.mxu0 0.0
        %2293 = vmatprep.subr.mxu0 0.0
        %2294 = vmatpush1.msra.mxu0 0.0
        %2295 = vmatprep.subr.mxu0 0.0
        %2296 = vmatpush1.msra.mxu0 0.0
        %2297 = vmatprep.subr.mxu0 0.0
        %2298 = vmatpush1.msra.mxu0 0.0
        %2299 = vmatprep.subr.mxu0 0.0
        %2300 = vmatpush1.msra.mxu0 0.0
        %2301 = vmatprep.subr.mxu0 0.0
        %2302 = vmatpush1.msra.mxu0 0.0
        %2303 = vmatprep.subr.mxu0 0.0
        %2304 = vmatpush1.msra.mxu0 0.0
        %2305 = vmatprep.subr.mxu0 0.0
        %2306 = vmatpush1.msra.mxu0 0.0
        %2307 = vmatprep.subr.mxu0 0.0
        %2308 = vmatpush1.msra.mxu0 0.0
        %2309 = vmatprep.subr.mxu0 0.0
        %2310 = vmatpush1.msra.mxu0 0.0
        %2311 = vmatprep.subr.mxu0 0.0
        %2312 = vmatpush1.msra.mxu0 0.0
        %2313 = vmatprep.subr.mxu0 0.0
        %2314 = vmatpush1.msra.mxu0 0.0
        %2315 = vmatprep.subr.mxu0 0.0
        %2316 = vmatpush1.msra.mxu0 0.0
        %2317 = vmatprep.subr.mxu0 0.0
        %2318 = vmatpush1.msra.mxu0 0.0
        %2319 = vmatprep.subr.mxu0 0.0
        %2320 = vmatpush1.msra.mxu0 0.0
        %2321 = vmatprep.subr.mxu0 0.0
        %2322 = vmatpush1.msra.mxu0 0.0
        %2323 = vmatprep.subr.mxu0 0.0
        %2324 = vmatpush1.msra.mxu0 0.0
        %2325 = vmatprep.subr.mxu0 0.0
        %2326 = vmatpush1.msra.mxu0 0.0
        %2327 = vmatprep.subr.mxu0 0.0
        %2328 = vmatpush1.msra.mxu0 0.0
        %2329 = vmatprep.subr.mxu0 0.0
        %2330 = vmatpush1.msra.mxu0 0.0
        %2331 = vmatprep.subr.mxu0 0.0
        %2332 = vmatpush1.msra.mxu0 0.0
        %2333 = vmatprep.subr.mxu0 0.0
        %2334 = vmatpush1.msra.mxu0 0.0
        %2335 = vmatprep.subr.mxu0 0.0
        %2336 = vmatpush1.msra.mxu0 0.0
        %2337 = vmatprep.subr.mxu0 0.0
        %2338 = vmatpush1.msra.mxu0 0.0
        %2339 = vmatprep.subr.mxu0 0.0
        %2340 = vmatpush1.msra.mxu0 0.0
        %2341 = vmatprep.subr.mxu0 0.0
        %2342 = vmatpush1.msra.mxu0 0.0
        %2343 = vmatprep.mubr.f32.mxu0 0.0
        %2344 = vmatmul.mubr.f32.gmra.mrb[0].mxu0 %v1619
        %v2345 = vpop.f32.mrb[0].mxu0
        %v2346 = vadd.f32 %v2277, %v2345
        %v2347 = vpop.f32.mrb[0].mxu0
        %2348 = vdwg.mxu0
        %s2349 = scalar_lea.vmem [#allocation2], 16
        %v2350 = vld [vmem:[%s2349] sm:$0xff]
        %s2351 = scalar_lea.vmem [#allocation3], 16
        %v2352 = vld [vmem:[%s2351] sm:$0xff]
        %v2354 = vsel %vm1693, %v2346, 0
        %v2357 = vsel %vm1693, %v2350, 0
        %2359 = vmatprep.subr.mxu0 0.0
        %2360 = vmatpush1.xpose.msra.mxu0 %v2357
        %2361 = vmatprep.subr.mxu0 0.0
        %2362 = vmatpush1.xpose.msra.mxu0 0.0
        %2363 = vmatprep.subr.mxu0 0.0
        %2364 = vmatpush1.xpose.msra.mxu0 0.0
        %2365 = vmatprep.subr.mxu0 0.0
        %2366 = vmatpush1.xpose.msra.mxu0 0.0
        %2367 = vmatprep.subr.mxu0 0.0
        %2368 = vmatpush1.xpose.msra.mxu0 0.0
        %2369 = vmatprep.subr.mxu0 0.0
        %2370 = vmatpush1.xpose.msra.mxu0 0.0
        %2371 = vmatprep.subr.mxu0 0.0
        %2372 = vmatpush1.xpose.msra.mxu0 0.0
        %2373 = vmatprep.subr.mxu0 0.0
        %2374 = vmatpush1.xpose.msra.mxu0 0.0
        %2375 = vmatprep.subr.mxu0 0.0
        %2376 = vmatpush1.xpose.msra.mxu0 0.0
        %2377 = vmatprep.subr.mxu0 0.0
        %2378 = vmatpush1.xpose.msra.mxu0 0.0
        %2379 = vmatprep.subr.mxu0 0.0
        %2380 = vmatpush1.xpose.msra.mxu0 0.0
        %2381 = vmatprep.subr.mxu0 0.0
        %2382 = vmatpush1.xpose.msra.mxu0 0.0
        %2383 = vmatprep.subr.mxu0 0.0
        %2384 = vmatpush1.xpose.msra.mxu0 0.0
        %2385 = vmatprep.subr.mxu0 0.0
        %2386 = vmatpush1.xpose.msra.mxu0 0.0
        %2387 = vmatprep.subr.mxu0 0.0
        %2388 = vmatpush1.xpose.msra.mxu0 0.0
        %2389 = vmatprep.subr.mxu0 0.0
        %2390 = vmatpush1.xpose.msra.mxu0 0.0
        %2391 = vmatprep.subr.mxu0 0.0
        %2392 = vmatpush1.xpose.msra.mxu0 0.0
        %2393 = vmatprep.subr.mxu0 0.0
        %2394 = vmatpush1.xpose.msra.mxu0 0.0
        %2395 = vmatprep.subr.mxu0 0.0
        %2396 = vmatpush1.xpose.msra.mxu0 0.0
        %2397 = vmatprep.subr.mxu0 0.0
        %2398 = vmatpush1.xpose.msra.mxu0 0.0
        %2399 = vmatprep.subr.mxu0 0.0
        %2400 = vmatpush1.xpose.msra.mxu0 0.0
        %2401 = vmatprep.subr.mxu0 0.0
        %2402 = vmatpush1.xpose.msra.mxu0 0.0
        %2403 = vmatprep.subr.mxu0 0.0
        %2404 = vmatpush1.xpose.msra.mxu0 0.0
        %2405 = vmatprep.subr.mxu0 0.0
        %2406 = vmatpush1.xpose.msra.mxu0 0.0
        %2407 = vmatprep.subr.mxu0 0.0
        %2408 = vmatpush1.xpose.msra.mxu0 0.0
        %2409 = vmatprep.subr.mxu0 0.0
        %2410 = vmatpush1.xpose.msra.mxu0 0.0
        %2411 = vmatprep.subr.mxu0 0.0
        %2412 = vmatpush1.xpose.msra.mxu0 0.0
        %2413 = vmatprep.subr.mxu0 0.0
        %2414 = vmatpush1.xpose.msra.mxu0 0.0
        %2415 = vmatprep.subr.mxu0 0.0
        %2416 = vmatpush1.xpose.msra.mxu0 0.0
        %2417 = vmatprep.subr.mxu0 0.0
        %2418 = vmatpush1.xpose.msra.mxu0 0.0
        %2419 = vmatprep.subr.mxu0 0.0
        %2420 = vmatpush1.xpose.msra.mxu0 0.0
        %2421 = vmatprep.subr.mxu0 0.0
        %2422 = vmatpush1.xpose.msra.mxu0 0.0
        %2423 = vmatprep.mubr.f32.mxu0 0.0
        %2424 = vmatmul.mubr.f32.gmra.mrb[0].mxu0 %v2354
        %v2425 = vpop.f32.mrb[0].mxu0
        %v2426 = vadd.f32 0.0, %v2425
        %v2427 = vpop.f32.mrb[0].mxu0
        %2428 = vdwg.mxu0
        %v2429 = vsel %vm1770, %v2426, -inf
        %2430 = vmax.xlane.f32.xlu0 %v2429
        %v2431 = vpop.xlane.xlu0 %2430
        %v2432 = vsub.f32 %v2426, %v2431
        %v2433 = vmul.f32 %v2432, 1.442695
        %v2434 = vpow.pop %v2433
        %v2435 = vsel %vm1770, %v2434, 0.0
        %2436 = vadd.xlane.f32.xlu0 %v2435
        %v2437 = vpop.xlane.xlu0 %2436
        %v2438 = vrcp.pop %v2437
        %v2439 = vmul.f32 %v2438, 0.17677669
        %v2440 = vmul.f32 %v2434, %v2439
        %v2442 = vsel %vm1770, %v2440, 0
        %2444 = vmatprep.subr.mxu0 0.0
        %2445 = vmatpush1.msra.mxu0 %v2352
        %2446 = vmatprep.subr.mxu0 0.0
        %2447 = vmatpush1.msra.mxu0 0.0
        %2448 = vmatprep.subr.mxu0 0.0
        %2449 = vmatpush1.msra.mxu0 0.0
        %2450 = vmatprep.subr.mxu0 0.0
        %2451 = vmatpush1.msra.mxu0 0.0
        %2452 = vmatprep.subr.mxu0 0.0
        %2453 = vmatpush1.msra.mxu0 0.0
        %2454 = vmatprep.subr.mxu0 0.0
        %2455 = vmatpush1.msra.mxu0 0.0
        %2456 = vmatprep.subr.mxu0 0.0
        %2457 = vmatpush1.msra.mxu0 0.0
        %2458 = vmatprep.subr.mxu0 0.0
        %2459 = vmatpush1.msra.mxu0 0.0
        %2460 = vmatprep.subr.mxu0 0.0
        %2461 = vmatpush1.msra.mxu0 0.0
        %2462 = vmatprep.subr.mxu0 0.0
        %2463 = vmatpush1.msra.mxu0 0.0
        %2464 = vmatprep.subr.mxu0 0.0
        %2465 = vmatpush1.msra.mxu0 0.0
        %2466 = vmatprep.subr.mxu0 0.0
        %2467 = vmatpush1.msra.mxu0 0.0
        %2468 = vmatprep.subr.mxu0 0.0
        %2469 = vmatpush1.msra.mxu0 0.0
        %2470 = vmatprep.subr.mxu0 0.0
        %2471 = vmatpush1.msra.mxu0 0.0
        %2472 = vmatprep.subr.mxu0 0.0
        %2473 = vmatpush1.msra.mxu0 0.0
        %2474 = vmatprep.subr.mxu0 0.0
        %2475 = vmatpush1.msra.mxu0 0.0
        %2476 = vmatprep.subr.mxu0 0.0
        %2477 = vmatpush1.msra.mxu0 0.0
        %2478 = vmatprep.subr.mxu0 0.0
        %2479 = vmatpush1.msra.mxu0 0.0
        %2480 = vmatprep.subr.mxu0 0.0
        %2481 = vmatpush1.msra.mxu0 0.0
        %2482 = vmatprep.subr.mxu0 0.0
        %2483 = vmatpush1.msra.mxu0 0.0
        %2484 = vmatprep.subr.mxu0 0.0
        %2485 = vmatpush1.msra.mxu0 0.0
        %2486 = vmatprep.subr.mxu0 0.0
        %2487 = vmatpush1.msra.mxu0 0.0
        %2488 = vmatprep.subr.mxu0 0.0
        %2489 = vmatpush1.msra.mxu0 0.0
        %2490 = vmatprep.subr.mxu0 0.0
        %2491 = vmatpush1.msra.mxu0 0.0
        %2492 = vmatprep.subr.mxu0 0.0
        %2493 = vmatpush1.msra.mxu0 0.0
        %2494 = vmatprep.subr.mxu0 0.0
        %2495 = vmatpush1.msra.mxu0 0.0
        %2496 = vmatprep.subr.mxu0 0.0
        %2497 = vmatpush1.msra.mxu0 0.0
        %2498 = vmatprep.subr.mxu0 0.0
        %2499 = vmatpush1.msra.mxu0 0.0
        %2500 = vmatprep.subr.mxu0 0.0
        %2501 = vmatpush1.msra.mxu0 0.0
        %2502 = vmatprep.subr.mxu0 0.0
        %2503 = vmatpush1.msra.mxu0 0.0
        %2504 = vmatprep.subr.mxu0 0.0
        %2505 = vmatpush1.msra.mxu0 0.0
        %2506 = vmatprep.subr.mxu0 0.0
        %2507 = vmatpush1.msra.mxu0 0.0
        %2508 = vmatprep.mubr.f32.mxu0 0.0
        %2509 = vmatmul.mubr.f32.gmra.mrb[0].mxu0 %v2442
        %v2510 = vpop.f32.mrb[0].mxu0
        %v2511 = vadd.f32 0.0, %v2510
        %v2512 = vpop.f32.mrb[0].mxu0
        %2513 = vdwg.mxu0
        %v2514 = vld [vmem:[#allocation4] sm:$0xff]
        %s2515 = scalar_lea.vmem %s3, 8
        %v2516 = vld [vmem:[%s2515] sm:$0xf]
        %v2518 = vsel %vm1693, %v2511, 0
        %v2521 = vsel %vm1861, %v2516, 0
        %2523 = vmatprep.subr.mxu0 0.0
        %2524 = vmatpush1.msra.mxu0 %v2521
        %2525 = vmatprep.subr.mxu0 0.0
        %2526 = vmatpush1.msra.mxu0 0.0
        %2527 = vmatprep.subr.mxu0 0.0
        %2528 = vmatpush1.msra.mxu0 0.0
        %2529 = vmatprep.subr.mxu0 0.0
        %2530 = vmatpush1.msra.mxu0 0.0
        %2531 = vmatprep.subr.mxu0 0.0
        %2532 = vmatpush1.msra.mxu0 0.0
        %2533 = vmatprep.subr.mxu0 0.0
        %2534 = vmatpush1.msra.mxu0 0.0
        %2535 = vmatprep.subr.mxu0 0.0
        %2536 = vmatpush1.msra.mxu0 0.0
        %2537 = vmatprep.subr.mxu0 0.0
        %2538 = vmatpush1.msra.mxu0 0.0
        %2539 = vmatprep.subr.mxu0 0.0
        %2540 = vmatpush1.msra.mxu0 0.0
        %2541 = vmatprep.subr.mxu0 0.0
        %2542 = vmatpush1.msra.mxu0 0.0
        %2543 = vmatprep.subr.mxu0 0.0
        %2544 = vmatpush1.msra.mxu0 0.0
        %2545 = vmatprep.subr.mxu0 0.0
        %2546 = vmatpush1.msra.mxu0 0.0
        %2547 = vmatprep.subr.mxu0 0.0
        %2548 = vmatpush1.msra.mxu0 0.0
        %2549 = vmatprep.subr.mxu0 0.0
        %2550 = vmatpush1.msra.mxu0 0.0
        %2551 = vmatprep.subr.mxu0 0.0
        %2552 = vmatpush1.msra.mxu0 0.0
        %2553 = vmatprep.subr.mxu0 0.0
        %2554 = vmatpush1.msra.mxu0 0.0
        %2555 = vmatprep.subr.mxu0 0.0
        %2556 = vmatpush1.msra.mxu0 0.0
        %2557 = vmatprep.subr.mxu0 0.0
        %2558 = vmatpush1.msra.mxu0 0.0
        %2559 = vmatprep.subr.mxu0 0.0
        %2560 = vmatpush1.msra.mxu0 0.0
        %2561 = vmatprep.subr.mxu0 0.0
        %2562 = vmatpush1.msra.mxu0 0.0
        %2563 = vmatprep.subr.mxu0 0.0
        %2564 = vmatpush1.msra.mxu0 0.0
        %2565 = vmatprep.subr.mxu0 0.0
        %2566 = vmatpush1.msra.mxu0 0.0
        %2567 = vmatprep.subr.mxu0 0.0
        %2568 = vmatpush1.msra.mxu0 0.0
        %2569 = vmatprep.subr.mxu0 0.0
        %2570 = vmatpush1.msra.mxu0 0.0
        %2571 = vmatprep.subr.mxu0 0.0
        %2572 = vmatpush1.msra.mxu0 0.0
        %2573 = vmatprep.subr.mxu0 0.0
        %2574 = vmatpush1.msra.mxu0 0.0
        %2575 = vmatprep.subr.mxu0 0.0
        %2576 = vmatpush1.msra.mxu0 0.0
        %2577 = vmatprep.subr.mxu0 0.0
        %2578 = vmatpush1.msra.mxu0 0.0
        %2579 = vmatprep.subr.mxu0 0.0
        %2580 = vmatpush1.msra.mxu0 0.0
        %2581 = vmatprep.subr.mxu0 0.0
        %2582 = vmatpush1.msra.mxu0 0.0
        %2583 = vmatprep.subr.mxu0 0.0
        %2584 = vmatpush1.msra.mxu0 0.0
        %2585 = vmatprep.subr.mxu0 0.0
        %2586 = vmatpush1.msra.mxu0 0.0
        %2587 = vmatprep.mubr.f32.mxu0 0.0
        %2588 = vmatmul.mubr.f32.gmra.mrb[0].mxu0 %v2518
        %v2589 = vpop.f32.mrb[0].mxu0
        %v2590 = vadd.f32 0.0, %v2589
        %v2591 = vpop.f32.mrb[0].mxu0
        %2592 = vdwg.mxu0
        %v2593 = vadd.f32 %v2514, %v2590
        %2594 = vst.msk [vmem:[#allocation4] sm:$0xff] %vm1605, %v2593
        %s2595 = scalar_lea.vmem %s1, 96
        %v2596 = vld [vmem:[%s2595] sm:$0xff]
        %v2597 = vld [vmem:[%s2595 + $0x8] sm:$0xff]
        %v2598 = vld [vmem:[%s2595 + $0x10] sm:$0xff]
        %v2599 = vld [vmem:[%s2595 + $0x18] sm:$0xff]
        %s2600 = scalar_lea.vmem %s2, 3
        %v2601 = vld [vmem:[%s2600] sm:$0x1]
        %v2603 = vlaneseq
        %v2604 = vshrl.u32 %v2603, 7
        %v2605 = vsub.s32 0, %v2604
        %v2606 = vrot.slane %v2601, %v2605
        %2608 = vmatprep.subr.mxu0 0.0
        %2609 = vmatpush1.msra.mxu0 %v2596
        %2610 = vmatprep.subr.mxu0 0.0
        %2611 = vmatpush1.msra.mxu0 %v2597
        %2612 = vmatprep.subr.mxu0 0.0
        %2613 = vmatpush1.msra.mxu0 %v2598
        %2614 = vmatprep.subr.mxu0 0.0
        %2615 = vmatpush1.msra.mxu0 %v2599
        %2616 = vmatprep.subr.mxu0 0.0
        %2617 = vmatpush1.msra.mxu0 0.0
        %2618 = vmatprep.subr.mxu0 0.0
        %2619 = vmatpush1.msra.mxu0 0.0
        %2620 = vmatprep.subr.mxu0 0.0
        %2621 = vmatpush1.msra.mxu0 0.0
        %2622 = vmatprep.subr.mxu0 0.0
        %2623 = vmatpush1.msra.mxu0 0.0
        %2624 = vmatprep.subr.mxu0 0.0
        %2625 = vmatpush1.msra.mxu0 0.0
        %2626 = vmatprep.subr.mxu0 0.0
        %2627 = vmatpush1.msra.mxu0 0.0
        %2628 = vmatprep.subr.mxu0 0.0
        %2629 = vmatpush1.msra.mxu0 0.0
        %2630 = vmatprep.subr.mxu0 0.0
        %2631 = vmatpush1.msra.mxu0 0.0
        %2632 = vmatprep.subr.mxu0 0.0
        %2633 = vmatpush1.msra.mxu0 0.0
        %2634 = vmatprep.subr.mxu0 0.0
        %2635 = vmatpush1.msra.mxu0 0.0
        %2636 = vmatprep.subr.mxu0 0.0
        %2637 = vmatpush1.msra.mxu0 0.0
        %2638 = vmatprep.subr.mxu0 0.0
        %2639 = vmatpush1.msra.mxu0 0.0
        %2640 = vmatprep.subr.mxu0 0.0
        %2641 = vmatpush1.msra.mxu0 0.0
        %2642 = vmatprep.subr.mxu0 0.0
        %2643 = vmatpush1.msra.mxu0 0.0
        %2644 = vmatprep.subr.mxu0 0.0
        %2645 = vmatpush1.msra.mxu0 0.0
        %2646 = vmatprep.subr.mxu0 0.0
        %2647 = vmatpush1.msra.mxu0 0.0
        %2648 = vmatprep.subr.mxu0 0.0
        %2649 = vmatpush1.msra.mxu0 0.0
        %2650 = vmatprep.subr.mxu0 0.0
        %2651 = vmatpush1.msra.mxu0 0.0
        %2652 = vmatprep.subr.mxu0 0.0
        %2653 = vmatpush1.msra.mxu0 0.0
        %2654 = vmatprep.subr.mxu0 0.0
        %2655 = vmatpush1.msra.mxu0 0.0
        %2656 = vmatprep.subr.mxu0 0.0
        %2657 = vmatpush1.msra.mxu0 0.0
        %2658 = vmatprep.subr.mxu0 0.0
        %2659 = vmatpush1.msra.mxu0 0.0
        %2660 = vmatprep.subr.mxu0 0.0
        %2661 = vmatpush1.msra.mxu0 0.0
        %2662 = vmatprep.subr.mxu0 0.0
        %2663 = vmatpush1.msra.mxu0 0.0
        %2664 = vmatprep.subr.mxu0 0.0
        %2665 = vmatpush1.msra.mxu0 0.0
        %2666 = vmatprep.subr.mxu0 0.0
        %2667 = vmatpush1.msra.mxu0 0.0
        %2668 = vmatprep.subr.mxu0 0.0
        %2669 = vmatpush1.msra.mxu0 0.0
        %2670 = vmatprep.subr.mxu0 0.0
        %2671 = vmatpush1.msra.mxu0 0.0
        %2672 = vmatprep.mubr.f32.mxu0 0.0
        %2673 = vmatmul.mubr.f32.gmra.mrb[0].mxu0 %v1619
        %v2674 = vpop.f32.mrb[0].mxu0
        %v2675 = vadd.f32 %v2606, %v2674
        %v2676 = vpop.f32.mrb[0].mxu0
        %2677 = vdwg.mxu0
        %s2678 = scalar_lea.vmem [#allocation2], 24
        %v2679 = vld [vmem:[%s2678] sm:$0xff]
        %s2680 = scalar_lea.vmem [#allocation3], 24
        %v2681 = vld [vmem:[%s2680] sm:$0xff]
        %v2683 = vsel %vm1693, %v2675, 0
        %v2686 = vsel %vm1693, %v2679, 0
        %2688 = vmatprep.subr.mxu0 0.0
        %2689 = vmatpush1.xpose.msra.mxu0 %v2686
        %2690 = vmatprep.subr.mxu0 0.0
        %2691 = vmatpush1.xpose.msra.mxu0 0.0
        %2692 = vmatprep.subr.mxu0 0.0
        %2693 = vmatpush1.xpose.msra.mxu0 0.0
        %2694 = vmatprep.subr.mxu0 0.0
        %2695 = vmatpush1.xpose.msra.mxu0 0.0
        %2696 = vmatprep.subr.mxu0 0.0
        %2697 = vmatpush1.xpose.msra.mxu0 0.0
        %2698 = vmatprep.subr.mxu0 0.0
        %2699 = vmatpush1.xpose.msra.mxu0 0.0
        %2700 = vmatprep.subr.mxu0 0.0
        %2701 = vmatpush1.xpose.msra.mxu0 0.0
        %2702 = vmatprep.subr.mxu0 0.0
        %2703 = vmatpush1.xpose.msra.mxu0 0.0
        %2704 = vmatprep.subr.mxu0 0.0
        %2705 = vmatpush1.xpose.msra.mxu0 0.0
        %2706 = vmatprep.subr.mxu0 0.0
        %2707 = vmatpush1.xpose.msra.mxu0 0.0
        %2708 = vmatprep.subr.mxu0 0.0
        %2709 = vmatpush1.xpose.msra.mxu0 0.0
        %2710 = vmatprep.subr.mxu0 0.0
        %2711 = vmatpush1.xpose.msra.mxu0 0.0
        %2712 = vmatprep.subr.mxu0 0.0
        %2713 = vmatpush1.xpose.msra.mxu0 0.0
        %2714 = vmatprep.subr.mxu0 0.0
        %2715 = vmatpush1.xpose.msra.mxu0 0.0
        %2716 = vmatprep.subr.mxu0 0.0
        %2717 = vmatpush1.xpose.msra.mxu0 0.0
        %2718 = vmatprep.subr.mxu0 0.0
        %2719 = vmatpush1.xpose.msra.mxu0 0.0
        %2720 = vmatprep.subr.mxu0 0.0
        %2721 = vmatpush1.xpose.msra.mxu0 0.0
        %2722 = vmatprep.subr.mxu0 0.0
        %2723 = vmatpush1.xpose.msra.mxu0 0.0
        %2724 = vmatprep.subr.mxu0 0.0
        %2725 = vmatpush1.xpose.msra.mxu0 0.0
        %2726 = vmatprep.subr.mxu0 0.0
        %2727 = vmatpush1.xpose.msra.mxu0 0.0
        %2728 = vmatprep.subr.mxu0 0.0
        %2729 = vmatpush1.xpose.msra.mxu0 0.0
        %2730 = vmatprep.subr.mxu0 0.0
        %2731 = vmatpush1.xpose.msra.mxu0 0.0
        %2732 = vmatprep.subr.mxu0 0.0
        %2733 = vmatpush1.xpose.msra.mxu0 0.0
        %2734 = vmatprep.subr.mxu0 0.0
        %2735 = vmatpush1.xpose.msra.mxu0 0.0
        %2736 = vmatprep.subr.mxu0 0.0
        %2737 = vmatpush1.xpose.msra.mxu0 0.0
        %2738 = vmatprep.subr.mxu0 0.0
        %2739 = vmatpush1.xpose.msra.mxu0 0.0
        %2740 = vmatprep.subr.mxu0 0.0
        %2741 = vmatpush1.xpose.msra.mxu0 0.0
        %2742 = vmatprep.subr.mxu0 0.0
        %2743 = vmatpush1.xpose.msra.mxu0 0.0
        %2744 = vmatprep.subr.mxu0 0.0
        %2745 = vmatpush1.xpose.msra.mxu0 0.0
        %2746 = vmatprep.subr.mxu0 0.0
        %2747 = vmatpush1.xpose.msra.mxu0 0.0
        %2748 = vmatprep.subr.mxu0 0.0
        %2749 = vmatpush1.xpose.msra.mxu0 0.0
        %2750 = vmatprep.subr.mxu0 0.0
        %2751 = vmatpush1.xpose.msra.mxu0 0.0
        %2752 = vmatprep.mubr.f32.mxu0 0.0
        %2753 = vmatmul.mubr.f32.gmra.mrb[0].mxu0 %v2683
        %v2754 = vpop.f32.mrb[0].mxu0
        %v2755 = vadd.f32 0.0, %v2754
        %v2756 = vpop.f32.mrb[0].mxu0
        %2757 = vdwg.mxu0
        %v2758 = vsel %vm1770, %v2755, -inf
        %2759 = vmax.xlane.f32.xlu0 %v2758
        %v2760 = vpop.xlane.xlu0 %2759
        %v2761 = vsub.f32 %v2755, %v2760
        %v2762 = vmul.f32 %v2761, 1.442695
        %v2763 = vpow.pop %v2762
        %v2764 = vsel %vm1770, %v2763, 0.0
        %2765 = vadd.xlane.f32.xlu0 %v2764
        %v2766 = vpop.xlane.xlu0 %2765
        %v2767 = vrcp.pop %v2766
        %v2768 = vmul.f32 %v2767, 0.17677669
        %v2769 = vmul.f32 %v2763, %v2768
        %v2771 = vsel %vm1770, %v2769, 0
        %2773 = vmatprep.subr.mxu0 0.0
        %2774 = vmatpush1.msra.mxu0 %v2681
        %2775 = vmatprep.subr.mxu0 0.0
        %2776 = vmatpush1.msra.mxu0 0.0
        %2777 = vmatprep.subr.mxu0 0.0
        %2778 = vmatpush1.msra.mxu0 0.0
        %2779 = vmatprep.subr.mxu0 0.0
        %2780 = vmatpush1.msra.mxu0 0.0
        %2781 = vmatprep.subr.mxu0 0.0
        %2782 = vmatpush1.msra.mxu0 0.0
        %2783 = vmatprep.subr.mxu0 0.0
        %2784 = vmatpush1.msra.mxu0 0.0
        %2785 = vmatprep.subr.mxu0 0.0
        %2786 = vmatpush1.msra.mxu0 0.0
        %2787 = vmatprep.subr.mxu0 0.0
        %2788 = vmatpush1.msra.mxu0 0.0
        %2789 = vmatprep.subr.mxu0 0.0
        %2790 = vmatpush1.msra.mxu0 0.0
        %2791 = vmatprep.subr.mxu0 0.0
        %2792 = vmatpush1.msra.mxu0 0.0
        %2793 = vmatprep.subr.mxu0 0.0
        %2794 = vmatpush1.msra.mxu0 0.0
        %2795 = vmatprep.subr.mxu0 0.0
        %2796 = vmatpush1.msra.mxu0 0.0
        %2797 = vmatprep.subr.mxu0 0.0
        %2798 = vmatpush1.msra.mxu0 0.0
        %2799 = vmatprep.subr.mxu0 0.0
        %2800 = vmatpush1.msra.mxu0 0.0
        %2801 = vmatprep.subr.mxu0 0.0
        %2802 = vmatpush1.msra.mxu0 0.0
        %2803 = vmatprep.subr.mxu0 0.0
        %2804 = vmatpush1.msra.mxu0 0.0
        %2805 = vmatprep.subr.mxu0 0.0
        %2806 = vmatpush1.msra.mxu0 0.0
        %2807 = vmatprep.subr.mxu0 0.0
        %2808 = vmatpush1.msra.mxu0 0.0
        %2809 = vmatprep.subr.mxu0 0.0
        %2810 = vmatpush1.msra.mxu0 0.0
        %2811 = vmatprep.subr.mxu0 0.0
        %2812 = vmatpush1.msra.mxu0 0.0
        %2813 = vmatprep.subr.mxu0 0.0
        %2814 = vmatpush1.msra.mxu0 0.0
        %2815 = vmatprep.subr.mxu0 0.0
        %2816 = vmatpush1.msra.mxu0 0.0
        %2817 = vmatprep.subr.mxu0 0.0
        %2818 = vmatpush1.msra.mxu0 0.0
        %2819 = vmatprep.subr.mxu0 0.0
        %2820 = vmatpush1.msra.mxu0 0.0
        %2821 = vmatprep.subr.mxu0 0.0
        %2822 = vmatpush1.msra.mxu0 0.0
        %2823 = vmatprep.subr.mxu0 0.0
        %2824 = vmatpush1.msra.mxu0 0.0
        %2825 = vmatprep.subr.mxu0 0.0
        %2826 = vmatpush1.msra.mxu0 0.0
        %2827 = vmatprep.subr.mxu0 0.0
        %2828 = vmatpush1.msra.mxu0 0.0
        %2829 = vmatprep.subr.mxu0 0.0
        %2830 = vmatpush1.msra.mxu0 0.0
        %2831 = vmatprep.subr.mxu0 0.0
        %2832 = vmatpush1.msra.mxu0 0.0
        %2833 = vmatprep.subr.mxu0 0.0
        %2834 = vmatpush1.msra.mxu0 0.0
        %2835 = vmatprep.subr.mxu0 0.0
        %2836 = vmatpush1.msra.mxu0 0.0
        %2837 = vmatprep.mubr.f32.mxu0 0.0
        %2838 = vmatmul.mubr.f32.gmra.mrb[0].mxu0 %v2771
        %v2839 = vpop.f32.mrb[0].mxu0
        %v2840 = vadd.f32 0.0, %v2839
        %v2841 = vpop.f32.mrb[0].mxu0
        %2842 = vdwg.mxu0
        %v2843 = vld [vmem:[#allocation4] sm:$0xff]
        %s2844 = scalar_lea.vmem %s3, 12
        %v2845 = vld [vmem:[%s2844] sm:$0xf]
        %v2847 = vsel %vm1693, %v2840, 0
        %v2850 = vsel %vm1861, %v2845, 0
        %2852 = vmatprep.subr.mxu0 0.0
        %2853 = vmatpush1.msra.mxu0 %v2850
        %2854 = vmatprep.subr.mxu0 0.0
        %2855 = vmatpush1.msra.mxu0 0.0
        %2856 = vmatprep.subr.mxu0 0.0
        %2857 = vmatpush1.msra.mxu0 0.0
        %2858 = vmatprep.subr.mxu0 0.0
        %2859 = vmatpush1.msra.mxu0 0.0
        %2860 = vmatprep.subr.mxu0 0.0
        %2861 = vmatpush1.msra.mxu0 0.0
        %2862 = vmatprep.subr.mxu0 0.0
        %2863 = vmatpush1.msra.mxu0 0.0
        %2864 = vmatprep.subr.mxu0 0.0
        %2865 = vmatpush1.msra.mxu0 0.0
        %2866 = vmatprep.subr.mxu0 0.0
        %2867 = vmatpush1.msra.mxu0 0.0
        %2868 = vmatprep.subr.mxu0 0.0
        %2869 = vmatpush1.msra.mxu0 0.0
        %2870 = vmatprep.subr.mxu0 0.0
        %2871 = vmatpush1.msra.mxu0 0.0
        %2872 = vmatprep.subr.mxu0 0.0
        %2873 = vmatpush1.msra.mxu0 0.0
        %2874 = vmatprep.subr.mxu0 0.0
        %2875 = vmatpush1.msra.mxu0 0.0
        %2876 = vmatprep.subr.mxu0 0.0
        %2877 = vmatpush1.msra.mxu0 0.0
        %2878 = vmatprep.subr.mxu0 0.0
        %2879 = vmatpush1.msra.mxu0 0.0
        %2880 = vmatprep.subr.mxu0 0.0
        %2881 = vmatpush1.msra.mxu0 0.0
        %2882 = vmatprep.subr.mxu0 0.0
        %2883 = vmatpush1.msra.mxu0 0.0
        %2884 = vmatprep.subr.mxu0 0.0
        %2885 = vmatpush1.msra.mxu0 0.0
        %2886 = vmatprep.subr.mxu0 0.0
        %2887 = vmatpush1.msra.mxu0 0.0
        %2888 = vmatprep.subr.mxu0 0.0
        %2889 = vmatpush1.msra.mxu0 0.0
        %2890 = vmatprep.subr.mxu0 0.0
        %2891 = vmatpush1.msra.mxu0 0.0
        %2892 = vmatprep.subr.mxu0 0.0
        %2893 = vmatpush1.msra.mxu0 0.0
        %2894 = vmatprep.subr.mxu0 0.0
        %2895 = vmatpush1.msra.mxu0 0.0
        %2896 = vmatprep.subr.mxu0 0.0
        %2897 = vmatpush1.msra.mxu0 0.0
        %2898 = vmatprep.subr.mxu0 0.0
        %2899 = vmatpush1.msra.mxu0 0.0
        %2900 = vmatprep.subr.mxu0 0.0
        %2901 = vmatpush1.msra.mxu0 0.0
        %2902 = vmatprep.subr.mxu0 0.0
        %2903 = vmatpush1.msra.mxu0 0.0
        %2904 = vmatprep.subr.mxu0 0.0
        %2905 = vmatpush1.msra.mxu0 0.0
        %2906 = vmatprep.subr.mxu0 0.0
        %2907 = vmatpush1.msra.mxu0 0.0
        %2908 = vmatprep.subr.mxu0 0.0
        %2909 = vmatpush1.msra.mxu0 0.0
        %2910 = vmatprep.subr.mxu0 0.0
        %2911 = vmatpush1.msra.mxu0 0.0
        %2912 = vmatprep.subr.mxu0 0.0
        %2913 = vmatpush1.msra.mxu0 0.0
        %2914 = vmatprep.subr.mxu0 0.0
        %2915 = vmatpush1.msra.mxu0 0.0
        %2916 = vmatprep.mubr.f32.mxu0 0.0
        %2917 = vmatmul.mubr.f32.gmra.mrb[0].mxu0 %v2847
        %v2918 = vpop.f32.mrb[0].mxu0
        %v2919 = vadd.f32 0.0, %v2918
        %v2920 = vpop.f32.mrb[0].mxu0
        %2921 = vdwg.mxu0
        %v2922 = vadd.f32 %v2843, %v2919
        %2923 = vst.msk [vmem:[#allocation4] sm:$0xff] %vm1605, %v2922
        %s2924 = scalar_lea.vmem %s1, 128
        %v2925 = vld [vmem:[%s2924] sm:$0xff]
        %v2926 = vld [vmem:[%s2924 + $0x8] sm:$0xff]
        %v2927 = vld [vmem:[%s2924 + $0x10] sm:$0xff]
        %v2928 = vld [vmem:[%s2924 + $0x18] sm:$0xff]
        %s2929 = scalar_lea.vmem %s2, 4
        %v2930 = vld [vmem:[%s2929] sm:$0x1]
        %v2932 = vlaneseq
        %v2933 = vshrl.u32 %v2932, 7
        %v2934 = vsub.s32 0, %v2933
        %v2935 = vrot.slane %v2930, %v2934
        %2937 = vmatprep.subr.mxu0 0.0
        %2938 = vmatpush1.msra.mxu0 %v2925
        %2939 = vmatprep.subr.mxu0 0.0
        %2940 = vmatpush1.msra.mxu0 %v2926
        %2941 = vmatprep.subr.mxu0 0.0
        %2942 = vmatpush1.msra.mxu0 %v2927
        %2943 = vmatprep.subr.mxu0 0.0
        %2944 = vmatpush1.msra.mxu0 %v2928
        %2945 = vmatprep.subr.mxu0 0.0
        %2946 = vmatpush1.msra.mxu0 0.0
        %2947 = vmatprep.subr.mxu0 0.0
        %2948 = vmatpush1.msra.mxu0 0.0
        %2949 = vmatprep.subr.mxu0 0.0
        %2950 = vmatpush1.msra.mxu0 0.0
        %2951 = vmatprep.subr.mxu0 0.0
        %2952 = vmatpush1.msra.mxu0 0.0
        %2953 = vmatprep.subr.mxu0 0.0
        %2954 = vmatpush1.msra.mxu0 0.0
        %2955 = vmatprep.subr.mxu0 0.0
        %2956 = vmatpush1.msra.mxu0 0.0
        %2957 = vmatprep.subr.mxu0 0.0
        %2958 = vmatpush1.msra.mxu0 0.0
        %2959 = vmatprep.subr.mxu0 0.0
        %2960 = vmatpush1.msra.mxu0 0.0
        %2961 = vmatprep.subr.mxu0 0.0
        %2962 = vmatpush1.msra.mxu0 0.0
        %2963 = vmatprep.subr.mxu0 0.0
        %2964 = vmatpush1.msra.mxu0 0.0
        %2965 = vmatprep.subr.mxu0 0.0
        %2966 = vmatpush1.msra.mxu0 0.0
        %2967 = vmatprep.subr.mxu0 0.0
        %2968 = vmatpush1.msra.mxu0 0.0
        %2969 = vmatprep.subr.mxu0 0.0
        %2970 = vmatpush1.msra.mxu0 0.0
        %2971 = vmatprep.subr.mxu0 0.0
        %2972 = vmatpush1.msra.mxu0 0.0
        %2973 = vmatprep.subr.mxu0 0.0
        %2974 = vmatpush1.msra.mxu0 0.0
        %2975 = vmatprep.subr.mxu0 0.0
        %2976 = vmatpush1.msra.mxu0 0.0
        %2977 = vmatprep.subr.mxu0 0.0
        %2978 = vmatpush1.msra.mxu0 0.0
        %2979 = vmatprep.subr.mxu0 0.0
        %2980 = vmatpush1.msra.mxu0 0.0
        %2981 = vmatprep.subr.mxu0 0.0
        %2982 = vmatpush1.msra.mxu0 0.0
        %2983 = vmatprep.subr.mxu0 0.0
        %2984 = vmatpush1.msra.mxu0 0.0
        %2985 = vmatprep.subr.mxu0 0.0
        %2986 = vmatpush1.msra.mxu0 0.0
        %2987 = vmatprep.subr.mxu0 0.0
        %2988 = vmatpush1.msra.mxu0 0.0
        %2989 = vmatprep.subr.mxu0 0.0
        %2990 = vmatpush1.msra.mxu0 0.0
        %2991 = vmatprep.subr.mxu0 0.0
        %2992 = vmatpush1.msra.mxu0 0.0
        %2993 = vmatprep.subr.mxu0 0.0
        %2994 = vmatpush1.msra.mxu0 0.0
        %2995 = vmatprep.subr.mxu0 0.0
        %2996 = vmatpush1.msra.mxu0 0.0
        %2997 = vmatprep.subr.mxu0 0.0
        %2998 = vmatpush1.msra.mxu0 0.0
        %2999 = vmatprep.subr.mxu0 0.0
        %3000 = vmatpush1.msra.mxu0 0.0
        %3001 = vmatprep.mubr.f32.mxu0 0.0
        %3002 = vmatmul.mubr.f32.gmra.mrb[0].mxu0 %v1619
        %v3003 = vpop.f32.mrb[0].mxu0
        %v3004 = vadd.f32 %v2935, %v3003
        %v3005 = vpop.f32.mrb[0].mxu0
        %3006 = vdwg.mxu0
        %s3007 = scalar_lea.vmem [#allocation2], 32
        %v3008 = vld [vmem:[%s3007] sm:$0xff]
        %s3009 = scalar_lea.vmem [#allocation3], 32
        %v3010 = vld [vmem:[%s3009] sm:$0xff]
        %v3012 = vsel %vm1693, %v3004, 0
        %v3015 = vsel %vm1693, %v3008, 0
        %3017 = vmatprep.subr.mxu0 0.0
        %3018 = vmatpush1.xpose.msra.mxu0 %v3015
        %3019 = vmatprep.subr.mxu0 0.0
        %3020 = vmatpush1.xpose.msra.mxu0 0.0
        %3021 = vmatprep.subr.mxu0 0.0
        %3022 = vmatpush1.xpose.msra.mxu0 0.0
        %3023 = vmatprep.subr.mxu0 0.0
        %3024 = vmatpush1.xpose.msra.mxu0 0.0
        %3025 = vmatprep.subr.mxu0 0.0
        %3026 = vmatpush1.xpose.msra.mxu0 0.0
        %3027 = vmatprep.subr.mxu0 0.0
        %3028 = vmatpush1.xpose.msra.mxu0 0.0
        %3029 = vmatprep.subr.mxu0 0.0
        %3030 = vmatpush1.xpose.msra.mxu0 0.0
        %3031 = vmatprep.subr.mxu0 0.0
        %3032 = vmatpush1.xpose.msra.mxu0 0.0
        %3033 = vmatprep.subr.mxu0 0.0
        %3034 = vmatpush1.xpose.msra.mxu0 0.0
        %3035 = vmatprep.subr.mxu0 0.0
        %3036 = vmatpush1.xpose.msra.mxu0 0.0
        %3037 = vmatprep.subr.mxu0 0.0
        %3038 = vmatpush1.xpose.msra.mxu0 0.0
        %3039 = vmatprep.subr.mxu0 0.0
        %3040 = vmatpush1.xpose.msra.mxu0 0.0
        %3041 = vmatprep.subr.mxu0 0.0
        %3042 = vmatpush1.xpose.msra.mxu0 0.0
        %3043 = vmatprep.subr.mxu0 0.0
        %3044 = vmatpush1.xpose.msra.mxu0 0.0
        %3045 = vmatprep.subr.mxu0 0.0
        %3046 = vmatpush1.xpose.msra.mxu0 0.0
        %3047 = vmatprep.subr.mxu0 0.0
        %3048 = vmatpush1.xpose.msra.mxu0 0.0
        %3049 = vmatprep.subr.mxu0 0.0
        %3050 = vmatpush1.xpose.msra.mxu0 0.0
        %3051 = vmatprep.subr.mxu0 0.0
        %3052 = vmatpush1.xpose.msra.mxu0 0.0
        %3053 = vmatprep.subr.mxu0 0.0
        %3054 = vmatpush1.xpose.msra.mxu0 0.0
        %3055 = vmatprep.subr.mxu0 0.0
        %3056 = vmatpush1.xpose.msra.mxu0 0.0
        %3057 = vmatprep.subr.mxu0 0.0
        %3058 = vmatpush1.xpose.msra.mxu0 0.0
        %3059 = vmatprep.subr.mxu0 0.0
        %3060 = vmatpush1.xpose.msra.mxu0 0.0
        %3061 = vmatprep.subr.mxu0 0.0
        %3062 = vmatpush1.xpose.msra.mxu0 0.0
        %3063 = vmatprep.subr.mxu0 0.0
        %3064 = vmatpush1.xpose.msra.mxu0 0.0
        %3065 = vmatprep.subr.mxu0 0.0
        %3066 = vmatpush1.xpose.msra.mxu0 0.0
        %3067 = vmatprep.subr.mxu0 0.0
        %3068 = vmatpush1.xpose.msra.mxu0 0.0
        %3069 = vmatprep.subr.mxu0 0.0
        %3070 = vmatpush1.xpose.msra.mxu0 0.0
        %3071 = vmatprep.subr.mxu0 0.0
        %3072 = vmatpush1.xpose.msra.mxu0 0.0
        %3073 = vmatprep.subr.mxu0 0.0
        %3074 = vmatpush1.xpose.msra.mxu0 0.0
        %3075 = vmatprep.subr.mxu0 0.0
        %3076 = vmatpush1.xpose.msra.mxu0 0.0
        %3077 = vmatprep.subr.mxu0 0.0
        %3078 = vmatpush1.xpose.msra.mxu0 0.0
        %3079 = vmatprep.subr.mxu0 0.0
        %3080 = vmatpush1.xpose.msra.mxu0 0.0
        %3081 = vmatprep.mubr.f32.mxu0 0.0
        %3082 = vmatmul.mubr.f32.gmra.mrb[0].mxu0 %v3012
        %v3083 = vpop.f32.mrb[0].mxu0
        %v3084 = vadd.f32 0.0, %v3083
        %v3085 = vpop.f32.mrb[0].mxu0
        %3086 = vdwg.mxu0
        %v3087 = vsel %vm1770, %v3084, -inf
        %3088 = vmax.xlane.f32.xlu0 %v3087
        %v3089 = vpop.xlane.xlu0 %3088
        %v3090 = vsub.f32 %v3084, %v3089
        %v3091 = vmul.f32 %v3090, 1.442695
        %v3092 = vpow.pop %v3091
        %v3093 = vsel %vm1770, %v3092, 0.0
        %3094 = vadd.xlane.f32.xlu0 %v3093
        %v3095 = vpop.xlane.xlu0 %3094
        %v3096 = vrcp.pop %v3095
        %v3097 = vmul.f32 %v3096, 0.17677669
        %v3098 = vmul.f32 %v3092, %v3097
        %v3100 = vsel %vm1770, %v3098, 0
        %3102 = vmatprep.subr.mxu0 0.0
        %3103 = vmatpush1.msra.mxu0 %v3010
        %3104 = vmatprep.subr.mxu0 0.0
        %3105 = vmatpush1.msra.mxu0 0.0
        %3106 = vmatprep.subr.mxu0 0.0
        %3107 = vmatpush1.msra.mxu0 0.0
        %3108 = vmatprep.subr.mxu0 0.0
        %3109 = vmatpush1.msra.mxu0 0.0
        %3110 = vmatprep.subr.mxu0 0.0
        %3111 = vmatpush1.msra.mxu0 0.0
        %3112 = vmatprep.subr.mxu0 0.0
        %3113 = vmatpush1.msra.mxu0 0.0
        %3114 = vmatprep.subr.mxu0 0.0
        %3115 = vmatpush1.msra.mxu0 0.0
        %3116 = vmatprep.subr.mxu0 0.0
        %3117 = vmatpush1.msra.mxu0 0.0
        %3118 = vmatprep.subr.mxu0 0.0
        %3119 = vmatpush1.msra.mxu0 0.0
        %3120 = vmatprep.subr.mxu0 0.0
        %3121 = vmatpush1.msra.mxu0 0.0
        %3122 = vmatprep.subr.mxu0 0.0
        %3123 = vmatpush1.msra.mxu0 0.0
        %3124 = vmatprep.subr.mxu0 0.0
        %3125 = vmatpush1.msra.mxu0 0.0
        %3126 = vmatprep.subr.mxu0 0.0
        %3127 = vmatpush1.msra.mxu0 0.0
        %3128 = vmatprep.subr.mxu0 0.0
        %3129 = vmatpush1.msra.mxu0 0.0
        %3130 = vmatprep.subr.mxu0 0.0
        %3131 = vmatpush1.msra.mxu0 0.0
        %3132 = vmatprep.subr.mxu0 0.0
        %3133 = vmatpush1.msra.mxu0 0.0
        %3134 = vmatprep.subr.mxu0 0.0
        %3135 = vmatpush1.msra.mxu0 0.0
        %3136 = vmatprep.subr.mxu0 0.0
        %3137 = vmatpush1.msra.mxu0 0.0
        %3138 = vmatprep.subr.mxu0 0.0
        %3139 = vmatpush1.msra.mxu0 0.0
        %3140 = vmatprep.subr.mxu0 0.0
        %3141 = vmatpush1.msra.mxu0 0.0
        %3142 = vmatprep.subr.mxu0 0.0
        %3143 = vmatpush1.msra.mxu0 0.0
        %3144 = vmatprep.subr.mxu0 0.0
        %3145 = vmatpush1.msra.mxu0 0.0
        %3146 = vmatprep.subr.mxu0 0.0
        %3147 = vmatpush1.msra.mxu0 0.0
        %3148 = vmatprep.subr.mxu0 0.0
        %3149 = vmatpush1.msra.mxu0 0.0
        %3150 = vmatprep.subr.mxu0 0.0
        %3151 = vmatpush1.msra.mxu0 0.0
        %3152 = vmatprep.subr.mxu0 0.0
        %3153 = vmatpush1.msra.mxu0 0.0
        %3154 = vmatprep.subr.mxu0 0.0
        %3155 = vmatpush1.msra.mxu0 0.0
        %3156 = vmatprep.subr.mxu0 0.0
        %3157 = vmatpush1.msra.mxu0 0.0
        %3158 = vmatprep.subr.mxu0 0.0
        %3159 = vmatpush1.msra.mxu0 0.0
        %3160 = vmatprep.subr.mxu0 0.0
        %3161 = vmatpush1.msra.mxu0 0.0
        %3162 = vmatprep.subr.mxu0 0.0
        %3163 = vmatpush1.msra.mxu0 0.0
        %3164 = vmatprep.subr.mxu0 0.0
        %3165 = vmatpush1.msra.mxu0 0.0
        %3166 = vmatprep.mubr.f32.mxu0 0.0
        %3167 = vmatmul.mubr.f32.gmra.mrb[0].mxu0 %v3100
        %v3168 = vpop.f32.mrb[0].mxu0
        %v3169 = vadd.f32 0.0, %v3168
        %v3170 = vpop.f32.mrb[0].mxu0
        %3171 = vdwg.mxu0
        %v3172 = vld [vmem:[#allocation4] sm:$0xff]
        %s3173 = scalar_lea.vmem %s3, 16
        %v3174 = vld [vmem:[%s3173] sm:$0xf]
        %v3176 = vsel %vm1693, %v3169, 0
        %v3179 = vsel %vm1861, %v3174, 0
        %3181 = vmatprep.subr.mxu0 0.0
        %3182 = vmatpush1.msra.mxu0 %v3179
        %3183 = vmatprep.subr.mxu0 0.0
        %3184 = vmatpush1.msra.mxu0 0.0
        %3185 = vmatprep.subr.mxu0 0.0
        %3186 = vmatpush1.msra.mxu0 0.0
        %3187 = vmatprep.subr.mxu0 0.0
        %3188 = vmatpush1.msra.mxu0 0.0
        %3189 = vmatprep.subr.mxu0 0.0
        %3190 = vmatpush1.msra.mxu0 0.0
        %3191 = vmatprep.subr.mxu0 0.0
        %3192 = vmatpush1.msra.mxu0 0.0
        %3193 = vmatprep.subr.mxu0 0.0
        %3194 = vmatpush1.msra.mxu0 0.0
        %3195 = vmatprep.subr.mxu0 0.0
        %3196 = vmatpush1.msra.mxu0 0.0
        %3197 = vmatprep.subr.mxu0 0.0
        %3198 = vmatpush1.msra.mxu0 0.0
        %3199 = vmatprep.subr.mxu0 0.0
        %3200 = vmatpush1.msra.mxu0 0.0
        %3201 = vmatprep.subr.mxu0 0.0
        %3202 = vmatpush1.msra.mxu0 0.0
        %3203 = vmatprep.subr.mxu0 0.0
        %3204 = vmatpush1.msra.mxu0 0.0
        %3205 = vmatprep.subr.mxu0 0.0
        %3206 = vmatpush1.msra.mxu0 0.0
        %3207 = vmatprep.subr.mxu0 0.0
        %3208 = vmatpush1.msra.mxu0 0.0
        %3209 = vmatprep.subr.mxu0 0.0
        %3210 = vmatpush1.msra.mxu0 0.0
        %3211 = vmatprep.subr.mxu0 0.0
        %3212 = vmatpush1.msra.mxu0 0.0
        %3213 = vmatprep.subr.mxu0 0.0
        %3214 = vmatpush1.msra.mxu0 0.0
        %3215 = vmatprep.subr.mxu0 0.0
        %3216 = vmatpush1.msra.mxu0 0.0
        %3217 = vmatprep.subr.mxu0 0.0
        %3218 = vmatpush1.msra.mxu0 0.0
        %3219 = vmatprep.subr.mxu0 0.0
        %3220 = vmatpush1.msra.mxu0 0.0
        %3221 = vmatprep.subr.mxu0 0.0
        %3222 = vmatpush1.msra.mxu0 0.0
        %3223 = vmatprep.subr.mxu0 0.0
        %3224 = vmatpush1.msra.mxu0 0.0
        %3225 = vmatprep.subr.mxu0 0.0
        %3226 = vmatpush1.msra.mxu0 0.0
        %3227 = vmatprep.subr.mxu0 0.0
        %3228 = vmatpush1.msra.mxu0 0.0
        %3229 = vmatprep.subr.mxu0 0.0
        %3230 = vmatpush1.msra.mxu0 0.0
        %3231 = vmatprep.subr.mxu0 0.0
        %3232 = vmatpush1.msra.mxu0 0.0
        %3233 = vmatprep.subr.mxu0 0.0
        %3234 = vmatpush1.msra.mxu0 0.0
        %3235 = vmatprep.subr.mxu0 0.0
        %3236 = vmatpush1.msra.mxu0 0.0
        %3237 = vmatprep.subr.mxu0 0.0
        %3238 = vmatpush1.msra.mxu0 0.0
        %3239 = vmatprep.subr.mxu0 0.0
        %3240 = vmatpush1.msra.mxu0 0.0
        %3241 = vmatprep.subr.mxu0 0.0
        %3242 = vmatpush1.msra.mxu0 0.0
        %3243 = vmatprep.subr.mxu0 0.0
        %3244 = vmatpush1.msra.mxu0 0.0
        %3245 = vmatprep.mubr.f32.mxu0 0.0
        %3246 = vmatmul.mubr.f32.gmra.mrb[0].mxu0 %v3176
        %v3247 = vpop.f32.mrb[0].mxu0
        %v3248 = vadd.f32 0.0, %v3247
        %v3249 = vpop.f32.mrb[0].mxu0
        %3250 = vdwg.mxu0
        %v3251 = vadd.f32 %v3172, %v3248
        %3252 = vst.msk [vmem:[#allocation4] sm:$0xff] %vm1605, %v3251
        %s3253 = scalar_lea.vmem %s1, 160
        %v3254 = vld [vmem:[%s3253] sm:$0xff]
        %v3255 = vld [vmem:[%s3253 + $0x8] sm:$0xff]
        %v3256 = vld [vmem:[%s3253 + $0x10] sm:$0xff]
        %v3257 = vld [vmem:[%s3253 + $0x18] sm:$0xff]
        %s3258 = scalar_lea.vmem %s2, 5
        %v3259 = vld [vmem:[%s3258] sm:$0x1]
        %v3261 = vlaneseq
        %v3262 = vshrl.u32 %v3261, 7
        %v3263 = vsub.s32 0, %v3262
        %v3264 = vrot.slane %v3259, %v3263
        %3266 = vmatprep.subr.mxu0 0.0
        %3267 = vmatpush1.msra.mxu0 %v3254
        %3268 = vmatprep.subr.mxu0 0.0
        %3269 = vmatpush1.msra.mxu0 %v3255
        %3270 = vmatprep.subr.mxu0 0.0
        %3271 = vmatpush1.msra.mxu0 %v3256
        %3272 = vmatprep.subr.mxu0 0.0
        %3273 = vmatpush1.msra.mxu0 %v3257
        %3274 = vmatprep.subr.mxu0 0.0
        %3275 = vmatpush1.msra.mxu0 0.0
        %3276 = vmatprep.subr.mxu0 0.0
        %3277 = vmatpush1.msra.mxu0 0.0
        %3278 = vmatprep.subr.mxu0 0.0
        %3279 = vmatpush1.msra.mxu0 0.0
        %3280 = vmatprep.subr.mxu0 0.0
        %3281 = vmatpush1.msra.mxu0 0.0
        %3282 = vmatprep.subr.mxu0 0.0
        %3283 = vmatpush1.msra.mxu0 0.0
        %3284 = vmatprep.subr.mxu0 0.0
        %3285 = vmatpush1.msra.mxu0 0.0
        %3286 = vmatprep.subr.mxu0 0.0
        %3287 = vmatpush1.msra.mxu0 0.0
        %3288 = vmatprep.subr.mxu0 0.0
        %3289 = vmatpush1.msra.mxu0 0.0
        %3290 = vmatprep.subr.mxu0 0.0
        %3291 = vmatpush1.msra.mxu0 0.0
        %3292 = vmatprep.subr.mxu0 0.0
        %3293 = vmatpush1.msra.mxu0 0.0
        %3294 = vmatprep.subr.mxu0 0.0
        %3295 = vmatpush1.msra.mxu0 0.0
        %3296 = vmatprep.subr.mxu0 0.0
        %3297 = vmatpush1.msra.mxu0 0.0
        %3298 = vmatprep.subr.mxu0 0.0
        %3299 = vmatpush1.msra.mxu0 0.0
        %3300 = vmatprep.subr.mxu0 0.0
        %3301 = vmatpush1.msra.mxu0 0.0
        %3302 = vmatprep.subr.mxu0 0.0
        %3303 = vmatpush1.msra.mxu0 0.0
        %3304 = vmatprep.subr.mxu0 0.0
        %3305 = vmatpush1.msra.mxu0 0.0
        %3306 = vmatprep.subr.mxu0 0.0
        %3307 = vmatpush1.msra.mxu0 0.0
        %3308 = vmatprep.subr.mxu0 0.0
        %3309 = vmatpush1.msra.mxu0 0.0
        %3310 = vmatprep.subr.mxu0 0.0
        %3311 = vmatpush1.msra.mxu0 0.0
        %3312 = vmatprep.subr.mxu0 0.0
        %3313 = vmatpush1.msra.mxu0 0.0
        %3314 = vmatprep.subr.mxu0 0.0
        %3315 = vmatpush1.msra.mxu0 0.0
        %3316 = vmatprep.subr.mxu0 0.0
        %3317 = vmatpush1.msra.mxu0 0.0
        %3318 = vmatprep.subr.mxu0 0.0
        %3319 = vmatpush1.msra.mxu0 0.0
        %3320 = vmatprep.subr.mxu0 0.0
        %3321 = vmatpush1.msra.mxu0 0.0
        %3322 = vmatprep.subr.mxu0 0.0
        %3323 = vmatpush1.msra.mxu0 0.0
        %3324 = vmatprep.subr.mxu0 0.0
        %3325 = vmatpush1.msra.mxu0 0.0
        %3326 = vmatprep.subr.mxu0 0.0
        %3327 = vmatpush1.msra.mxu0 0.0
        %3328 = vmatprep.subr.mxu0 0.0
        %3329 = vmatpush1.msra.mxu0 0.0
        %3330 = vmatprep.mubr.f32.mxu0 0.0
        %3331 = vmatmul.mubr.f32.gmra.mrb[0].mxu0 %v1619
        %v3332 = vpop.f32.mrb[0].mxu0
        %v3333 = vadd.f32 %v3264, %v3332
        %v3334 = vpop.f32.mrb[0].mxu0
        %3335 = vdwg.mxu0
        %s3336 = scalar_lea.vmem [#allocation2], 40
        %v3337 = vld [vmem:[%s3336] sm:$0xff]
        %s3338 = scalar_lea.vmem [#allocation3], 40
        %v3339 = vld [vmem:[%s3338] sm:$0xff]
        %v3341 = vsel %vm1693, %v3333, 0
        %v3344 = vsel %vm1693, %v3337, 0
        %3346 = vmatprep.subr.mxu0 0.0
        %3347 = vmatpush1.xpose.msra.mxu0 %v3344
        %3348 = vmatprep.subr.mxu0 0.0
        %3349 = vmatpush1.xpose.msra.mxu0 0.0
        %3350 = vmatprep.subr.mxu0 0.0
        %3351 = vmatpush1.xpose.msra.mxu0 0.0
        %3352 = vmatprep.subr.mxu0 0.0
        %3353 = vmatpush1.xpose.msra.mxu0 0.0
        %3354 = vmatprep.subr.mxu0 0.0
        %3355 = vmatpush1.xpose.msra.mxu0 0.0
        %3356 = vmatprep.subr.mxu0 0.0
        %3357 = vmatpush1.xpose.msra.mxu0 0.0
        %3358 = vmatprep.subr.mxu0 0.0
        %3359 = vmatpush1.xpose.msra.mxu0 0.0
        %3360 = vmatprep.subr.mxu0 0.0
        %3361 = vmatpush1.xpose.msra.mxu0 0.0
        %3362 = vmatprep.subr.mxu0 0.0
        %3363 = vmatpush1.xpose.msra.mxu0 0.0
        %3364 = vmatprep.subr.mxu0 0.0
        %3365 = vmatpush1.xpose.msra.mxu0 0.0
        %3366 = vmatprep.subr.mxu0 0.0
        %3367 = vmatpush1.xpose.msra.mxu0 0.0
        %3368 = vmatprep.subr.mxu0 0.0
        %3369 = vmatpush1.xpose.msra.mxu0 0.0
        %3370 = vmatprep.subr.mxu0 0.0
        %3371 = vmatpush1.xpose.msra.mxu0 0.0
        %3372 = vmatprep.subr.mxu0 0.0
        %3373 = vmatpush1.xpose.msra.mxu0 0.0
        %3374 = vmatprep.subr.mxu0 0.0
        %3375 = vmatpush1.xpose.msra.mxu0 0.0
        %3376 = vmatprep.subr.mxu0 0.0
        %3377 = vmatpush1.xpose.msra.mxu0 0.0
        %3378 = vmatprep.subr.mxu0 0.0
        %3379 = vmatpush1.xpose.msra.mxu0 0.0
        %3380 = vmatprep.subr.mxu0 0.0
        %3381 = vmatpush1.xpose.msra.mxu0 0.0
        %3382 = vmatprep.subr.mxu0 0.0
        %3383 = vmatpush1.xpose.msra.mxu0 0.0
        %3384 = vmatprep.subr.mxu0 0.0
        %3385 = vmatpush1.xpose.msra.mxu0 0.0
        %3386 = vmatprep.subr.mxu0 0.0
        %3387 = vmatpush1.xpose.msra.mxu0 0.0
        %3388 = vmatprep.subr.mxu0 0.0
        %3389 = vmatpush1.xpose.msra.mxu0 0.0
        %3390 = vmatprep.subr.mxu0 0.0
        %3391 = vmatpush1.xpose.msra.mxu0 0.0
        %3392 = vmatprep.subr.mxu0 0.0
        %3393 = vmatpush1.xpose.msra.mxu0 0.0
        %3394 = vmatprep.subr.mxu0 0.0
        %3395 = vmatpush1.xpose.msra.mxu0 0.0
        %3396 = vmatprep.subr.mxu0 0.0
        %3397 = vmatpush1.xpose.msra.mxu0 0.0
        %3398 = vmatprep.subr.mxu0 0.0
        %3399 = vmatpush1.xpose.msra.mxu0 0.0
        %3400 = vmatprep.subr.mxu0 0.0
        %3401 = vmatpush1.xpose.msra.mxu0 0.0
        %3402 = vmatprep.subr.mxu0 0.0
        %3403 = vmatpush1.xpose.msra.mxu0 0.0
        %3404 = vmatprep.subr.mxu0 0.0
        %3405 = vmatpush1.xpose.msra.mxu0 0.0
        %3406 = vmatprep.subr.mxu0 0.0
        %3407 = vmatpush1.xpose.msra.mxu0 0.0
        %3408 = vmatprep.subr.mxu0 0.0
        %3409 = vmatpush1.xpose.msra.mxu0 0.0
        %3410 = vmatprep.mubr.f32.mxu0 0.0
        %3411 = vmatmul.mubr.f32.gmra.mrb[0].mxu0 %v3341
        %v3412 = vpop.f32.mrb[0].mxu0
        %v3413 = vadd.f32 0.0, %v3412
        %v3414 = vpop.f32.mrb[0].mxu0
        %3415 = vdwg.mxu0
        %v3416 = vsel %vm1770, %v3413, -inf
        %3417 = vmax.xlane.f32.xlu0 %v3416
        %v3418 = vpop.xlane.xlu0 %3417
        %v3419 = vsub.f32 %v3413, %v3418
        %v3420 = vmul.f32 %v3419, 1.442695
        %v3421 = vpow.pop %v3420
        %v3422 = vsel %vm1770, %v3421, 0.0
        %3423 = vadd.xlane.f32.xlu0 %v3422
        %v3424 = vpop.xlane.xlu0 %3423
        %v3425 = vrcp.pop %v3424
        %v3426 = vmul.f32 %v3425, 0.17677669
        %v3427 = vmul.f32 %v3421, %v3426
        %v3429 = vsel %vm1770, %v3427, 0
        %3431 = vmatprep.subr.mxu0 0.0
        %3432 = vmatpush1.msra.mxu0 %v3339
        %3433 = vmatprep.subr.mxu0 0.0
        %3434 = vmatpush1.msra.mxu0 0.0
        %3435 = vmatprep.subr.mxu0 0.0
        %3436 = vmatpush1.msra.mxu0 0.0
        %3437 = vmatprep.subr.mxu0 0.0
        %3438 = vmatpush1.msra.mxu0 0.0
        %3439 = vmatprep.subr.mxu0 0.0
        %3440 = vmatpush1.msra.mxu0 0.0
        %3441 = vmatprep.subr.mxu0 0.0
        %3442 = vmatpush1.msra.mxu0 0.0
        %3443 = vmatprep.subr.mxu0 0.0
        %3444 = vmatpush1.msra.mxu0 0.0
        %3445 = vmatprep.subr.mxu0 0.0
        %3446 = vmatpush1.msra.mxu0 0.0
        %3447 = vmatprep.subr.mxu0 0.0
        %3448 = vmatpush1.msra.mxu0 0.0
        %3449 = vmatprep.subr.mxu0 0.0
        %3450 = vmatpush1.msra.mxu0 0.0
        %3451 = vmatprep.subr.mxu0 0.0
        %3452 = vmatpush1.msra.mxu0 0.0
        %3453 = vmatprep.subr.mxu0 0.0
        %3454 = vmatpush1.msra.mxu0 0.0
        %3455 = vmatprep.subr.mxu0 0.0
        %3456 = vmatpush1.msra.mxu0 0.0
        %3457 = vmatprep.subr.mxu0 0.0
        %3458 = vmatpush1.msra.mxu0 0.0
        %3459 = vmatprep.subr.mxu0 0.0
        %3460 = vmatpush1.msra.mxu0 0.0
        %3461 = vmatprep.subr.mxu0 0.0
        %3462 = vmatpush1.msra.mxu0 0.0
        %3463 = vmatprep.subr.mxu0 0.0
        %3464 = vmatpush1.msra.mxu0 0.0
        %3465 = vmatprep.subr.mxu0 0.0
        %3466 = vmatpush1.msra.mxu0 0.0
        %3467 = vmatprep.subr.mxu0 0.0
        %3468 = vmatpush1.msra.mxu0 0.0
        %3469 = vmatprep.subr.mxu0 0.0
        %3470 = vmatpush1.msra.mxu0 0.0
        %3471 = vmatprep.subr.mxu0 0.0
        %3472 = vmatpush1.msra.mxu0 0.0
        %3473 = vmatprep.subr.mxu0 0.0
        %3474 = vmatpush1.msra.mxu0 0.0
        %3475 = vmatprep.subr.mxu0 0.0
        %3476 = vmatpush1.msra.mxu0 0.0
        %3477 = vmatprep.subr.mxu0 0.0
        %3478 = vmatpush1.msra.mxu0 0.0
        %3479 = vmatprep.subr.mxu0 0.0
        %3480 = vmatpush1.msra.mxu0 0.0
        %3481 = vmatprep.subr.mxu0 0.0
        %3482 = vmatpush1.msra.mxu0 0.0
        %3483 = vmatprep.subr.mxu0 0.0
        %3484 = vmatpush1.msra.mxu0 0.0
        %3485 = vmatprep.subr.mxu0 0.0
        %3486 = vmatpush1.msra.mxu0 0.0
        %3487 = vmatprep.subr.mxu0 0.0
        %3488 = vmatpush1.msra.mxu0 0.0
        %3489 = vmatprep.subr.mxu0 0.0
        %3490 = vmatpush1.msra.mxu0 0.0
        %3491 = vmatprep.subr.mxu0 0.0
        %3492 = vmatpush1.msra.mxu0 0.0
        %3493 = vmatprep.subr.mxu0 0.0
        %3494 = vmatpush1.msra.mxu0 0.0
        %3495 = vmatprep.mubr.f32.mxu0 0.0
        %3496 = vmatmul.mubr.f32.gmra.mrb[0].mxu0 %v3429
        %v3497 = vpop.f32.mrb[0].mxu0
        %v3498 = vadd.f32 0.0, %v3497
        %v3499 = vpop.f32.mrb[0].mxu0
        %3500 = vdwg.mxu0
        %v3501 = vld [vmem:[#allocation4] sm:$0xff]
        %s3502 = scalar_lea.vmem %s3, 20
        %v3503 = vld [vmem:[%s3502] sm:$0xf]
        %v3505 = vsel %vm1693, %v3498, 0
        %v3508 = vsel %vm1861, %v3503, 0
        %3510 = vmatprep.subr.mxu0 0.0
        %3511 = vmatpush1.msra.mxu0 %v3508
        %3512 = vmatprep.subr.mxu0 0.0
        %3513 = vmatpush1.msra.mxu0 0.0
        %3514 = vmatprep.subr.mxu0 0.0
        %3515 = vmatpush1.msra.mxu0 0.0
        %3516 = vmatprep.subr.mxu0 0.0
        %3517 = vmatpush1.msra.mxu0 0.0
        %3518 = vmatprep.subr.mxu0 0.0
        %3519 = vmatpush1.msra.mxu0 0.0
        %3520 = vmatprep.subr.mxu0 0.0
        %3521 = vmatpush1.msra.mxu0 0.0
        %3522 = vmatprep.subr.mxu0 0.0
        %3523 = vmatpush1.msra.mxu0 0.0
        %3524 = vmatprep.subr.mxu0 0.0
        %3525 = vmatpush1.msra.mxu0 0.0
        %3526 = vmatprep.subr.mxu0 0.0
        %3527 = vmatpush1.msra.mxu0 0.0
        %3528 = vmatprep.subr.mxu0 0.0
        %3529 = vmatpush1.msra.mxu0 0.0
        %3530 = vmatprep.subr.mxu0 0.0
        %3531 = vmatpush1.msra.mxu0 0.0
        %3532 = vmatprep.subr.mxu0 0.0
        %3533 = vmatpush1.msra.mxu0 0.0
        %3534 = vmatprep.subr.mxu0 0.0
        %3535 = vmatpush1.msra.mxu0 0.0
        %3536 = vmatprep.subr.mxu0 0.0
        %3537 = vmatpush1.msra.mxu0 0.0
        %3538 = vmatprep.subr.mxu0 0.0
        %3539 = vmatpush1.msra.mxu0 0.0
        %3540 = vmatprep.subr.mxu0 0.0
        %3541 = vmatpush1.msra.mxu0 0.0
        %3542 = vmatprep.subr.mxu0 0.0
        %3543 = vmatpush1.msra.mxu0 0.0
        %3544 = vmatprep.subr.mxu0 0.0
        %3545 = vmatpush1.msra.mxu0 0.0
        %3546 = vmatprep.subr.mxu0 0.0
        %3547 = vmatpush1.msra.mxu0 0.0
        %3548 = vmatprep.subr.mxu0 0.0
        %3549 = vmatpush1.msra.mxu0 0.0
        %3550 = vmatprep.subr.mxu0 0.0
        %3551 = vmatpush1.msra.mxu0 0.0
        %3552 = vmatprep.subr.mxu0 0.0
        %3553 = vmatpush1.msra.mxu0 0.0
        %3554 = vmatprep.subr.mxu0 0.0
        %3555 = vmatpush1.msra.mxu0 0.0
        %3556 = vmatprep.subr.mxu0 0.0
        %3557 = vmatpush1.msra.mxu0 0.0
        %3558 = vmatprep.subr.mxu0 0.0
        %3559 = vmatpush1.msra.mxu0 0.0
        %3560 = vmatprep.subr.mxu0 0.0
        %3561 = vmatpush1.msra.mxu0 0.0
        %3562 = vmatprep.subr.mxu0 0.0
        %3563 = vmatpush1.msra.mxu0 0.0
        %3564 = vmatprep.subr.mxu0 0.0
        %3565 = vmatpush1.msra.mxu0 0.0
        %3566 = vmatprep.subr.mxu0 0.0
        %3567 = vmatpush1.msra.mxu0 0.0
        %3568 = vmatprep.subr.mxu0 0.0
        %3569 = vmatpush1.msra.mxu0 0.0
        %3570 = vmatprep.subr.mxu0 0.0
        %3571 = vmatpush1.msra.mxu0 0.0
        %3572 = vmatprep.subr.mxu0 0.0
        %3573 = vmatpush1.msra.mxu0 0.0
        %3574 = vmatprep.mubr.f32.mxu0 0.0
        %3575 = vmatmul.mubr.f32.gmra.mrb[0].mxu0 %v3505
        %v3576 = vpop.f32.mrb[0].mxu0
        %v3577 = vadd.f32 0.0, %v3576
        %v3578 = vpop.f32.mrb[0].mxu0
        %3579 = vdwg.mxu0
        %v3580 = vadd.f32 %v3501, %v3577
        %3581 = vst.msk [vmem:[#allocation4] sm:$0xff] %vm1605, %v3580
        %s3582 = scalar_lea.vmem %s1, 192
        %v3583 = vld [vmem:[%s3582] sm:$0xff]
        %v3584 = vld [vmem:[%s3582 + $0x8] sm:$0xff]
        %v3585 = vld [vmem:[%s3582 + $0x10] sm:$0xff]
        %v3586 = vld [vmem:[%s3582 + $0x18] sm:$0xff]
        %s3587 = scalar_lea.vmem %s2, 6
        %v3588 = vld [vmem:[%s3587] sm:$0x1]
        %v3590 = vlaneseq
        %v3591 = vshrl.u32 %v3590, 7
        %v3592 = vsub.s32 0, %v3591
        %v3593 = vrot.slane %v3588, %v3592
        %3595 = vmatprep.subr.mxu0 0.0
        %3596 = vmatpush1.msra.mxu0 %v3583
        %3597 = vmatprep.subr.mxu0 0.0
        %3598 = vmatpush1.msra.mxu0 %v3584
        %3599 = vmatprep.subr.mxu0 0.0
        %3600 = vmatpush1.msra.mxu0 %v3585
        %3601 = vmatprep.subr.mxu0 0.0
        %3602 = vmatpush1.msra.mxu0 %v3586
        %3603 = vmatprep.subr.mxu0 0.0
        %3604 = vmatpush1.msra.mxu0 0.0
        %3605 = vmatprep.subr.mxu0 0.0
        %3606 = vmatpush1.msra.mxu0 0.0
        %3607 = vmatprep.subr.mxu0 0.0
        %3608 = vmatpush1.msra.mxu0 0.0
        %3609 = vmatprep.subr.mxu0 0.0
        %3610 = vmatpush1.msra.mxu0 0.0
        %3611 = vmatprep.subr.mxu0 0.0
        %3612 = vmatpush1.msra.mxu0 0.0
        %3613 = vmatprep.subr.mxu0 0.0
        %3614 = vmatpush1.msra.mxu0 0.0
        %3615 = vmatprep.subr.mxu0 0.0
        %3616 = vmatpush1.msra.mxu0 0.0
        %3617 = vmatprep.subr.mxu0 0.0
        %3618 = vmatpush1.msra.mxu0 0.0
        %3619 = vmatprep.subr.mxu0 0.0
        %3620 = vmatpush1.msra.mxu0 0.0
        %3621 = vmatprep.subr.mxu0 0.0
        %3622 = vmatpush1.msra.mxu0 0.0
        %3623 = vmatprep.subr.mxu0 0.0
        %3624 = vmatpush1.msra.mxu0 0.0
        %3625 = vmatprep.subr.mxu0 0.0
        %3626 = vmatpush1.msra.mxu0 0.0
        %3627 = vmatprep.subr.mxu0 0.0
        %3628 = vmatpush1.msra.mxu0 0.0
        %3629 = vmatprep.subr.mxu0 0.0
        %3630 = vmatpush1.msra.mxu0 0.0
        %3631 = vmatprep.subr.mxu0 0.0
        %3632 = vmatpush1.msra.mxu0 0.0
        %3633 = vmatprep.subr.mxu0 0.0
        %3634 = vmatpush1.msra.mxu0 0.0
        %3635 = vmatprep.subr.mxu0 0.0
        %3636 = vmatpush1.msra.mxu0 0.0
        %3637 = vmatprep.subr.mxu0 0.0
        %3638 = vmatpush1.msra.mxu0 0.0
        %3639 = vmatprep.subr.mxu0 0.0
        %3640 = vmatpush1.msra.mxu0 0.0
        %3641 = vmatprep.subr.mxu0 0.0
        %3642 = vmatpush1.msra.mxu0 0.0
        %3643 = vmatprep.subr.mxu0 0.0
        %3644 = vmatpush1.msra.mxu0 0.0
        %3645 = vmatprep.subr.mxu0 0.0
        %3646 = vmatpush1.msra.mxu0 0.0
        %3647 = vmatprep.subr.mxu0 0.0
        %3648 = vmatpush1.msra.mxu0 0.0
        %3649 = vmatprep.subr.mxu0 0.0
        %3650 = vmatpush1.msra.mxu0 0.0
        %3651 = vmatprep.subr.mxu0 0.0
        %3652 = vmatpush1.msra.mxu0 0.0
        %3653 = vmatprep.subr.mxu0 0.0
        %3654 = vmatpush1.msra.mxu0 0.0
        %3655 = vmatprep.subr.mxu0 0.0
        %3656 = vmatpush1.msra.mxu0 0.0
        %3657 = vmatprep.subr.mxu0 0.0
        %3658 = vmatpush1.msra.mxu0 0.0
        %3659 = vmatprep.mubr.f32.mxu0 0.0
        %3660 = vmatmul.mubr.f32.gmra.mrb[0].mxu0 %v1619
        %v3661 = vpop.f32.mrb[0].mxu0
        %v3662 = vadd.f32 %v3593, %v3661
        %v3663 = vpop.f32.mrb[0].mxu0
        %3664 = vdwg.mxu0
        %s3665 = scalar_lea.vmem [#allocation2], 48
        %v3666 = vld [vmem:[%s3665] sm:$0xff]
        %s3667 = scalar_lea.vmem [#allocation3], 48
        %v3668 = vld [vmem:[%s3667] sm:$0xff]
        %v3670 = vsel %vm1693, %v3662, 0
        %v3673 = vsel %vm1693, %v3666, 0
        %3675 = vmatprep.subr.mxu0 0.0
        %3676 = vmatpush1.xpose.msra.mxu0 %v3673
        %3677 = vmatprep.subr.mxu0 0.0
        %3678 = vmatpush1.xpose.msra.mxu0 0.0
        %3679 = vmatprep.subr.mxu0 0.0
        %3680 = vmatpush1.xpose.msra.mxu0 0.0
        %3681 = vmatprep.subr.mxu0 0.0
        %3682 = vmatpush1.xpose.msra.mxu0 0.0
        %3683 = vmatprep.subr.mxu0 0.0
        %3684 = vmatpush1.xpose.msra.mxu0 0.0
        %3685 = vmatprep.subr.mxu0 0.0
        %3686 = vmatpush1.xpose.msra.mxu0 0.0
        %3687 = vmatprep.subr.mxu0 0.0
        %3688 = vmatpush1.xpose.msra.mxu0 0.0
        %3689 = vmatprep.subr.mxu0 0.0
        %3690 = vmatpush1.xpose.msra.mxu0 0.0
        %3691 = vmatprep.subr.mxu0 0.0
        %3692 = vmatpush1.xpose.msra.mxu0 0.0
        %3693 = vmatprep.subr.mxu0 0.0
        %3694 = vmatpush1.xpose.msra.mxu0 0.0
        %3695 = vmatprep.subr.mxu0 0.0
        %3696 = vmatpush1.xpose.msra.mxu0 0.0
        %3697 = vmatprep.subr.mxu0 0.0
        %3698 = vmatpush1.xpose.msra.mxu0 0.0
        %3699 = vmatprep.subr.mxu0 0.0
        %3700 = vmatpush1.xpose.msra.mxu0 0.0
        %3701 = vmatprep.subr.mxu0 0.0
        %3702 = vmatpush1.xpose.msra.mxu0 0.0
        %3703 = vmatprep.subr.mxu0 0.0
        %3704 = vmatpush1.xpose.msra.mxu0 0.0
        %3705 = vmatprep.subr.mxu0 0.0
        %3706 = vmatpush1.xpose.msra.mxu0 0.0
        %3707 = vmatprep.subr.mxu0 0.0
        %3708 = vmatpush1.xpose.msra.mxu0 0.0
        %3709 = vmatprep.subr.mxu0 0.0
        %3710 = vmatpush1.xpose.msra.mxu0 0.0
        %3711 = vmatprep.subr.mxu0 0.0
        %3712 = vmatpush1.xpose.msra.mxu0 0.0
        %3713 = vmatprep.subr.mxu0 0.0
        %3714 = vmatpush1.xpose.msra.mxu0 0.0
        %3715 = vmatprep.subr.mxu0 0.0
        %3716 = vmatpush1.xpose.msra.mxu0 0.0
        %3717 = vmatprep.subr.mxu0 0.0
        %3718 = vmatpush1.xpose.msra.mxu0 0.0
        %3719 = vmatprep.subr.mxu0 0.0
        %3720 = vmatpush1.xpose.msra.mxu0 0.0
        %3721 = vmatprep.subr.mxu0 0.0
        %3722 = vmatpush1.xpose.msra.mxu0 0.0
        %3723 = vmatprep.subr.mxu0 0.0
        %3724 = vmatpush1.xpose.msra.mxu0 0.0
        %3725 = vmatprep.subr.mxu0 0.0
        %3726 = vmatpush1.xpose.msra.mxu0 0.0
        %3727 = vmatprep.subr.mxu0 0.0
        %3728 = vmatpush1.xpose.msra.mxu0 0.0
        %3729 = vmatprep.subr.mxu0 0.0
        %3730 = vmatpush1.xpose.msra.mxu0 0.0
        %3731 = vmatprep.subr.mxu0 0.0
        %3732 = vmatpush1.xpose.msra.mxu0 0.0
        %3733 = vmatprep.subr.mxu0 0.0
        %3734 = vmatpush1.xpose.msra.mxu0 0.0
        %3735 = vmatprep.subr.mxu0 0.0
        %3736 = vmatpush1.xpose.msra.mxu0 0.0
        %3737 = vmatprep.subr.mxu0 0.0
        %3738 = vmatpush1.xpose.msra.mxu0 0.0
        %3739 = vmatprep.mubr.f32.mxu0 0.0
        %3740 = vmatmul.mubr.f32.gmra.mrb[0].mxu0 %v3670
        %v3741 = vpop.f32.mrb[0].mxu0
        %v3742 = vadd.f32 0.0, %v3741
        %v3743 = vpop.f32.mrb[0].mxu0
        %3744 = vdwg.mxu0
        %v3745 = vsel %vm1770, %v3742, -inf
        %3746 = vmax.xlane.f32.xlu0 %v3745
        %v3747 = vpop.xlane.xlu0 %3746
        %v3748 = vsub.f32 %v3742, %v3747
        %v3749 = vmul.f32 %v3748, 1.442695
        %v3750 = vpow.pop %v3749
        %v3751 = vsel %vm1770, %v3750, 0.0
        %3752 = vadd.xlane.f32.xlu0 %v3751
        %v3753 = vpop.xlane.xlu0 %3752
        %v3754 = vrcp.pop %v3753
        %v3755 = vmul.f32 %v3754, 0.17677669
        %v3756 = vmul.f32 %v3750, %v3755
        %v3758 = vsel %vm1770, %v3756, 0
        %3760 = vmatprep.subr.mxu0 0.0
        %3761 = vmatpush1.msra.mxu0 %v3668
        %3762 = vmatprep.subr.mxu0 0.0
        %3763 = vmatpush1.msra.mxu0 0.0
        %3764 = vmatprep.subr.mxu0 0.0
        %3765 = vmatpush1.msra.mxu0 0.0
        %3766 = vmatprep.subr.mxu0 0.0
        %3767 = vmatpush1.msra.mxu0 0.0
        %3768 = vmatprep.subr.mxu0 0.0
        %3769 = vmatpush1.msra.mxu0 0.0
        %3770 = vmatprep.subr.mxu0 0.0
        %3771 = vmatpush1.msra.mxu0 0.0
        %3772 = vmatprep.subr.mxu0 0.0
        %3773 = vmatpush1.msra.mxu0 0.0
        %3774 = vmatprep.subr.mxu0 0.0
        %3775 = vmatpush1.msra.mxu0 0.0
        %3776 = vmatprep.subr.mxu0 0.0
        %3777 = vmatpush1.msra.mxu0 0.0
        %3778 = vmatprep.subr.mxu0 0.0
        %3779 = vmatpush1.msra.mxu0 0.0
        %3780 = vmatprep.subr.mxu0 0.0
        %3781 = vmatpush1.msra.mxu0 0.0
        %3782 = vmatprep.subr.mxu0 0.0
        %3783 = vmatpush1.msra.mxu0 0.0
        %3784 = vmatprep.subr.mxu0 0.0
        %3785 = vmatpush1.msra.mxu0 0.0
        %3786 = vmatprep.subr.mxu0 0.0
        %3787 = vmatpush1.msra.mxu0 0.0
        %3788 = vmatprep.subr.mxu0 0.0
        %3789 = vmatpush1.msra.mxu0 0.0
        %3790 = vmatprep.subr.mxu0 0.0
        %3791 = vmatpush1.msra.mxu0 0.0
        %3792 = vmatprep.subr.mxu0 0.0
        %3793 = vmatpush1.msra.mxu0 0.0
        %3794 = vmatprep.subr.mxu0 0.0
        %3795 = vmatpush1.msra.mxu0 0.0
        %3796 = vmatprep.subr.mxu0 0.0
        %3797 = vmatpush1.msra.mxu0 0.0
        %3798 = vmatprep.subr.mxu0 0.0
        %3799 = vmatpush1.msra.mxu0 0.0
        %3800 = vmatprep.subr.mxu0 0.0
        %3801 = vmatpush1.msra.mxu0 0.0
        %3802 = vmatprep.subr.mxu0 0.0
        %3803 = vmatpush1.msra.mxu0 0.0
        %3804 = vmatprep.subr.mxu0 0.0
        %3805 = vmatpush1.msra.mxu0 0.0
        %3806 = vmatprep.subr.mxu0 0.0
        %3807 = vmatpush1.msra.mxu0 0.0
        %3808 = vmatprep.subr.mxu0 0.0
        %3809 = vmatpush1.msra.mxu0 0.0
        %3810 = vmatprep.subr.mxu0 0.0
        %3811 = vmatpush1.msra.mxu0 0.0
        %3812 = vmatprep.subr.mxu0 0.0
        %3813 = vmatpush1.msra.mxu0 0.0
        %3814 = vmatprep.subr.mxu0 0.0
        %3815 = vmatpush1.msra.mxu0 0.0
        %3816 = vmatprep.subr.mxu0 0.0
        %3817 = vmatpush1.msra.mxu0 0.0
        %3818 = vmatprep.subr.mxu0 0.0
        %3819 = vmatpush1.msra.mxu0 0.0
        %3820 = vmatprep.subr.mxu0 0.0
        %3821 = vmatpush1.msra.mxu0 0.0
        %3822 = vmatprep.subr.mxu0 0.0
        %3823 = vmatpush1.msra.mxu0 0.0
        %3824 = vmatprep.mubr.f32.mxu0 0.0
        %3825 = vmatmul.mubr.f32.gmra.mrb[0].mxu0 %v3758
        %v3826 = vpop.f32.mrb[0].mxu0
        %v3827 = vadd.f32 0.0, %v3826
        %v3828 = vpop.f32.mrb[0].mxu0
        %3829 = vdwg.mxu0
        %v3830 = vld [vmem:[#allocation4] sm:$0xff]
        %s3831 = scalar_lea.vmem %s3, 24
        %v3832 = vld [vmem:[%s3831] sm:$0xf]
        %v3834 = vsel %vm1693, %v3827, 0
        %v3837 = vsel %vm1861, %v3832, 0
        %3839 = vmatprep.subr.mxu0 0.0
        %3840 = vmatpush1.msra.mxu0 %v3837
        %3841 = vmatprep.subr.mxu0 0.0
        %3842 = vmatpush1.msra.mxu0 0.0
        %3843 = vmatprep.subr.mxu0 0.0
        %3844 = vmatpush1.msra.mxu0 0.0
        %3845 = vmatprep.subr.mxu0 0.0
        %3846 = vmatpush1.msra.mxu0 0.0
        %3847 = vmatprep.subr.mxu0 0.0
        %3848 = vmatpush1.msra.mxu0 0.0
        %3849 = vmatprep.subr.mxu0 0.0
        %3850 = vmatpush1.msra.mxu0 0.0
        %3851 = vmatprep.subr.mxu0 0.0
        %3852 = vmatpush1.msra.mxu0 0.0
        %3853 = vmatprep.subr.mxu0 0.0
        %3854 = vmatpush1.msra.mxu0 0.0
        %3855 = vmatprep.subr.mxu0 0.0
        %3856 = vmatpush1.msra.mxu0 0.0
        %3857 = vmatprep.subr.mxu0 0.0
        %3858 = vmatpush1.msra.mxu0 0.0
        %3859 = vmatprep.subr.mxu0 0.0
        %3860 = vmatpush1.msra.mxu0 0.0
        %3861 = vmatprep.subr.mxu0 0.0
        %3862 = vmatpush1.msra.mxu0 0.0
        %3863 = vmatprep.subr.mxu0 0.0
        %3864 = vmatpush1.msra.mxu0 0.0
        %3865 = vmatprep.subr.mxu0 0.0
        %3866 = vmatpush1.msra.mxu0 0.0
        %3867 = vmatprep.subr.mxu0 0.0
        %3868 = vmatpush1.msra.mxu0 0.0
        %3869 = vmatprep.subr.mxu0 0.0
        %3870 = vmatpush1.msra.mxu0 0.0
        %3871 = vmatprep.subr.mxu0 0.0
        %3872 = vmatpush1.msra.mxu0 0.0
        %3873 = vmatprep.subr.mxu0 0.0
        %3874 = vmatpush1.msra.mxu0 0.0
        %3875 = vmatprep.subr.mxu0 0.0
        %3876 = vmatpush1.msra.mxu0 0.0
        %3877 = vmatprep.subr.mxu0 0.0
        %3878 = vmatpush1.msra.mxu0 0.0
        %3879 = vmatprep.subr.mxu0 0.0
        %3880 = vmatpush1.msra.mxu0 0.0
        %3881 = vmatprep.subr.mxu0 0.0
        %3882 = vmatpush1.msra.mxu0 0.0
        %3883 = vmatprep.subr.mxu0 0.0
        %3884 = vmatpush1.msra.mxu0 0.0
        %3885 = vmatprep.subr.mxu0 0.0
        %3886 = vmatpush1.msra.mxu0 0.0
        %3887 = vmatprep.subr.mxu0 0.0
        %3888 = vmatpush1.msra.mxu0 0.0
        %3889 = vmatprep.subr.mxu0 0.0
        %3890 = vmatpush1.msra.mxu0 0.0
        %3891 = vmatprep.subr.mxu0 0.0
        %3892 = vmatpush1.msra.mxu0 0.0
        %3893 = vmatprep.subr.mxu0 0.0
        %3894 = vmatpush1.msra.mxu0 0.0
        %3895 = vmatprep.subr.mxu0 0.0
        %3896 = vmatpush1.msra.mxu0 0.0
        %3897 = vmatprep.subr.mxu0 0.0
        %3898 = vmatpush1.msra.mxu0 0.0
        %3899 = vmatprep.subr.mxu0 0.0
        %3900 = vmatpush1.msra.mxu0 0.0
        %3901 = vmatprep.subr.mxu0 0.0
        %3902 = vmatpush1.msra.mxu0 0.0
        %3903 = vmatprep.mubr.f32.mxu0 0.0
        %3904 = vmatmul.mubr.f32.gmra.mrb[0].mxu0 %v3834
        %v3905 = vpop.f32.mrb[0].mxu0
        %v3906 = vadd.f32 0.0, %v3905
        %v3907 = vpop.f32.mrb[0].mxu0
        %3908 = vdwg.mxu0
        %v3909 = vadd.f32 %v3830, %v3906
        %3910 = vst.msk [vmem:[#allocation4] sm:$0xff] %vm1605, %v3909
        %s3911 = scalar_lea.vmem %s1, 224
        %v3912 = vld [vmem:[%s3911] sm:$0xff]
        %v3913 = vld [vmem:[%s3911 + $0x8] sm:$0xff]
        %v3914 = vld [vmem:[%s3911 + $0x10] sm:$0xff]
        %v3915 = vld [vmem:[%s3911 + $0x18] sm:$0xff]
        %s3916 = scalar_lea.vmem %s2, 7
        %v3917 = vld [vmem:[%s3916] sm:$0x1]
        %v3919 = vlaneseq
        %v3920 = vshrl.u32 %v3919, 7
        %v3921 = vsub.s32 0, %v3920
        %v3922 = vrot.slane %v3917, %v3921
        %3924 = vmatprep.subr.mxu0 0.0
        %3925 = vmatpush1.msra.mxu0 %v3912
        %3926 = vmatprep.subr.mxu0 0.0
        %3927 = vmatpush1.msra.mxu0 %v3913
        %3928 = vmatprep.subr.mxu0 0.0
        %3929 = vmatpush1.msra.mxu0 %v3914
        %3930 = vmatprep.subr.mxu0 0.0
        %3931 = vmatpush1.msra.mxu0 %v3915
        %3932 = vmatprep.subr.mxu0 0.0
        %3933 = vmatpush1.msra.mxu0 0.0
        %3934 = vmatprep.subr.mxu0 0.0
        %3935 = vmatpush1.msra.mxu0 0.0
        %3936 = vmatprep.subr.mxu0 0.0
        %3937 = vmatpush1.msra.mxu0 0.0
        %3938 = vmatprep.subr.mxu0 0.0
        %3939 = vmatpush1.msra.mxu0 0.0
        %3940 = vmatprep.subr.mxu0 0.0
        %3941 = vmatpush1.msra.mxu0 0.0
        %3942 = vmatprep.subr.mxu0 0.0
        %3943 = vmatpush1.msra.mxu0 0.0
        %3944 = vmatprep.subr.mxu0 0.0
        %3945 = vmatpush1.msra.mxu0 0.0
        %3946 = vmatprep.subr.mxu0 0.0
        %3947 = vmatpush1.msra.mxu0 0.0
        %3948 = vmatprep.subr.mxu0 0.0
        %3949 = vmatpush1.msra.mxu0 0.0
        %3950 = vmatprep.subr.mxu0 0.0
        %3951 = vmatpush1.msra.mxu0 0.0
        %3952 = vmatprep.subr.mxu0 0.0
        %3953 = vmatpush1.msra.mxu0 0.0
        %3954 = vmatprep.subr.mxu0 0.0
        %3955 = vmatpush1.msra.mxu0 0.0
        %3956 = vmatprep.subr.mxu0 0.0
        %3957 = vmatpush1.msra.mxu0 0.0
        %3958 = vmatprep.subr.mxu0 0.0
        %3959 = vmatpush1.msra.mxu0 0.0
        %3960 = vmatprep.subr.mxu0 0.0
        %3961 = vmatpush1.msra.mxu0 0.0
        %3962 = vmatprep.subr.mxu0 0.0
        %3963 = vmatpush1.msra.mxu0 0.0
        %3964 = vmatprep.subr.mxu0 0.0
        %3965 = vmatpush1.msra.mxu0 0.0
        %3966 = vmatprep.subr.mxu0 0.0
        %3967 = vmatpush1.msra.mxu0 0.0
        %3968 = vmatprep.subr.mxu0 0.0
        %3969 = vmatpush1.msra.mxu0 0.0
        %3970 = vmatprep.subr.mxu0 0.0
        %3971 = vmatpush1.msra.mxu0 0.0
        %3972 = vmatprep.subr.mxu0 0.0
        %3973 = vmatpush1.msra.mxu0 0.0
        %3974 = vmatprep.subr.mxu0 0.0
        %3975 = vmatpush1.msra.mxu0 0.0
        %3976 = vmatprep.subr.mxu0 0.0
        %3977 = vmatpush1.msra.mxu0 0.0
        %3978 = vmatprep.subr.mxu0 0.0
        %3979 = vmatpush1.msra.mxu0 0.0
        %3980 = vmatprep.subr.mxu0 0.0
        %3981 = vmatpush1.msra.mxu0 0.0
        %3982 = vmatprep.subr.mxu0 0.0
        %3983 = vmatpush1.msra.mxu0 0.0
        %3984 = vmatprep.subr.mxu0 0.0
        %3985 = vmatpush1.msra.mxu0 0.0
        %3986 = vmatprep.subr.mxu0 0.0
        %3987 = vmatpush1.msra.mxu0 0.0
        %3988 = vmatprep.mubr.f32.mxu0 0.0
        %3989 = vmatmul.mubr.f32.gmra.mrb[0].mxu0 %v1619
        %v3990 = vpop.f32.mrb[0].mxu0
        %v3991 = vadd.f32 %v3922, %v3990
        %v3992 = vpop.f32.mrb[0].mxu0
        %3993 = vdwg.mxu0
        %s3994 = scalar_lea.vmem [#allocation2], 56
        %v3995 = vld [vmem:[%s3994] sm:$0xff]
        %s3996 = scalar_lea.vmem [#allocation3], 56
        %v3997 = vld [vmem:[%s3996] sm:$0xff]
        %v3999 = vsel %vm1693, %v3991, 0
        %v4002 = vsel %vm1693, %v3995, 0
        %4004 = vmatprep.subr.mxu0 0.0
        %4005 = vmatpush1.xpose.msra.mxu0 %v4002
        %4006 = vmatprep.subr.mxu0 0.0
        %4007 = vmatpush1.xpose.msra.mxu0 0.0
        %4008 = vmatprep.subr.mxu0 0.0
        %4009 = vmatpush1.xpose.msra.mxu0 0.0
        %4010 = vmatprep.subr.mxu0 0.0
        %4011 = vmatpush1.xpose.msra.mxu0 0.0
        %4012 = vmatprep.subr.mxu0 0.0
        %4013 = vmatpush1.xpose.msra.mxu0 0.0
        %4014 = vmatprep.subr.mxu0 0.0
        %4015 = vmatpush1.xpose.msra.mxu0 0.0
        %4016 = vmatprep.subr.mxu0 0.0
        %4017 = vmatpush1.xpose.msra.mxu0 0.0
        %4018 = vmatprep.subr.mxu0 0.0
        %4019 = vmatpush1.xpose.msra.mxu0 0.0
        %4020 = vmatprep.subr.mxu0 0.0
        %4021 = vmatpush1.xpose.msra.mxu0 0.0
        %4022 = vmatprep.subr.mxu0 0.0
        %4023 = vmatpush1.xpose.msra.mxu0 0.0
        %4024 = vmatprep.subr.mxu0 0.0
        %4025 = vmatpush1.xpose.msra.mxu0 0.0
        %4026 = vmatprep.subr.mxu0 0.0
        %4027 = vmatpush1.xpose.msra.mxu0 0.0
        %4028 = vmatprep.subr.mxu0 0.0
        %4029 = vmatpush1.xpose.msra.mxu0 0.0
        %4030 = vmatprep.subr.mxu0 0.0
        %4031 = vmatpush1.xpose.msra.mxu0 0.0
        %4032 = vmatprep.subr.mxu0 0.0
        %4033 = vmatpush1.xpose.msra.mxu0 0.0
        %4034 = vmatprep.subr.mxu0 0.0
        %4035 = vmatpush1.xpose.msra.mxu0 0.0
        %4036 = vmatprep.subr.mxu0 0.0
        %4037 = vmatpush1.xpose.msra.mxu0 0.0
        %4038 = vmatprep.subr.mxu0 0.0
        %4039 = vmatpush1.xpose.msra.mxu0 0.0
        %4040 = vmatprep.subr.mxu0 0.0
        %4041 = vmatpush1.xpose.msra.mxu0 0.0
        %4042 = vmatprep.subr.mxu0 0.0
        %4043 = vmatpush1.xpose.msra.mxu0 0.0
        %4044 = vmatprep.subr.mxu0 0.0
        %4045 = vmatpush1.xpose.msra.mxu0 0.0
        %4046 = vmatprep.subr.mxu0 0.0
        %4047 = vmatpush1.xpose.msra.mxu0 0.0
        %4048 = vmatprep.subr.mxu0 0.0
        %4049 = vmatpush1.xpose.msra.mxu0 0.0
        %4050 = vmatprep.subr.mxu0 0.0
        %4051 = vmatpush1.xpose.msra.mxu0 0.0
        %4052 = vmatprep.subr.mxu0 0.0
        %4053 = vmatpush1.xpose.msra.mxu0 0.0
        %4054 = vmatprep.subr.mxu0 0.0
        %4055 = vmatpush1.xpose.msra.mxu0 0.0
        %4056 = vmatprep.subr.mxu0 0.0
        %4057 = vmatpush1.xpose.msra.mxu0 0.0
        %4058 = vmatprep.subr.mxu0 0.0
        %4059 = vmatpush1.xpose.msra.mxu0 0.0
        %4060 = vmatprep.subr.mxu0 0.0
        %4061 = vmatpush1.xpose.msra.mxu0 0.0
        %4062 = vmatprep.subr.mxu0 0.0
        %4063 = vmatpush1.xpose.msra.mxu0 0.0
        %4064 = vmatprep.subr.mxu0 0.0
        %4065 = vmatpush1.xpose.msra.mxu0 0.0
        %4066 = vmatprep.subr.mxu0 0.0
        %4067 = vmatpush1.xpose.msra.mxu0 0.0
        %4068 = vmatprep.mubr.f32.mxu0 0.0
        %4069 = vmatmul.mubr.f32.gmra.mrb[0].mxu0 %v3999
        %v4070 = vpop.f32.mrb[0].mxu0
        %v4071 = vadd.f32 0.0, %v4070
        %v4072 = vpop.f32.mrb[0].mxu0
        %4073 = vdwg.mxu0
        %v4074 = vsel %vm1770, %v4071, -inf
        %4075 = vmax.xlane.f32.xlu0 %v4074
        %v4076 = vpop.xlane.xlu0 %4075
        %v4077 = vsub.f32 %v4071, %v4076
        %v4078 = vmul.f32 %v4077, 1.442695
        %v4079 = vpow.pop %v4078
        %v4080 = vsel %vm1770, %v4079, 0.0
        %4081 = vadd.xlane.f32.xlu0 %v4080
        %v4082 = vpop.xlane.xlu0 %4081
        %v4083 = vrcp.pop %v4082
        %v4084 = vmul.f32 %v4083, 0.17677669
        %v4085 = vmul.f32 %v4079, %v4084
        %v4087 = vsel %vm1770, %v4085, 0
        %4089 = vmatprep.subr.mxu0 0.0
        %4090 = vmatpush1.msra.mxu0 %v3997
        %4091 = vmatprep.subr.mxu0 0.0
        %4092 = vmatpush1.msra.mxu0 0.0
        %4093 = vmatprep.subr.mxu0 0.0
        %4094 = vmatpush1.msra.mxu0 0.0
        %4095 = vmatprep.subr.mxu0 0.0
        %4096 = vmatpush1.msra.mxu0 0.0
        %4097 = vmatprep.subr.mxu0 0.0
        %4098 = vmatpush1.msra.mxu0 0.0
        %4099 = vmatprep.subr.mxu0 0.0
        %4100 = vmatpush1.msra.mxu0 0.0
        %4101 = vmatprep.subr.mxu0 0.0
        %4102 = vmatpush1.msra.mxu0 0.0
        %4103 = vmatprep.subr.mxu0 0.0
        %4104 = vmatpush1.msra.mxu0 0.0
        %4105 = vmatprep.subr.mxu0 0.0
        %4106 = vmatpush1.msra.mxu0 0.0
        %4107 = vmatprep.subr.mxu0 0.0
        %4108 = vmatpush1.msra.mxu0 0.0
        %4109 = vmatprep.subr.mxu0 0.0
        %4110 = vmatpush1.msra.mxu0 0.0
        %4111 = vmatprep.subr.mxu0 0.0
        %4112 = vmatpush1.msra.mxu0 0.0
        %4113 = vmatprep.subr.mxu0 0.0
        %4114 = vmatpush1.msra.mxu0 0.0
        %4115 = vmatprep.subr.mxu0 0.0
        %4116 = vmatpush1.msra.mxu0 0.0
        %4117 = vmatprep.subr.mxu0 0.0
        %4118 = vmatpush1.msra.mxu0 0.0
        %4119 = vmatprep.subr.mxu0 0.0
        %4120 = vmatpush1.msra.mxu0 0.0
        %4121 = vmatprep.subr.mxu0 0.0
        %4122 = vmatpush1.msra.mxu0 0.0
        %4123 = vmatprep.subr.mxu0 0.0
        %4124 = vmatpush1.msra.mxu0 0.0
        %4125 = vmatprep.subr.mxu0 0.0
        %4126 = vmatpush1.msra.mxu0 0.0
        %4127 = vmatprep.subr.mxu0 0.0
        %4128 = vmatpush1.msra.mxu0 0.0
        %4129 = vmatprep.subr.mxu0 0.0
        %4130 = vmatpush1.msra.mxu0 0.0
        %4131 = vmatprep.subr.mxu0 0.0
        %4132 = vmatpush1.msra.mxu0 0.0
        %4133 = vmatprep.subr.mxu0 0.0
        %4134 = vmatpush1.msra.mxu0 0.0
        %4135 = vmatprep.subr.mxu0 0.0
        %4136 = vmatpush1.msra.mxu0 0.0
        %4137 = vmatprep.subr.mxu0 0.0
        %4138 = vmatpush1.msra.mxu0 0.0
        %4139 = vmatprep.subr.mxu0 0.0
        %4140 = vmatpush1.msra.mxu0 0.0
        %4141 = vmatprep.subr.mxu0 0.0
        %4142 = vmatpush1.msra.mxu0 0.0
        %4143 = vmatprep.subr.mxu0 0.0
        %4144 = vmatpush1.msra.mxu0 0.0
        %4145 = vmatprep.subr.mxu0 0.0
        %4146 = vmatpush1.msra.mxu0 0.0
        %4147 = vmatprep.subr.mxu0 0.0
        %4148 = vmatpush1.msra.mxu0 0.0
        %4149 = vmatprep.subr.mxu0 0.0
        %4150 = vmatpush1.msra.mxu0 0.0
        %4151 = vmatprep.subr.mxu0 0.0
        %4152 = vmatpush1.msra.mxu0 0.0
        %4153 = vmatprep.mubr.f32.mxu0 0.0
        %4154 = vmatmul.mubr.f32.gmra.mrb[0].mxu0 %v4087
        %v4155 = vpop.f32.mrb[0].mxu0
        %v4156 = vadd.f32 0.0, %v4155
        %v4157 = vpop.f32.mrb[0].mxu0
        %4158 = vdwg.mxu0
        %v4159 = vld [vmem:[#allocation4] sm:$0xff]
        %s4160 = scalar_lea.vmem %s3, 28
        %v4161 = vld [vmem:[%s4160] sm:$0xf]
        %v4163 = vsel %vm1693, %v4156, 0
        %v4166 = vsel %vm1861, %v4161, 0
        %4168 = vmatprep.subr.mxu0 0.0
        %4169 = vmatpush1.msra.mxu0 %v4166
        %4170 = vmatprep.subr.mxu0 0.0
        %4171 = vmatpush1.msra.mxu0 0.0
        %4172 = vmatprep.subr.mxu0 0.0
        %4173 = vmatpush1.msra.mxu0 0.0
        %4174 = vmatprep.subr.mxu0 0.0
        %4175 = vmatpush1.msra.mxu0 0.0
        %4176 = vmatprep.subr.mxu0 0.0
        %4177 = vmatpush1.msra.mxu0 0.0
        %4178 = vmatprep.subr.mxu0 0.0
        %4179 = vmatpush1.msra.mxu0 0.0
        %4180 = vmatprep.subr.mxu0 0.0
        %4181 = vmatpush1.msra.mxu0 0.0
        %4182 = vmatprep.subr.mxu0 0.0
        %4183 = vmatpush1.msra.mxu0 0.0
        %4184 = vmatprep.subr.mxu0 0.0
        %4185 = vmatpush1.msra.mxu0 0.0
        %4186 = vmatprep.subr.mxu0 0.0
        %4187 = vmatpush1.msra.mxu0 0.0
        %4188 = vmatprep.subr.mxu0 0.0
        %4189 = vmatpush1.msra.mxu0 0.0
        %4190 = vmatprep.subr.mxu0 0.0
        %4191 = vmatpush1.msra.mxu0 0.0
        %4192 = vmatprep.subr.mxu0 0.0
        %4193 = vmatpush1.msra.mxu0 0.0
        %4194 = vmatprep.subr.mxu0 0.0
        %4195 = vmatpush1.msra.mxu0 0.0
        %4196 = vmatprep.subr.mxu0 0.0
        %4197 = vmatpush1.msra.mxu0 0.0
        %4198 = vmatprep.subr.mxu0 0.0
        %4199 = vmatpush1.msra.mxu0 0.0
        %4200 = vmatprep.subr.mxu0 0.0
        %4201 = vmatpush1.msra.mxu0 0.0
        %4202 = vmatprep.subr.mxu0 0.0
        %4203 = vmatpush1.msra.mxu0 0.0
        %4204 = vmatprep.subr.mxu0 0.0
        %4205 = vmatpush1.msra.mxu0 0.0
        %4206 = vmatprep.subr.mxu0 0.0
        %4207 = vmatpush1.msra.mxu0 0.0
        %4208 = vmatprep.subr.mxu0 0.0
        %4209 = vmatpush1.msra.mxu0 0.0
        %4210 = vmatprep.subr.mxu0 0.0
        %4211 = vmatpush1.msra.mxu0 0.0
        %4212 = vmatprep.subr.mxu0 0.0
        %4213 = vmatpush1.msra.mxu0 0.0
        %4214 = vmatprep.subr.mxu0 0.0
        %4215 = vmatpush1.msra.mxu0 0.0
        %4216 = vmatprep.subr.mxu0 0.0
        %4217 = vmatpush1.msra.mxu0 0.0
        %4218 = vmatprep.subr.mxu0 0.0
        %4219 = vmatpush1.msra.mxu0 0.0
        %4220 = vmatprep.subr.mxu0 0.0
        %4221 = vmatpush1.msra.mxu0 0.0
        %4222 = vmatprep.subr.mxu0 0.0
        %4223 = vmatpush1.msra.mxu0 0.0
        %4224 = vmatprep.subr.mxu0 0.0
        %4225 = vmatpush1.msra.mxu0 0.0
        %4226 = vmatprep.subr.mxu0 0.0
        %4227 = vmatpush1.msra.mxu0 0.0
        %4228 = vmatprep.subr.mxu0 0.0
        %4229 = vmatpush1.msra.mxu0 0.0
        %4230 = vmatprep.subr.mxu0 0.0
        %4231 = vmatpush1.msra.mxu0 0.0
        %4232 = vmatprep.mubr.f32.mxu0 0.0
        %4233 = vmatmul.mubr.f32.gmra.mrb[0].mxu0 %v4163
        %v4234 = vpop.f32.mrb[0].mxu0
        %v4235 = vadd.f32 0.0, %v4234
        %v4236 = vpop.f32.mrb[0].mxu0
        %4237 = vdwg.mxu0
        %v4238 = vadd.f32 %v4159, %v4235
        %4239 = vst.msk [vmem:[#allocation4] sm:$0xff] %vm1605, %v4238
        %v4240 = vld [vmem:[#allocation4] sm:$0xff]
        %v4241 = vld [vmem:[%s4] sm:$0x1]
        %v4243 = vlaneseq
        %v4244 = vshrl.u32 %v4243, 7
        %v4245 = vsub.s32 0, %v4244
        %v4246 = vrot.slane %v4241, %v4245
        %v4248 = vadd.f32 %v4240, %v4246
        %4249 = vst.msk [vmem:[%s229] sm:$0xff] %vm1605, %v4248
        %s4250 = sand.u32 %s151, 1
        %s4251 = scalar_lea.sflag [#allocation6], %s4250
        %s4252 = sand.u32 %s151, 1
        %s4253 = smul.addr %s4252, 8
        %s4254 = scalar_lea.vmem [#allocation5], %s4253
        // Predicated region
        $region45: #{tpu_custom_call.1} parent=39 // pred_check
          %p4255 = pneg %p161
        $region46: #{tpu_custom_call.1} parent=39 // pred_check_branch
          %4257 = sbr.rel (%p4255) target = $region48
        $region47: #{tpu_custom_call.1} parent=39 // pred_region
          %s4259 = ssub.s32 128, 128
          %4260 = vsyncadd %s4251, %s4259
          %s4261 = sadd.s32 %s24, %s23
          %s4262 = smul.addr %s4261, 128
          %s4263 = scalar_lea.hbm %s5, %s4262
          %s4265 = sshll.u32 %s4254, 4
          %s4266 = int_to_ptr.vmem [resolvable:$true] %s4265
          %4268 = dma.vmem_to_hbm [thread:$0]  %s4266, 128, %s4263, %s4251
        $region48: #{tpu_custom_call.1} parent=39 // pred_fallthru
          _
      $region40: #{tpu_custom_call.1} parent=5 // pred_fallthru
        _
      %p4269 = scmp.le.s32.totalorder 2, %s14
      // Predicated region
      $region49: #{tpu_custom_call.1} parent=5 // pred_check
        %p4270 = pneg %p4269
      $region50: #{tpu_custom_call.1} parent=5 // pred_check_branch
        %4272 = sbr.rel (%p4270) target = $region52
      $region51: #{tpu_custom_call.1} parent=5 // pred_region
        %s4273 = ssub.s32 %s14, 2
        // Predicated region
        $region53: #{tpu_custom_call.1} parent=51 // pred_check
          %p4274 = pneg %p167
        $region54: #{tpu_custom_call.1} parent=51 // pred_check_branch
          %4276 = sbr.rel (%p4274) target = $region56
        $region55: #{tpu_custom_call.1} parent=51 // pred_region
          %s4277 = sand.u32 %s152, 1
          %s4278 = scalar_lea.sflag [#allocation6], %s4277
          %s4279 = sand.u32 %s152, 1
          %s4280 = smul.addr %s4279, 8
          %s4281 = scalar_lea.vmem [#allocation5], %s4280
          %4282 = dma.done %s4278, 128
        $region56: #{tpu_custom_call.1} parent=51 // pred_fallthru
          _
      $region52: #{tpu_custom_call.1} parent=5 // pred_fallthru
        _
    $region6: #{tpu_custom_call.1} parent=1 // loop_footer
      %s18 = sadd.s32 1, %s14
    $region7: #{tpu_custom_call.1} parent=1 // loop_footer_branch
      %13 = sbr.rel target = $region3
    $region8: #{tpu_custom_call.1} parent=1 // loop_exit
      _
    %4283 = vsyncpa [#allocation6], 1
    %s4284 = scalar_lea.sflag [#allocation6], 1
    %4285 = vsyncpa %s4284, 1

// kernel: tpu_custom_call.1
$region0: #{tpu_custom_call.1}
  #allocation0 [shape = 'u32[]', space=smem, size = 0x4, offset = 0x4, fixed_abs, tag = 'smem constant byte address 0x4 - core index']
  #allocation1 [shape = 'u32[144,128]{1,0:T(1,128)}', space=vmem, size = 0x12000, scoped, tag = 'internal scratch']
  #allocation2 [shape = 'f32[8,8,4]{2,1,0:T(8,128)}', space=vmem, size = 0x8000, scoped, tag = 'scratch operand']
  #allocation3 [shape = 'f32[8,8,4]{2,1,0:T(8,128)}', space=vmem, size = 0x8000, scoped, tag = 'scratch operand']
  #allocation4 [shape = 'f32[8,32]{1,0:T(8,128)}', space=vmem, size = 0x1000, scoped, tag = 'scratch operand']
  %s0 = inlined_call_operand.vmem [shape: f32[2,8,32], index: 0, kind: input, shape index: {}]
  %s1 = inlined_call_operand.vmem [shape: f32[3,8,32,4], index: 1, kind: input, shape index: {}]
  %s2 = inlined_call_operand.vmem [shape: f32[3,8,1,4], index: 2, kind: input, shape index: {}]
  %s3 = inlined_call_operand.vmem [shape: f32[8,4,32], index: 3, kind: input, shape index: {}]
  %s4 = inlined_call_operand.vmem [shape: f32[1,32], index: 4, kind: input, shape index: {}]
  %s5 = inlined_call_operand.hbm [shape: f32[2,8,32], index: 5, kind: output, shape index: {}]
  %s6 = sld [smem:[#allocation0]]
  $region57: #{tpu_custom_call.1} parent=0
    _
  %s8 = ssub.s32 1, %s6
  %s9 = scalar_select 0, %s8, %s6
  $region1: #{tpu_custom_call.1} parent=0
    #allocation5 [shape = 'u8[8192]{0}', space=vmem, size = 0x2000, scoped, tag = 'output window, operand 0']
    #allocation6 [shape = 's32[2]{0}', space=sflag, size = 0x8, scoped, tag = 'scoped memory for tpu_custom_call.1']
    %10 = vsyncpa [#allocation6], 0
    %s11 = scalar_lea.sflag [#allocation6], 1
    %12 = vsyncpa %s11, 0
    loop: start=0, step=1, limit=4
    $region2: #{tpu_custom_call.1} parent=1 // loop_pre_header
      _
    $region3: #{tpu_custom_call.1} parent=1 // loop_header
      %s14 = sphi 0, %s18
      %p15 = scmp.ge.s32.totalorder %s14, 4
      %s21 = sphi 0, %s33
      %s22 = sphi 0, %s29
      %s23 = sphi 0, %s21
      %s24 = sphi 0, %s22
      %s25 = sphi 0, %s23
      %s26 = sphi 0, %s24
      %s36 = sphi 0, %s38
      %s39 = sphi 0, %s36
      %s40 = sphi 0, %s39
      %s56 = sphi 0, %s40
      %s60 = sphi 0, %s60
      %s62 = sphi 0, %s60
      %s63 = sphi 0, %s62
      %s77 = sphi 0, %s63
      %s81 = sphi 0, %s81
      %s83 = sphi 0, %s81
      %s84 = sphi 0, %s83
      %s98 = sphi 0, %s84
      %s102 = sphi 0, %s102
      %s104 = sphi 0, %s102
      %s105 = sphi 0, %s104
      %s119 = sphi 0, %s105
      %s123 = sphi 0, %s123
      %s125 = sphi 0, %s123
      %s126 = sphi 0, %s125
      %s140 = sphi 0, %s126
      %s148 = sphi 0, %s150
      %s151 = sphi 0, %s148
      %s152 = sphi 0, %s151
      %s168 = sphi 0, %s152
    $region4: #{tpu_custom_call.1} parent=1 // loop_header_branch
      %17 = sbr.rel (%p15) target = $region8
    $region5: #{tpu_custom_call.1} parent=1 // loop_body
      %s19 = ssub.s32 %s14, 1
      %s20 = ssub.s32 %s14, 2
      %s27 = sadd.s32 1, %s22
      %p28 = scmp.ge.s32.totalorder %s27, 1
      %s29 = scalar_select %p28, 0, %s27
      %s30 = sadd.s32 1, %s21
      %s31 = scalar_select %p28, %s30, %s21
      %p32 = scmp.ge.s32.totalorder %s31, 2
      %s33 = scalar_select %p32, 0, %s31
      %s34 = ssub.s32 %s21, %s33
      %p35 = scmp.eq.s32.totalorder %s34, 0
      %s37 = sadd.s32 %s36, 1
      %s38 = scalar_select %p35, %s36, %s37
      %p41 = pneg %p35
      %p42 = scmp.eq.s32.totalorder %s14, 1
      %p43 = por %p41, %p42
      %p44 = scmp.ne.s32.totalorder %s36, %s39
      %p45 = scmp.eq.s32.totalorder %s14, 0
      %p46 = por %p44, %p45
      %p47 = scmp.ne.s32.totalorder %s36, %s39
      %p48 = scmp.eq.s32.totalorder %s19, 1
      %p49 = por %p47, %p48
      %p50 = scmp.ne.s32.totalorder %s39, %s40
      %p51 = scmp.eq.s32.totalorder %s19, 0
      %p52 = por %p50, %p51
      %p53 = scmp.ne.s32.totalorder %s39, %s40
      %p54 = scmp.eq.s32.totalorder %s20, 1
      %p55 = por %p53, %p54
      %p57 = scmp.ne.s32.totalorder %s40, %s56
      %p58 = scmp.eq.s32.totalorder %s20, 0
      %p59 = por %p57, %p58
      %s61 = sadd.s32 %s60, 1
      %p64 = scmp.eq.s32.totalorder %s14, 1
      %p65 = scmp.ne.s32.totalorder %s60, %s62
      %p66 = scmp.eq.s32.totalorder %s14, 0
      %p67 = por %p65, %p66
      %p68 = scmp.ne.s32.totalorder %s60, %s62
      %p69 = scmp.eq.s32.totalorder %s19, 1
      %p70 = por %p68, %p69
      %p71 = scmp.ne.s32.totalorder %s62, %s63
      %p72 = scmp.eq.s32.totalorder %s19, 0
      %p73 = por %p71, %p72
      %p74 = scmp.ne.s32.totalorder %s62, %s63
      %p75 = scmp.eq.s32.totalorder %s20, 1
      %p76 = por %p74, %p75
      %p78 = scmp.ne.s32.totalorder %s63, %s77
      %p79 = scmp.eq.s32.totalorder %s20, 0
      %p80 = por %p78, %p79
      %s82 = sadd.s32 %s81, 1
      %p85 = scmp.eq.s32.totalorder %s14, 1
      %p86 = scmp.ne.s32.totalorder %s81, %s83
      %p87 = scmp.eq.s32.totalorder %s14, 0
      %p88 = por %p86, %p87
      %p89 = scmp.ne.s32.totalorder %s81, %s83
      %p90 = scmp.eq.s32.totalorder %s19, 1
      %p91 = por %p89, %p90
      %p92 = scmp.ne.s32.totalorder %s83, %s84
      %p93 = scmp.eq.s32.totalorder %s19, 0
      %p94 = por %p92, %p93
      %p95 = scmp.ne.s32.totalorder %s83, %s84
      %p96 = scmp.eq.s32.totalorder %s20, 1
      %p97 = por %p95, %p96
      %p99 = scmp.ne.s32.totalorder %s84, %s98
      %p100 = scmp.eq.s32.totalorder %s20, 0
      %p101 = por %p99, %p100
      %s103 = sadd.s32 %s102, 1
      %p106 = scmp.eq.s32.totalorder %s14, 1
      %p107 = scmp.ne.s32.totalorder %s102, %s104
      %p108 = scmp.eq.s32.totalorder %s14, 0
      %p109 = por %p107, %p108
      %p110 = scmp.ne.s32.totalorder %s102, %s104
      %p111 = scmp.eq.s32.totalorder %s19, 1
      %p112 = por %p110, %p111
      %p113 = scmp.ne.s32.totalorder %s104, %s105
      %p114 = scmp.eq.s32.totalorder %s19, 0
      %p115 = por %p113, %p114
      %p116 = scmp.ne.s32.totalorder %s104, %s105
      %p117 = scmp.eq.s32.totalorder %s20, 1
      %p118 = por %p116, %p117
      %p120 = scmp.ne.s32.totalorder %s105, %s119
      %p121 = scmp.eq.s32.totalorder %s20, 0
      %p122 = por %p120, %p121
      %s124 = sadd.s32 %s123, 1
      %p127 = scmp.eq.s32.totalorder %s14, 1
      %p128 = scmp.ne.s32.totalorder %s123, %s125
      %p129 = scmp.eq.s32.totalorder %s14, 0
      %p130 = por %p128, %p129
      %p131 = scmp.ne.s32.totalorder %s123, %s125
      %p132 = scmp.eq.s32.totalorder %s19, 1
      %p133 = por %p131, %p132
      %p134 = scmp.ne.s32.totalorder %s125, %s126
      %p135 = scmp.eq.s32.totalorder %s19, 0
      %p136 = por %p134, %p135
      %p137 = scmp.ne.s32.totalorder %s125, %s126
      %p138 = scmp.eq.s32.totalorder %s20, 1
      %p139 = por %p137, %p138
      %p141 = scmp.ne.s32.totalorder %s126, %s140
      %p142 = scmp.eq.s32.totalorder %s20, 0
      %p143 = por %p141, %p142
      %s144 = ssub.s32 %s21, %s33
      %s145 = ssub.s32 %s22, %s29
      %s146 = sor.u32 %s144, %s145
      %p147 = scmp.eq.s32.totalorder %s146, 0
      %s149 = sadd.s32 %s148, 1
      %s150 = scalar_select %p147, %s148, %s149
      %p153 = pneg %p147
      %p154 = scmp.eq.s32.totalorder %s14, 1
      %p155 = por %p153, %p154
      %p156 = scmp.ne.s32.totalorder %s148, %s151
      %p157 = scmp.eq.s32.totalorder %s14, 0
      %p158 = por %p156, %p157
      %p159 = scmp.ne.s32.totalorder %s148, %s151
      %p160 = scmp.eq.s32.totalorder %s19, 1
      %p161 = por %p159, %p160
      %p162 = scmp.ne.s32.totalorder %s151, %s152
      %p163 = scmp.eq.s32.totalorder %s19, 0
      %p164 = por %p162, %p163
      %p165 = scmp.ne.s32.totalorder %s151, %s152
      %p166 = scmp.eq.s32.totalorder %s20, 1
      %p167 = por %p165, %p166
      %p169 = scmp.ne.s32.totalorder %s152, %s168
      %p170 = scmp.eq.s32.totalorder %s20, 0
      %p171 = por %p169, %p170
      %p172 = scmp.le.s32.totalorder 1, %s14
      %p173 = scmp.lt.s32.totalorder %s14, 3
      %p174 = pnand %p172, %p173
      %p175 = pneg %p174
      // Predicated region
      $region9: #{tpu_custom_call.1} parent=5 // pred_check
        _
      $region10: #{tpu_custom_call.1} parent=5 // pred_check_branch
        %177 = sbr.rel (%p174) target = $region12
      $region11: #{tpu_custom_call.1} parent=5 // pred_region
        %s178 = ssub.s32 %s14, 1
        // Predicated region
        $region13: #{tpu_custom_call.1} parent=11 // pred_check
          %p179 = pneg %p73
        $region14: #{tpu_custom_call.1} parent=11 // pred_check_branch
          %181 = sbr.rel (%p179) target = $region16
        $region15: #{tpu_custom_call.1} parent=11 // pred_region
          _
        $region16: #{tpu_custom_call.1} parent=11 // pred_fallthru
          _
        // Predicated region
        $region17: #{tpu_custom_call.1} parent=11 // pred_check
          %p182 = pneg %p94
        $region18: #{tpu_custom_call.1} parent=11 // pred_check_branch
          %184 = sbr.rel (%p182) target = $region20
        $region19: #{tpu_custom_call.1} parent=11 // pred_region
          _
        $region20: #{tpu_custom_call.1} parent=11 // pred_fallthru
          _
        // Predicated region
        $region21: #{tpu_custom_call.1} parent=11 // pred_check
          %p185 = pneg %p115
        $region22: #{tpu_custom_call.1} parent=11 // pred_check_branch
          %187 = sbr.rel (%p185) target = $region24
        $region23: #{tpu_custom_call.1} parent=11 // pred_region
          _
        $region24: #{tpu_custom_call.1} parent=11 // pred_fallthru
          _
        // Predicated region
        $region25: #{tpu_custom_call.1} parent=11 // pred_check
          %p188 = pneg %p136
        $region26: #{tpu_custom_call.1} parent=11 // pred_check_branch
          %190 = sbr.rel (%p188) target = $region28
        $region27: #{tpu_custom_call.1} parent=11 // pred_region
          _
        $region28: #{tpu_custom_call.1} parent=11 // pred_fallthru
          _
      $region12: #{tpu_custom_call.1} parent=5 // pred_fallthru
        _
      %p191 = scmp.lt.s32.totalorder %s14, 2
      // Predicated region
      $region29: #{tpu_custom_call.1} parent=5 // pred_check
        %p192 = pneg %p191
      $region30: #{tpu_custom_call.1} parent=5 // pred_check_branch
        %194 = sbr.rel (%p192) target = $region32
      $region31: #{tpu_custom_call.1} parent=5 // pred_region
        // Predicated region
        $region33: #{tpu_custom_call.1} parent=31 // pred_check
          %p195 = pneg %p46
        $region34: #{tpu_custom_call.1} parent=31 // pred_check_branch
          %197 = sbr.rel (%p195) target = $region36
        $region35: #{tpu_custom_call.1} parent=31 // pred_region
          %p198 = scmp.lt.s32.totalorder %s21, 1
          %s199 = scalar_select %p198, %s21, 1
          %s200 = smul.addr %s199, 8
          %s201 = scalar_lea.vmem %s0, %s200
        $region36: #{tpu_custom_call.1} parent=31 // pred_fallthru
          _
      $region32: #{tpu_custom_call.1} parent=5 // pred_fallthru
        _
      %p202 = scmp.le.s32.totalorder 1, %s14
      %p203 = scmp.lt.s32.totalorder %s14, 3
      %p204 = pnand %p202, %p203
      %p205 = pneg %p204
      // Predicated region
      $region37: #{tpu_custom_call.1} parent=5 // pred_check
        _
      $region38: #{tpu_custom_call.1} parent=5 // pred_check_branch
        %207 = sbr.rel (%p204) target = $region40
      $region39: #{tpu_custom_call.1} parent=5 // pred_region
        %s208 = ssub.s32 %s14, 1
        %p209 = scmp.lt.s32.totalorder %s23, 1
        %s210 = scalar_select %p209, %s23, 1
        %s211 = smul.addr %s210, 8
        %s212 = scalar_lea.vmem %s0, %s211
        %p213 = pneg %p52
        %p214 = pneg %p49
        %p215 = pneg %p73
        %p216 = pneg %p70
        %p217 = pneg %p94
        %p218 = pneg %p91
        %p219 = pneg %p115
        %p220 = pneg %p112
        %p221 = pneg %p136
        %p222 = pneg %p133
        %p223 = pneg %p164
        %p224 = pneg %p161
        %s225 = sand.u32 %s151, 1
        %s226 = scalar_lea.sflag [#allocation6], %s225
        %s227 = sand.u32 %s151, 1
        %s228 = smul.addr %s227, 8
        %s229 = scalar_lea.vmem [#allocation5], %s228
        %p230 = scmp.lt.s32.totalorder %s23, 1
        %s231 = scalar_select %p230, %s23, 1
        %s232 = smul.addr %s231, 8
        %s233 = scalar_lea.vmem %s0, %s232
        %p234 = scmp.eq.s32.totalorder %s24, 0
        // Predicated region
        $region41: #{tpu_custom_call.1} parent=39 // pred_check
          %p235 = pneg %p234
        $region42: #{tpu_custom_call.1} parent=39 // pred_check_branch
          %237 = sbr.rel (%p235) target = $region44
        $region43: #{tpu_custom_call.1} parent=39 // pred_region
          %v238 = vld [vmem:[%s233] sm:$0xff]
          %s239 = scalar_lea.vmem %s1, 256
          %v240 = vld [vmem:[%s239] sm:$0xff]
          %v241 = vld [vmem:[%s239 + $0x8] sm:$0xff]
          %v242 = vld [vmem:[%s239 + $0x10] sm:$0xff]
          %v243 = vld [vmem:[%s239 + $0x18] sm:$0xff]
          %s244 = scalar_lea.vmem %s2, 8
          %v245 = vld [vmem:[%s244] sm:$0x1]
          %v247 = vlaneseq
          %v248 = vshrl.u32 %v247, 7
          %v249 = vsub.s32 0, %v248
          %v250 = vrot.slane %v245, %v249
          %vm252 = vcmask 261120
          %v254 = vsel %vm252, %v238, 0
          %256 = vmatprep.subr.mxu0 0.0
          %257 = vmatpush1.msra.mxu0 %v240
          %258 = vmatprep.subr.mxu0 0.0
          %259 = vmatpush1.msra.mxu0 %v241
          %260 = vmatprep.subr.mxu0 0.0
          %261 = vmatpush1.msra.mxu0 %v242
          %262 = vmatprep.subr.mxu0 0.0
          %263 = vmatpush1.msra.mxu0 %v243
          %264 = vmatprep.subr.mxu0 0.0
          %265 = vmatpush1.msra.mxu0 0.0
          %266 = vmatprep.subr.mxu0 0.0
          %267 = vmatpush1.msra.mxu0 0.0
          %268 = vmatprep.subr.mxu0 0.0
          %269 = vmatpush1.msra.mxu0 0.0
          %270 = vmatprep.subr.mxu0 0.0
          %271 = vmatpush1.msra.mxu0 0.0
          %272 = vmatprep.subr.mxu0 0.0
          %273 = vmatpush1.msra.mxu0 0.0
          %274 = vmatprep.subr.mxu0 0.0
          %275 = vmatpush1.msra.mxu0 0.0
          %276 = vmatprep.subr.mxu0 0.0
          %277 = vmatpush1.msra.mxu0 0.0
          %278 = vmatprep.subr.mxu0 0.0
          %279 = vmatpush1.msra.mxu0 0.0
          %280 = vmatprep.subr.mxu0 0.0
          %281 = vmatpush1.msra.mxu0 0.0
          %282 = vmatprep.subr.mxu0 0.0
          %283 = vmatpush1.msra.mxu0 0.0
          %284 = vmatprep.subr.mxu0 0.0
          %285 = vmatpush1.msra.mxu0 0.0
          %286 = vmatprep.subr.mxu0 0.0
          %287 = vmatpush1.msra.mxu0 0.0
          %288 = vmatprep.subr.mxu0 0.0
          %289 = vmatpush1.msra.mxu0 0.0
          %290 = vmatprep.subr.mxu0 0.0
          %291 = vmatpush1.msra.mxu0 0.0
          %292 = vmatprep.subr.mxu0 0.0
          %293 = vmatpush1.msra.mxu0 0.0
          %294 = vmatprep.subr.mxu0 0.0
          %295 = vmatpush1.msra.mxu0 0.0
          %296 = vmatprep.subr.mxu0 0.0
          %297 = vmatpush1.msra.mxu0 0.0
          %298 = vmatprep.subr.mxu0 0.0
          %299 = vmatpush1.msra.mxu0 0.0
          %300 = vmatprep.subr.mxu0 0.0
          %301 = vmatpush1.msra.mxu0 0.0
          %302 = vmatprep.subr.mxu0 0.0
          %303 = vmatpush1.msra.mxu0 0.0
          %304 = vmatprep.subr.mxu0 0.0
          %305 = vmatpush1.msra.mxu0 0.0
          %306 = vmatprep.subr.mxu0 0.0
          %307 = vmatpush1.msra.mxu0 0.0
          %308 = vmatprep.subr.mxu0 0.0
          %309 = vmatpush1.msra.mxu0 0.0
          %310 = vmatprep.subr.mxu0 0.0
          %311 = vmatpush1.msra.mxu0 0.0
          %312 = vmatprep.subr.mxu0 0.0
          %313 = vmatpush1.msra.mxu0 0.0
          %314 = vmatprep.subr.mxu0 0.0
          %315 = vmatpush1.msra.mxu0 0.0
          %316 = vmatprep.subr.mxu0 0.0
          %317 = vmatpush1.msra.mxu0 0.0
          %318 = vmatprep.subr.mxu0 0.0
          %319 = vmatpush1.msra.mxu0 0.0
          %320 = vmatprep.mubr.f32.mxu0 0.0
          %321 = vmatmul.mubr.f32.gmra.mrb[0].mxu0 %v254
          %v322 = vpop.f32.mrb[0].mxu0
          %v323 = vadd.f32 %v250, %v322
          %v324 = vpop.f32.mrb[0].mxu0
          %325 = vdwg.mxu0
          %vm326 = vcmask 31744
          %327 = vst.msk [vmem:[#allocation2] sm:$0xff] %vm326, %v323
          %s328 = scalar_lea.vmem %s1, 512
          %v329 = vld [vmem:[%s328] sm:$0xff]
          %v330 = vld [vmem:[%s328 + $0x8] sm:$0xff]
          %v331 = vld [vmem:[%s328 + $0x10] sm:$0xff]
          %v332 = vld [vmem:[%s328 + $0x18] sm:$0xff]
          %s333 = scalar_lea.vmem %s2, 16
          %v334 = vld [vmem:[%s333] sm:$0x1]
          %v336 = vlaneseq
          %v337 = vshrl.u32 %v336, 7
          %v338 = vsub.s32 0, %v337
          %v339 = vrot.slane %v334, %v338
          %341 = vmatprep.subr.mxu0 0.0
          %342 = vmatpush1.msra.mxu0 %v329
          %343 = vmatprep.subr.mxu0 0.0
          %344 = vmatpush1.msra.mxu0 %v330
          %345 = vmatprep.subr.mxu0 0.0
          %346 = vmatpush1.msra.mxu0 %v331
          %347 = vmatprep.subr.mxu0 0.0
          %348 = vmatpush1.msra.mxu0 %v332
          %349 = vmatprep.subr.mxu0 0.0
          %350 = vmatpush1.msra.mxu0 0.0
          %351 = vmatprep.subr.mxu0 0.0
          %352 = vmatpush1.msra.mxu0 0.0
          %353 = vmatprep.subr.mxu0 0.0
          %354 = vmatpush1.msra.mxu0 0.0
          %355 = vmatprep.subr.mxu0 0.0
          %356 = vmatpush1.msra.mxu0 0.0
          %357 = vmatprep.subr.mxu0 0.0
          %358 = vmatpush1.msra.mxu0 0.0
          %359 = vmatprep.subr.mxu0 0.0
          %360 = vmatpush1.msra.mxu0 0.0
          %361 = vmatprep.subr.mxu0 0.0
          %362 = vmatpush1.msra.mxu0 0.0
          %363 = vmatprep.subr.mxu0 0.0
          %364 = vmatpush1.msra.mxu0 0.0
          %365 = vmatprep.subr.mxu0 0.0
          %366 = vmatpush1.msra.mxu0 0.0
          %367 = vmatprep.subr.mxu0 0.0
          %368 = vmatpush1.msra.mxu0 0.0
          %369 = vmatprep.subr.mxu0 0.0
          %370 = vmatpush1.msra.mxu0 0.0
          %371 = vmatprep.subr.mxu0 0.0
          %372 = vmatpush1.msra.mxu0 0.0
          %373 = vmatprep.subr.mxu0 0.0
          %374 = vmatpush1.msra.mxu0 0.0
          %375 = vmatprep.subr.mxu0 0.0
          %376 = vmatpush1.msra.mxu0 0.0
          %377 = vmatprep.subr.mxu0 0.0
          %378 = vmatpush1.msra.mxu0 0.0
          %379 = vmatprep.subr.mxu0 0.0
          %380 = vmatpush1.msra.mxu0 0.0
          %381 = vmatprep.subr.mxu0 0.0
          %382 = vmatpush1.msra.mxu0 0.0
          %383 = vmatprep.subr.mxu0 0.0
          %384 = vmatpush1.msra.mxu0 0.0
          %385 = vmatprep.subr.mxu0 0.0
          %386 = vmatpush1.msra.mxu0 0.0
          %387 = vmatprep.subr.mxu0 0.0
          %388 = vmatpush1.msra.mxu0 0.0
          %389 = vmatprep.subr.mxu0 0.0
          %390 = vmatpush1.msra.mxu0 0.0
          %391 = vmatprep.subr.mxu0 0.0
          %392 = vmatpush1.msra.mxu0 0.0
          %393 = vmatprep.subr.mxu0 0.0
          %394 = vmatpush1.msra.mxu0 0.0
          %395 = vmatprep.subr.mxu0 0.0
          %396 = vmatpush1.msra.mxu0 0.0
          %397 = vmatprep.subr.mxu0 0.0
          %398 = vmatpush1.msra.mxu0 0.0
          %399 = vmatprep.subr.mxu0 0.0
          %400 = vmatpush1.msra.mxu0 0.0
          %401 = vmatprep.subr.mxu0 0.0
          %402 = vmatpush1.msra.mxu0 0.0
          %403 = vmatprep.subr.mxu0 0.0
          %404 = vmatpush1.msra.mxu0 0.0
          %405 = vmatprep.mubr.f32.mxu0 0.0
          %406 = vmatmul.mubr.f32.gmra.mrb[0].mxu0 %v254
          %v407 = vpop.f32.mrb[0].mxu0
          %v408 = vadd.f32 %v339, %v407
          %v409 = vpop.f32.mrb[0].mxu0
          %410 = vdwg.mxu0
          %411 = vst.msk [vmem:[#allocation3] sm:$0xff] %vm326, %v408
          %s412 = scalar_lea.vmem %s1, 288
          %v413 = vld [vmem:[%s412] sm:$0xff]
          %v414 = vld [vmem:[%s412 + $0x8] sm:$0xff]
          %v415 = vld [vmem:[%s412 + $0x10] sm:$0xff]
          %v416 = vld [vmem:[%s412 + $0x18] sm:$0xff]
          %s417 = scalar_lea.vmem %s2, 9
          %v418 = vld [vmem:[%s417] sm:$0x1]
          %v420 = vlaneseq
          %v421 = vshrl.u32 %v420, 7
          %v422 = vsub.s32 0, %v421
          %v423 = vrot.slane %v418, %v422
          %425 = vmatprep.subr.mxu0 0.0
          %426 = vmatpush1.msra.mxu0 %v413
          %427 = vmatprep.subr.mxu0 0.0
          %428 = vmatpush1.msra.mxu0 %v414
          %429 = vmatprep.subr.mxu0 0.0
          %430 = vmatpush1.msra.mxu0 %v415
          %431 = vmatprep.subr.mxu0 0.0
          %432 = vmatpush1.msra.mxu0 %v416
          %433 = vmatprep.subr.mxu0 0.0
          %434 = vmatpush1.msra.mxu0 0.0
          %435 = vmatprep.subr.mxu0 0.0
          %436 = vmatpush1.msra.mxu0 0.0
          %437 = vmatprep.subr.mxu0 0.0
          %438 = vmatpush1.msra.mxu0 0.0
          %439 = vmatprep.subr.mxu0 0.0
          %440 = vmatpush1.msra.mxu0 0.0
          %441 = vmatprep.subr.mxu0 0.0
          %442 = vmatpush1.msra.mxu0 0.0
          %443 = vmatprep.subr.mxu0 0.0
          %444 = vmatpush1.msra.mxu0 0.0
          %445 = vmatprep.subr.mxu0 0.0
          %446 = vmatpush1.msra.mxu0 0.0
          %447 = vmatprep.subr.mxu0 0.0
          %448 = vmatpush1.msra.mxu0 0.0
          %449 = vmatprep.subr.mxu0 0.0
          %450 = vmatpush1.msra.mxu0 0.0
          %451 = vmatprep.subr.mxu0 0.0
          %452 = vmatpush1.msra.mxu0 0.0
          %453 = vmatprep.subr.mxu0 0.0
          %454 = vmatpush1.msra.mxu0 0.0
          %455 = vmatprep.subr.mxu0 0.0
          %456 = vmatpush1.msra.mxu0 0.0
          %457 = vmatprep.subr.mxu0 0.0
          %458 = vmatpush1.msra.mxu0 0.0
          %459 = vmatprep.subr.mxu0 0.0
          %460 = vmatpush1.msra.mxu0 0.0
          %461 = vmatprep.subr.mxu0 0.0
          %462 = vmatpush1.msra.mxu0 0.0
          %463 = vmatprep.subr.mxu0 0.0
          %464 = vmatpush1.msra.mxu0 0.0
          %465 = vmatprep.subr.mxu0 0.0
          %466 = vmatpush1.msra.mxu0 0.0
          %467 = vmatprep.subr.mxu0 0.0
          %468 = vmatpush1.msra.mxu0 0.0
          %469 = vmatprep.subr.mxu0 0.0
          %470 = vmatpush1.msra.mxu0 0.0
          %471 = vmatprep.subr.mxu0 0.0
          %472 = vmatpush1.msra.mxu0 0.0
          %473 = vmatprep.subr.mxu0 0.0
          %474 = vmatpush1.msra.mxu0 0.0
          %475 = vmatprep.subr.mxu0 0.0
          %476 = vmatpush1.msra.mxu0 0.0
          %477 = vmatprep.subr.mxu0 0.0
          %478 = vmatpush1.msra.mxu0 0.0
          %479 = vmatprep.subr.mxu0 0.0
          %480 = vmatpush1.msra.mxu0 0.0
          %481 = vmatprep.subr.mxu0 0.0
          %482 = vmatpush1.msra.mxu0 0.0
          %483 = vmatprep.subr.mxu0 0.0
          %484 = vmatpush1.msra.mxu0 0.0
          %485 = vmatprep.subr.mxu0 0.0
          %486 = vmatpush1.msra.mxu0 0.0
          %487 = vmatprep.subr.mxu0 0.0
          %488 = vmatpush1.msra.mxu0 0.0
          %489 = vmatprep.mubr.f32.mxu0 0.0
          %490 = vmatmul.mubr.f32.gmra.mrb[0].mxu0 %v254
          %v491 = vpop.f32.mrb[0].mxu0
          %v492 = vadd.f32 %v423, %v491
          %v493 = vpop.f32.mrb[0].mxu0
          %494 = vdwg.mxu0
          %s495 = scalar_lea.vmem [#allocation2], 8
          %496 = vst.msk [vmem:[%s495] sm:$0xff] %vm326, %v492
          %s497 = scalar_lea.vmem %s1, 544
          %v498 = vld [vmem:[%s497] sm:$0xff]
          %v499 = vld [vmem:[%s497 + $0x8] sm:$0xff]
          %v500 = vld [vmem:[%s497 + $0x10] sm:$0xff]
          %v501 = vld [vmem:[%s497 + $0x18] sm:$0xff]
          %s502 = scalar_lea.vmem %s2, 17
          %v503 = vld [vmem:[%s502] sm:$0x1]
          %v505 = vlaneseq
          %v506 = vshrl.u32 %v505, 7
          %v507 = vsub.s32 0, %v506
          %v508 = vrot.slane %v503, %v507
          %510 = vmatprep.subr.mxu0 0.0
          %511 = vmatpush1.msra.mxu0 %v498
          %512 = vmatprep.subr.mxu0 0.0
          %513 = vmatpush1.msra.mxu0 %v499
          %514 = vmatprep.subr.mxu0 0.0
          %515 = vmatpush1.msra.mxu0 %v500
          %516 = vmatprep.subr.mxu0 0.0
          %517 = vmatpush1.msra.mxu0 %v501
          %518 = vmatprep.subr.mxu0 0.0
          %519 = vmatpush1.msra.mxu0 0.0
          %520 = vmatprep.subr.mxu0 0.0
          %521 = vmatpush1.msra.mxu0 0.0
          %522 = vmatprep.subr.mxu0 0.0
          %523 = vmatpush1.msra.mxu0 0.0
          %524 = vmatprep.subr.mxu0 0.0
          %525 = vmatpush1.msra.mxu0 0.0
          %526 = vmatprep.subr.mxu0 0.0
          %527 = vmatpush1.msra.mxu0 0.0
          %528 = vmatprep.subr.mxu0 0.0
          %529 = vmatpush1.msra.mxu0 0.0
          %530 = vmatprep.subr.mxu0 0.0
          %531 = vmatpush1.msra.mxu0 0.0
          %532 = vmatprep.subr.mxu0 0.0
          %533 = vmatpush1.msra.mxu0 0.0
          %534 = vmatprep.subr.mxu0 0.0
          %535 = vmatpush1.msra.mxu0 0.0
          %536 = vmatprep.subr.mxu0 0.0
          %537 = vmatpush1.msra.mxu0 0.0
          %538 = vmatprep.subr.mxu0 0.0
          %539 = vmatpush1.msra.mxu0 0.0
          %540 = vmatprep.subr.mxu0 0.0
          %541 = vmatpush1.msra.mxu0 0.0
          %542 = vmatprep.subr.mxu0 0.0
          %543 = vmatpush1.msra.mxu0 0.0
          %544 = vmatprep.subr.mxu0 0.0
          %545 = vmatpush1.msra.mxu0 0.0
          %546 = vmatprep.subr.mxu0 0.0
          %547 = vmatpush1.msra.mxu0 0.0
          %548 = vmatprep.subr.mxu0 0.0
          %549 = vmatpush1.msra.mxu0 0.0
          %550 = vmatprep.subr.mxu0 0.0
          %551 = vmatpush1.msra.mxu0 0.0
          %552 = vmatprep.subr.mxu0 0.0
          %553 = vmatpush1.msra.mxu0 0.0
          %554 = vmatprep.subr.mxu0 0.0
          %555 = vmatpush1.msra.mxu0 0.0
          %556 = vmatprep.subr.mxu0 0.0
          %557 = vmatpush1.msra.mxu0 0.0
          %558 = vmatprep.subr.mxu0 0.0
          %559 = vmatpush1.msra.mxu0 0.0
          %560 = vmatprep.subr.mxu0 0.0
          %561 = vmatpush1.msra.mxu0 0.0
          %562 = vmatprep.subr.mxu0 0.0
          %563 = vmatpush1.msra.mxu0 0.0
          %564 = vmatprep.subr.mxu0 0.0
          %565 = vmatpush1.msra.mxu0 0.0
          %566 = vmatprep.subr.mxu0 0.0
          %567 = vmatpush1.msra.mxu0 0.0
          %568 = vmatprep.subr.mxu0 0.0
          %569 = vmatpush1.msra.mxu0 0.0
          %570 = vmatprep.subr.mxu0 0.0
          %571 = vmatpush1.msra.mxu0 0.0
          %572 = vmatprep.subr.mxu0 0.0
          %573 = vmatpush1.msra.mxu0 0.0
          %574 = vmatprep.mubr.f32.mxu0 0.0
          %575 = vmatmul.mubr.f32.gmra.mrb[0].mxu0 %v254
          %v576 = vpop.f32.mrb[0].mxu0
          %v577 = vadd.f32 %v508, %v576
          %v578 = vpop.f32.mrb[0].mxu0
          %579 = vdwg.mxu0
          %s580 = scalar_lea.vmem [#allocation3], 8
          %581 = vst.msk [vmem:[%s580] sm:$0xff] %vm326, %v577
          %s582 = scalar_lea.vmem %s1, 320
          %v583 = vld [vmem:[%s582] sm:$0xff]
          %v584 = vld [vmem:[%s582 + $0x8] sm:$0xff]
          %v585 = vld [vmem:[%s582 + $0x10] sm:$0xff]
          %v586 = vld [vmem:[%s582 + $0x18] sm:$0xff]
          %s587 = scalar_lea.vmem %s2, 10
          %v588 = vld [vmem:[%s587] sm:$0x1]
          %v590 = vlaneseq
          %v591 = vshrl.u32 %v590, 7
          %v592 = vsub.s32 0, %v591
          %v593 = vrot.slane %v588, %v592
          %595 = vmatprep.subr.mxu0 0.0
          %596 = vmatpush1.msra.mxu0 %v583
          %597 = vmatprep.subr.mxu0 0.0
          %598 = vmatpush1.msra.mxu0 %v584
          %599 = vmatprep.subr.mxu0 0.0
          %600 = vmatpush1.msra.mxu0 %v585
          %601 = vmatprep.subr.mxu0 0.0
          %602 = vmatpush1.msra.mxu0 %v586
          %603 = vmatprep.subr.mxu0 0.0
          %604 = vmatpush1.msra.mxu0 0.0
          %605 = vmatprep.subr.mxu0 0.0
          %606 = vmatpush1.msra.mxu0 0.0
          %607 = vmatprep.subr.mxu0 0.0
          %608 = vmatpush1.msra.mxu0 0.0
          %609 = vmatprep.subr.mxu0 0.0
          %610 = vmatpush1.msra.mxu0 0.0
          %611 = vmatprep.subr.mxu0 0.0
          %612 = vmatpush1.msra.mxu0 0.0
          %613 = vmatprep.subr.mxu0 0.0
          %614 = vmatpush1.msra.mxu0 0.0
          %615 = vmatprep.subr.mxu0 0.0
          %616 = vmatpush1.msra.mxu0 0.0
          %617 = vmatprep.subr.mxu0 0.0
          %618 = vmatpush1.msra.mxu0 0.0
          %619 = vmatprep.subr.mxu0 0.0
          %620 = vmatpush1.msra.mxu0 0.0
          %621 = vmatprep.subr.mxu0 0.0
          %622 = vmatpush1.msra.mxu0 0.0
          %623 = vmatprep.subr.mxu0 0.0
          %624 = vmatpush1.msra.mxu0 0.0
          %625 = vmatprep.subr.mxu0 0.0
          %626 = vmatpush1.msra.mxu0 0.0
          %627 = vmatprep.subr.mxu0 0.0
          %628 = vmatpush1.msra.mxu0 0.0
          %629 = vmatprep.subr.mxu0 0.0
          %630 = vmatpush1.msra.mxu0 0.0
          %631 = vmatprep.subr.mxu0 0.0
          %632 = vmatpush1.msra.mxu0 0.0
          %633 = vmatprep.subr.mxu0 0.0
          %634 = vmatpush1.msra.mxu0 0.0
          %635 = vmatprep.subr.mxu0 0.0
          %636 = vmatpush1.msra.mxu0 0.0
          %637 = vmatprep.subr.mxu0 0.0
          %638 = vmatpush1.msra.mxu0 0.0
          %639 = vmatprep.subr.mxu0 0.0
          %640 = vmatpush1.msra.mxu0 0.0
          %641 = vmatprep.subr.mxu0 0.0
          %642 = vmatpush1.msra.mxu0 0.0
          %643 = vmatprep.subr.mxu0 0.0
          %644 = vmatpush1.msra.mxu0 0.0
          %645 = vmatprep.subr.mxu0 0.0
          %646 = vmatpush1.msra.mxu0 0.0
          %647 = vmatprep.subr.mxu0 0.0
          %648 = vmatpush1.msra.mxu0 0.0
          %649 = vmatprep.subr.mxu0 0.0
          %650 = vmatpush1.msra.mxu0 0.0
          %651 = vmatprep.subr.mxu0 0.0
          %652 = vmatpush1.msra.mxu0 0.0
          %653 = vmatprep.subr.mxu0 0.0
          %654 = vmatpush1.msra.mxu0 0.0
          %655 = vmatprep.subr.mxu0 0.0
          %656 = vmatpush1.msra.mxu0 0.0
          %657 = vmatprep.subr.mxu0 0.0
          %658 = vmatpush1.msra.mxu0 0.0
          %659 = vmatprep.mubr.f32.mxu0 0.0
          %660 = vmatmul.mubr.f32.gmra.mrb[0].mxu0 %v254
          %v661 = vpop.f32.mrb[0].mxu0
          %v662 = vadd.f32 %v593, %v661
          %v663 = vpop.f32.mrb[0].mxu0
          %664 = vdwg.mxu0
          %s665 = scalar_lea.vmem [#allocation2], 16
          %666 = vst.msk [vmem:[%s665] sm:$0xff] %vm326, %v662
          %s667 = scalar_lea.vmem %s1, 576
          %v668 = vld [vmem:[%s667] sm:$0xff]
          %v669 = vld [vmem:[%s667 + $0x8] sm:$0xff]
          %v670 = vld [vmem:[%s667 + $0x10] sm:$0xff]
          %v671 = vld [vmem:[%s667 + $0x18] sm:$0xff]
          %s672 = scalar_lea.vmem %s2, 18
          %v673 = vld [vmem:[%s672] sm:$0x1]
          %v675 = vlaneseq
          %v676 = vshrl.u32 %v675, 7
          %v677 = vsub.s32 0, %v676
          %v678 = vrot.slane %v673, %v677
          %680 = vmatprep.subr.mxu0 0.0
          %681 = vmatpush1.msra.mxu0 %v668
          %682 = vmatprep.subr.mxu0 0.0
          %683 = vmatpush1.msra.mxu0 %v669
          %684 = vmatprep.subr.mxu0 0.0
          %685 = vmatpush1.msra.mxu0 %v670
          %686 = vmatprep.subr.mxu0 0.0
          %687 = vmatpush1.msra.mxu0 %v671
          %688 = vmatprep.subr.mxu0 0.0
          %689 = vmatpush1.msra.mxu0 0.0
          %690 = vmatprep.subr.mxu0 0.0
          %691 = vmatpush1.msra.mxu0 0.0
          %692 = vmatprep.subr.mxu0 0.0
          %693 = vmatpush1.msra.mxu0 0.0
          %694 = vmatprep.subr.mxu0 0.0
          %695 = vmatpush1.msra.mxu0 0.0
          %696 = vmatprep.subr.mxu0 0.0
          %697 = vmatpush1.msra.mxu0 0.0
          %698 = vmatprep.subr.mxu0 0.0
          %699 = vmatpush1.msra.mxu0 0.0
          %700 = vmatprep.subr.mxu0 0.0
          %701 = vmatpush1.msra.mxu0 0.0
          %702 = vmatprep.subr.mxu0 0.0
          %703 = vmatpush1.msra.mxu0 0.0
          %704 = vmatprep.subr.mxu0 0.0
          %705 = vmatpush1.msra.mxu0 0.0
          %706 = vmatprep.subr.mxu0 0.0
          %707 = vmatpush1.msra.mxu0 0.0
          %708 = vmatprep.subr.mxu0 0.0
          %709 = vmatpush1.msra.mxu0 0.0
          %710 = vmatprep.subr.mxu0 0.0
          %711 = vmatpush1.msra.mxu0 0.0
          %712 = vmatprep.subr.mxu0 0.0
          %713 = vmatpush1.msra.mxu0 0.0
          %714 = vmatprep.subr.mxu0 0.0
          %715 = vmatpush1.msra.mxu0 0.0
          %716 = vmatprep.subr.mxu0 0.0
          %717 = vmatpush1.msra.mxu0 0.0
          %718 = vmatprep.subr.mxu0 0.0
          %719 = vmatpush1.msra.mxu0 0.0
          %720 = vmatprep.subr.mxu0 0.0
          %721 = vmatpush1.msra.mxu0 0.0
          %722 = vmatprep.subr.mxu0 0.0
          %723 = vmatpush1.msra.mxu0 0.0
          %724 = vmatprep.subr.mxu0 0.0
          %725 = vmatpush1.msra.mxu0 0.0
          %726 = vmatprep.subr.mxu0 0.0
          %727 = vmatpush1.msra.mxu0 0.0
          %728 = vmatprep.subr.mxu0 0.0
          %729 = vmatpush1.msra.mxu0 0.0
          %730 = vmatprep.subr.mxu0 0.0
          %731 = vmatpush1.msra.mxu0 0.0
          %732 = vmatprep.subr.mxu0 0.0
          %733 = vmatpush1.msra.mxu0 0.0
          %734 = vmatprep.subr.mxu0 0.0
          %735 = vmatpush1.msra.mxu0 0.0
          %736 = vmatprep.subr.mxu0 0.0
          %737 = vmatpush1.msra.mxu0 0.0
          %738 = vmatprep.subr.mxu0 0.0
          %739 = vmatpush1.msra.mxu0 0.0
          %740 = vmatprep.subr.mxu0 0.0
          %741 = vmatpush1.msra.mxu0 0.0
          %742 = vmatprep.subr.mxu0 0.0
          %743 = vmatpush1.msra.mxu0 0.0
          %744 = vmatprep.mubr.f32.mxu0 0.0
          %745 = vmatmul.mubr.f32.gmra.mrb[0].mxu0 %v254
          %v746 = vpop.f32.mrb[0].mxu0
          %v747 = vadd.f32 %v678, %v746
          %v748 = vpop.f32.mrb[0].mxu0
          %749 = vdwg.mxu0
          %s750 = scalar_lea.vmem [#allocation3], 16
          %751 = vst.msk [vmem:[%s750] sm:$0xff] %vm326, %v747
          %s752 = scalar_lea.vmem %s1, 352
          %v753 = vld [vmem:[%s752] sm:$0xff]
          %v754 = vld [vmem:[%s752 + $0x8] sm:$0xff]
          %v755 = vld [vmem:[%s752 + $0x10] sm:$0xff]
          %v756 = vld [vmem:[%s752 + $0x18] sm:$0xff]
          %s757 = scalar_lea.vmem %s2, 11
          %v758 = vld [vmem:[%s757] sm:$0x1]
          %v760 = vlaneseq
          %v761 = vshrl.u32 %v760, 7
          %v762 = vsub.s32 0, %v761
          %v763 = vrot.slane %v758, %v762
          %765 = vmatprep.subr.mxu0 0.0
          %766 = vmatpush1.msra.mxu0 %v753
          %767 = vmatprep.subr.mxu0 0.0
          %768 = vmatpush1.msra.mxu0 %v754
          %769 = vmatprep.subr.mxu0 0.0
          %770 = vmatpush1.msra.mxu0 %v755
          %771 = vmatprep.subr.mxu0 0.0
          %772 = vmatpush1.msra.mxu0 %v756
          %773 = vmatprep.subr.mxu0 0.0
          %774 = vmatpush1.msra.mxu0 0.0
          %775 = vmatprep.subr.mxu0 0.0
          %776 = vmatpush1.msra.mxu0 0.0
          %777 = vmatprep.subr.mxu0 0.0
          %778 = vmatpush1.msra.mxu0 0.0
          %779 = vmatprep.subr.mxu0 0.0
          %780 = vmatpush1.msra.mxu0 0.0
          %781 = vmatprep.subr.mxu0 0.0
          %782 = vmatpush1.msra.mxu0 0.0
          %783 = vmatprep.subr.mxu0 0.0
          %784 = vmatpush1.msra.mxu0 0.0
          %785 = vmatprep.subr.mxu0 0.0
          %786 = vmatpush1.msra.mxu0 0.0
          %787 = vmatprep.subr.mxu0 0.0
          %788 = vmatpush1.msra.mxu0 0.0
          %789 = vmatprep.subr.mxu0 0.0
          %790 = vmatpush1.msra.mxu0 0.0
          %791 = vmatprep.subr.mxu0 0.0
          %792 = vmatpush1.msra.mxu0 0.0
          %793 = vmatprep.subr.mxu0 0.0
          %794 = vmatpush1.msra.mxu0 0.0
          %795 = vmatprep.subr.mxu0 0.0
          %796 = vmatpush1.msra.mxu0 0.0
          %797 = vmatprep.subr.mxu0 0.0
          %798 = vmatpush1.msra.mxu0 0.0
          %799 = vmatprep.subr.mxu0 0.0
          %800 = vmatpush1.msra.mxu0 0.0
          %801 = vmatprep.subr.mxu0 0.0
          %802 = vmatpush1.msra.mxu0 0.0
          %803 = vmatprep.subr.mxu0 0.0
          %804 = vmatpush1.msra.mxu0 0.0
          %805 = vmatprep.subr.mxu0 0.0
          %806 = vmatpush1.msra.mxu0 0.0
          %807 = vmatprep.subr.mxu0 0.0
          %808 = vmatpush1.msra.mxu0 0.0
          %809 = vmatprep.subr.mxu0 0.0
          %810 = vmatpush1.msra.mxu0 0.0
          %811 = vmatprep.subr.mxu0 0.0
          %812 = vmatpush1.msra.mxu0 0.0
          %813 = vmatprep.subr.mxu0 0.0
          %814 = vmatpush1.msra.mxu0 0.0
          %815 = vmatprep.subr.mxu0 0.0
          %816 = vmatpush1.msra.mxu0 0.0
          %817 = vmatprep.subr.mxu0 0.0
          %818 = vmatpush1.msra.mxu0 0.0
          %819 = vmatprep.subr.mxu0 0.0
          %820 = vmatpush1.msra.mxu0 0.0
          %821 = vmatprep.subr.mxu0 0.0
          %822 = vmatpush1.msra.mxu0 0.0
          %823 = vmatprep.subr.mxu0 0.0
          %824 = vmatpush1.msra.mxu0 0.0
          %825 = vmatprep.subr.mxu0 0.0
          %826 = vmatpush1.msra.mxu0 0.0
          %827 = vmatprep.subr.mxu0 0.0
          %828 = vmatpush1.msra.mxu0 0.0
          %829 = vmatprep.mubr.f32.mxu0 0.0
          %830 = vmatmul.mubr.f32.gmra.mrb[0].mxu0 %v254
          %v831 = vpop.f32.mrb[0].mxu0
          %v832 = vadd.f32 %v763, %v831
          %v833 = vpop.f32.mrb[0].mxu0
          %834 = vdwg.mxu0
          %s835 = scalar_lea.vmem [#allocation2], 24
          %836 = vst.msk [vmem:[%s835] sm:$0xff] %vm326, %v832
          %s837 = scalar_lea.vmem %s1, 608
          %v838 = vld [vmem:[%s837] sm:$0xff]
          %v839 = vld [vmem:[%s837 + $0x8] sm:$0xff]
          %v840 = vld [vmem:[%s837 + $0x10] sm:$0xff]
          %v841 = vld [vmem:[%s837 + $0x18] sm:$0xff]
          %s842 = scalar_lea.vmem %s2, 19
          %v843 = vld [vmem:[%s842] sm:$0x1]
          %v845 = vlaneseq
          %v846 = vshrl.u32 %v845, 7
          %v847 = vsub.s32 0, %v846
          %v848 = vrot.slane %v843, %v847
          %850 = vmatprep.subr.mxu0 0.0
          %851 = vmatpush1.msra.mxu0 %v838
          %852 = vmatprep.subr.mxu0 0.0
          %853 = vmatpush1.msra.mxu0 %v839
          %854 = vmatprep.subr.mxu0 0.0
          %855 = vmatpush1.msra.mxu0 %v840
          %856 = vmatprep.subr.mxu0 0.0
          %857 = vmatpush1.msra.mxu0 %v841
          %858 = vmatprep.subr.mxu0 0.0
          %859 = vmatpush1.msra.mxu0 0.0
          %860 = vmatprep.subr.mxu0 0.0
          %861 = vmatpush1.msra.mxu0 0.0
          %862 = vmatprep.subr.mxu0 0.0
          %863 = vmatpush1.msra.mxu0 0.0
          %864 = vmatprep.subr.mxu0 0.0
          %865 = vmatpush1.msra.mxu0 0.0
          %866 = vmatprep.subr.mxu0 0.0
          %867 = vmatpush1.msra.mxu0 0.0
          %868 = vmatprep.subr.mxu0 0.0
          %869 = vmatpush1.msra.mxu0 0.0
          %870 = vmatprep.subr.mxu0 0.0
          %871 = vmatpush1.msra.mxu0 0.0
          %872 = vmatprep.subr.mxu0 0.0
          %873 = vmatpush1.msra.mxu0 0.0
          %874 = vmatprep.subr.mxu0 0.0
          %875 = vmatpush1.msra.mxu0 0.0
          %876 = vmatprep.subr.mxu0 0.0
          %877 = vmatpush1.msra.mxu0 0.0
          %878 = vmatprep.subr.mxu0 0.0
          %879 = vmatpush1.msra.mxu0 0.0
          %880 = vmatprep.subr.mxu0 0.0
          %881 = vmatpush1.msra.mxu0 0.0
          %882 = vmatprep.subr.mxu0 0.0
          %883 = vmatpush1.msra.mxu0 0.0
          %884 = vmatprep.subr.mxu0 0.0
          %885 = vmatpush1.msra.mxu0 0.0
          %886 = vmatprep.subr.mxu0 0.0
          %887 = vmatpush1.msra.mxu0 0.0
          %888 = vmatprep.subr.mxu0 0.0
          %889 = vmatpush1.msra.mxu0 0.0
          %890 = vmatprep.subr.mxu0 0.0
          %891 = vmatpush1.msra.mxu0 0.0
          %892 = vmatprep.subr.mxu0 0.0
          %893 = vmatpush1.msra.mxu0 0.0
          %894 = vmatprep.subr.mxu0 0.0
          %895 = vmatpush1.msra.mxu0 0.0
          %896 = vmatprep.subr.mxu0 0.0
          %897 = vmatpush1.msra.mxu0 0.0
          %898 = vmatprep.subr.mxu0 0.0
          %899 = vmatpush1.msra.mxu0 0.0
          %900 = vmatprep.subr.mxu0 0.0
          %901 = vmatpush1.msra.mxu0 0.0
          %902 = vmatprep.subr.mxu0 0.0
          %903 = vmatpush1.msra.mxu0 0.0
          %904 = vmatprep.subr.mxu0 0.0
          %905 = vmatpush1.msra.mxu0 0.0
          %906 = vmatprep.subr.mxu0 0.0
          %907 = vmatpush1.msra.mxu0 0.0
          %908 = vmatprep.subr.mxu0 0.0
          %909 = vmatpush1.msra.mxu0 0.0
          %910 = vmatprep.subr.mxu0 0.0
          %911 = vmatpush1.msra.mxu0 0.0
          %912 = vmatprep.subr.mxu0 0.0
          %913 = vmatpush1.msra.mxu0 0.0
          %914 = vmatprep.mubr.f32.mxu0 0.0
          %915 = vmatmul.mubr.f32.gmra.mrb[0].mxu0 %v254
          %v916 = vpop.f32.mrb[0].mxu0
          %v917 = vadd.f32 %v848, %v916
          %v918 = vpop.f32.mrb[0].mxu0
          %919 = vdwg.mxu0
          %s920 = scalar_lea.vmem [#allocation3], 24
          %921 = vst.msk [vmem:[%s920] sm:$0xff] %vm326, %v917
          %s922 = scalar_lea.vmem %s1, 384
          %v923 = vld [vmem:[%s922] sm:$0xff]
          %v924 = vld [vmem:[%s922 + $0x8] sm:$0xff]
          %v925 = vld [vmem:[%s922 + $0x10] sm:$0xff]
          %v926 = vld [vmem:[%s922 + $0x18] sm:$0xff]
          %s927 = scalar_lea.vmem %s2, 12
          %v928 = vld [vmem:[%s927] sm:$0x1]
          %v930 = vlaneseq
          %v931 = vshrl.u32 %v930, 7
          %v932 = vsub.s32 0, %v931
          %v933 = vrot.slane %v928, %v932
          %935 = vmatprep.subr.mxu0 0.0
          %936 = vmatpush1.msra.mxu0 %v923
          %937 = vmatprep.subr.mxu0 0.0
          %938 = vmatpush1.msra.mxu0 %v924
          %939 = vmatprep.subr.mxu0 0.0
          %940 = vmatpush1.msra.mxu0 %v925
          %941 = vmatprep.subr.mxu0 0.0
          %942 = vmatpush1.msra.mxu0 %v926
          %943 = vmatprep.subr.mxu0 0.0
          %944 = vmatpush1.msra.mxu0 0.0
          %945 = vmatprep.subr.mxu0 0.0
          %946 = vmatpush1.msra.mxu0 0.0
          %947 = vmatprep.subr.mxu0 0.0
          %948 = vmatpush1.msra.mxu0 0.0
          %949 = vmatprep.subr.mxu0 0.0
          %950 = vmatpush1.msra.mxu0 0.0
          %951 = vmatprep.subr.mxu0 0.0
          %952 = vmatpush1.msra.mxu0 0.0
          %953 = vmatprep.subr.mxu0 0.0
          %954 = vmatpush1.msra.mxu0 0.0
          %955 = vmatprep.subr.mxu0 0.0
          %956 = vmatpush1.msra.mxu0 0.0
          %957 = vmatprep.subr.mxu0 0.0
          %958 = vmatpush1.msra.mxu0 0.0
          %959 = vmatprep.subr.mxu0 0.0
          %960 = vmatpush1.msra.mxu0 0.0
          %961 = vmatprep.subr.mxu0 0.0
          %962 = vmatpush1.msra.mxu0 0.0
          %963 = vmatprep.subr.mxu0 0.0
          %964 = vmatpush1.msra.mxu0 0.0
          %965 = vmatprep.subr.mxu0 0.0
          %966 = vmatpush1.msra.mxu0 0.0
          %967 = vmatprep.subr.mxu0 0.0
          %968 = vmatpush1.msra.mxu0 0.0
          %969 = vmatprep.subr.mxu0 0.0
          %970 = vmatpush1.msra.mxu0 0.0
          %971 = vmatprep.subr.mxu0 0.0
          %972 = vmatpush1.msra.mxu0 0.0
          %973 = vmatprep.subr.mxu0 0.0
          %974 = vmatpush1.msra.mxu0 0.0
          %975 = vmatprep.subr.mxu0 0.0
          %976 = vmatpush1.msra.mxu0 0.0
          %977 = vmatprep.subr.mxu0 0.0
          %978 = vmatpush1.msra.mxu0 0.0
          %979 = vmatprep.subr.mxu0 0.0
          %980 = vmatpush1.msra.mxu0 0.0
          %981 = vmatprep.subr.mxu0 0.0
          %982 = vmatpush1.msra.mxu0 0.0
          %983 = vmatprep.subr.mxu0 0.0
          %984 = vmatpush1.msra.mxu0 0.0
          %985 = vmatprep.subr.mxu0 0.0
          %986 = vmatpush1.msra.mxu0 0.0
          %987 = vmatprep.subr.mxu0 0.0
          %988 = vmatpush1.msra.mxu0 0.0
          %989 = vmatprep.subr.mxu0 0.0
          %990 = vmatpush1.msra.mxu0 0.0
          %991 = vmatprep.subr.mxu0 0.0
          %992 = vmatpush1.msra.mxu0 0.0
          %993 = vmatprep.subr.mxu0 0.0
          %994 = vmatpush1.msra.mxu0 0.0
          %995 = vmatprep.subr.mxu0 0.0
          %996 = vmatpush1.msra.mxu0 0.0
          %997 = vmatprep.subr.mxu0 0.0
          %998 = vmatpush1.msra.mxu0 0.0
          %999 = vmatprep.mubr.f32.mxu0 0.0
          %1000 = vmatmul.mubr.f32.gmra.mrb[0].mxu0 %v254
          %v1001 = vpop.f32.mrb[0].mxu0
          %v1002 = vadd.f32 %v933, %v1001
          %v1003 = vpop.f32.mrb[0].mxu0
          %1004 = vdwg.mxu0
          %s1005 = scalar_lea.vmem [#allocation2], 32
          %1006 = vst.msk [vmem:[%s1005] sm:$0xff] %vm326, %v1002
          %s1007 = scalar_lea.vmem %s1, 640
          %v1008 = vld [vmem:[%s1007] sm:$0xff]
          %v1009 = vld [vmem:[%s1007 + $0x8] sm:$0xff]
          %v1010 = vld [vmem:[%s1007 + $0x10] sm:$0xff]
          %v1011 = vld [vmem:[%s1007 + $0x18] sm:$0xff]
          %s1012 = scalar_lea.vmem %s2, 20
          %v1013 = vld [vmem:[%s1012] sm:$0x1]
          %v1015 = vlaneseq
          %v1016 = vshrl.u32 %v1015, 7
          %v1017 = vsub.s32 0, %v1016
          %v1018 = vrot.slane %v1013, %v1017
          %1020 = vmatprep.subr.mxu0 0.0
          %1021 = vmatpush1.msra.mxu0 %v1008
          %1022 = vmatprep.subr.mxu0 0.0
          %1023 = vmatpush1.msra.mxu0 %v1009
          %1024 = vmatprep.subr.mxu0 0.0
          %1025 = vmatpush1.msra.mxu0 %v1010
          %1026 = vmatprep.subr.mxu0 0.0
          %1027 = vmatpush1.msra.mxu0 %v1011
          %1028 = vmatprep.subr.mxu0 0.0
          %1029 = vmatpush1.msra.mxu0 0.0
          %1030 = vmatprep.subr.mxu0 0.0
          %1031 = vmatpush1.msra.mxu0 0.0
          %1032 = vmatprep.subr.mxu0 0.0
          %1033 = vmatpush1.msra.mxu0 0.0
          %1034 = vmatprep.subr.mxu0 0.0
          %1035 = vmatpush1.msra.mxu0 0.0
          %1036 = vmatprep.subr.mxu0 0.0
          %1037 = vmatpush1.msra.mxu0 0.0
          %1038 = vmatprep.subr.mxu0 0.0
          %1039 = vmatpush1.msra.mxu0 0.0
          %1040 = vmatprep.subr.mxu0 0.0
          %1041 = vmatpush1.msra.mxu0 0.0
          %1042 = vmatprep.subr.mxu0 0.0
          %1043 = vmatpush1.msra.mxu0 0.0
          %1044 = vmatprep.subr.mxu0 0.0
          %1045 = vmatpush1.msra.mxu0 0.0
          %1046 = vmatprep.subr.mxu0 0.0
          %1047 = vmatpush1.msra.mxu0 0.0
          %1048 = vmatprep.subr.mxu0 0.0
          %1049 = vmatpush1.msra.mxu0 0.0
          %1050 = vmatprep.subr.mxu0 0.0
          %1051 = vmatpush1.msra.mxu0 0.0
          %1052 = vmatprep.subr.mxu0 0.0
          %1053 = vmatpush1.msra.mxu0 0.0
          %1054 = vmatprep.subr.mxu0 0.0
          %1055 = vmatpush1.msra.mxu0 0.0
          %1056 = vmatprep.subr.mxu0 0.0
          %1057 = vmatpush1.msra.mxu0 0.0
          %1058 = vmatprep.subr.mxu0 0.0
          %1059 = vmatpush1.msra.mxu0 0.0
          %1060 = vmatprep.subr.mxu0 0.0
          %1061 = vmatpush1.msra.mxu0 0.0
          %1062 = vmatprep.subr.mxu0 0.0
          %1063 = vmatpush1.msra.mxu0 0.0
          %1064 = vmatprep.subr.mxu0 0.0
          %1065 = vmatpush1.msra.mxu0 0.0
          %1066 = vmatprep.subr.mxu0 0.0
          %1067 = vmatpush1.msra.mxu0 0.0
          %1068 = vmatprep.subr.mxu0 0.0
          %1069 = vmatpush1.msra.mxu0 0.0
          %1070 = vmatprep.subr.mxu0 0.0
          %1071 = vmatpush1.msra.mxu0 0.0
          %1072 = vmatprep.subr.mxu0 0.0
          %1073 = vmatpush1.msra.mxu0 0.0
          %1074 = vmatprep.subr.mxu0 0.0
          %1075 = vmatpush1.msra.mxu0 0.0
          %1076 = vmatprep.subr.mxu0 0.0
          %1077 = vmatpush1.msra.mxu0 0.0
          %1078 = vmatprep.subr.mxu0 0.0
          %1079 = vmatpush1.msra.mxu0 0.0
          %1080 = vmatprep.subr.mxu0 0.0
          %1081 = vmatpush1.msra.mxu0 0.0
          %1082 = vmatprep.subr.mxu0 0.0
          %1083 = vmatpush1.msra.mxu0 0.0
          %1084 = vmatprep.mubr.f32.mxu0 0.0
          %1085 = vmatmul.mubr.f32.gmra.mrb[0].mxu0 %v254
          %v1086 = vpop.f32.mrb[0].mxu0
          %v1087 = vadd.f32 %v1018, %v1086
          %v1088 = vpop.f32.mrb[0].mxu0
          %1089 = vdwg.mxu0
          %s1090 = scalar_lea.vmem [#allocation3], 32
          %1091 = vst.msk [vmem:[%s1090] sm:$0xff] %vm326, %v1087
          %s1092 = scalar_lea.vmem %s1, 416
          %v1093 = vld [vmem:[%s1092] sm:$0xff]
          %v1094 = vld [vmem:[%s1092 + $0x8] sm:$0xff]
          %v1095 = vld [vmem:[%s1092 + $0x10] sm:$0xff]
          %v1096 = vld [vmem:[%s1092 + $0x18] sm:$0xff]
          %s1097 = scalar_lea.vmem %s2, 13
          %v1098 = vld [vmem:[%s1097] sm:$0x1]
          %v1100 = vlaneseq
          %v1101 = vshrl.u32 %v1100, 7
          %v1102 = vsub.s32 0, %v1101
          %v1103 = vrot.slane %v1098, %v1102
          %1105 = vmatprep.subr.mxu0 0.0
          %1106 = vmatpush1.msra.mxu0 %v1093
          %1107 = vmatprep.subr.mxu0 0.0
          %1108 = vmatpush1.msra.mxu0 %v1094
          %1109 = vmatprep.subr.mxu0 0.0
          %1110 = vmatpush1.msra.mxu0 %v1095
          %1111 = vmatprep.subr.mxu0 0.0
          %1112 = vmatpush1.msra.mxu0 %v1096
          %1113 = vmatprep.subr.mxu0 0.0
          %1114 = vmatpush1.msra.mxu0 0.0
          %1115 = vmatprep.subr.mxu0 0.0
          %1116 = vmatpush1.msra.mxu0 0.0
          %1117 = vmatprep.subr.mxu0 0.0
          %1118 = vmatpush1.msra.mxu0 0.0
          %1119 = vmatprep.subr.mxu0 0.0
          %1120 = vmatpush1.msra.mxu0 0.0
          %1121 = vmatprep.subr.mxu0 0.0
          %1122 = vmatpush1.msra.mxu0 0.0
          %1123 = vmatprep.subr.mxu0 0.0
          %1124 = vmatpush1.msra.mxu0 0.0
          %1125 = vmatprep.subr.mxu0 0.0
          %1126 = vmatpush1.msra.mxu0 0.0
          %1127 = vmatprep.subr.mxu0 0.0
          %1128 = vmatpush1.msra.mxu0 0.0
          %1129 = vmatprep.subr.mxu0 0.0
          %1130 = vmatpush1.msra.mxu0 0.0
          %1131 = vmatprep.subr.mxu0 0.0
          %1132 = vmatpush1.msra.mxu0 0.0
          %1133 = vmatprep.subr.mxu0 0.0
          %1134 = vmatpush1.msra.mxu0 0.0
          %1135 = vmatprep.subr.mxu0 0.0
          %1136 = vmatpush1.msra.mxu0 0.0
          %1137 = vmatprep.subr.mxu0 0.0
          %1138 = vmatpush1.msra.mxu0 0.0
          %1139 = vmatprep.subr.mxu0 0.0
          %1140 = vmatpush1.msra.mxu0 0.0
          %1141 = vmatprep.subr.mxu0 0.0
          %1142 = vmatpush1.msra.mxu0 0.0
          %1143 = vmatprep.subr.mxu0 0.0
          %1144 = vmatpush1.msra.mxu0 0.0
          %1145 = vmatprep.subr.mxu0 0.0
          %1146 = vmatpush1.msra.mxu0 0.0
          %1147 = vmatprep.subr.mxu0 0.0
          %1148 = vmatpush1.msra.mxu0 0.0
          %1149 = vmatprep.subr.mxu0 0.0
          %1150 = vmatpush1.msra.mxu0 0.0
          %1151 = vmatprep.subr.mxu0 0.0
          %1152 = vmatpush1.msra.mxu0 0.0
          %1153 = vmatprep.subr.mxu0 0.0
          %1154 = vmatpush1.msra.mxu0 0.0
          %1155 = vmatprep.subr.mxu0 0.0
          %1156 = vmatpush1.msra.mxu0 0.0
          %1157 = vmatprep.subr.mxu0 0.0
          %1158 = vmatpush1.msra.mxu0 0.0
          %1159 = vmatprep.subr.mxu0 0.0
          %1160 = vmatpush1.msra.mxu0 0.0
          %1161 = vmatprep.subr.mxu0 0.0
          %1162 = vmatpush1.msra.mxu0 0.0
          %1163 = vmatprep.subr.mxu0 0.0
          %1164 = vmatpush1.msra.mxu0 0.0
          %1165 = vmatprep.subr.mxu0 0.0
          %1166 = vmatpush1.msra.mxu0 0.0
          %1167 = vmatprep.subr.mxu0 0.0
          %1168 = vmatpush1.msra.mxu0 0.0
          %1169 = vmatprep.mubr.f32.mxu0 0.0
          %1170 = vmatmul.mubr.f32.gmra.mrb[0].mxu0 %v254
          %v1171 = vpop.f32.mrb[0].mxu0
          %v1172 = vadd.f32 %v1103, %v1171
          %v1173 = vpop.f32.mrb[0].mxu0
          %1174 = vdwg.mxu0
          %s1175 = scalar_lea.vmem [#allocation2], 40
          %1176 = vst.msk [vmem:[%s1175] sm:$0xff] %vm326, %v1172
          %s1177 = scalar_lea.vmem %s1, 672
          %v1178 = vld [vmem:[%s1177] sm:$0xff]
          %v1179 = vld [vmem:[%s1177 + $0x8] sm:$0xff]
          %v1180 = vld [vmem:[%s1177 + $0x10] sm:$0xff]
          %v1181 = vld [vmem:[%s1177 + $0x18] sm:$0xff]
          %s1182 = scalar_lea.vmem %s2, 21
          %v1183 = vld [vmem:[%s1182] sm:$0x1]
          %v1185 = vlaneseq
          %v1186 = vshrl.u32 %v1185, 7
          %v1187 = vsub.s32 0, %v1186
          %v1188 = vrot.slane %v1183, %v1187
          %1190 = vmatprep.subr.mxu0 0.0
          %1191 = vmatpush1.msra.mxu0 %v1178
          %1192 = vmatprep.subr.mxu0 0.0
          %1193 = vmatpush1.msra.mxu0 %v1179
          %1194 = vmatprep.subr.mxu0 0.0
          %1195 = vmatpush1.msra.mxu0 %v1180
          %1196 = vmatprep.subr.mxu0 0.0
          %1197 = vmatpush1.msra.mxu0 %v1181
          %1198 = vmatprep.subr.mxu0 0.0
          %1199 = vmatpush1.msra.mxu0 0.0
          %1200 = vmatprep.subr.mxu0 0.0
          %1201 = vmatpush1.msra.mxu0 0.0
          %1202 = vmatprep.subr.mxu0 0.0
          %1203 = vmatpush1.msra.mxu0 0.0
          %1204 = vmatprep.subr.mxu0 0.0
          %1205 = vmatpush1.msra.mxu0 0.0
          %1206 = vmatprep.subr.mxu0 0.0
          %1207 = vmatpush1.msra.mxu0 0.0
          %1208 = vmatprep.subr.mxu0 0.0
          %1209 = vmatpush1.msra.mxu0 0.0
          %1210 = vmatprep.subr.mxu0 0.0
          %1211 = vmatpush1.msra.mxu0 0.0
          %1212 = vmatprep.subr.mxu0 0.0
          %1213 = vmatpush1.msra.mxu0 0.0
          %1214 = vmatprep.subr.mxu0 0.0
          %1215 = vmatpush1.msra.mxu0 0.0
          %1216 = vmatprep.subr.mxu0 0.0
          %1217 = vmatpush1.msra.mxu0 0.0
          %1218 = vmatprep.subr.mxu0 0.0
          %1219 = vmatpush1.msra.mxu0 0.0
          %1220 = vmatprep.subr.mxu0 0.0
          %1221 = vmatpush1.msra.mxu0 0.0
          %1222 = vmatprep.subr.mxu0 0.0
          %1223 = vmatpush1.msra.mxu0 0.0
          %1224 = vmatprep.subr.mxu0 0.0
          %1225 = vmatpush1.msra.mxu0 0.0
          %1226 = vmatprep.subr.mxu0 0.0
          %1227 = vmatpush1.msra.mxu0 0.0
          %1228 = vmatprep.subr.mxu0 0.0
          %1229 = vmatpush1.msra.mxu0 0.0
          %1230 = vmatprep.subr.mxu0 0.0
          %1231 = vmatpush1.msra.mxu0 0.0
          %1232 = vmatprep.subr.mxu0 0.0
          %1233 = vmatpush1.msra.mxu0 0.0
          %1234 = vmatprep.subr.mxu0 0.0
          %1235 = vmatpush1.msra.mxu0 0.0
          %1236 = vmatprep.subr.mxu0 0.0
          %1237 = vmatpush1.msra.mxu0 0.0
          %1238 = vmatprep.subr.mxu0 0.0
          %1239 = vmatpush1.msra.mxu0 0.0
          %1240 = vmatprep.subr.mxu0 0.0
          %1241 = vmatpush1.msra.mxu0 0.0
          %1242 = vmatprep.subr.mxu0 0.0
          %1243 = vmatpush1.msra.mxu0 0.0
          %1244 = vmatprep.subr.mxu0 0.0
          %1245 = vmatpush1.msra.mxu0 0.0
          %1246 = vmatprep.subr.mxu0 0.0
          %1247 = vmatpush1.msra.mxu0 0.0
          %1248 = vmatprep.subr.mxu0 0.0
          %1249 = vmatpush1.msra.mxu0 0.0
          %1250 = vmatprep.subr.mxu0 0.0
          %1251 = vmatpush1.msra.mxu0 0.0
          %1252 = vmatprep.subr.mxu0 0.0
          %1253 = vmatpush1.msra.mxu0 0.0
          %1254 = vmatprep.mubr.f32.mxu0 0.0
          %1255 = vmatmul.mubr.f32.gmra.mrb[0].mxu0 %v254
          %v1256 = vpop.f32.mrb[0].mxu0
          %v1257 = vadd.f32 %v1188, %v1256
          %v1258 = vpop.f32.mrb[0].mxu0
          %1259 = vdwg.mxu0
          %s1260 = scalar_lea.vmem [#allocation3], 40
          %1261 = vst.msk [vmem:[%s1260] sm:$0xff] %vm326, %v1257
          %s1262 = scalar_lea.vmem %s1, 448
          %v1263 = vld [vmem:[%s1262] sm:$0xff]
          %v1264 = vld [vmem:[%s1262 + $0x8] sm:$0xff]
          %v1265 = vld [vmem:[%s1262 + $0x10] sm:$0xff]
          %v1266 = vld [vmem:[%s1262 + $0x18] sm:$0xff]
          %s1267 = scalar_lea.vmem %s2, 14
          %v1268 = vld [vmem:[%s1267] sm:$0x1]
          %v1270 = vlaneseq
          %v1271 = vshrl.u32 %v1270, 7
          %v1272 = vsub.s32 0, %v1271
          %v1273 = vrot.slane %v1268, %v1272
          %1275 = vmatprep.subr.mxu0 0.0
          %1276 = vmatpush1.msra.mxu0 %v1263
          %1277 = vmatprep.subr.mxu0 0.0
          %1278 = vmatpush1.msra.mxu0 %v1264
          %1279 = vmatprep.subr.mxu0 0.0
          %1280 = vmatpush1.msra.mxu0 %v1265
          %1281 = vmatprep.subr.mxu0 0.0
          %1282 = vmatpush1.msra.mxu0 %v1266
          %1283 = vmatprep.subr.mxu0 0.0
          %1284 = vmatpush1.msra.mxu0 0.0
          %1285 = vmatprep.subr.mxu0 0.0
          %1286 = vmatpush1.msra.mxu0 0.0
          %1287 = vmatprep.subr.mxu0 0.0
          %1288 = vmatpush1.msra.mxu0 0.0
          %1289 = vmatprep.subr.mxu0 0.0
          %1290 = vmatpush1.msra.mxu0 0.0
          %1291 = vmatprep.subr.mxu0 0.0
          %1292 = vmatpush1.msra.mxu0 0.0
          %1293 = vmatprep.subr.mxu0 0.0
          %1294 = vmatpush1.msra.mxu0 0.0
          %1295 = vmatprep.subr.mxu0 0.0
          %1296 = vmatpush1.msra.mxu0 0.0
          %1297 = vmatprep.subr.mxu0 0.0
          %1298 = vmatpush1.msra.mxu0 0.0
          %1299 = vmatprep.subr.mxu0 0.0
          %1300 = vmatpush1.msra.mxu0 0.0
          %1301 = vmatprep.subr.mxu0 0.0
          %1302 = vmatpush1.msra.mxu0 0.0
          %1303 = vmatprep.subr.mxu0 0.0
          %1304 = vmatpush1.msra.mxu0 0.0
          %1305 = vmatprep.subr.mxu0 0.0
          %1306 = vmatpush1.msra.mxu0 0.0
          %1307 = vmatprep.subr.mxu0 0.0
          %1308 = vmatpush1.msra.mxu0 0.0
          %1309 = vmatprep.subr.mxu0 0.0
          %1310 = vmatpush1.msra.mxu0 0.0
          %1311 = vmatprep.subr.mxu0 0.0
          %1312 = vmatpush1.msra.mxu0 0.0
          %1313 = vmatprep.subr.mxu0 0.0
          %1314 = vmatpush1.msra.mxu0 0.0
          %1315 = vmatprep.subr.mxu0 0.0
          %1316 = vmatpush1.msra.mxu0 0.0
          %1317 = vmatprep.subr.mxu0 0.0
          %1318 = vmatpush1.msra.mxu0 0.0
          %1319 = vmatprep.subr.mxu0 0.0
          %1320 = vmatpush1.msra.mxu0 0.0
          %1321 = vmatprep.subr.mxu0 0.0
          %1322 = vmatpush1.msra.mxu0 0.0
          %1323 = vmatprep.subr.mxu0 0.0
          %1324 = vmatpush1.msra.mxu0 0.0
          %1325 = vmatprep.subr.mxu0 0.0
          %1326 = vmatpush1.msra.mxu0 0.0
          %1327 = vmatprep.subr.mxu0 0.0
          %1328 = vmatpush1.msra.mxu0 0.0
          %1329 = vmatprep.subr.mxu0 0.0
          %1330 = vmatpush1.msra.mxu0 0.0
          %1331 = vmatprep.subr.mxu0 0.0
          %1332 = vmatpush1.msra.mxu0 0.0
          %1333 = vmatprep.subr.mxu0 0.0
          %1334 = vmatpush1.msra.mxu0 0.0
          %1335 = vmatprep.subr.mxu0 0.0
          %1336 = vmatpush1.msra.mxu0 0.0
          %1337 = vmatprep.subr.mxu0 0.0
          %1338 = vmatpush1.msra.mxu0 0.0
          %1339 = vmatprep.mubr.f32.mxu0 0.0
          %1340 = vmatmul.mubr.f32.gmra.mrb[0].mxu0 %v254
          %v1341 = vpop.f32.mrb[0].mxu0
          %v1342 = vadd.f32 %v1273, %v1341
          %v1343 = vpop.f32.mrb[0].mxu0
          %1344 = vdwg.mxu0
          %s1345 = scalar_lea.vmem [#allocation2], 48
          %1346 = vst.msk [vmem:[%s1345] sm:$0xff] %vm326, %v1342
          %s1347 = scalar_lea.vmem %s1, 704
          %v1348 = vld [vmem:[%s1347] sm:$0xff]
          %v1349 = vld [vmem:[%s1347 + $0x8] sm:$0xff]
          %v1350 = vld [vmem:[%s1347 + $0x10] sm:$0xff]
          %v1351 = vld [vmem:[%s1347 + $0x18] sm:$0xff]
          %s1352 = scalar_lea.vmem %s2, 22
          %v1353 = vld [vmem:[%s1352] sm:$0x1]
          %v1355 = vlaneseq
          %v1356 = vshrl.u32 %v1355, 7
          %v1357 = vsub.s32 0, %v1356
          %v1358 = vrot.slane %v1353, %v1357
          %1360 = vmatprep.subr.mxu0 0.0
          %1361 = vmatpush1.msra.mxu0 %v1348
          %1362 = vmatprep.subr.mxu0 0.0
          %1363 = vmatpush1.msra.mxu0 %v1349
          %1364 = vmatprep.subr.mxu0 0.0
          %1365 = vmatpush1.msra.mxu0 %v1350
          %1366 = vmatprep.subr.mxu0 0.0
          %1367 = vmatpush1.msra.mxu0 %v1351
          %1368 = vmatprep.subr.mxu0 0.0
          %1369 = vmatpush1.msra.mxu0 0.0
          %1370 = vmatprep.subr.mxu0 0.0
          %1371 = vmatpush1.msra.mxu0 0.0
          %1372 = vmatprep.subr.mxu0 0.0
          %1373 = vmatpush1.msra.mxu0 0.0
          %1374 = vmatprep.subr.mxu0 0.0
          %1375 = vmatpush1.msra.mxu0 0.0
          %1376 = vmatprep.subr.mxu0 0.0
          %1377 = vmatpush1.msra.mxu0 0.0
          %1378 = vmatprep.subr.mxu0 0.0
          %1379 = vmatpush1.msra.mxu0 0.0
          %1380 = vmatprep.subr.mxu0 0.0
          %1381 = vmatpush1.msra.mxu0 0.0
          %1382 = vmatprep.subr.mxu0 0.0
          %1383 = vmatpush1.msra.mxu0 0.0
          %1384 = vmatprep.subr.mxu0 0.0
          %1385 = vmatpush1.msra.mxu0 0.0
          %1386 = vmatprep.subr.mxu0 0.0
          %1387 = vmatpush1.msra.mxu0 0.0
          %1388 = vmatprep.subr.mxu0 0.0
          %1389 = vmatpush1.msra.mxu0 0.0
          %1390 = vmatprep.subr.mxu0 0.0
          %1391 = vmatpush1.msra.mxu0 0.0
          %1392 = vmatprep.subr.mxu0 0.0
          %1393 = vmatpush1.msra.mxu0 0.0
          %1394 = vmatprep.subr.mxu0 0.0
          %1395 = vmatpush1.msra.mxu0 0.0
          %1396 = vmatprep.subr.mxu0 0.0
          %1397 = vmatpush1.msra.mxu0 0.0
          %1398 = vmatprep.subr.mxu0 0.0
          %1399 = vmatpush1.msra.mxu0 0.0
          %1400 = vmatprep.subr.mxu0 0.0
          %1401 = vmatpush1.msra.mxu0 0.0
          %1402 = vmatprep.subr.mxu0 0.0
          %1403 = vmatpush1.msra.mxu0 0.0
          %1404 = vmatprep.subr.mxu0 0.0
          %1405 = vmatpush1.msra.mxu0 0.0
          %1406 = vmatprep.subr.mxu0 0.0
          %1407 = vmatpush1.msra.mxu0 0.0
          %1408 = vmatprep.subr.mxu0 0.0
          %1409 = vmatpush1.msra.mxu0 0.0
          %1410 = vmatprep.subr.mxu0 0.0
          %1411 = vmatpush1.msra.mxu0 0.0
          %1412 = vmatprep.subr.mxu0 0.0
          %1413 = vmatpush1.msra.mxu0 0.0
          %1414 = vmatprep.subr.mxu0 0.0
          %1415 = vmatpush1.msra.mxu0 0.0
          %1416 = vmatprep.subr.mxu0 0.0
          %1417 = vmatpush1.msra.mxu0 0.0
          %1418 = vmatprep.subr.mxu0 0.0
          %1419 = vmatpush1.msra.mxu0 0.0
          %1420 = vmatprep.subr.mxu0 0.0
          %1421 = vmatpush1.msra.mxu0 0.0
          %1422 = vmatprep.subr.mxu0 0.0
          %1423 = vmatpush1.msra.mxu0 0.0
          %1424 = vmatprep.mubr.f32.mxu0 0.0
          %1425 = vmatmul.mubr.f32.gmra.mrb[0].mxu0 %v254
          %v1426 = vpop.f32.mrb[0].mxu0
          %v1427 = vadd.f32 %v1358, %v1426
          %v1428 = vpop.f32.mrb[0].mxu0
          %1429 = vdwg.mxu0
          %s1430 = scalar_lea.vmem [#allocation3], 48
          %1431 = vst.msk [vmem:[%s1430] sm:$0xff] %vm326, %v1427
          %s1432 = scalar_lea.vmem %s1, 480
          %v1433 = vld [vmem:[%s1432] sm:$0xff]
          %v1434 = vld [vmem:[%s1432 + $0x8] sm:$0xff]
          %v1435 = vld [vmem:[%s1432 + $0x10] sm:$0xff]
          %v1436 = vld [vmem:[%s1432 + $0x18] sm:$0xff]
          %s1437 = scalar_lea.vmem %s2, 15
          %v1438 = vld [vmem:[%s1437] sm:$0x1]
          %v1440 = vlaneseq
          %v1441 = vshrl.u32 %v1440, 7
          %v1442 = vsub.s32 0, %v1441
          %v1443 = vrot.slane %v1438, %v1442
          %1445 = vmatprep.subr.mxu0 0.0
          %1446 = vmatpush1.msra.mxu0 %v1433
          %1447 = vmatprep.subr.mxu0 0.0
          %1448 = vmatpush1.msra.mxu0 %v1434
          %1449 = vmatprep.subr.mxu0 0.0
          %1450 = vmatpush1.msra.mxu0 %v1435
          %1451 = vmatprep.subr.mxu0 0.0
          %1452 = vmatpush1.msra.mxu0 %v1436
          %1453 = vmatprep.subr.mxu0 0.0
          %1454 = vmatpush1.msra.mxu0 0.0
          %1455 = vmatprep.subr.mxu0 0.0
          %1456 = vmatpush1.msra.mxu0 0.0
          %1457 = vmatprep.subr.mxu0 0.0
          %1458 = vmatpush1.msra.mxu0 0.0
          %1459 = vmatprep.subr.mxu0 0.0
          %1460 = vmatpush1.msra.mxu0 0.0
          %1461 = vmatprep.subr.mxu0 0.0
          %1462 = vmatpush1.msra.mxu0 0.0
          %1463 = vmatprep.subr.mxu0 0.0
          %1464 = vmatpush1.msra.mxu0 0.0
          %1465 = vmatprep.subr.mxu0 0.0
          %1466 = vmatpush1.msra.mxu0 0.0
          %1467 = vmatprep.subr.mxu0 0.0
          %1468 = vmatpush1.msra.mxu0 0.0
          %1469 = vmatprep.subr.mxu0 0.0
          %1470 = vmatpush1.msra.mxu0 0.0
          %1471 = vmatprep.subr.mxu0 0.0
          %1472 = vmatpush1.msra.mxu0 0.0
          %1473 = vmatprep.subr.mxu0 0.0
          %1474 = vmatpush1.msra.mxu0 0.0
          %1475 = vmatprep.subr.mxu0 0.0
          %1476 = vmatpush1.msra.mxu0 0.0
          %1477 = vmatprep.subr.mxu0 0.0
          %1478 = vmatpush1.msra.mxu0 0.0
          %1479 = vmatprep.subr.mxu0 0.0
          %1480 = vmatpush1.msra.mxu0 0.0
          %1481 = vmatprep.subr.mxu0 0.0
          %1482 = vmatpush1.msra.mxu0 0.0
          %1483 = vmatprep.subr.mxu0 0.0
          %1484 = vmatpush1.msra.mxu0 0.0
          %1485 = vmatprep.subr.mxu0 0.0
          %1486 = vmatpush1.msra.mxu0 0.0
          %1487 = vmatprep.subr.mxu0 0.0
          %1488 = vmatpush1.msra.mxu0 0.0
          %1489 = vmatprep.subr.mxu0 0.0
          %1490 = vmatpush1.msra.mxu0 0.0
          %1491 = vmatprep.subr.mxu0 0.0
          %1492 = vmatpush1.msra.mxu0 0.0
          %1493 = vmatprep.subr.mxu0 0.0
          %1494 = vmatpush1.msra.mxu0 0.0
          %1495 = vmatprep.subr.mxu0 0.0
          %1496 = vmatpush1.msra.mxu0 0.0
          %1497 = vmatprep.subr.mxu0 0.0
          %1498 = vmatpush1.msra.mxu0 0.0
          %1499 = vmatprep.subr.mxu0 0.0
          %1500 = vmatpush1.msra.mxu0 0.0
          %1501 = vmatprep.subr.mxu0 0.0
          %1502 = vmatpush1.msra.mxu0 0.0
          %1503 = vmatprep.subr.mxu0 0.0
          %1504 = vmatpush1.msra.mxu0 0.0
          %1505 = vmatprep.subr.mxu0 0.0
          %1506 = vmatpush1.msra.mxu0 0.0
          %1507 = vmatprep.subr.mxu0 0.0
          %1508 = vmatpush1.msra.mxu0 0.0
          %1509 = vmatprep.mubr.f32.mxu0 0.0
          %1510 = vmatmul.mubr.f32.gmra.mrb[0].mxu0 %v254
          %v1511 = vpop.f32.mrb[0].mxu0
          %v1512 = vadd.f32 %v1443, %v1511
          %v1513 = vpop.f32.mrb[0].mxu0
          %1514 = vdwg.mxu0
          %s1515 = scalar_lea.vmem [#allocation2], 56
          %1516 = vst.msk [vmem:[%s1515] sm:$0xff] %vm326, %v1512
          %s1517 = scalar_lea.vmem %s1, 736
          %v1518 = vld [vmem:[%s1517] sm:$0xff]
          %v1519 = vld [vmem:[%s1517 + $0x8] sm:$0xff]
          %v1520 = vld [vmem:[%s1517 + $0x10] sm:$0xff]
          %v1521 = vld [vmem:[%s1517 + $0x18] sm:$0xff]
          %s1522 = scalar_lea.vmem %s2, 23
          %v1523 = vld [vmem:[%s1522] sm:$0x1]
          %v1525 = vlaneseq
          %v1526 = vshrl.u32 %v1525, 7
          %v1527 = vsub.s32 0, %v1526
          %v1528 = vrot.slane %v1523, %v1527
          %1530 = vmatprep.subr.mxu0 0.0
          %1531 = vmatpush1.msra.mxu0 %v1518
          %1532 = vmatprep.subr.mxu0 0.0
          %1533 = vmatpush1.msra.mxu0 %v1519
          %1534 = vmatprep.subr.mxu0 0.0
          %1535 = vmatpush1.msra.mxu0 %v1520
          %1536 = vmatprep.subr.mxu0 0.0
          %1537 = vmatpush1.msra.mxu0 %v1521
          %1538 = vmatprep.subr.mxu0 0.0
          %1539 = vmatpush1.msra.mxu0 0.0
          %1540 = vmatprep.subr.mxu0 0.0
          %1541 = vmatpush1.msra.mxu0 0.0
          %1542 = vmatprep.subr.mxu0 0.0
          %1543 = vmatpush1.msra.mxu0 0.0
          %1544 = vmatprep.subr.mxu0 0.0
          %1545 = vmatpush1.msra.mxu0 0.0
          %1546 = vmatprep.subr.mxu0 0.0
          %1547 = vmatpush1.msra.mxu0 0.0
          %1548 = vmatprep.subr.mxu0 0.0
          %1549 = vmatpush1.msra.mxu0 0.0
          %1550 = vmatprep.subr.mxu0 0.0
          %1551 = vmatpush1.msra.mxu0 0.0
          %1552 = vmatprep.subr.mxu0 0.0
          %1553 = vmatpush1.msra.mxu0 0.0
          %1554 = vmatprep.subr.mxu0 0.0
          %1555 = vmatpush1.msra.mxu0 0.0
          %1556 = vmatprep.subr.mxu0 0.0
          %1557 = vmatpush1.msra.mxu0 0.0
          %1558 = vmatprep.subr.mxu0 0.0
          %1559 = vmatpush1.msra.mxu0 0.0
          %1560 = vmatprep.subr.mxu0 0.0
          %1561 = vmatpush1.msra.mxu0 0.0
          %1562 = vmatprep.subr.mxu0 0.0
          %1563 = vmatpush1.msra.mxu0 0.0
          %1564 = vmatprep.subr.mxu0 0.0
          %1565 = vmatpush1.msra.mxu0 0.0
          %1566 = vmatprep.subr.mxu0 0.0
          %1567 = vmatpush1.msra.mxu0 0.0
          %1568 = vmatprep.subr.mxu0 0.0
          %1569 = vmatpush1.msra.mxu0 0.0
          %1570 = vmatprep.subr.mxu0 0.0
          %1571 = vmatpush1.msra.mxu0 0.0
          %1572 = vmatprep.subr.mxu0 0.0
          %1573 = vmatpush1.msra.mxu0 0.0
          %1574 = vmatprep.subr.mxu0 0.0
          %1575 = vmatpush1.msra.mxu0 0.0
          %1576 = vmatprep.subr.mxu0 0.0
          %1577 = vmatpush1.msra.mxu0 0.0
          %1578 = vmatprep.subr.mxu0 0.0
          %1579 = vmatpush1.msra.mxu0 0.0
          %1580 = vmatprep.subr.mxu0 0.0
          %1581 = vmatpush1.msra.mxu0 0.0
          %1582 = vmatprep.subr.mxu0 0.0
          %1583 = vmatpush1.msra.mxu0 0.0
          %1584 = vmatprep.subr.mxu0 0.0
          %1585 = vmatpush1.msra.mxu0 0.0
          %1586 = vmatprep.subr.mxu0 0.0
          %1587 = vmatpush1.msra.mxu0 0.0
          %1588 = vmatprep.subr.mxu0 0.0
          %1589 = vmatpush1.msra.mxu0 0.0
          %1590 = vmatprep.subr.mxu0 0.0
          %1591 = vmatpush1.msra.mxu0 0.0
          %1592 = vmatprep.subr.mxu0 0.0
          %1593 = vmatpush1.msra.mxu0 0.0
          %1594 = vmatprep.mubr.f32.mxu0 0.0
          %1595 = vmatmul.mubr.f32.gmra.mrb[0].mxu0 %v254
          %v1596 = vpop.f32.mrb[0].mxu0
          %v1597 = vadd.f32 %v1528, %v1596
          %v1598 = vpop.f32.mrb[0].mxu0
          %1599 = vdwg.mxu0
          %s1600 = scalar_lea.vmem [#allocation3], 56
          %1601 = vst.msk [vmem:[%s1600] sm:$0xff] %vm326, %v1597
        $region44: #{tpu_custom_call.1} parent=39 // pred_fallthru
          _
        %s1602 = smul.u32 %s24, 8
        %s1603 = scalar_lea.vmem %s233, %s1602
        %v1604 = vld [vmem:[%s1603] sm:$0xff]
        %vm1605 = vcmask 261120
        %1606 = vst.msk [vmem:[#allocation4] sm:$0xff] %vm1605, 0.0
        %v1607 = vld [vmem:[%s1] sm:$0xff]
        %v1608 = vld [vmem:[%s1 + $0x8] sm:$0xff]
        %v1609 = vld [vmem:[%s1 + $0x10] sm:$0xff]
        %v1610 = vld [vmem:[%s1 + $0x18] sm:$0xff]
        %v1611 = vld [vmem:[%s2] sm:$0x1]
        %v1613 = vlaneseq
        %v1614 = vshrl.u32 %v1613, 7
        %v1615 = vsub.s32 0, %v1614
        %v1616 = vrot.slane %v1611, %v1615
        %v1619 = vsel %vm1605, %v1604, 0
        %1621 = vmatprep.subr.mxu0 0.0
        %1622 = vmatpush1.msra.mxu0 %v1607
        %1623 = vmatprep.subr.mxu0 0.0
        %1624 = vmatpush1.msra.mxu0 %v1608
        %1625 = vmatprep.subr.mxu0 0.0
        %1626 = vmatpush1.msra.mxu0 %v1609
        %1627 = vmatprep.subr.mxu0 0.0
        %1628 = vmatpush1.msra.mxu0 %v1610
        %1629 = vmatprep.subr.mxu0 0.0
        %1630 = vmatpush1.msra.mxu0 0.0
        %1631 = vmatprep.subr.mxu0 0.0
        %1632 = vmatpush1.msra.mxu0 0.0
        %1633 = vmatprep.subr.mxu0 0.0
        %1634 = vmatpush1.msra.mxu0 0.0
        %1635 = vmatprep.subr.mxu0 0.0
        %1636 = vmatpush1.msra.mxu0 0.0
        %1637 = vmatprep.subr.mxu0 0.0
        %1638 = vmatpush1.msra.mxu0 0.0
        %1639 = vmatprep.subr.mxu0 0.0
        %1640 = vmatpush1.msra.mxu0 0.0
        %1641 = vmatprep.subr.mxu0 0.0
        %1642 = vmatpush1.msra.mxu0 0.0
        %1643 = vmatprep.subr.mxu0 0.0
        %1644 = vmatpush1.msra.mxu0 0.0
        %1645 = vmatprep.subr.mxu0 0.0
        %1646 = vmatpush1.msra.mxu0 0.0
        %1647 = vmatprep.subr.mxu0 0.0
        %1648 = vmatpush1.msra.mxu0 0.0
        %1649 = vmatprep.subr.mxu0 0.0
        %1650 = vmatpush1.msra.mxu0 0.0
        %1651 = vmatprep.subr.mxu0 0.0
        %1652 = vmatpush1.msra.mxu0 0.0
        %1653 = vmatprep.subr.mxu0 0.0
        %1654 = vmatpush1.msra.mxu0 0.0
        %1655 = vmatprep.subr.mxu0 0.0
        %1656 = vmatpush1.msra.mxu0 0.0
        %1657 = vmatprep.subr.mxu0 0.0
        %1658 = vmatpush1.msra.mxu0 0.0
        %1659 = vmatprep.subr.mxu0 0.0
        %1660 = vmatpush1.msra.mxu0 0.0
        %1661 = vmatprep.subr.mxu0 0.0
        %1662 = vmatpush1.msra.mxu0 0.0
        %1663 = vmatprep.subr.mxu0 0.0
        %1664 = vmatpush1.msra.mxu0 0.0
        %1665 = vmatprep.subr.mxu0 0.0
        %1666 = vmatpush1.msra.mxu0 0.0
        %1667 = vmatprep.subr.mxu0 0.0
        %1668 = vmatpush1.msra.mxu0 0.0
        %1669 = vmatprep.subr.mxu0 0.0
        %1670 = vmatpush1.msra.mxu0 0.0
        %1671 = vmatprep.subr.mxu0 0.0
        %1672 = vmatpush1.msra.mxu0 0.0
        %1673 = vmatprep.subr.mxu0 0.0
        %1674 = vmatpush1.msra.mxu0 0.0
        %1675 = vmatprep.subr.mxu0 0.0
        %1676 = vmatpush1.msra.mxu0 0.0
        %1677 = vmatprep.subr.mxu0 0.0
        %1678 = vmatpush1.msra.mxu0 0.0
        %1679 = vmatprep.subr.mxu0 0.0
        %1680 = vmatpush1.msra.mxu0 0.0
        %1681 = vmatprep.subr.mxu0 0.0
        %1682 = vmatpush1.msra.mxu0 0.0
        %1683 = vmatprep.subr.mxu0 0.0
        %1684 = vmatpush1.msra.mxu0 0.0
        %1685 = vmatprep.mubr.f32.mxu0 0.0
        %1686 = vmatmul.mubr.f32.gmra.mrb[0].mxu0 %v1619
        %v1687 = vpop.f32.mrb[0].mxu0
        %v1688 = vadd.f32 %v1616, %v1687
        %v1689 = vpop.f32.mrb[0].mxu0
        %1690 = vdwg.mxu0
        %v1691 = vld [vmem:[#allocation2] sm:$0xff]
        %v1692 = vld [vmem:[#allocation3] sm:$0xff]
        %vm1693 = vcmask 31744
        %v1695 = vsel %vm1693, %v1688, 0
        %v1698 = vsel %vm1693, %v1691, 0
        %1700 = vmatprep.subr.mxu0 0.0
        %1701 = vmatpush1.xpose.msra.mxu0 %v1698
        %1702 = vmatprep.subr.mxu0 0.0
        %1703 = vmatpush1.xpose.msra.mxu0 0.0
        %1704 = vmatprep.subr.mxu0 0.0
        %1705 = vmatpush1.xpose.msra.mxu0 0.0
        %1706 = vmatprep.subr.mxu0 0.0
        %1707 = vmatpush1.xpose.msra.mxu0 0.0
        %1708 = vmatprep.subr.mxu0 0.0
        %1709 = vmatpush1.xpose.msra.mxu0 0.0
        %1710 = vmatprep.subr.mxu0 0.0
        %1711 = vmatpush1.xpose.msra.mxu0 0.0
        %1712 = vmatprep.subr.mxu0 0.0
        %1713 = vmatpush1.xpose.msra.mxu0 0.0
        %1714 = vmatprep.subr.mxu0 0.0
        %1715 = vmatpush1.xpose.msra.mxu0 0.0
        %1716 = vmatprep.subr.mxu0 0.0
        %1717 = vmatpush1.xpose.msra.mxu0 0.0
        %1718 = vmatprep.subr.mxu0 0.0
        %1719 = vmatpush1.xpose.msra.mxu0 0.0
        %1720 = vmatprep.subr.mxu0 0.0
        %1721 = vmatpush1.xpose.msra.mxu0 0.0
        %1722 = vmatprep.subr.mxu0 0.0
        %1723 = vmatpush1.xpose.msra.mxu0 0.0
        %1724 = vmatprep.subr.mxu0 0.0
        %1725 = vmatpush1.xpose.msra.mxu0 0.0
        %1726 = vmatprep.subr.mxu0 0.0
        %1727 = vmatpush1.xpose.msra.mxu0 0.0
        %1728 = vmatprep.subr.mxu0 0.0
        %1729 = vmatpush1.xpose.msra.mxu0 0.0
        %1730 = vmatprep.subr.mxu0 0.0
        %1731 = vmatpush1.xpose.msra.mxu0 0.0
        %1732 = vmatprep.subr.mxu0 0.0
        %1733 = vmatpush1.xpose.msra.mxu0 0.0
        %1734 = vmatprep.subr.mxu0 0.0
        %1735 = vmatpush1.xpose.msra.mxu0 0.0
        %1736 = vmatprep.subr.mxu0 0.0
        %1737 = vmatpush1.xpose.msra.mxu0 0.0
        %1738 = vmatprep.subr.mxu0 0.0
        %1739 = vmatpush1.xpose.msra.mxu0 0.0
        %1740 = vmatprep.subr.mxu0 0.0
        %1741 = vmatpush1.xpose.msra.mxu0 0.0
        %1742 = vmatprep.subr.mxu0 0.0
        %1743 = vmatpush1.xpose.msra.mxu0 0.0
        %1744 = vmatprep.subr.mxu0 0.0
        %1745 = vmatpush1.xpose.msra.mxu0 0.0
        %1746 = vmatprep.subr.mxu0 0.0
        %1747 = vmatpush1.xpose.msra.mxu0 0.0
        %1748 = vmatprep.subr.mxu0 0.0
        %1749 = vmatpush1.xpose.msra.mxu0 0.0
        %1750 = vmatprep.subr.mxu0 0.0
        %1751 = vmatpush1.xpose.msra.mxu0 0.0
        %1752 = vmatprep.subr.mxu0 0.0
        %1753 = vmatpush1.xpose.msra.mxu0 0.0
        %1754 = vmatprep.subr.mxu0 0.0
        %1755 = vmatpush1.xpose.msra.mxu0 0.0
        %1756 = vmatprep.subr.mxu0 0.0
        %1757 = vmatpush1.xpose.msra.mxu0 0.0
        %1758 = vmatprep.subr.mxu0 0.0
        %1759 = vmatpush1.xpose.msra.mxu0 0.0
        %1760 = vmatprep.subr.mxu0 0.0
        %1761 = vmatpush1.xpose.msra.mxu0 0.0
        %1762 = vmatprep.subr.mxu0 0.0
        %1763 = vmatpush1.xpose.msra.mxu0 0.0
        %1764 = vmatprep.mubr.f32.mxu0 0.0
        %1765 = vmatmul.mubr.f32.gmra.mrb[0].mxu0 %v1695
        %v1766 = vpop.f32.mrb[0].mxu0
        %v1767 = vadd.f32 0.0, %v1766
        %v1768 = vpop.f32.mrb[0].mxu0
        %1769 = vdwg.mxu0
        %vm1770 = vcmask 64512
        %v1771 = vsel %vm1770, %v1767, -inf
        %1772 = vmax.xlane.f32.xlu0 %v1771
        %v1773 = vpop.xlane.xlu0 %1772
        %v1774 = vsub.f32 %v1767, %v1773
        %v1775 = vmul.f32 %v1774, 1.442695
        %v1776 = vpow.pop %v1775
        %v1777 = vsel %vm1770, %v1776, 0.0
        %1778 = vadd.xlane.f32.xlu0 %v1777
        %v1779 = vpop.xlane.xlu0 %1778
        %v1780 = vrcp.pop %v1779
        %v1781 = vmul.f32 %v1780, 0.17677669
        %v1782 = vmul.f32 %v1776, %v1781
        %v1784 = vsel %vm1770, %v1782, 0
        %1786 = vmatprep.subr.mxu0 0.0
        %1787 = vmatpush1.msra.mxu0 %v1692
        %1788 = vmatprep.subr.mxu0 0.0
        %1789 = vmatpush1.msra.mxu0 0.0
        %1790 = vmatprep.subr.mxu0 0.0
        %1791 = vmatpush1.msra.mxu0 0.0
        %1792 = vmatprep.subr.mxu0 0.0
        %1793 = vmatpush1.msra.mxu0 0.0
        %1794 = vmatprep.subr.mxu0 0.0
        %1795 = vmatpush1.msra.mxu0 0.0
        %1796 = vmatprep.subr.mxu0 0.0
        %1797 = vmatpush1.msra.mxu0 0.0
        %1798 = vmatprep.subr.mxu0 0.0
        %1799 = vmatpush1.msra.mxu0 0.0
        %1800 = vmatprep.subr.mxu0 0.0
        %1801 = vmatpush1.msra.mxu0 0.0
        %1802 = vmatprep.subr.mxu0 0.0
        %1803 = vmatpush1.msra.mxu0 0.0
        %1804 = vmatprep.subr.mxu0 0.0
        %1805 = vmatpush1.msra.mxu0 0.0
        %1806 = vmatprep.subr.mxu0 0.0
        %1807 = vmatpush1.msra.mxu0 0.0
        %1808 = vmatprep.subr.mxu0 0.0
        %1809 = vmatpush1.msra.mxu0 0.0
        %1810 = vmatprep.subr.mxu0 0.0
        %1811 = vmatpush1.msra.mxu0 0.0
        %1812 = vmatprep.subr.mxu0 0.0
        %1813 = vmatpush1.msra.mxu0 0.0
        %1814 = vmatprep.subr.mxu0 0.0
        %1815 = vmatpush1.msra.mxu0 0.0
        %1816 = vmatprep.subr.mxu0 0.0
        %1817 = vmatpush1.msra.mxu0 0.0
        %1818 = vmatprep.subr.mxu0 0.0
        %1819 = vmatpush1.msra.mxu0 0.0
        %1820 = vmatprep.subr.mxu0 0.0
        %1821 = vmatpush1.msra.mxu0 0.0
        %1822 = vmatprep.subr.mxu0 0.0
        %1823 = vmatpush1.msra.mxu0 0.0
        %1824 = vmatprep.subr.mxu0 0.0
        %1825 = vmatpush1.msra.mxu0 0.0
        %1826 = vmatprep.subr.mxu0 0.0
        %1827 = vmatpush1.msra.mxu0 0.0
        %1828 = vmatprep.subr.mxu0 0.0
        %1829 = vmatpush1.msra.mxu0 0.0
        %1830 = vmatprep.subr.mxu0 0.0
        %1831 = vmatpush1.msra.mxu0 0.0
        %1832 = vmatprep.subr.mxu0 0.0
        %1833 = vmatpush1.msra.mxu0 0.0
        %1834 = vmatprep.subr.mxu0 0.0
        %1835 = vmatpush1.msra.mxu0 0.0
        %1836 = vmatprep.subr.mxu0 0.0
        %1837 = vmatpush1.msra.mxu0 0.0
        %1838 = vmatprep.subr.mxu0 0.0
        %1839 = vmatpush1.msra.mxu0 0.0
        %1840 = vmatprep.subr.mxu0 0.0
        %1841 = vmatpush1.msra.mxu0 0.0
        %1842 = vmatprep.subr.mxu0 0.0
        %1843 = vmatpush1.msra.mxu0 0.0
        %1844 = vmatprep.subr.mxu0 0.0
        %1845 = vmatpush1.msra.mxu0 0.0
        %1846 = vmatprep.subr.mxu0 0.0
        %1847 = vmatpush1.msra.mxu0 0.0
        %1848 = vmatprep.subr.mxu0 0.0
        %1849 = vmatpush1.msra.mxu0 0.0
        %1850 = vmatprep.mubr.f32.mxu0 0.0
        %1851 = vmatmul.mubr.f32.gmra.mrb[0].mxu0 %v1784
        %v1852 = vpop.f32.mrb[0].mxu0
        %v1853 = vadd.f32 0.0, %v1852
        %v1854 = vpop.f32.mrb[0].mxu0
        %1855 = vdwg.mxu0
        %v1856 = vld [vmem:[#allocation4] sm:$0xff]
        %v1857 = vld [vmem:[%s3] sm:$0xf]
        %v1859 = vsel %vm1693, %v1853, 0
        %vm1861 = vcmask 1043456
        %v1863 = vsel %vm1861, %v1857, 0
        %1865 = vmatprep.subr.mxu0 0.0
        %1866 = vmatpush1.msra.mxu0 %v1863
        %1867 = vmatprep.subr.mxu0 0.0
        %1868 = vmatpush1.msra.mxu0 0.0
        %1869 = vmatprep.subr.mxu0 0.0
        %1870 = vmatpush1.msra.mxu0 0.0
        %1871 = vmatprep.subr.mxu0 0.0
        %1872 = vmatpush1.msra.mxu0 0.0
        %1873 = vmatprep.subr.mxu0 0.0
        %1874 = vmatpush1.msra.mxu0 0.0
        %1875 = vmatprep.subr.mxu0 0.0
        %1876 = vmatpush1.msra.mxu0 0.0
        %1877 = vmatprep.subr.mxu0 0.0
        %1878 = vmatpush1.msra.mxu0 0.0
        %1879 = vmatprep.subr.mxu0 0.0
        %1880 = vmatpush1.msra.mxu0 0.0
        %1881 = vmatprep.subr.mxu0 0.0
        %1882 = vmatpush1.msra.mxu0 0.0
        %1883 = vmatprep.subr.mxu0 0.0
        %1884 = vmatpush1.msra.mxu0 0.0
        %1885 = vmatprep.subr.mxu0 0.0
        %1886 = vmatpush1.msra.mxu0 0.0
        %1887 = vmatprep.subr.mxu0 0.0
        %1888 = vmatpush1.msra.mxu0 0.0
        %1889 = vmatprep.subr.mxu0 0.0
        %1890 = vmatpush1.msra.mxu0 0.0
        %1891 = vmatprep.subr.mxu0 0.0
        %1892 = vmatpush1.msra.mxu0 0.0
        %1893 = vmatprep.subr.mxu0 0.0
        %1894 = vmatpush1.msra.mxu0 0.0
        %1895 = vmatprep.subr.mxu0 0.0
        %1896 = vmatpush1.msra.mxu0 0.0
        %1897 = vmatprep.subr.mxu0 0.0
        %1898 = vmatpush1.msra.mxu0 0.0
        %1899 = vmatprep.subr.mxu0 0.0
        %1900 = vmatpush1.msra.mxu0 0.0
        %1901 = vmatprep.subr.mxu0 0.0
        %1902 = vmatpush1.msra.mxu0 0.0
        %1903 = vmatprep.subr.mxu0 0.0
        %1904 = vmatpush1.msra.mxu0 0.0
        %1905 = vmatprep.subr.mxu0 0.0
        %1906 = vmatpush1.msra.mxu0 0.0
        %1907 = vmatprep.subr.mxu0 0.0
        %1908 = vmatpush1.msra.mxu0 0.0
        %1909 = vmatprep.subr.mxu0 0.0
        %1910 = vmatpush1.msra.mxu0 0.0
        %1911 = vmatprep.subr.mxu0 0.0
        %1912 = vmatpush1.msra.mxu0 0.0
        %1913 = vmatprep.subr.mxu0 0.0
        %1914 = vmatpush1.msra.mxu0 0.0
        %1915 = vmatprep.subr.mxu0 0.0
        %1916 = vmatpush1.msra.mxu0 0.0
        %1917 = vmatprep.subr.mxu0 0.0
        %1918 = vmatpush1.msra.mxu0 0.0
        %1919 = vmatprep.subr.mxu0 0.0
        %1920 = vmatpush1.msra.mxu0 0.0
        %1921 = vmatprep.subr.mxu0 0.0
        %1922 = vmatpush1.msra.mxu0 0.0
        %1923 = vmatprep.subr.mxu0 0.0
        %1924 = vmatpush1.msra.mxu0 0.0
        %1925 = vmatprep.subr.mxu0 0.0
        %1926 = vmatpush1.msra.mxu0 0.0
        %1927 = vmatprep.subr.mxu0 0.0
        %1928 = vmatpush1.msra.mxu0 0.0
        %1929 = vmatprep.mubr.f32.mxu0 0.0
        %1930 = vmatmul.mubr.f32.gmra.mrb[0].mxu0 %v1859
        %v1931 = vpop.f32.mrb[0].mxu0
        %v1932 = vadd.f32 0.0, %v1931
        %v1933 = vpop.f32.mrb[0].mxu0
        %1934 = vdwg.mxu0
        %v1935 = vadd.f32 %v1856, %v1932
        %1936 = vst.msk [vmem:[#allocation4] sm:$0xff] %vm1605, %v1935
        %s1937 = scalar_lea.vmem %s1, 32
        %v1938 = vld [vmem:[%s1937] sm:$0xff]
        %v1939 = vld [vmem:[%s1937 + $0x8] sm:$0xff]
        %v1940 = vld [vmem:[%s1937 + $0x10] sm:$0xff]
        %v1941 = vld [vmem:[%s1937 + $0x18] sm:$0xff]
        %s1942 = scalar_lea.vmem %s2, 1
        %v1943 = vld [vmem:[%s1942] sm:$0x1]
        %v1945 = vlaneseq
        %v1946 = vshrl.u32 %v1945, 7
        %v1947 = vsub.s32 0, %v1946
        %v1948 = vrot.slane %v1943, %v1947
        %1950 = vmatprep.subr.mxu0 0.0
        %1951 = vmatpush1.msra.mxu0 %v1938
        %1952 = vmatprep.subr.mxu0 0.0
        %1953 = vmatpush1.msra.mxu0 %v1939
        %1954 = vmatprep.subr.mxu0 0.0
        %1955 = vmatpush1.msra.mxu0 %v1940
        %1956 = vmatprep.subr.mxu0 0.0
        %1957 = vmatpush1.msra.mxu0 %v1941
        %1958 = vmatprep.subr.mxu0 0.0
        %1959 = vmatpush1.msra.mxu0 0.0
        %1960 = vmatprep.subr.mxu0 0.0
        %1961 = vmatpush1.msra.mxu0 0.0
        %1962 = vmatprep.subr.mxu0 0.0
        %1963 = vmatpush1.msra.mxu0 0.0
        %1964 = vmatprep.subr.mxu0 0.0
        %1965 = vmatpush1.msra.mxu0 0.0
        %1966 = vmatprep.subr.mxu0 0.0
        %1967 = vmatpush1.msra.mxu0 0.0
        %1968 = vmatprep.subr.mxu0 0.0
        %1969 = vmatpush1.msra.mxu0 0.0
        %1970 = vmatprep.subr.mxu0 0.0
        %1971 = vmatpush1.msra.mxu0 0.0
        %1972 = vmatprep.subr.mxu0 0.0
        %1973 = vmatpush1.msra.mxu0 0.0
        %1974 = vmatprep.subr.mxu0 0.0
        %1975 = vmatpush1.msra.mxu0 0.0
        %1976 = vmatprep.subr.mxu0 0.0
        %1977 = vmatpush1.msra.mxu0 0.0
        %1978 = vmatprep.subr.mxu0 0.0
        %1979 = vmatpush1.msra.mxu0 0.0
        %1980 = vmatprep.subr.mxu0 0.0
        %1981 = vmatpush1.msra.mxu0 0.0
        %1982 = vmatprep.subr.mxu0 0.0
        %1983 = vmatpush1.msra.mxu0 0.0
        %1984 = vmatprep.subr.mxu0 0.0
        %1985 = vmatpush1.msra.mxu0 0.0
        %1986 = vmatprep.subr.mxu0 0.0
        %1987 = vmatpush1.msra.mxu0 0.0
        %1988 = vmatprep.subr.mxu0 0.0
        %1989 = vmatpush1.msra.mxu0 0.0
        %1990 = vmatprep.subr.mxu0 0.0
        %1991 = vmatpush1.msra.mxu0 0.0
        %1992 = vmatprep.subr.mxu0 0.0
        %1993 = vmatpush1.msra.mxu0 0.0
        %1994 = vmatprep.subr.mxu0 0.0
        %1995 = vmatpush1.msra.mxu0 0.0
        %1996 = vmatprep.subr.mxu0 0.0
        %1997 = vmatpush1.msra.mxu0 0.0
        %1998 = vmatprep.subr.mxu0 0.0
        %1999 = vmatpush1.msra.mxu0 0.0
        %2000 = vmatprep.subr.mxu0 0.0
        %2001 = vmatpush1.msra.mxu0 0.0
        %2002 = vmatprep.subr.mxu0 0.0
        %2003 = vmatpush1.msra.mxu0 0.0
        %2004 = vmatprep.subr.mxu0 0.0
        %2005 = vmatpush1.msra.mxu0 0.0
        %2006 = vmatprep.subr.mxu0 0.0
        %2007 = vmatpush1.msra.mxu0 0.0
        %2008 = vmatprep.subr.mxu0 0.0
        %2009 = vmatpush1.msra.mxu0 0.0
        %2010 = vmatprep.subr.mxu0 0.0
        %2011 = vmatpush1.msra.mxu0 0.0
        %2012 = vmatprep.subr.mxu0 0.0
        %2013 = vmatpush1.msra.mxu0 0.0
        %2014 = vmatprep.mubr.f32.mxu0 0.0
        %2015 = vmatmul.mubr.f32.gmra.mrb[0].mxu0 %v1619
        %v2016 = vpop.f32.mrb[0].mxu0
        %v2017 = vadd.f32 %v1948, %v2016
        %v2018 = vpop.f32.mrb[0].mxu0
        %2019 = vdwg.mxu0
        %s2020 = scalar_lea.vmem [#allocation2], 8
        %v2021 = vld [vmem:[%s2020] sm:$0xff]
        %s2022 = scalar_lea.vmem [#allocation3], 8
        %v2023 = vld [vmem:[%s2022] sm:$0xff]
        %v2025 = vsel %vm1693, %v2017, 0
        %v2028 = vsel %vm1693, %v2021, 0
        %2030 = vmatprep.subr.mxu0 0.0
        %2031 = vmatpush1.xpose.msra.mxu0 %v2028
        %2032 = vmatprep.subr.mxu0 0.0
        %2033 = vmatpush1.xpose.msra.mxu0 0.0
        %2034 = vmatprep.subr.mxu0 0.0
        %2035 = vmatpush1.xpose.msra.mxu0 0.0
        %2036 = vmatprep.subr.mxu0 0.0
        %2037 = vmatpush1.xpose.msra.mxu0 0.0
        %2038 = vmatprep.subr.mxu0 0.0
        %2039 = vmatpush1.xpose.msra.mxu0 0.0
        %2040 = vmatprep.subr.mxu0 0.0
        %2041 = vmatpush1.xpose.msra.mxu0 0.0
        %2042 = vmatprep.subr.mxu0 0.0
        %2043 = vmatpush1.xpose.msra.mxu0 0.0
        %2044 = vmatprep.subr.mxu0 0.0
        %2045 = vmatpush1.xpose.msra.mxu0 0.0
        %2046 = vmatprep.subr.mxu0 0.0
        %2047 = vmatpush1.xpose.msra.mxu0 0.0
        %2048 = vmatprep.subr.mxu0 0.0
        %2049 = vmatpush1.xpose.msra.mxu0 0.0
        %2050 = vmatprep.subr.mxu0 0.0
        %2051 = vmatpush1.xpose.msra.mxu0 0.0
        %2052 = vmatprep.subr.mxu0 0.0
        %2053 = vmatpush1.xpose.msra.mxu0 0.0
        %2054 = vmatprep.subr.mxu0 0.0
        %2055 = vmatpush1.xpose.msra.mxu0 0.0
        %2056 = vmatprep.subr.mxu0 0.0
        %2057 = vmatpush1.xpose.msra.mxu0 0.0
        %2058 = vmatprep.subr.mxu0 0.0
        %2059 = vmatpush1.xpose.msra.mxu0 0.0
        %2060 = vmatprep.subr.mxu0 0.0
        %2061 = vmatpush1.xpose.msra.mxu0 0.0
        %2062 = vmatprep.subr.mxu0 0.0
        %2063 = vmatpush1.xpose.msra.mxu0 0.0
        %2064 = vmatprep.subr.mxu0 0.0
        %2065 = vmatpush1.xpose.msra.mxu0 0.0
        %2066 = vmatprep.subr.mxu0 0.0
        %2067 = vmatpush1.xpose.msra.mxu0 0.0
        %2068 = vmatprep.subr.mxu0 0.0
        %2069 = vmatpush1.xpose.msra.mxu0 0.0
        %2070 = vmatprep.subr.mxu0 0.0
        %2071 = vmatpush1.xpose.msra.mxu0 0.0
        %2072 = vmatprep.subr.mxu0 0.0
        %2073 = vmatpush1.xpose.msra.mxu0 0.0
        %2074 = vmatprep.subr.mxu0 0.0
        %2075 = vmatpush1.xpose.msra.mxu0 0.0
        %2076 = vmatprep.subr.mxu0 0.0
        %2077 = vmatpush1.xpose.msra.mxu0 0.0
        %2078 = vmatprep.subr.mxu0 0.0
        %2079 = vmatpush1.xpose.msra.mxu0 0.0
        %2080 = vmatprep.subr.mxu0 0.0
        %2081 = vmatpush1.xpose.msra.mxu0 0.0
        %2082 = vmatprep.subr.mxu0 0.0
        %2083 = vmatpush1.xpose.msra.mxu0 0.0
        %2084 = vmatprep.subr.mxu0 0.0
        %2085 = vmatpush1.xpose.msra.mxu0 0.0
        %2086 = vmatprep.subr.mxu0 0.0
        %2087 = vmatpush1.xpose.msra.mxu0 0.0
        %2088 = vmatprep.subr.mxu0 0.0
        %2089 = vmatpush1.xpose.msra.mxu0 0.0
        %2090 = vmatprep.subr.mxu0 0.0
        %2091 = vmatpush1.xpose.msra.mxu0 0.0
        %2092 = vmatprep.subr.mxu0 0.0
        %2093 = vmatpush1.xpose.msra.mxu0 0.0
        %2094 = vmatprep.mubr.f32.mxu0 0.0
        %2095 = vmatmul.mubr.f32.gmra.mrb[0].mxu0 %v2025
        %v2096 = vpop.f32.mrb[0].mxu0
        %v2097 = vadd.f32 0.0, %v2096
        %v2098 = vpop.f32.mrb[0].mxu0
        %2099 = vdwg.mxu0
        %v2100 = vsel %vm1770, %v2097, -inf
        %2101 = vmax.xlane.f32.xlu0 %v2100
        %v2102 = vpop.xlane.xlu0 %2101
        %v2103 = vsub.f32 %v2097, %v2102
        %v2104 = vmul.f32 %v2103, 1.442695
        %v2105 = vpow.pop %v2104
        %v2106 = vsel %vm1770, %v2105, 0.0
        %2107 = vadd.xlane.f32.xlu0 %v2106
        %v2108 = vpop.xlane.xlu0 %2107
        %v2109 = vrcp.pop %v2108
        %v2110 = vmul.f32 %v2109, 0.17677669
        %v2111 = vmul.f32 %v2105, %v2110
        %v2113 = vsel %vm1770, %v2111, 0
        %2115 = vmatprep.subr.mxu0 0.0
        %2116 = vmatpush1.msra.mxu0 %v2023
        %2117 = vmatprep.subr.mxu0 0.0
        %2118 = vmatpush1.msra.mxu0 0.0
        %2119 = vmatprep.subr.mxu0 0.0
        %2120 = vmatpush1.msra.mxu0 0.0
        %2121 = vmatprep.subr.mxu0 0.0
        %2122 = vmatpush1.msra.mxu0 0.0
        %2123 = vmatprep.subr.mxu0 0.0
        %2124 = vmatpush1.msra.mxu0 0.0
        %2125 = vmatprep.subr.mxu0 0.0
        %2126 = vmatpush1.msra.mxu0 0.0
        %2127 = vmatprep.subr.mxu0 0.0
        %2128 = vmatpush1.msra.mxu0 0.0
        %2129 = vmatprep.subr.mxu0 0.0
        %2130 = vmatpush1.msra.mxu0 0.0
        %2131 = vmatprep.subr.mxu0 0.0
        %2132 = vmatpush1.msra.mxu0 0.0
        %2133 = vmatprep.subr.mxu0 0.0
        %2134 = vmatpush1.msra.mxu0 0.0
        %2135 = vmatprep.subr.mxu0 0.0
        %2136 = vmatpush1.msra.mxu0 0.0
        %2137 = vmatprep.subr.mxu0 0.0
        %2138 = vmatpush1.msra.mxu0 0.0
        %2139 = vmatprep.subr.mxu0 0.0
        %2140 = vmatpush1.msra.mxu0 0.0
        %2141 = vmatprep.subr.mxu0 0.0
        %2142 = vmatpush1.msra.mxu0 0.0
        %2143 = vmatprep.subr.mxu0 0.0
        %2144 = vmatpush1.msra.mxu0 0.0
        %2145 = vmatprep.subr.mxu0 0.0
        %2146 = vmatpush1.msra.mxu0 0.0
        %2147 = vmatprep.subr.mxu0 0.0
        %2148 = vmatpush1.msra.mxu0 0.0
        %2149 = vmatprep.subr.mxu0 0.0
        %2150 = vmatpush1.msra.mxu0 0.0
        %2151 = vmatprep.subr.mxu0 0.0
        %2152 = vmatpush1.msra.mxu0 0.0
        %2153 = vmatprep.subr.mxu0 0.0
        %2154 = vmatpush1.msra.mxu0 0.0
        %2155 = vmatprep.subr.mxu0 0.0
        %2156 = vmatpush1.msra.mxu0 0.0
        %2157 = vmatprep.subr.mxu0 0.0
        %2158 = vmatpush1.msra.mxu0 0.0
        %2159 = vmatprep.subr.mxu0 0.0
        %2160 = vmatpush1.msra.mxu0 0.0
        %2161 = vmatprep.subr.mxu0 0.0
        %2162 = vmatpush1.msra.mxu0 0.0
        %2163 = vmatprep.subr.mxu0 0.0
        %2164 = vmatpush1.msra.mxu0 0.0
        %2165 = vmatprep.subr.mxu0 0.0
        %2166 = vmatpush1.msra.mxu0 0.0
        %2167 = vmatprep.subr.mxu0 0.0
        %2168 = vmatpush1.msra.mxu0 0.0
        %2169 = vmatprep.subr.mxu0 0.0
        %2170 = vmatpush1.msra.mxu0 0.0
        %2171 = vmatprep.subr.mxu0 0.0
        %2172 = vmatpush1.msra.mxu0 0.0
        %2173 = vmatprep.subr.mxu0 0.0
        %2174 = vmatpush1.msra.mxu0 0.0
        %2175 = vmatprep.subr.mxu0 0.0
        %2176 = vmatpush1.msra.mxu0 0.0
        %2177 = vmatprep.subr.mxu0 0.0
        %2178 = vmatpush1.msra.mxu0 0.0
        %2179 = vmatprep.mubr.f32.mxu0 0.0
        %2180 = vmatmul.mubr.f32.gmra.mrb[0].mxu0 %v2113
        %v2181 = vpop.f32.mrb[0].mxu0
        %v2182 = vadd.f32 0.0, %v2181
        %v2183 = vpop.f32.mrb[0].mxu0
        %2184 = vdwg.mxu0
        %v2185 = vld [vmem:[#allocation4] sm:$0xff]
        %s2186 = scalar_lea.vmem %s3, 4
        %v2187 = vld [vmem:[%s2186] sm:$0xf]
        %v2189 = vsel %vm1693, %v2182, 0
        %v2192 = vsel %vm1861, %v2187, 0
        %2194 = vmatprep.subr.mxu0 0.0
        %2195 = vmatpush1.msra.mxu0 %v2192
        %2196 = vmatprep.subr.mxu0 0.0
        %2197 = vmatpush1.msra.mxu0 0.0
        %2198 = vmatprep.subr.mxu0 0.0
        %2199 = vmatpush1.msra.mxu0 0.0
        %2200 = vmatprep.subr.mxu0 0.0
        %2201 = vmatpush1.msra.mxu0 0.0
        %2202 = vmatprep.subr.mxu0 0.0
        %2203 = vmatpush1.msra.mxu0 0.0
        %2204 = vmatprep.subr.mxu0 0.0
        %2205 = vmatpush1.msra.mxu0 0.0
        %2206 = vmatprep.subr.mxu0 0.0
        %2207 = vmatpush1.msra.mxu0 0.0
        %2208 = vmatprep.subr.mxu0 0.0
        %2209 = vmatpush1.msra.mxu0 0.0
        %2210 = vmatprep.subr.mxu0 0.0
        %2211 = vmatpush1.msra.mxu0 0.0
        %2212 = vmatprep.subr.mxu0 0.0
        %2213 = vmatpush1.msra.mxu0 0.0
        %2214 = vmatprep.subr.mxu0 0.0
        %2215 = vmatpush1.msra.mxu0 0.0
        %2216 = vmatprep.subr.mxu0 0.0
        %2217 = vmatpush1.msra.mxu0 0.0
        %2218 = vmatprep.subr.mxu0 0.0
        %2219 = vmatpush1.msra.mxu0 0.0
        %2220 = vmatprep.subr.mxu0 0.0
        %2221 = vmatpush1.msra.mxu0 0.0
        %2222 = vmatprep.subr.mxu0 0.0
        %2223 = vmatpush1.msra.mxu0 0.0
        %2224 = vmatprep.subr.mxu0 0.0
        %2225 = vmatpush1.msra.mxu0 0.0
        %2226 = vmatprep.subr.mxu0 0.0
        %2227 = vmatpush1.msra.mxu0 0.0
        %2228 = vmatprep.subr.mxu0 0.0
        %2229 = vmatpush1.msra.mxu0 0.0
        %2230 = vmatprep.subr.mxu0 0.0
        %2231 = vmatpush1.msra.mxu0 0.0
        %2232 = vmatprep.subr.mxu0 0.0
        %2233 = vmatpush1.msra.mxu0 0.0
        %2234 = vmatprep.subr.mxu0 0.0
        %2235 = vmatpush1.msra.mxu0 0.0
        %2236 = vmatprep.subr.mxu0 0.0
        %2237 = vmatpush1.msra.mxu0 0.0
        %2238 = vmatprep.subr.mxu0 0.0
        %2239 = vmatpush1.msra.mxu0 0.0
        %2240 = vmatprep.subr.mxu0 0.0
        %2241 = vmatpush1.msra.mxu0 0.0
        %2242 = vmatprep.subr.mxu0 0.0
        %2243 = vmatpush1.msra.mxu0 0.0
        %2244 = vmatprep.subr.mxu0 0.0
        %2245 = vmatpush1.msra.mxu0 0.0
        %2246 = vmatprep.subr.mxu0 0.0
        %2247 = vmatpush1.msra.mxu0 0.0
        %2248 = vmatprep.subr.mxu0 0.0
        %2249 = vmatpush1.msra.mxu0 0.0
        %2250 = vmatprep.subr.mxu0 0.0
        %2251 = vmatpush1.msra.mxu0 0.0
        %2252 = vmatprep.subr.mxu0 0.0
        %2253 = vmatpush1.msra.mxu0 0.0
        %2254 = vmatprep.subr.mxu0 0.0
        %2255 = vmatpush1.msra.mxu0 0.0
        %2256 = vmatprep.subr.mxu0 0.0
        %2257 = vmatpush1.msra.mxu0 0.0
        %2258 = vmatprep.mubr.f32.mxu0 0.0
        %2259 = vmatmul.mubr.f32.gmra.mrb[0].mxu0 %v2189
        %v2260 = vpop.f32.mrb[0].mxu0
        %v2261 = vadd.f32 0.0, %v2260
        %v2262 = vpop.f32.mrb[0].mxu0
        %2263 = vdwg.mxu0
        %v2264 = vadd.f32 %v2185, %v2261
        %2265 = vst.msk [vmem:[#allocation4] sm:$0xff] %vm1605, %v2264
        %s2266 = scalar_lea.vmem %s1, 64
        %v2267 = vld [vmem:[%s2266] sm:$0xff]
        %v2268 = vld [vmem:[%s2266 + $0x8] sm:$0xff]
        %v2269 = vld [vmem:[%s2266 + $0x10] sm:$0xff]
        %v2270 = vld [vmem:[%s2266 + $0x18] sm:$0xff]
        %s2271 = scalar_lea.vmem %s2, 2
        %v2272 = vld [vmem:[%s2271] sm:$0x1]
        %v2274 = vlaneseq
        %v2275 = vshrl.u32 %v2274, 7
        %v2276 = vsub.s32 0, %v2275
        %v2277 = vrot.slane %v2272, %v2276
        %2279 = vmatprep.subr.mxu0 0.0
        %2280 = vmatpush1.msra.mxu0 %v2267
        %2281 = vmatprep.subr.mxu0 0.0
        %2282 = vmatpush1.msra.mxu0 %v2268
        %2283 = vmatprep.subr.mxu0 0.0
        %2284 = vmatpush1.msra.mxu0 %v2269
        %2285 = vmatprep.subr.mxu0 0.0
        %2286 = vmatpush1.msra.mxu0 %v2270
        %2287 = vmatprep.subr.mxu0 0.0
        %2288 = vmatpush1.msra.mxu0 0.0
        %2289 = vmatprep.subr.mxu0 0.0
        %2290 = vmatpush1.msra.mxu0 0.0
        %2291 = vmatprep.subr.mxu0 0.0
        %2292 = vmatpush1.msra.mxu0 0.0
        %2293 = vmatprep.subr.mxu0 0.0
        %2294 = vmatpush1.msra.mxu0 0.0
        %2295 = vmatprep.subr.mxu0 0.0
        %2296 = vmatpush1.msra.mxu0 0.0
        %2297 = vmatprep.subr.mxu0 0.0
        %2298 = vmatpush1.msra.mxu0 0.0
        %2299 = vmatprep.subr.mxu0 0.0
        %2300 = vmatpush1.msra.mxu0 0.0
        %2301 = vmatprep.subr.mxu0 0.0
        %2302 = vmatpush1.msra.mxu0 0.0
        %2303 = vmatprep.subr.mxu0 0.0
        %2304 = vmatpush1.msra.mxu0 0.0
        %2305 = vmatprep.subr.mxu0 0.0
        %2306 = vmatpush1.msra.mxu0 0.0
        %2307 = vmatprep.subr.mxu0 0.0
        %2308 = vmatpush1.msra.mxu0 0.0
        %2309 = vmatprep.subr.mxu0 0.0
        %2310 = vmatpush1.msra.mxu0 0.0
        %2311 = vmatprep.subr.mxu0 0.0
        %2312 = vmatpush1.msra.mxu0 0.0
        %2313 = vmatprep.subr.mxu0 0.0
        %2314 = vmatpush1.msra.mxu0 0.0
        %2315 = vmatprep.subr.mxu0 0.0
        %2316 = vmatpush1.msra.mxu0 0.0
        %2317 = vmatprep.subr.mxu0 0.0
        %2318 = vmatpush1.msra.mxu0 0.0
        %2319 = vmatprep.subr.mxu0 0.0
        %2320 = vmatpush1.msra.mxu0 0.0
        %2321 = vmatprep.subr.mxu0 0.0
        %2322 = vmatpush1.msra.mxu0 0.0
        %2323 = vmatprep.subr.mxu0 0.0
        %2324 = vmatpush1.msra.mxu0 0.0
        %2325 = vmatprep.subr.mxu0 0.0
        %2326 = vmatpush1.msra.mxu0 0.0
        %2327 = vmatprep.subr.mxu0 0.0
        %2328 = vmatpush1.msra.mxu0 0.0
        %2329 = vmatprep.subr.mxu0 0.0
        %2330 = vmatpush1.msra.mxu0 0.0
        %2331 = vmatprep.subr.mxu0 0.0
        %2332 = vmatpush1.msra.mxu0 0.0
        %2333 = vmatprep.subr.mxu0 0.0
        %2334 = vmatpush1.msra.mxu0 0.0
        %2335 = vmatprep.subr.mxu0 0.0
        %2336 = vmatpush1.msra.mxu0 0.0
        %2337 = vmatprep.subr.mxu0 0.0
        %2338 = vmatpush1.msra.mxu0 0.0
        %2339 = vmatprep.subr.mxu0 0.0
        %2340 = vmatpush1.msra.mxu0 0.0
        %2341 = vmatprep.subr.mxu0 0.0
        %2342 = vmatpush1.msra.mxu0 0.0
        %2343 = vmatprep.mubr.f32.mxu0 0.0
        %2344 = vmatmul.mubr.f32.gmra.mrb[0].mxu0 %v1619
        %v2345 = vpop.f32.mrb[0].mxu0
        %v2346 = vadd.f32 %v2277, %v2345
        %v2347 = vpop.f32.mrb[0].mxu0
        %2348 = vdwg.mxu0
        %s2349 = scalar_lea.vmem [#allocation2], 16
        %v2350 = vld [vmem:[%s2349] sm:$0xff]
        %s2351 = scalar_lea.vmem [#allocation3], 16
        %v2352 = vld [vmem:[%s2351] sm:$0xff]
        %v2354 = vsel %vm1693, %v2346, 0
        %v2357 = vsel %vm1693, %v2350, 0
        %2359 = vmatprep.subr.mxu0 0.0
        %2360 = vmatpush1.xpose.msra.mxu0 %v2357
        %2361 = vmatprep.subr.mxu0 0.0
        %2362 = vmatpush1.xpose.msra.mxu0 0.0
        %2363 = vmatprep.subr.mxu0 0.0
        %2364 = vmatpush1.xpose.msra.mxu0 0.0
        %2365 = vmatprep.subr.mxu0 0.0
        %2366 = vmatpush1.xpose.msra.mxu0 0.0
        %2367 = vmatprep.subr.mxu0 0.0
        %2368 = vmatpush1.xpose.msra.mxu0 0.0
        %2369 = vmatprep.subr.mxu0 0.0
        %2370 = vmatpush1.xpose.msra.mxu0 0.0
        %2371 = vmatprep.subr.mxu0 0.0
        %2372 = vmatpush1.xpose.msra.mxu0 0.0
        %2373 = vmatprep.subr.mxu0 0.0
        %2374 = vmatpush1.xpose.msra.mxu0 0.0
        %2375 = vmatprep.subr.mxu0 0.0
        %2376 = vmatpush1.xpose.msra.mxu0 0.0
        %2377 = vmatprep.subr.mxu0 0.0
        %2378 = vmatpush1.xpose.msra.mxu0 0.0
        %2379 = vmatprep.subr.mxu0 0.0
        %2380 = vmatpush1.xpose.msra.mxu0 0.0
        %2381 = vmatprep.subr.mxu0 0.0
        %2382 = vmatpush1.xpose.msra.mxu0 0.0
        %2383 = vmatprep.subr.mxu0 0.0
        %2384 = vmatpush1.xpose.msra.mxu0 0.0
        %2385 = vmatprep.subr.mxu0 0.0
        %2386 = vmatpush1.xpose.msra.mxu0 0.0
        %2387 = vmatprep.subr.mxu0 0.0
        %2388 = vmatpush1.xpose.msra.mxu0 0.0
        %2389 = vmatprep.subr.mxu0 0.0
        %2390 = vmatpush1.xpose.msra.mxu0 0.0
        %2391 = vmatprep.subr.mxu0 0.0
        %2392 = vmatpush1.xpose.msra.mxu0 0.0
        %2393 = vmatprep.subr.mxu0 0.0
        %2394 = vmatpush1.xpose.msra.mxu0 0.0
        %2395 = vmatprep.subr.mxu0 0.0
        %2396 = vmatpush1.xpose.msra.mxu0 0.0
        %2397 = vmatprep.subr.mxu0 0.0
        %2398 = vmatpush1.xpose.msra.mxu0 0.0
        %2399 = vmatprep.subr.mxu0 0.0
        %2400 = vmatpush1.xpose.msra.mxu0 0.0
        %2401 = vmatprep.subr.mxu0 0.0
        %2402 = vmatpush1.xpose.msra.mxu0 0.0
        %2403 = vmatprep.subr.mxu0 0.0
        %2404 = vmatpush1.xpose.msra.mxu0 0.0
        %2405 = vmatprep.subr.mxu0 0.0
        %2406 = vmatpush1.xpose.msra.mxu0 0.0
        %2407 = vmatprep.subr.mxu0 0.0
        %2408 = vmatpush1.xpose.msra.mxu0 0.0
        %2409 = vmatprep.subr.mxu0 0.0
        %2410 = vmatpush1.xpose.msra.mxu0 0.0
        %2411 = vmatprep.subr.mxu0 0.0
        %2412 = vmatpush1.xpose.msra.mxu0 0.0
        %2413 = vmatprep.subr.mxu0 0.0
        %2414 = vmatpush1.xpose.msra.mxu0 0.0
        %2415 = vmatprep.subr.mxu0 0.0
        %2416 = vmatpush1.xpose.msra.mxu0 0.0
        %2417 = vmatprep.subr.mxu0 0.0
        %2418 = vmatpush1.xpose.msra.mxu0 0.0
        %2419 = vmatprep.subr.mxu0 0.0
        %2420 = vmatpush1.xpose.msra.mxu0 0.0
        %2421 = vmatprep.subr.mxu0 0.0
        %2422 = vmatpush1.xpose.msra.mxu0 0.0
        %2423 = vmatprep.mubr.f32.mxu0 0.0
        %2424 = vmatmul.mubr.f32.gmra.mrb[0].mxu0 %v2354
        %v2425 = vpop.f32.mrb[0].mxu0
        %v2426 = vadd.f32 0.0, %v2425
        %v2427 = vpop.f32.mrb[0].mxu0
        %2428 = vdwg.mxu0
        %v2429 = vsel %vm1770, %v2426, -inf
        %2430 = vmax.xlane.f32.xlu0 %v2429
        %v2431 = vpop.xlane.xlu0 %2430
        %v2432 = vsub.f32 %v2426, %v2431
        %v2433 = vmul.f32 %v2432, 1.442695
        %v2434 = vpow.pop %v2433
        %v2435 = vsel %vm1770, %v2434, 0.0
        %2436 = vadd.xlane.f32.xlu0 %v2435
        %v2437 = vpop.xlane.xlu0 %2436
        %v2438 = vrcp.pop %v2437
        %v2439 = vmul.f32 %v2438, 0.17677669
        %v2440 = vmul.f32 %v2434, %v2439
        %v2442 = vsel %vm1770, %v2440, 0
        %2444 = vmatprep.subr.mxu0 0.0
        %2445 = vmatpush1.msra.mxu0 %v2352
        %2446 = vmatprep.subr.mxu0 0.0
        %2447 = vmatpush1.msra.mxu0 0.0
        %2448 = vmatprep.subr.mxu0 0.0
        %2449 = vmatpush1.msra.mxu0 0.0
        %2450 = vmatprep.subr.mxu0 0.0
        %2451 = vmatpush1.msra.mxu0 0.0
        %2452 = vmatprep.subr.mxu0 0.0
        %2453 = vmatpush1.msra.mxu0 0.0
        %2454 = vmatprep.subr.mxu0 0.0
        %2455 = vmatpush1.msra.mxu0 0.0
        %2456 = vmatprep.subr.mxu0 0.0
        %2457 = vmatpush1.msra.mxu0 0.0
        %2458 = vmatprep.subr.mxu0 0.0
        %2459 = vmatpush1.msra.mxu0 0.0
        %2460 = vmatprep.subr.mxu0 0.0
        %2461 = vmatpush1.msra.mxu0 0.0
        %2462 = vmatprep.subr.mxu0 0.0
        %2463 = vmatpush1.msra.mxu0 0.0
        %2464 = vmatprep.subr.mxu0 0.0
        %2465 = vmatpush1.msra.mxu0 0.0
        %2466 = vmatprep.subr.mxu0 0.0
        %2467 = vmatpush1.msra.mxu0 0.0
        %2468 = vmatprep.subr.mxu0 0.0
        %2469 = vmatpush1.msra.mxu0 0.0
        %2470 = vmatprep.subr.mxu0 0.0
        %2471 = vmatpush1.msra.mxu0 0.0
        %2472 = vmatprep.subr.mxu0 0.0
        %2473 = vmatpush1.msra.mxu0 0.0
        %2474 = vmatprep.subr.mxu0 0.0
        %2475 = vmatpush1.msra.mxu0 0.0
        %2476 = vmatprep.subr.mxu0 0.0
        %2477 = vmatpush1.msra.mxu0 0.0
        %2478 = vmatprep.subr.mxu0 0.0
        %2479 = vmatpush1.msra.mxu0 0.0
        %2480 = vmatprep.subr.mxu0 0.0
        %2481 = vmatpush1.msra.mxu0 0.0
        %2482 = vmatprep.subr.mxu0 0.0
        %2483 = vmatpush1.msra.mxu0 0.0
        %2484 = vmatprep.subr.mxu0 0.0
        %2485 = vmatpush1.msra.mxu0 0.0
        %2486 = vmatprep.subr.mxu0 0.0
        %2487 = vmatpush1.msra.mxu0 0.0
        %2488 = vmatprep.subr.mxu0 0.0
        %2489 = vmatpush1.msra.mxu0 0.0
        %2490 = vmatprep.subr.mxu0 0.0
        %2491 = vmatpush1.msra.mxu0 0.0
        %2492 = vmatprep.subr.mxu0 0.0
        %2493 = vmatpush1.msra.mxu0 0.0
        %2494 = vmatprep.subr.mxu0 0.0
        %2495 = vmatpush1.msra.mxu0 0.0
        %2496 = vmatprep.subr.mxu0 0.0
        %2497 = vmatpush1.msra.mxu0 0.0
        %2498 = vmatprep.subr.mxu0 0.0
        %2499 = vmatpush1.msra.mxu0 0.0
        %2500 = vmatprep.subr.mxu0 0.0
        %2501 = vmatpush1.msra.mxu0 0.0
        %2502 = vmatprep.subr.mxu0 0.0
        %2503 = vmatpush1.msra.mxu0 0.0
        %2504 = vmatprep.subr.mxu0 0.0
        %2505 = vmatpush1.msra.mxu0 0.0
        %2506 = vmatprep.subr.mxu0 0.0
        %2507 = vmatpush1.msra.mxu0 0.0
        %2508 = vmatprep.mubr.f32.mxu0 0.0
        %2509 = vmatmul.mubr.f32.gmra.mrb[0].mxu0 %v2442
        %v2510 = vpop.f32.mrb[0].mxu0
        %v2511 = vadd.f32 0.0, %v2510
        %v2512 = vpop.f32.mrb[0].mxu0
        %2513 = vdwg.mxu0
        %v2514 = vld [vmem:[#allocation4] sm:$0xff]
        %s2515 = scalar_lea.vmem %s3, 8
        %v2516 = vld [vmem:[%s2515] sm:$0xf]
        %v2518 = vsel %vm1693, %v2511, 0
        %v2521 = vsel %vm1861, %v2516, 0
        %2523 = vmatprep.subr.mxu0 0.0
        %2524 = vmatpush1.msra.mxu0 %v2521
        %2525 = vmatprep.subr.mxu0 0.0
        %2526 = vmatpush1.msra.mxu0 0.0
        %2527 = vmatprep.subr.mxu0 0.0
        %2528 = vmatpush1.msra.mxu0 0.0
        %2529 = vmatprep.subr.mxu0 0.0
        %2530 = vmatpush1.msra.mxu0 0.0
        %2531 = vmatprep.subr.mxu0 0.0
        %2532 = vmatpush1.msra.mxu0 0.0
        %2533 = vmatprep.subr.mxu0 0.0
        %2534 = vmatpush1.msra.mxu0 0.0
        %2535 = vmatprep.subr.mxu0 0.0
        %2536 = vmatpush1.msra.mxu0 0.0
        %2537 = vmatprep.subr.mxu0 0.0
        %2538 = vmatpush1.msra.mxu0 0.0
        %2539 = vmatprep.subr.mxu0 0.0
        %2540 = vmatpush1.msra.mxu0 0.0
        %2541 = vmatprep.subr.mxu0 0.0
        %2542 = vmatpush1.msra.mxu0 0.0
        %2543 = vmatprep.subr.mxu0 0.0
        %2544 = vmatpush1.msra.mxu0 0.0
        %2545 = vmatprep.subr.mxu0 0.0
        %2546 = vmatpush1.msra.mxu0 0.0
        %2547 = vmatprep.subr.mxu0 0.0
        %2548 = vmatpush1.msra.mxu0 0.0
        %2549 = vmatprep.subr.mxu0 0.0
        %2550 = vmatpush1.msra.mxu0 0.0
        %2551 = vmatprep.subr.mxu0 0.0
        %2552 = vmatpush1.msra.mxu0 0.0
        %2553 = vmatprep.subr.mxu0 0.0
        %2554 = vmatpush1.msra.mxu0 0.0
        %2555 = vmatprep.subr.mxu0 0.0
        %2556 = vmatpush1.msra.mxu0 0.0
        %2557 = vmatprep.subr.mxu0 0.0
        %2558 = vmatpush1.msra.mxu0 0.0
        %2559 = vmatprep.subr.mxu0 0.0
        %2560 = vmatpush1.msra.mxu0 0.0
        %2561 = vmatprep.subr.mxu0 0.0
        %2562 = vmatpush1.msra.mxu0 0.0
        %2563 = vmatprep.subr.mxu0 0.0
        %2564 = vmatpush1.msra.mxu0 0.0
        %2565 = vmatprep.subr.mxu0 0.0
        %2566 = vmatpush1.msra.mxu0 0.0
        %2567 = vmatprep.subr.mxu0 0.0
        %2568 = vmatpush1.msra.mxu0 0.0
        %2569 = vmatprep.subr.mxu0 0.0
        %2570 = vmatpush1.msra.mxu0 0.0
        %2571 = vmatprep.subr.mxu0 0.0
        %2572 = vmatpush1.msra.mxu0 0.0
        %2573 = vmatprep.subr.mxu0 0.0
        %2574 = vmatpush1.msra.mxu0 0.0
        %2575 = vmatprep.subr.mxu0 0.0
        %2576 = vmatpush1.msra.mxu0 0.0
        %2577 = vmatprep.subr.mxu0 0.0
        %2578 = vmatpush1.msra.mxu0 0.0
        %2579 = vmatprep.subr.mxu0 0.0
        %2580 = vmatpush1.msra.mxu0 0.0
        %2581 = vmatprep.subr.mxu0 0.0
        %2582 = vmatpush1.msra.mxu0 0.0
        %2583 = vmatprep.subr.mxu0 0.0
        %2584 = vmatpush1.msra.mxu0 0.0
        %2585 = vmatprep.subr.mxu0 0.0
        %2586 = vmatpush1.msra.mxu0 0.0
        %2587 = vmatprep.mubr.f32.mxu0 0.0
        %2588 = vmatmul.mubr.f32.gmra.mrb[0].mxu0 %v2518
        %v2589 = vpop.f32.mrb[0].mxu0
        %v2590 = vadd.f32 0.0, %v2589
        %v2591 = vpop.f32.mrb[0].mxu0
        %2592 = vdwg.mxu0
        %v2593 = vadd.f32 %v2514, %v2590
        %2594 = vst.msk [vmem:[#allocation4] sm:$0xff] %vm1605, %v2593
        %s2595 = scalar_lea.vmem %s1, 96
        %v2596 = vld [vmem:[%s2595] sm:$0xff]
        %v2597 = vld [vmem:[%s2595 + $0x8] sm:$0xff]
        %v2598 = vld [vmem:[%s2595 + $0x10] sm:$0xff]
        %v2599 = vld [vmem:[%s2595 + $0x18] sm:$0xff]
        %s2600 = scalar_lea.vmem %s2, 3
        %v2601 = vld [vmem:[%s2600] sm:$0x1]
        %v2603 = vlaneseq
        %v2604 = vshrl.u32 %v2603, 7
        %v2605 = vsub.s32 0, %v2604
        %v2606 = vrot.slane %v2601, %v2605
        %2608 = vmatprep.subr.mxu0 0.0
        %2609 = vmatpush1.msra.mxu0 %v2596
        %2610 = vmatprep.subr.mxu0 0.0
        %2611 = vmatpush1.msra.mxu0 %v2597
        %2612 = vmatprep.subr.mxu0 0.0
        %2613 = vmatpush1.msra.mxu0 %v2598
        %2614 = vmatprep.subr.mxu0 0.0
        %2615 = vmatpush1.msra.mxu0 %v2599
        %2616 = vmatprep.subr.mxu0 0.0
        %2617 = vmatpush1.msra.mxu0 0.0
        %2618 = vmatprep.subr.mxu0 0.0
        %2619 = vmatpush1.msra.mxu0 0.0
        %2620 = vmatprep.subr.mxu0 0.0
        %2621 = vmatpush1.msra.mxu0 0.0
        %2622 = vmatprep.subr.mxu0 0.0
        %2623 = vmatpush1.msra.mxu0 0.0
        %2624 = vmatprep.subr.mxu0 0.0
        %2625 = vmatpush1.msra.mxu0 0.0
        %2626 = vmatprep.subr.mxu0 0.0
        %2627 = vmatpush1.msra.mxu0 0.0
        %2628 = vmatprep.subr.mxu0 0.0
        %2629 = vmatpush1.msra.mxu0 0.0
        %2630 = vmatprep.subr.mxu0 0.0
        %2631 = vmatpush1.msra.mxu0 0.0
        %2632 = vmatprep.subr.mxu0 0.0
        %2633 = vmatpush1.msra.mxu0 0.0
        %2634 = vmatprep.subr.mxu0 0.0
        %2635 = vmatpush1.msra.mxu0 0.0
        %2636 = vmatprep.subr.mxu0 0.0
        %2637 = vmatpush1.msra.mxu0 0.0
        %2638 = vmatprep.subr.mxu0 0.0
        %2639 = vmatpush1.msra.mxu0 0.0
        %2640 = vmatprep.subr.mxu0 0.0
        %2641 = vmatpush1.msra.mxu0 0.0
        %2642 = vmatprep.subr.mxu0 0.0
        %2643 = vmatpush1.msra.mxu0 0.0
        %2644 = vmatprep.subr.mxu0 0.0
        %2645 = vmatpush1.msra.mxu0 0.0
        %2646 = vmatprep.subr.mxu0 0.0
        %2647 = vmatpush1.msra.mxu0 0.0
        %2648 = vmatprep.subr.mxu0 0.0
        %2649 = vmatpush1.msra.mxu0 0.0
        %2650 = vmatprep.subr.mxu0 0.0
        %2651 = vmatpush1.msra.mxu0 0.0
        %2652 = vmatprep.subr.mxu0 0.0
        %2653 = vmatpush1.msra.mxu0 0.0
        %2654 = vmatprep.subr.mxu0 0.0
        %2655 = vmatpush1.msra.mxu0 0.0
        %2656 = vmatprep.subr.mxu0 0.0
        %2657 = vmatpush1.msra.mxu0 0.0
        %2658 = vmatprep.subr.mxu0 0.0
        %2659 = vmatpush1.msra.mxu0 0.0
        %2660 = vmatprep.subr.mxu0 0.0
        %2661 = vmatpush1.msra.mxu0 0.0
        %2662 = vmatprep.subr.mxu0 0.0
        %2663 = vmatpush1.msra.mxu0 0.0
        %2664 = vmatprep.subr.mxu0 0.0
        %2665 = vmatpush1.msra.mxu0 0.0
        %2666 = vmatprep.subr.mxu0 0.0
        %2667 = vmatpush1.msra.mxu0 0.0
        %2668 = vmatprep.subr.mxu0 0.0
        %2669 = vmatpush1.msra.mxu0 0.0
        %2670 = vmatprep.subr.mxu0 0.0
        %2671 = vmatpush1.msra.mxu0 0.0
        %2672 = vmatprep.mubr.f32.mxu0 0.0
        %2673 = vmatmul.mubr.f32.gmra.mrb[0].mxu0 %v1619
        %v2674 = vpop.f32.mrb[0].mxu0
        %v2675 = vadd.f32 %v2606, %v2674
        %v2676 = vpop.f32.mrb[0].mxu0
        %2677 = vdwg.mxu0
        %s2678 = scalar_lea.vmem [#allocation2], 24
        %v2679 = vld [vmem:[%s2678] sm:$0xff]
        %s2680 = scalar_lea.vmem [#allocation3], 24
        %v2681 = vld [vmem:[%s2680] sm:$0xff]
        %v2683 = vsel %vm1693, %v2675, 0
        %v2686 = vsel %vm1693, %v2679, 0
        %2688 = vmatprep.subr.mxu0 0.0
        %2689 = vmatpush1.xpose.msra.mxu0 %v2686
        %2690 = vmatprep.subr.mxu0 0.0
        %2691 = vmatpush1.xpose.msra.mxu0 0.0
        %2692 = vmatprep.subr.mxu0 0.0
        %2693 = vmatpush1.xpose.msra.mxu0 0.0
        %2694 = vmatprep.subr.mxu0 0.0
        %2695 = vmatpush1.xpose.msra.mxu0 0.0
        %2696 = vmatprep.subr.mxu0 0.0
        %2697 = vmatpush1.xpose.msra.mxu0 0.0
        %2698 = vmatprep.subr.mxu0 0.0
        %2699 = vmatpush1.xpose.msra.mxu0 0.0
        %2700 = vmatprep.subr.mxu0 0.0
        %2701 = vmatpush1.xpose.msra.mxu0 0.0
        %2702 = vmatprep.subr.mxu0 0.0
        %2703 = vmatpush1.xpose.msra.mxu0 0.0
        %2704 = vmatprep.subr.mxu0 0.0
        %2705 = vmatpush1.xpose.msra.mxu0 0.0
        %2706 = vmatprep.subr.mxu0 0.0
        %2707 = vmatpush1.xpose.msra.mxu0 0.0
        %2708 = vmatprep.subr.mxu0 0.0
        %2709 = vmatpush1.xpose.msra.mxu0 0.0
        %2710 = vmatprep.subr.mxu0 0.0
        %2711 = vmatpush1.xpose.msra.mxu0 0.0
        %2712 = vmatprep.subr.mxu0 0.0
        %2713 = vmatpush1.xpose.msra.mxu0 0.0
        %2714 = vmatprep.subr.mxu0 0.0
        %2715 = vmatpush1.xpose.msra.mxu0 0.0
        %2716 = vmatprep.subr.mxu0 0.0
        %2717 = vmatpush1.xpose.msra.mxu0 0.0
        %2718 = vmatprep.subr.mxu0 0.0
        %2719 = vmatpush1.xpose.msra.mxu0 0.0
        %2720 = vmatprep.subr.mxu0 0.0
        %2721 = vmatpush1.xpose.msra.mxu0 0.0
        %2722 = vmatprep.subr.mxu0 0.0
        %2723 = vmatpush1.xpose.msra.mxu0 0.0
        %2724 = vmatprep.subr.mxu0 0.0
        %2725 = vmatpush1.xpose.msra.mxu0 0.0
        %2726 = vmatprep.subr.mxu0 0.0
        %2727 = vmatpush1.xpose.msra.mxu0 0.0
        %2728 = vmatprep.subr.mxu0 0.0
        %2729 = vmatpush1.xpose.msra.mxu0 0.0
        %2730 = vmatprep.subr.mxu0 0.0
        %2731 = vmatpush1.xpose.msra.mxu0 0.0
        %2732 = vmatprep.subr.mxu0 0.0
        %2733 = vmatpush1.xpose.msra.mxu0 0.0
        %2734 = vmatprep.subr.mxu0 0.0
        %2735 = vmatpush1.xpose.msra.mxu0 0.0
        %2736 = vmatprep.subr.mxu0 0.0
        %2737 = vmatpush1.xpose.msra.mxu0 0.0
        %2738 = vmatprep.subr.mxu0 0.0
        %2739 = vmatpush1.xpose.msra.mxu0 0.0
        %2740 = vmatprep.subr.mxu0 0.0
        %2741 = vmatpush1.xpose.msra.mxu0 0.0
        %2742 = vmatprep.subr.mxu0 0.0
        %2743 = vmatpush1.xpose.msra.mxu0 0.0
        %2744 = vmatprep.subr.mxu0 0.0
        %2745 = vmatpush1.xpose.msra.mxu0 0.0
        %2746 = vmatprep.subr.mxu0 0.0
        %2747 = vmatpush1.xpose.msra.mxu0 0.0
        %2748 = vmatprep.subr.mxu0 0.0
        %2749 = vmatpush1.xpose.msra.mxu0 0.0
        %2750 = vmatprep.subr.mxu0 0.0
        %2751 = vmatpush1.xpose.msra.mxu0 0.0
        %2752 = vmatprep.mubr.f32.mxu0 0.0
        %2753 = vmatmul.mubr.f32.gmra.mrb[0].mxu0 %v2683
        %v2754 = vpop.f32.mrb[0].mxu0
        %v2755 = vadd.f32 0.0, %v2754
        %v2756 = vpop.f32.mrb[0].mxu0
        %2757 = vdwg.mxu0
        %v2758 = vsel %vm1770, %v2755, -inf
        %2759 = vmax.xlane.f32.xlu0 %v2758
        %v2760 = vpop.xlane.xlu0 %2759
        %v2761 = vsub.f32 %v2755, %v2760
        %v2762 = vmul.f32 %v2761, 1.442695
        %v2763 = vpow.pop %v2762
        %v2764 = vsel %vm1770, %v2763, 0.0
        %2765 = vadd.xlane.f32.xlu0 %v2764
        %v2766 = vpop.xlane.xlu0 %2765
        %v2767 = vrcp.pop %v2766
        %v2768 = vmul.f32 %v2767, 0.17677669
        %v2769 = vmul.f32 %v2763, %v2768
        %v2771 = vsel %vm1770, %v2769, 0
        %2773 = vmatprep.subr.mxu0 0.0
        %2774 = vmatpush1.msra.mxu0 %v2681
        %2775 = vmatprep.subr.mxu0 0.0
        %2776 = vmatpush1.msra.mxu0 0.0
        %2777 = vmatprep.subr.mxu0 0.0
        %2778 = vmatpush1.msra.mxu0 0.0
        %2779 = vmatprep.subr.mxu0 0.0
        %2780 = vmatpush1.msra.mxu0 0.0
        %2781 = vmatprep.subr.mxu0 0.0
        %2782 = vmatpush1.msra.mxu0 0.0
        %2783 = vmatprep.subr.mxu0 0.0
        %2784 = vmatpush1.msra.mxu0 0.0
        %2785 = vmatprep.subr.mxu0 0.0
        %2786 = vmatpush1.msra.mxu0 0.0
        %2787 = vmatprep.subr.mxu0 0.0
        %2788 = vmatpush1.msra.mxu0 0.0
        %2789 = vmatprep.subr.mxu0 0.0
        %2790 = vmatpush1.msra.mxu0 0.0
        %2791 = vmatprep.subr.mxu0 0.0
        %2792 = vmatpush1.msra.mxu0 0.0
        %2793 = vmatprep.subr.mxu0 0.0
        %2794 = vmatpush1.msra.mxu0 0.0
        %2795 = vmatprep.subr.mxu0 0.0
        %2796 = vmatpush1.msra.mxu0 0.0
        %2797 = vmatprep.subr.mxu0 0.0
        %2798 = vmatpush1.msra.mxu0 0.0
        %2799 = vmatprep.subr.mxu0 0.0
        %2800 = vmatpush1.msra.mxu0 0.0
        %2801 = vmatprep.subr.mxu0 0.0
        %2802 = vmatpush1.msra.mxu0 0.0
        %2803 = vmatprep.subr.mxu0 0.0
        %2804 = vmatpush1.msra.mxu0 0.0
        %2805 = vmatprep.subr.mxu0 0.0
        %2806 = vmatpush1.msra.mxu0 0.0
        %2807 = vmatprep.subr.mxu0 0.0
        %2808 = vmatpush1.msra.mxu0 0.0
        %2809 = vmatprep.subr.mxu0 0.0
        %2810 = vmatpush1.msra.mxu0 0.0
        %2811 = vmatprep.subr.mxu0 0.0
        %2812 = vmatpush1.msra.mxu0 0.0
        %2813 = vmatprep.subr.mxu0 0.0
        %2814 = vmatpush1.msra.mxu0 0.0
        %2815 = vmatprep.subr.mxu0 0.0
        %2816 = vmatpush1.msra.mxu0 0.0
        %2817 = vmatprep.subr.mxu0 0.0
        %2818 = vmatpush1.msra.mxu0 0.0
        %2819 = vmatprep.subr.mxu0 0.0
        %2820 = vmatpush1.msra.mxu0 0.0
        %2821 = vmatprep.subr.mxu0 0.0
        %2822 = vmatpush1.msra.mxu0 0.0
        %2823 = vmatprep.subr.mxu0 0.0
        %2824 = vmatpush1.msra.mxu0 0.0
        %2825 = vmatprep.subr.mxu0 0.0
        %2826 = vmatpush1.msra.mxu0 0.0
        %2827 = vmatprep.subr.mxu0 0.0
        %2828 = vmatpush1.msra.mxu0 0.0
        %2829 = vmatprep.subr.mxu0 0.0
        %2830 = vmatpush1.msra.mxu0 0.0
        %2831 = vmatprep.subr.mxu0 0.0
        %2832 = vmatpush1.msra.mxu0 0.0
        %2833 = vmatprep.subr.mxu0 0.0
        %2834 = vmatpush1.msra.mxu0 0.0
        %2835 = vmatprep.subr.mxu0 0.0
        %2836 = vmatpush1.msra.mxu0 0.0
        %2837 = vmatprep.mubr.f32.mxu0 0.0
        %2838 = vmatmul.mubr.f32.gmra.mrb[0].mxu0 %v2771
        %v2839 = vpop.f32.mrb[0].mxu0
        %v2840 = vadd.f32 0.0, %v2839
        %v2841 = vpop.f32.mrb[0].mxu0
        %2842 = vdwg.mxu0
        %v2843 = vld [vmem:[#allocation4] sm:$0xff]
        %s2844 = scalar_lea.vmem %s3, 12
        %v2845 = vld [vmem:[%s2844] sm:$0xf]
        %v2847 = vsel %vm1693, %v2840, 0
        %v2850 = vsel %vm1861, %v2845, 0
        %2852 = vmatprep.subr.mxu0 0.0
        %2853 = vmatpush1.msra.mxu0 %v2850
        %2854 = vmatprep.subr.mxu0 0.0
        %2855 = vmatpush1.msra.mxu0 0.0
        %2856 = vmatprep.subr.mxu0 0.0
        %2857 = vmatpush1.msra.mxu0 0.0
        %2858 = vmatprep.subr.mxu0 0.0
        %2859 = vmatpush1.msra.mxu0 0.0
        %2860 = vmatprep.subr.mxu0 0.0
        %2861 = vmatpush1.msra.mxu0 0.0
        %2862 = vmatprep.subr.mxu0 0.0
        %2863 = vmatpush1.msra.mxu0 0.0
        %2864 = vmatprep.subr.mxu0 0.0
        %2865 = vmatpush1.msra.mxu0 0.0
        %2866 = vmatprep.subr.mxu0 0.0
        %2867 = vmatpush1.msra.mxu0 0.0
        %2868 = vmatprep.subr.mxu0 0.0
        %2869 = vmatpush1.msra.mxu0 0.0
        %2870 = vmatprep.subr.mxu0 0.0
        %2871 = vmatpush1.msra.mxu0 0.0
        %2872 = vmatprep.subr.mxu0 0.0
        %2873 = vmatpush1.msra.mxu0 0.0
        %2874 = vmatprep.subr.mxu0 0.0
        %2875 = vmatpush1.msra.mxu0 0.0
        %2876 = vmatprep.subr.mxu0 0.0
        %2877 = vmatpush1.msra.mxu0 0.0
        %2878 = vmatprep.subr.mxu0 0.0
        %2879 = vmatpush1.msra.mxu0 0.0
        %2880 = vmatprep.subr.mxu0 0.0
        %2881 = vmatpush1.msra.mxu0 0.0
        %2882 = vmatprep.subr.mxu0 0.0
        %2883 = vmatpush1.msra.mxu0 0.0
        %2884 = vmatprep.subr.mxu0 0.0
        %2885 = vmatpush1.msra.mxu0 0.0
        %2886 = vmatprep.subr.mxu0 0.0
        %2887 = vmatpush1.msra.mxu0 0.0
        %2888 = vmatprep.subr.mxu0 0.0
        %2889 = vmatpush1.msra.mxu0 0.0
        %2890 = vmatprep.subr.mxu0 0.0
        %2891 = vmatpush1.msra.mxu0 0.0
        %2892 = vmatprep.subr.mxu0 0.0
        %2893 = vmatpush1.msra.mxu0 0.0
        %2894 = vmatprep.subr.mxu0 0.0
        %2895 = vmatpush1.msra.mxu0 0.0
        %2896 = vmatprep.subr.mxu0 0.0
        %2897 = vmatpush1.msra.mxu0 0.0
        %2898 = vmatprep.subr.mxu0 0.0
        %2899 = vmatpush1.msra.mxu0 0.0
        %2900 = vmatprep.subr.mxu0 0.0
        %2901 = vmatpush1.msra.mxu0 0.0
        %2902 = vmatprep.subr.mxu0 0.0
        %2903 = vmatpush1.msra.mxu0 0.0
        %2904 = vmatprep.subr.mxu0 0.0
        %2905 = vmatpush1.msra.mxu0 0.0
        %2906 = vmatprep.subr.mxu0 0.0
        %2907 = vmatpush1.msra.mxu0 0.0
        %2908 = vmatprep.subr.mxu0 0.0
        %2909 = vmatpush1.msra.mxu0 0.0
        %2910 = vmatprep.subr.mxu0 0.0
        %2911 = vmatpush1.msra.mxu0 0.0
        %2912 = vmatprep.subr.mxu0 0.0
        %2913 = vmatpush1.msra.mxu0 0.0
        %2914 = vmatprep.subr.mxu0 0.0
        %2915 = vmatpush1.msra.mxu0 0.0
        %2916 = vmatprep.mubr.f32.mxu0 0.0
        %2917 = vmatmul.mubr.f32.gmra.mrb[0].mxu0 %v2847
        %v2918 = vpop.f32.mrb[0].mxu0
        %v2919 = vadd.f32 0.0, %v2918
        %v2920 = vpop.f32.mrb[0].mxu0
        %2921 = vdwg.mxu0
        %v2922 = vadd.f32 %v2843, %v2919
        %2923 = vst.msk [vmem:[#allocation4] sm:$0xff] %vm1605, %v2922
        %s2924 = scalar_lea.vmem %s1, 128
        %v2925 = vld [vmem:[%s2924] sm:$0xff]
        %v2926 = vld [vmem:[%s2924 + $0x8] sm:$0xff]
        %v2927 = vld [vmem:[%s2924 + $0x10] sm:$0xff]
        %v2928 = vld [vmem:[%s2924 + $0x18] sm:$0xff]
        %s2929 = scalar_lea.vmem %s2, 4
        %v2930 = vld [vmem:[%s2929] sm:$0x1]
        %v2932 = vlaneseq
        %v2933 = vshrl.u32 %v2932, 7
        %v2934 = vsub.s32 0, %v2933
        %v2935 = vrot.slane %v2930, %v2934
        %2937 = vmatprep.subr.mxu0 0.0
        %2938 = vmatpush1.msra.mxu0 %v2925
        %2939 = vmatprep.subr.mxu0 0.0
        %2940 = vmatpush1.msra.mxu0 %v2926
        %2941 = vmatprep.subr.mxu0 0.0
        %2942 = vmatpush1.msra.mxu0 %v2927
        %2943 = vmatprep.subr.mxu0 0.0
        %2944 = vmatpush1.msra.mxu0 %v2928
        %2945 = vmatprep.subr.mxu0 0.0
        %2946 = vmatpush1.msra.mxu0 0.0
        %2947 = vmatprep.subr.mxu0 0.0
        %2948 = vmatpush1.msra.mxu0 0.0
        %2949 = vmatprep.subr.mxu0 0.0
        %2950 = vmatpush1.msra.mxu0 0.0
        %2951 = vmatprep.subr.mxu0 0.0
        %2952 = vmatpush1.msra.mxu0 0.0
        %2953 = vmatprep.subr.mxu0 0.0
        %2954 = vmatpush1.msra.mxu0 0.0
        %2955 = vmatprep.subr.mxu0 0.0
        %2956 = vmatpush1.msra.mxu0 0.0
        %2957 = vmatprep.subr.mxu0 0.0
        %2958 = vmatpush1.msra.mxu0 0.0
        %2959 = vmatprep.subr.mxu0 0.0
        %2960 = vmatpush1.msra.mxu0 0.0
        %2961 = vmatprep.subr.mxu0 0.0
        %2962 = vmatpush1.msra.mxu0 0.0
        %2963 = vmatprep.subr.mxu0 0.0
        %2964 = vmatpush1.msra.mxu0 0.0
        %2965 = vmatprep.subr.mxu0 0.0
        %2966 = vmatpush1.msra.mxu0 0.0
        %2967 = vmatprep.subr.mxu0 0.0
        %2968 = vmatpush1.msra.mxu0 0.0
        %2969 = vmatprep.subr.mxu0 0.0
        %2970 = vmatpush1.msra.mxu0 0.0
        %2971 = vmatprep.subr.mxu0 0.0
        %2972 = vmatpush1.msra.mxu0 0.0
        %2973 = vmatprep.subr.mxu0 0.0
        %2974 = vmatpush1.msra.mxu0 0.0
        %2975 = vmatprep.subr.mxu0 0.0
        %2976 = vmatpush1.msra.mxu0 0.0
        %2977 = vmatprep.subr.mxu0 0.0
        %2978 = vmatpush1.msra.mxu0 0.0
        %2979 = vmatprep.subr.mxu0 0.0
        %2980 = vmatpush1.msra.mxu0 0.0
        %2981 = vmatprep.subr.mxu0 0.0
        %2982 = vmatpush1.msra.mxu0 0.0
        %2983 = vmatprep.subr.mxu0 0.0
        %2984 = vmatpush1.msra.mxu0 0.0
        %2985 = vmatprep.subr.mxu0 0.0
        %2986 = vmatpush1.msra.mxu0 0.0
        %2987 = vmatprep.subr.mxu0 0.0
        %2988 = vmatpush1.msra.mxu0 0.0
        %2989 = vmatprep.subr.mxu0 0.0
        %2990 = vmatpush1.msra.mxu0 0.0
        %2991 = vmatprep.subr.mxu0 0.0
        %2992 = vmatpush1.msra.mxu0 0.0
        %2993 = vmatprep.subr.mxu0 0.0
        %2994 = vmatpush1.msra.mxu0 0.0
        %2995 = vmatprep.subr.mxu0 0.0
        %2996 = vmatpush1.msra.mxu0 0.0
        %2997 = vmatprep.subr.mxu0 0.0
        %2998 = vmatpush1.msra.mxu0 0.0
        %2999 = vmatprep.subr.mxu0 0.0
        %3000 = vmatpush1.msra.mxu0 0.0
        %3001 = vmatprep.mubr.f32.mxu0 0.0
        %3002 = vmatmul.mubr.f32.gmra.mrb[0].mxu0 %v1619
        %v3003 = vpop.f32.mrb[0].mxu0
        %v3004 = vadd.f32 %v2935, %v3003
        %v3005 = vpop.f32.mrb[0].mxu0
        %3006 = vdwg.mxu0
        %s3007 = scalar_lea.vmem [#allocation2], 32
        %v3008 = vld [vmem:[%s3007] sm:$0xff]
        %s3009 = scalar_lea.vmem [#allocation3], 32
        %v3010 = vld [vmem:[%s3009] sm:$0xff]
        %v3012 = vsel %vm1693, %v3004, 0
        %v3015 = vsel %vm1693, %v3008, 0
        %3017 = vmatprep.subr.mxu0 0.0
        %3018 = vmatpush1.xpose.msra.mxu0 %v3015
        %3019 = vmatprep.subr.mxu0 0.0
        %3020 = vmatpush1.xpose.msra.mxu0 0.0
        %3021 = vmatprep.subr.mxu0 0.0
        %3022 = vmatpush1.xpose.msra.mxu0 0.0
        %3023 = vmatprep.subr.mxu0 0.0
        %3024 = vmatpush1.xpose.msra.mxu0 0.0
        %3025 = vmatprep.subr.mxu0 0.0
        %3026 = vmatpush1.xpose.msra.mxu0 0.0
        %3027 = vmatprep.subr.mxu0 0.0
        %3028 = vmatpush1.xpose.msra.mxu0 0.0
        %3029 = vmatprep.subr.mxu0 0.0
        %3030 = vmatpush1.xpose.msra.mxu0 0.0
        %3031 = vmatprep.subr.mxu0 0.0
        %3032 = vmatpush1.xpose.msra.mxu0 0.0
        %3033 = vmatprep.subr.mxu0 0.0
        %3034 = vmatpush1.xpose.msra.mxu0 0.0
        %3035 = vmatprep.subr.mxu0 0.0
        %3036 = vmatpush1.xpose.msra.mxu0 0.0
        %3037 = vmatprep.subr.mxu0 0.0
        %3038 = vmatpush1.xpose.msra.mxu0 0.0
        %3039 = vmatprep.subr.mxu0 0.0
        %3040 = vmatpush1.xpose.msra.mxu0 0.0
        %3041 = vmatprep.subr.mxu0 0.0
        %3042 = vmatpush1.xpose.msra.mxu0 0.0
        %3043 = vmatprep.subr.mxu0 0.0
        %3044 = vmatpush1.xpose.msra.mxu0 0.0
        %3045 = vmatprep.subr.mxu0 0.0
        %3046 = vmatpush1.xpose.msra.mxu0 0.0
        %3047 = vmatprep.subr.mxu0 0.0
        %3048 = vmatpush1.xpose.msra.mxu0 0.0
        %3049 = vmatprep.subr.mxu0 0.0
        %3050 = vmatpush1.xpose.msra.mxu0 0.0
        %3051 = vmatprep.subr.mxu0 0.0
        %3052 = vmatpush1.xpose.msra.mxu0 0.0
        %3053 = vmatprep.subr.mxu0 0.0
        %3054 = vmatpush1.xpose.msra.mxu0 0.0
        %3055 = vmatprep.subr.mxu0 0.0
        %3056 = vmatpush1.xpose.msra.mxu0 0.0
        %3057 = vmatprep.subr.mxu0 0.0
        %3058 = vmatpush1.xpose.msra.mxu0 0.0
        %3059 = vmatprep.subr.mxu0 0.0
        %3060 = vmatpush1.xpose.msra.mxu0 0.0
        %3061 = vmatprep.subr.mxu0 0.0
        %3062 = vmatpush1.xpose.msra.mxu0 0.0
        %3063 = vmatprep.subr.mxu0 0.0
        %3064 = vmatpush1.xpose.msra.mxu0 0.0
        %3065 = vmatprep.subr.mxu0 0.0
        %3066 = vmatpush1.xpose.msra.mxu0 0.0
        %3067 = vmatprep.subr.mxu0 0.0
        %3068 = vmatpush1.xpose.msra.mxu0 0.0
        %3069 = vmatprep.subr.mxu0 0.0
        %3070 = vmatpush1.xpose.msra.mxu0 0.0
        %3071 = vmatprep.subr.mxu0 0.0
        %3072 = vmatpush1.xpose.msra.mxu0 0.0
        %3073 = vmatprep.subr.mxu0 0.0
        %3074 = vmatpush1.xpose.msra.mxu0 0.0
        %3075 = vmatprep.subr.mxu0 0.0
        %3076 = vmatpush1.xpose.msra.mxu0 0.0
        %3077 = vmatprep.subr.mxu0 0.0
        %3078 = vmatpush1.xpose.msra.mxu0 0.0
        %3079 = vmatprep.subr.mxu0 0.0
        %3080 = vmatpush1.xpose.msra.mxu0 0.0
        %3081 = vmatprep.mubr.f32.mxu0 0.0
        %3082 = vmatmul.mubr.f32.gmra.mrb[0].mxu0 %v3012
        %v3083 = vpop.f32.mrb[0].mxu0
        %v3084 = vadd.f32 0.0, %v3083
        %v3085 = vpop.f32.mrb[0].mxu0
        %3086 = vdwg.mxu0
        %v3087 = vsel %vm1770, %v3084, -inf
        %3088 = vmax.xlane.f32.xlu0 %v3087
        %v3089 = vpop.xlane.xlu0 %3088
        %v3090 = vsub.f32 %v3084, %v3089
        %v3091 = vmul.f32 %v3090, 1.442695
        %v3092 = vpow.pop %v3091
        %v3093 = vsel %vm1770, %v3092, 0.0
        %3094 = vadd.xlane.f32.xlu0 %v3093
        %v3095 = vpop.xlane.xlu0 %3094
        %v3096 = vrcp.pop %v3095
        %v3097 = vmul.f32 %v3096, 0.17677669
        %v3098 = vmul.f32 %v3092, %v3097
        %v3100 = vsel %vm1770, %v3098, 0
        %3102 = vmatprep.subr.mxu0 0.0
        %3103 = vmatpush1.msra.mxu0 %v3010
        %3104 = vmatprep.subr.mxu0 0.0
        %3105 = vmatpush1.msra.mxu0 0.0
        %3106 = vmatprep.subr.mxu0 0.0
        %3107 = vmatpush1.msra.mxu0 0.0
        %3108 = vmatprep.subr.mxu0 0.0
        %3109 = vmatpush1.msra.mxu0 0.0
        %3110 = vmatprep.subr.mxu0 0.0
        %3111 = vmatpush1.msra.mxu0 0.0
        %3112 = vmatprep.subr.mxu0 0.0
        %3113 = vmatpush1.msra.mxu0 0.0
        %3114 = vmatprep.subr.mxu0 0.0
        %3115 = vmatpush1.msra.mxu0 0.0
        %3116 = vmatprep.subr.mxu0 0.0
        %3117 = vmatpush1.msra.mxu0 0.0
        %3118 = vmatprep.subr.mxu0 0.0
        %3119 = vmatpush1.msra.mxu0 0.0
        %3120 = vmatprep.subr.mxu0 0.0
        %3121 = vmatpush1.msra.mxu0 0.0
        %3122 = vmatprep.subr.mxu0 0.0
        %3123 = vmatpush1.msra.mxu0 0.0
        %3124 = vmatprep.subr.mxu0 0.0
        %3125 = vmatpush1.msra.mxu0 0.0
        %3126 = vmatprep.subr.mxu0 0.0
        %3127 = vmatpush1.msra.mxu0 0.0
        %3128 = vmatprep.subr.mxu0 0.0
        %3129 = vmatpush1.msra.mxu0 0.0
        %3130 = vmatprep.subr.mxu0 0.0
        %3131 = vmatpush1.msra.mxu0 0.0
        %3132 = vmatprep.subr.mxu0 0.0
        %3133 = vmatpush1.msra.mxu0 0.0
        %3134 = vmatprep.subr.mxu0 0.0
        %3135 = vmatpush1.msra.mxu0 0.0
        %3136 = vmatprep.subr.mxu0 0.0
        %3137 = vmatpush1.msra.mxu0 0.0
        %3138 = vmatprep.subr.mxu0 0.0
        %3139 = vmatpush1.msra.mxu0 0.0
        %3140 = vmatprep.subr.mxu0 0.0
        %3141 = vmatpush1.msra.mxu0 0.0
        %3142 = vmatprep.subr.mxu0 0.0
        %3143 = vmatpush1.msra.mxu0 0.0
        %3144 = vmatprep.subr.mxu0 0.0
        %3145 = vmatpush1.msra.mxu0 0.0
        %3146 = vmatprep.subr.mxu0 0.0
        %3147 = vmatpush1.msra.mxu0 0.0
        %3148 = vmatprep.subr.mxu0 0.0
        %3149 = vmatpush1.msra.mxu0 0.0
        %3150 = vmatprep.subr.mxu0 0.0
        %3151 = vmatpush1.msra.mxu0 0.0
        %3152 = vmatprep.subr.mxu0 0.0
        %3153 = vmatpush1.msra.mxu0 0.0
        %3154 = vmatprep.subr.mxu0 0.0
        %3155 = vmatpush1.msra.mxu0 0.0
        %3156 = vmatprep.subr.mxu0 0.0
        %3157 = vmatpush1.msra.mxu0 0.0
        %3158 = vmatprep.subr.mxu0 0.0
        %3159 = vmatpush1.msra.mxu0 0.0
        %3160 = vmatprep.subr.mxu0 0.0
        %3161 = vmatpush1.msra.mxu0 0.0
        %3162 = vmatprep.subr.mxu0 0.0
        %3163 = vmatpush1.msra.mxu0 0.0
        %3164 = vmatprep.subr.mxu0 0.0
        %3165 = vmatpush1.msra.mxu0 0.0
        %3166 = vmatprep.mubr.f32.mxu0 0.0
        %3167 = vmatmul.mubr.f32.gmra.mrb[0].mxu0 %v3100
        %v3168 = vpop.f32.mrb[0].mxu0
        %v3169 = vadd.f32 0.0, %v3168
        %v3170 = vpop.f32.mrb[0].mxu0
        %3171 = vdwg.mxu0
        %v3172 = vld [vmem:[#allocation4] sm:$0xff]
        %s3173 = scalar_lea.vmem %s3, 16
        %v3174 = vld [vmem:[%s3173] sm:$0xf]
        %v3176 = vsel %vm1693, %v3169, 0
        %v3179 = vsel %vm1861, %v3174, 0
        %3181 = vmatprep.subr.mxu0 0.0
        %3182 = vmatpush1.msra.mxu0 %v3179
        %3183 = vmatprep.subr.mxu0 0.0
        %3184 = vmatpush1.msra.mxu0 0.0
        %3185 = vmatprep.subr.mxu0 0.0
        %3186 = vmatpush1.msra.mxu0 0.0
        %3187 = vmatprep.subr.mxu0 0.0
        %3188 = vmatpush1.msra.mxu0 0.0
        %3189 = vmatprep.subr.mxu0 0.0
        %3190 = vmatpush1.msra.mxu0 0.0
        %3191 = vmatprep.subr.mxu0 0.0
        %3192 = vmatpush1.msra.mxu0 0.0
        %3193 = vmatprep.subr.mxu0 0.0
        %3194 = vmatpush1.msra.mxu0 0.0
        %3195 = vmatprep.subr.mxu0 0.0
        %3196 = vmatpush1.msra.mxu0 0.0
        %3197 = vmatprep.subr.mxu0 0.0
        %3198 = vmatpush1.msra.mxu0 0.0
        %3199 = vmatprep.subr.mxu0 0.0
        %3200 = vmatpush1.msra.mxu0 0.0
        %3201 = vmatprep.subr.mxu0 0.0
        %3202 = vmatpush1.msra.mxu0 0.0
        %3203 = vmatprep.subr.mxu0 0.0
        %3204 = vmatpush1.msra.mxu0 0.0
        %3205 = vmatprep.subr.mxu0 0.0
        %3206 = vmatpush1.msra.mxu0 0.0
        %3207 = vmatprep.subr.mxu0 0.0
        %3208 = vmatpush1.msra.mxu0 0.0
        %3209 = vmatprep.subr.mxu0 0.0
        %3210 = vmatpush1.msra.mxu0 0.0
        %3211 = vmatprep.subr.mxu0 0.0
        %3212 = vmatpush1.msra.mxu0 0.0
        %3213 = vmatprep.subr.mxu0 0.0
        %3214 = vmatpush1.msra.mxu0 0.0
        %3215 = vmatprep.subr.mxu0 0.0
        %3216 = vmatpush1.msra.mxu0 0.0
        %3217 = vmatprep.subr.mxu0 0.0
        %3218 = vmatpush1.msra.mxu0 0.0
        %3219 = vmatprep.subr.mxu0 0.0
        %3220 = vmatpush1.msra.mxu0 0.0
        %3221 = vmatprep.subr.mxu0 0.0
        %3222 = vmatpush1.msra.mxu0 0.0
        %3223 = vmatprep.subr.mxu0 0.0
        %3224 = vmatpush1.msra.mxu0 0.0
        %3225 = vmatprep.subr.mxu0 0.0
        %3226 = vmatpush1.msra.mxu0 0.0
        %3227 = vmatprep.subr.mxu0 0.0
        %3228 = vmatpush1.msra.mxu0 0.0
        %3229 = vmatprep.subr.mxu0 0.0
        %3230 = vmatpush1.msra.mxu0 0.0
        %3231 = vmatprep.subr.mxu0 0.0
        %3232 = vmatpush1.msra.mxu0 0.0
        %3233 = vmatprep.subr.mxu0 0.0
        %3234 = vmatpush1.msra.mxu0 0.0
        %3235 = vmatprep.subr.mxu0 0.0
        %3236 = vmatpush1.msra.mxu0 0.0
        %3237 = vmatprep.subr.mxu0 0.0
        %3238 = vmatpush1.msra.mxu0 0.0
        %3239 = vmatprep.subr.mxu0 0.0
        %3240 = vmatpush1.msra.mxu0 0.0
        %3241 = vmatprep.subr.mxu0 0.0
        %3242 = vmatpush1.msra.mxu0 0.0
        %3243 = vmatprep.subr.mxu0 0.0
        %3244 = vmatpush1.msra.mxu0 0.0
        %3245 = vmatprep.mubr.f32.mxu0 0.0
        %3246 = vmatmul.mubr.f32.gmra.mrb[0].mxu0 %v3176
        %v3247 = vpop.f32.mrb[0].mxu0
        %v3248 = vadd.f32 0.0, %v3247
        %v3249 = vpop.f32.mrb[0].mxu0
        %3250 = vdwg.mxu0
        %v3251 = vadd.f32 %v3172, %v3248
        %3252 = vst.msk [vmem:[#allocation4] sm:$0xff] %vm1605, %v3251
        %s3253 = scalar_lea.vmem %s1, 160
        %v3254 = vld [vmem:[%s3253] sm:$0xff]
        %v3255 = vld [vmem:[%s3253 + $0x8] sm:$0xff]
        %v3256 = vld [vmem:[%s3253 + $0x10] sm:$0xff]
        %v3257 = vld [vmem:[%s3253 + $0x18] sm:$0xff]
        %s3258 = scalar_lea.vmem %s2, 5
        %v3259 = vld [vmem:[%s3258] sm:$0x1]
        %v3261 = vlaneseq
        %v3262 = vshrl.u32 %v3261, 7
        %v3263 = vsub.s32 0, %v3262
        %v3264 = vrot.slane %v3259, %v3263
        %3266 = vmatprep.subr.mxu0 0.0
        %3267 = vmatpush1.msra.mxu0 %v3254
        %3268 = vmatprep.subr.mxu0 0.0
        %3269 = vmatpush1.msra.mxu0 %v3255
        %3270 = vmatprep.subr.mxu0 0.0
        %3271 = vmatpush1.msra.mxu0 %v3256
        %3272 = vmatprep.subr.mxu0 0.0
        %3273 = vmatpush1.msra.mxu0 %v3257
        %3274 = vmatprep.subr.mxu0 0.0
        %3275 = vmatpush1.msra.mxu0 0.0
        %3276 = vmatprep.subr.mxu0 0.0
        %3277 = vmatpush1.msra.mxu0 0.0
        %3278 = vmatprep.subr.mxu0 0.0
        %3279 = vmatpush1.msra.mxu0 0.0
        %3280 = vmatprep.subr.mxu0 0.0
        %3281 = vmatpush1.msra.mxu0 0.0
        %3282 = vmatprep.subr.mxu0 0.0
        %3283 = vmatpush1.msra.mxu0 0.0
        %3284 = vmatprep.subr.mxu0 0.0
        %3285 = vmatpush1.msra.mxu0 0.0
        %3286 = vmatprep.subr.mxu0 0.0
        %3287 = vmatpush1.msra.mxu0 0.0
        %3288 = vmatprep.subr.mxu0 0.0
        %3289 = vmatpush1.msra.mxu0 0.0
        %3290 = vmatprep.subr.mxu0 0.0
        %3291 = vmatpush1.msra.mxu0 0.0
        %3292 = vmatprep.subr.mxu0 0.0
        %3293 = vmatpush1.msra.mxu0 0.0
        %3294 = vmatprep.subr.mxu0 0.0
        %3295 = vmatpush1.msra.mxu0 0.0
        %3296 = vmatprep.subr.mxu0 0.0
        %3297 = vmatpush1.msra.mxu0 0.0
        %3298 = vmatprep.subr.mxu0 0.0
        %3299 = vmatpush1.msra.mxu0 0.0
        %3300 = vmatprep.subr.mxu0 0.0
        %3301 = vmatpush1.msra.mxu0 0.0
        %3302 = vmatprep.subr.mxu0 0.0
        %3303 = vmatpush1.msra.mxu0 0.0
        %3304 = vmatprep.subr.mxu0 0.0
        %3305 = vmatpush1.msra.mxu0 0.0
        %3306 = vmatprep.subr.mxu0 0.0
        %3307 = vmatpush1.msra.mxu0 0.0
        %3308 = vmatprep.subr.mxu0 0.0
        %3309 = vmatpush1.msra.mxu0 0.0
        %3310 = vmatprep.subr.mxu0 0.0
        %3311 = vmatpush1.msra.mxu0 0.0
        %3312 = vmatprep.subr.mxu0 0.0
        %3313 = vmatpush1.msra.mxu0 0.0
        %3314 = vmatprep.subr.mxu0 0.0
        %3315 = vmatpush1.msra.mxu0 0.0
        %3316 = vmatprep.subr.mxu0 0.0
        %3317 = vmatpush1.msra.mxu0 0.0
        %3318 = vmatprep.subr.mxu0 0.0
        %3319 = vmatpush1.msra.mxu0 0.0
        %3320 = vmatprep.subr.mxu0 0.0
        %3321 = vmatpush1.msra.mxu0 0.0
        %3322 = vmatprep.subr.mxu0 0.0
        %3323 = vmatpush1.msra.mxu0 0.0
        %3324 = vmatprep.subr.mxu0 0.0
        %3325 = vmatpush1.msra.mxu0 0.0
        %3326 = vmatprep.subr.mxu0 0.0
        %3327 = vmatpush1.msra.mxu0 0.0
        %3328 = vmatprep.subr.mxu0 0.0
        %3329 = vmatpush1.msra.mxu0 0.0
        %3330 = vmatprep.mubr.f32.mxu0 0.0
        %3331 = vmatmul.mubr.f32.gmra.mrb[0].mxu0 %v1619
        %v3332 = vpop.f32.mrb[0].mxu0
        %v3333 = vadd.f32 %v3264, %v3332
        %v3334 = vpop.f32.mrb[0].mxu0
        %3335 = vdwg.mxu0
        %s3336 = scalar_lea.vmem [#allocation2], 40
        %v3337 = vld [vmem:[%s3336] sm:$0xff]
        %s3338 = scalar_lea.vmem [#allocation3], 40
        %v3339 = vld [vmem:[%s3338] sm:$0xff]
        %v3341 = vsel %vm1693, %v3333, 0
        %v3344 = vsel %vm1693, %v3337, 0
        %3346 = vmatprep.subr.mxu0 0.0
        %3347 = vmatpush1.xpose.msra.mxu0 %v3344
        %3348 = vmatprep.subr.mxu0 0.0
        %3349 = vmatpush1.xpose.msra.mxu0 0.0
        %3350 = vmatprep.subr.mxu0 0.0
        %3351 = vmatpush1.xpose.msra.mxu0 0.0
        %3352 = vmatprep.subr.mxu0 0.0
        %3353 = vmatpush1.xpose.msra.mxu0 0.0
        %3354 = vmatprep.subr.mxu0 0.0
        %3355 = vmatpush1.xpose.msra.mxu0 0.0
        %3356 = vmatprep.subr.mxu0 0.0
        %3357 = vmatpush1.xpose.msra.mxu0 0.0
        %3358 = vmatprep.subr.mxu0 0.0
        %3359 = vmatpush1.xpose.msra.mxu0 0.0
        %3360 = vmatprep.subr.mxu0 0.0
        %3361 = vmatpush1.xpose.msra.mxu0 0.0
        %3362 = vmatprep.subr.mxu0 0.0
        %3363 = vmatpush1.xpose.msra.mxu0 0.0
        %3364 = vmatprep.subr.mxu0 0.0
        %3365 = vmatpush1.xpose.msra.mxu0 0.0
        %3366 = vmatprep.subr.mxu0 0.0
        %3367 = vmatpush1.xpose.msra.mxu0 0.0
        %3368 = vmatprep.subr.mxu0 0.0
        %3369 = vmatpush1.xpose.msra.mxu0 0.0
        %3370 = vmatprep.subr.mxu0 0.0
        %3371 = vmatpush1.xpose.msra.mxu0 0.0
        %3372 = vmatprep.subr.mxu0 0.0
        %3373 = vmatpush1.xpose.msra.mxu0 0.0
        %3374 = vmatprep.subr.mxu0 0.0
        %3375 = vmatpush1.xpose.msra.mxu0 0.0
        %3376 = vmatprep.subr.mxu0 0.0
        %3377 = vmatpush1.xpose.msra.mxu0 0.0
        %3378 = vmatprep.subr.mxu0 0.0
        %3379 = vmatpush1.xpose.msra.mxu0 0.0
        %3380 = vmatprep.subr.mxu0 0.0
        %3381 = vmatpush1.xpose.msra.mxu0 0.0
        %3382 = vmatprep.subr.mxu0 0.0
        %3383 = vmatpush1.xpose.msra.mxu0 0.0
        %3384 = vmatprep.subr.mxu0 0.0
        %3385 = vmatpush1.xpose.msra.mxu0 0.0
        %3386 = vmatprep.subr.mxu0 0.0
        %3387 = vmatpush1.xpose.msra.mxu0 0.0
        %3388 = vmatprep.subr.mxu0 0.0
        %3389 = vmatpush1.xpose.msra.mxu0 0.0
        %3390 = vmatprep.subr.mxu0 0.0
        %3391 = vmatpush1.xpose.msra.mxu0 0.0
        %3392 = vmatprep.subr.mxu0 0.0
        %3393 = vmatpush1.xpose.msra.mxu0 0.0
        %3394 = vmatprep.subr.mxu0 0.0
        %3395 = vmatpush1.xpose.msra.mxu0 0.0
        %3396 = vmatprep.subr.mxu0 0.0
        %3397 = vmatpush1.xpose.msra.mxu0 0.0
        %3398 = vmatprep.subr.mxu0 0.0
        %3399 = vmatpush1.xpose.msra.mxu0 0.0
        %3400 = vmatprep.subr.mxu0 0.0
        %3401 = vmatpush1.xpose.msra.mxu0 0.0
        %3402 = vmatprep.subr.mxu0 0.0
        %3403 = vmatpush1.xpose.msra.mxu0 0.0
        %3404 = vmatprep.subr.mxu0 0.0
        %3405 = vmatpush1.xpose.msra.mxu0 0.0
        %3406 = vmatprep.subr.mxu0 0.0
        %3407 = vmatpush1.xpose.msra.mxu0 0.0
        %3408 = vmatprep.subr.mxu0 0.0
        %3409 = vmatpush1.xpose.msra.mxu0 0.0
        %3410 = vmatprep.mubr.f32.mxu0 0.0
        %3411 = vmatmul.mubr.f32.gmra.mrb[0].mxu0 %v3341
        %v3412 = vpop.f32.mrb[0].mxu0
        %v3413 = vadd.f32 0.0, %v3412
        %v3414 = vpop.f32.mrb[0].mxu0
        %3415 = vdwg.mxu0
        %v3416 = vsel %vm1770, %v3413, -inf
        %3417 = vmax.xlane.f32.xlu0 %v3416
        %v3418 = vpop.xlane.xlu0 %3417
        %v3419 = vsub.f32 %v3413, %v3418
        %v3420 = vmul.f32 %v3419, 1.442695
        %v3421 = vpow.pop %v3420
        %v3422 = vsel %vm1770, %v3421, 0.0
        %3423 = vadd.xlane.f32.xlu0 %v3422
        %v3424 = vpop.xlane.xlu0 %3423
        %v3425 = vrcp.pop %v3424
        %v3426 = vmul.f32 %v3425, 0.17677669
        %v3427 = vmul.f32 %v3421, %v3426
        %v3429 = vsel %vm1770, %v3427, 0
        %3431 = vmatprep.subr.mxu0 0.0
        %3432 = vmatpush1.msra.mxu0 %v3339
        %3433 = vmatprep.subr.mxu0 0.0
        %3434 = vmatpush1.msra.mxu0 0.0
        %3435 = vmatprep.subr.mxu0 0.0
        %3436 = vmatpush1.msra.mxu0 0.0
        %3437 = vmatprep.subr.mxu0 0.0
        %3438 = vmatpush1.msra.mxu0 0.0
        %3439 = vmatprep.subr.mxu0 0.0
        %3440 = vmatpush1.msra.mxu0 0.0
        %3441 = vmatprep.subr.mxu0 0.0
        %3442 = vmatpush1.msra.mxu0 0.0
        %3443 = vmatprep.subr.mxu0 0.0
        %3444 = vmatpush1.msra.mxu0 0.0
        %3445 = vmatprep.subr.mxu0 0.0
        %3446 = vmatpush1.msra.mxu0 0.0
        %3447 = vmatprep.subr.mxu0 0.0
        %3448 = vmatpush1.msra.mxu0 0.0
        %3449 = vmatprep.subr.mxu0 0.0
        %3450 = vmatpush1.msra.mxu0 0.0
        %3451 = vmatprep.subr.mxu0 0.0
        %3452 = vmatpush1.msra.mxu0 0.0
        %3453 = vmatprep.subr.mxu0 0.0
        %3454 = vmatpush1.msra.mxu0 0.0
        %3455 = vmatprep.subr.mxu0 0.0
        %3456 = vmatpush1.msra.mxu0 0.0
        %3457 = vmatprep.subr.mxu0 0.0
        %3458 = vmatpush1.msra.mxu0 0.0
        %3459 = vmatprep.subr.mxu0 0.0
        %3460 = vmatpush1.msra.mxu0 0.0
        %3461 = vmatprep.subr.mxu0 0.0
        %3462 = vmatpush1.msra.mxu0 0.0
        %3463 = vmatprep.subr.mxu0 0.0
        %3464 = vmatpush1.msra.mxu0 0.0
        %3465 = vmatprep.subr.mxu0 0.0
        %3466 = vmatpush1.msra.mxu0 0.0
        %3467 = vmatprep.subr.mxu0 0.0
        %3468 = vmatpush1.msra.mxu0 0.0
        %3469 = vmatprep.subr.mxu0 0.0
        %3470 = vmatpush1.msra.mxu0 0.0
        %3471 = vmatprep.subr.mxu0 0.0
        %3472 = vmatpush1.msra.mxu0 0.0
        %3473 = vmatprep.subr.mxu0 0.0
        %3474 = vmatpush1.msra.mxu0 0.0
        %3475 = vmatprep.subr.mxu0 0.0
        %3476 = vmatpush1.msra.mxu0 0.0
        %3477 = vmatprep.subr.mxu0 0.0
        %3478 = vmatpush1.msra.mxu0 0.0
        %3479 = vmatprep.subr.mxu0 0.0
        %3480 = vmatpush1.msra.mxu0 0.0
        %3481 = vmatprep.subr.mxu0 0.0
        %3482 = vmatpush1.msra.mxu0 0.0
        %3483 = vmatprep.subr.mxu0 0.0
        %3484 = vmatpush1.msra.mxu0 0.0
        %3485 = vmatprep.subr.mxu0 0.0
        %3486 = vmatpush1.msra.mxu0 0.0
        %3487 = vmatprep.subr.mxu0 0.0
        %3488 = vmatpush1.msra.mxu0 0.0
        %3489 = vmatprep.subr.mxu0 0.0
        %3490 = vmatpush1.msra.mxu0 0.0
        %3491 = vmatprep.subr.mxu0 0.0
        %3492 = vmatpush1.msra.mxu0 0.0
        %3493 = vmatprep.subr.mxu0 0.0
        %3494 = vmatpush1.msra.mxu0 0.0
        %3495 = vmatprep.mubr.f32.mxu0 0.0
        %3496 = vmatmul.mubr.f32.gmra.mrb[0].mxu0 %v3429
        %v3497 = vpop.f32.mrb[0].mxu0
        %v3498 = vadd.f32 0.0, %v3497
        %v3499 = vpop.f32.mrb[0].mxu0
        %3500 = vdwg.mxu0
        %v3501 = vld [vmem:[#allocation4] sm:$0xff]
        %s3502 = scalar_lea.vmem %s3, 20
        %v3503 = vld [vmem:[%s3502] sm:$0xf]
        %v3505 = vsel %vm1693, %v3498, 0
        %v3508 = vsel %vm1861, %v3503, 0
        %3510 = vmatprep.subr.mxu0 0.0
        %3511 = vmatpush1.msra.mxu0 %v3508
        %3512 = vmatprep.subr.mxu0 0.0
        %3513 = vmatpush1.msra.mxu0 0.0
        %3514 = vmatprep.subr.mxu0 0.0
        %3515 = vmatpush1.msra.mxu0 0.0
        %3516 = vmatprep.subr.mxu0 0.0
        %3517 = vmatpush1.msra.mxu0 0.0
        %3518 = vmatprep.subr.mxu0 0.0
        %3519 = vmatpush1.msra.mxu0 0.0
        %3520 = vmatprep.subr.mxu0 0.0
        %3521 = vmatpush1.msra.mxu0 0.0
        %3522 = vmatprep.subr.mxu0 0.0
        %3523 = vmatpush1.msra.mxu0 0.0
        %3524 = vmatprep.subr.mxu0 0.0
        %3525 = vmatpush1.msra.mxu0 0.0
        %3526 = vmatprep.subr.mxu0 0.0
        %3527 = vmatpush1.msra.mxu0 0.0
        %3528 = vmatprep.subr.mxu0 0.0
        %3529 = vmatpush1.msra.mxu0 0.0
        %3530 = vmatprep.subr.mxu0 0.0
        %3531 = vmatpush1.msra.mxu0 0.0
        %3532 = vmatprep.subr.mxu0 0.0
        %3533 = vmatpush1.msra.mxu0 0.0
        %3534 = vmatprep.subr.mxu0 0.0
        %3535 = vmatpush1.msra.mxu0 0.0
        %3536 = vmatprep.subr.mxu0 0.0
        %3537 = vmatpush1.msra.mxu0 0.0
        %3538 = vmatprep.subr.mxu0 0.0
        %3539 = vmatpush1.msra.mxu0 0.0
        %3540 = vmatprep.subr.mxu0 0.0
        %3541 = vmatpush1.msra.mxu0 0.0
        %3542 = vmatprep.subr.mxu0 0.0
        %3543 = vmatpush1.msra.mxu0 0.0
        %3544 = vmatprep.subr.mxu0 0.0
        %3545 = vmatpush1.msra.mxu0 0.0
        %3546 = vmatprep.subr.mxu0 0.0
        %3547 = vmatpush1.msra.mxu0 0.0
        %3548 = vmatprep.subr.mxu0 0.0
        %3549 = vmatpush1.msra.mxu0 0.0
        %3550 = vmatprep.subr.mxu0 0.0
        %3551 = vmatpush1.msra.mxu0 0.0
        %3552 = vmatprep.subr.mxu0 0.0
        %3553 = vmatpush1.msra.mxu0 0.0
        %3554 = vmatprep.subr.mxu0 0.0
        %3555 = vmatpush1.msra.mxu0 0.0
        %3556 = vmatprep.subr.mxu0 0.0
        %3557 = vmatpush1.msra.mxu0 0.0
        %3558 = vmatprep.subr.mxu0 0.0
        %3559 = vmatpush1.msra.mxu0 0.0
        %3560 = vmatprep.subr.mxu0 0.0
        %3561 = vmatpush1.msra.mxu0 0.0
        %3562 = vmatprep.subr.mxu0 0.0
        %3563 = vmatpush1.msra.mxu0 0.0
        %3564 = vmatprep.subr.mxu0 0.0
        %3565 = vmatpush1.msra.mxu0 0.0
        %3566 = vmatprep.subr.mxu0 0.0
        %3567 = vmatpush1.msra.mxu0 0.0
        %3568 = vmatprep.subr.mxu0 0.0
        %3569 = vmatpush1.msra.mxu0 0.0
        %3570 = vmatprep.subr.mxu0 0.0
        %3571 = vmatpush1.msra.mxu0 0.0
        %3572 = vmatprep.subr.mxu0 0.0
        %3573 = vmatpush1.msra.mxu0 0.0
        %3574 = vmatprep.mubr.f32.mxu0 0.0
        %3575 = vmatmul.mubr.f32.gmra.mrb[0].mxu0 %v3505
        %v3576 = vpop.f32.mrb[0].mxu0
        %v3577 = vadd.f32 0.0, %v3576
        %v3578 = vpop.f32.mrb[0].mxu0
        %3579 = vdwg.mxu0
        %v3580 = vadd.f32 %v3501, %v3577
        %3581 = vst.msk [vmem:[#allocation4] sm:$0xff] %vm1605, %v3580
        %s3582 = scalar_lea.vmem %s1, 192
        %v3583 = vld [vmem:[%s3582] sm:$0xff]
        %v3584 = vld [vmem:[%s3582 + $0x8] sm:$0xff]
        %v3585 = vld [vmem:[%s3582 + $0x10] sm:$0xff]
        %v3586 = vld [vmem:[%s3582 + $0x18] sm:$0xff]
        %s3587 = scalar_lea.vmem %s2, 6
        %v3588 = vld [vmem:[%s3587] sm:$0x1]
        %v3590 = vlaneseq
        %v3591 = vshrl.u32 %v3590, 7
        %v3592 = vsub.s32 0, %v3591
        %v3593 = vrot.slane %v3588, %v3592
        %3595 = vmatprep.subr.mxu0 0.0
        %3596 = vmatpush1.msra.mxu0 %v3583
        %3597 = vmatprep.subr.mxu0 0.0
        %3598 = vmatpush1.msra.mxu0 %v3584
        %3599 = vmatprep.subr.mxu0 0.0
        %3600 = vmatpush1.msra.mxu0 %v3585
        %3601 = vmatprep.subr.mxu0 0.0
        %3602 = vmatpush1.msra.mxu0 %v3586
        %3603 = vmatprep.subr.mxu0 0.0
        %3604 = vmatpush1.msra.mxu0 0.0
        %3605 = vmatprep.subr.mxu0 0.0
        %3606 = vmatpush1.msra.mxu0 0.0
        %3607 = vmatprep.subr.mxu0 0.0
        %3608 = vmatpush1.msra.mxu0 0.0
        %3609 = vmatprep.subr.mxu0 0.0
        %3610 = vmatpush1.msra.mxu0 0.0
        %3611 = vmatprep.subr.mxu0 0.0
        %3612 = vmatpush1.msra.mxu0 0.0
        %3613 = vmatprep.subr.mxu0 0.0
        %3614 = vmatpush1.msra.mxu0 0.0
        %3615 = vmatprep.subr.mxu0 0.0
        %3616 = vmatpush1.msra.mxu0 0.0
        %3617 = vmatprep.subr.mxu0 0.0
        %3618 = vmatpush1.msra.mxu0 0.0
        %3619 = vmatprep.subr.mxu0 0.0
        %3620 = vmatpush1.msra.mxu0 0.0
        %3621 = vmatprep.subr.mxu0 0.0
        %3622 = vmatpush1.msra.mxu0 0.0
        %3623 = vmatprep.subr.mxu0 0.0
        %3624 = vmatpush1.msra.mxu0 0.0
        %3625 = vmatprep.subr.mxu0 0.0
        %3626 = vmatpush1.msra.mxu0 0.0
        %3627 = vmatprep.subr.mxu0 0.0
        %3628 = vmatpush1.msra.mxu0 0.0
        %3629 = vmatprep.subr.mxu0 0.0
        %3630 = vmatpush1.msra.mxu0 0.0
        %3631 = vmatprep.subr.mxu0 0.0
        %3632 = vmatpush1.msra.mxu0 0.0
        %3633 = vmatprep.subr.mxu0 0.0
        %3634 = vmatpush1.msra.mxu0 0.0
        %3635 = vmatprep.subr.mxu0 0.0
        %3636 = vmatpush1.msra.mxu0 0.0
        %3637 = vmatprep.subr.mxu0 0.0
        %3638 = vmatpush1.msra.mxu0 0.0
        %3639 = vmatprep.subr.mxu0 0.0
        %3640 = vmatpush1.msra.mxu0 0.0
        %3641 = vmatprep.subr.mxu0 0.0
        %3642 = vmatpush1.msra.mxu0 0.0
        %3643 = vmatprep.subr.mxu0 0.0
        %3644 = vmatpush1.msra.mxu0 0.0
        %3645 = vmatprep.subr.mxu0 0.0
        %3646 = vmatpush1.msra.mxu0 0.0
        %3647 = vmatprep.subr.mxu0 0.0
        %3648 = vmatpush1.msra.mxu0 0.0
        %3649 = vmatprep.subr.mxu0 0.0
        %3650 = vmatpush1.msra.mxu0 0.0
        %3651 = vmatprep.subr.mxu0 0.0
        %3652 = vmatpush1.msra.mxu0 0.0
        %3653 = vmatprep.subr.mxu0 0.0
        %3654 = vmatpush1.msra.mxu0 0.0
        %3655 = vmatprep.subr.mxu0 0.0
        %3656 = vmatpush1.msra.mxu0 0.0
        %3657 = vmatprep.subr.mxu0 0.0
        %3658 = vmatpush1.msra.mxu0 0.0
        %3659 = vmatprep.mubr.f32.mxu0 0.0
        %3660 = vmatmul.mubr.f32.gmra.mrb[0].mxu0 %v1619
        %v3661 = vpop.f32.mrb[0].mxu0
        %v3662 = vadd.f32 %v3593, %v3661
        %v3663 = vpop.f32.mrb[0].mxu0
        %3664 = vdwg.mxu0
        %s3665 = scalar_lea.vmem [#allocation2], 48
        %v3666 = vld [vmem:[%s3665] sm:$0xff]
        %s3667 = scalar_lea.vmem [#allocation3], 48
        %v3668 = vld [vmem:[%s3667] sm:$0xff]
        %v3670 = vsel %vm1693, %v3662, 0
        %v3673 = vsel %vm1693, %v3666, 0
        %3675 = vmatprep.subr.mxu0 0.0
        %3676 = vmatpush1.xpose.msra.mxu0 %v3673
        %3677 = vmatprep.subr.mxu0 0.0
        %3678 = vmatpush1.xpose.msra.mxu0 0.0
        %3679 = vmatprep.subr.mxu0 0.0
        %3680 = vmatpush1.xpose.msra.mxu0 0.0
        %3681 = vmatprep.subr.mxu0 0.0
        %3682 = vmatpush1.xpose.msra.mxu0 0.0
        %3683 = vmatprep.subr.mxu0 0.0
        %3684 = vmatpush1.xpose.msra.mxu0 0.0
        %3685 = vmatprep.subr.mxu0 0.0
        %3686 = vmatpush1.xpose.msra.mxu0 0.0
        %3687 = vmatprep.subr.mxu0 0.0
        %3688 = vmatpush1.xpose.msra.mxu0 0.0
        %3689 = vmatprep.subr.mxu0 0.0
        %3690 = vmatpush1.xpose.msra.mxu0 0.0
        %3691 = vmatprep.subr.mxu0 0.0
        %3692 = vmatpush1.xpose.msra.mxu0 0.0
        %3693 = vmatprep.subr.mxu0 0.0
        %3694 = vmatpush1.xpose.msra.mxu0 0.0
        %3695 = vmatprep.subr.mxu0 0.0
        %3696 = vmatpush1.xpose.msra.mxu0 0.0
        %3697 = vmatprep.subr.mxu0 0.0
        %3698 = vmatpush1.xpose.msra.mxu0 0.0
        %3699 = vmatprep.subr.mxu0 0.0
        %3700 = vmatpush1.xpose.msra.mxu0 0.0
        %3701 = vmatprep.subr.mxu0 0.0
        %3702 = vmatpush1.xpose.msra.mxu0 0.0
        %3703 = vmatprep.subr.mxu0 0.0
        %3704 = vmatpush1.xpose.msra.mxu0 0.0
        %3705 = vmatprep.subr.mxu0 0.0
        %3706 = vmatpush1.xpose.msra.mxu0 0.0
        %3707 = vmatprep.subr.mxu0 0.0
        %3708 = vmatpush1.xpose.msra.mxu0 0.0
        %3709 = vmatprep.subr.mxu0 0.0
        %3710 = vmatpush1.xpose.msra.mxu0 0.0
        %3711 = vmatprep.subr.mxu0 0.0
        %3712 = vmatpush1.xpose.msra.mxu0 0.0
        %3713 = vmatprep.subr.mxu0 0.0
        %3714 = vmatpush1.xpose.msra.mxu0 0.0
        %3715 = vmatprep.subr.mxu0 0.0
        %3716 = vmatpush1.xpose.msra.mxu0 0.0
        %3717 = vmatprep.subr.mxu0 0.0
        %3718 = vmatpush1.xpose.msra.mxu0 0.0
        %3719 = vmatprep.subr.mxu0 0.0
        %3720 = vmatpush1.xpose.msra.mxu0 0.0
        %3721 = vmatprep.subr.mxu0 0.0
        %3722 = vmatpush1.xpose.msra.mxu0 0.0
        %3723 = vmatprep.subr.mxu0 0.0
        %3724 = vmatpush1.xpose.msra.mxu0 0.0
        %3725 = vmatprep.subr.mxu0 0.0
        %3726 = vmatpush1.xpose.msra.mxu0 0.0
        %3727 = vmatprep.subr.mxu0 0.0
        %3728 = vmatpush1.xpose.msra.mxu0 0.0
        %3729 = vmatprep.subr.mxu0 0.0
        %3730 = vmatpush1.xpose.msra.mxu0 0.0
        %3731 = vmatprep.subr.mxu0 0.0
        %3732 = vmatpush1.xpose.msra.mxu0 0.0
        %3733 = vmatprep.subr.mxu0 0.0
        %3734 = vmatpush1.xpose.msra.mxu0 0.0
        %3735 = vmatprep.subr.mxu0 0.0
        %3736 = vmatpush1.xpose.msra.mxu0 0.0
        %3737 = vmatprep.subr.mxu0 0.0
        %3738 = vmatpush1.xpose.msra.mxu0 0.0
        %3739 = vmatprep.mubr.f32.mxu0 0.0
        %3740 = vmatmul.mubr.f32.gmra.mrb[0].mxu0 %v3670
        %v3741 = vpop.f32.mrb[0].mxu0
        %v3742 = vadd.f32 0.0, %v3741
        %v3743 = vpop.f32.mrb[0].mxu0
        %3744 = vdwg.mxu0
        %v3745 = vsel %vm1770, %v3742, -inf
        %3746 = vmax.xlane.f32.xlu0 %v3745
        %v3747 = vpop.xlane.xlu0 %3746
        %v3748 = vsub.f32 %v3742, %v3747
        %v3749 = vmul.f32 %v3748, 1.442695
        %v3750 = vpow.pop %v3749
        %v3751 = vsel %vm1770, %v3750, 0.0
        %3752 = vadd.xlane.f32.xlu0 %v3751
        %v3753 = vpop.xlane.xlu0 %3752
        %v3754 = vrcp.pop %v3753
        %v3755 = vmul.f32 %v3754, 0.17677669
        %v3756 = vmul.f32 %v3750, %v3755
        %v3758 = vsel %vm1770, %v3756, 0
        %3760 = vmatprep.subr.mxu0 0.0
        %3761 = vmatpush1.msra.mxu0 %v3668
        %3762 = vmatprep.subr.mxu0 0.0
        %3763 = vmatpush1.msra.mxu0 0.0
        %3764 = vmatprep.subr.mxu0 0.0
        %3765 = vmatpush1.msra.mxu0 0.0
        %3766 = vmatprep.subr.mxu0 0.0
        %3767 = vmatpush1.msra.mxu0 0.0
        %3768 = vmatprep.subr.mxu0 0.0
        %3769 = vmatpush1.msra.mxu0 0.0
        %3770 = vmatprep.subr.mxu0 0.0
        %3771 = vmatpush1.msra.mxu0 0.0
        %3772 = vmatprep.subr.mxu0 0.0
        %3773 = vmatpush1.msra.mxu0 0.0
        %3774 = vmatprep.subr.mxu0 0.0
        %3775 = vmatpush1.msra.mxu0 0.0
        %3776 = vmatprep.subr.mxu0 0.0
        %3777 = vmatpush1.msra.mxu0 0.0
        %3778 = vmatprep.subr.mxu0 0.0
        %3779 = vmatpush1.msra.mxu0 0.0
        %3780 = vmatprep.subr.mxu0 0.0
        %3781 = vmatpush1.msra.mxu0 0.0
        %3782 = vmatprep.subr.mxu0 0.0
        %3783 = vmatpush1.msra.mxu0 0.0
        %3784 = vmatprep.subr.mxu0 0.0
        %3785 = vmatpush1.msra.mxu0 0.0
        %3786 = vmatprep.subr.mxu0 0.0
        %3787 = vmatpush1.msra.mxu0 0.0
        %3788 = vmatprep.subr.mxu0 0.0
        %3789 = vmatpush1.msra.mxu0 0.0
        %3790 = vmatprep.subr.mxu0 0.0
        %3791 = vmatpush1.msra.mxu0 0.0
        %3792 = vmatprep.subr.mxu0 0.0
        %3793 = vmatpush1.msra.mxu0 0.0
        %3794 = vmatprep.subr.mxu0 0.0
        %3795 = vmatpush1.msra.mxu0 0.0
        %3796 = vmatprep.subr.mxu0 0.0
        %3797 = vmatpush1.msra.mxu0 0.0
        %3798 = vmatprep.subr.mxu0 0.0
        %3799 = vmatpush1.msra.mxu0 0.0
        %3800 = vmatprep.subr.mxu0 0.0
        %3801 = vmatpush1.msra.mxu0 0.0
        %3802 = vmatprep.subr.mxu0 0.0
        %3803 = vmatpush1.msra.mxu0 0.0
        %3804 = vmatprep.subr.mxu0 0.0
        %3805 = vmatpush1.msra.mxu0 0.0
        %3806 = vmatprep.subr.mxu0 0.0
        %3807 = vmatpush1.msra.mxu0 0.0
        %3808 = vmatprep.subr.mxu0 0.0
        %3809 = vmatpush1.msra.mxu0 0.0
        %3810 = vmatprep.subr.mxu0 0.0
        %3811 = vmatpush1.msra.mxu0 0.0
        %3812 = vmatprep.subr.mxu0 0.0
        %3813 = vmatpush1.msra.mxu0 0.0
        %3814 = vmatprep.subr.mxu0 0.0
        %3815 = vmatpush1.msra.mxu0 0.0
        %3816 = vmatprep.subr.mxu0 0.0
        %3817 = vmatpush1.msra.mxu0 0.0
        %3818 = vmatprep.subr.mxu0 0.0
        %3819 = vmatpush1.msra.mxu0 0.0
        %3820 = vmatprep.subr.mxu0 0.0
        %3821 = vmatpush1.msra.mxu0 0.0
        %3822 = vmatprep.subr.mxu0 0.0
        %3823 = vmatpush1.msra.mxu0 0.0
        %3824 = vmatprep.mubr.f32.mxu0 0.0
        %3825 = vmatmul.mubr.f32.gmra.mrb[0].mxu0 %v3758
        %v3826 = vpop.f32.mrb[0].mxu0
        %v3827 = vadd.f32 0.0, %v3826
        %v3828 = vpop.f32.mrb[0].mxu0
        %3829 = vdwg.mxu0
        %v3830 = vld [vmem:[#allocation4] sm:$0xff]
        %s3831 = scalar_lea.vmem %s3, 24
        %v3832 = vld [vmem:[%s3831] sm:$0xf]
        %v3834 = vsel %vm1693, %v3827, 0
        %v3837 = vsel %vm1861, %v3832, 0
        %3839 = vmatprep.subr.mxu0 0.0
        %3840 = vmatpush1.msra.mxu0 %v3837
        %3841 = vmatprep.subr.mxu0 0.0
        %3842 = vmatpush1.msra.mxu0 0.0
        %3843 = vmatprep.subr.mxu0 0.0
        %3844 = vmatpush1.msra.mxu0 0.0
        %3845 = vmatprep.subr.mxu0 0.0
        %3846 = vmatpush1.msra.mxu0 0.0
        %3847 = vmatprep.subr.mxu0 0.0
        %3848 = vmatpush1.msra.mxu0 0.0
        %3849 = vmatprep.subr.mxu0 0.0
        %3850 = vmatpush1.msra.mxu0 0.0
        %3851 = vmatprep.subr.mxu0 0.0
        %3852 = vmatpush1.msra.mxu0 0.0
        %3853 = vmatprep.subr.mxu0 0.0
        %3854 = vmatpush1.msra.mxu0 0.0
        %3855 = vmatprep.subr.mxu0 0.0
        %3856 = vmatpush1.msra.mxu0 0.0
        %3857 = vmatprep.subr.mxu0 0.0
        %3858 = vmatpush1.msra.mxu0 0.0
        %3859 = vmatprep.subr.mxu0 0.0
        %3860 = vmatpush1.msra.mxu0 0.0
        %3861 = vmatprep.subr.mxu0 0.0
        %3862 = vmatpush1.msra.mxu0 0.0
        %3863 = vmatprep.subr.mxu0 0.0
        %3864 = vmatpush1.msra.mxu0 0.0
        %3865 = vmatprep.subr.mxu0 0.0
        %3866 = vmatpush1.msra.mxu0 0.0
        %3867 = vmatprep.subr.mxu0 0.0
        %3868 = vmatpush1.msra.mxu0 0.0
        %3869 = vmatprep.subr.mxu0 0.0
        %3870 = vmatpush1.msra.mxu0 0.0
        %3871 = vmatprep.subr.mxu0 0.0
        %3872 = vmatpush1.msra.mxu0 0.0
        %3873 = vmatprep.subr.mxu0 0.0
        %3874 = vmatpush1.msra.mxu0 0.0
        %3875 = vmatprep.subr.mxu0 0.0
        %3876 = vmatpush1.msra.mxu0 0.0
        %3877 = vmatprep.subr.mxu0 0.0
        %3878 = vmatpush1.msra.mxu0 0.0
        %3879 = vmatprep.subr.mxu0 0.0
        %3880 = vmatpush1.msra.mxu0 0.0
        %3881 = vmatprep.subr.mxu0 0.0
        %3882 = vmatpush1.msra.mxu0 0.0
        %3883 = vmatprep.subr.mxu0 0.0
        %3884 = vmatpush1.msra.mxu0 0.0
        %3885 = vmatprep.subr.mxu0 0.0
        %3886 = vmatpush1.msra.mxu0 0.0
        %3887 = vmatprep.subr.mxu0 0.0
        %3888 = vmatpush1.msra.mxu0 0.0
        %3889 = vmatprep.subr.mxu0 0.0
        %3890 = vmatpush1.msra.mxu0 0.0
        %3891 = vmatprep.subr.mxu0 0.0
        %3892 = vmatpush1.msra.mxu0 0.0
        %3893 = vmatprep.subr.mxu0 0.0
        %3894 = vmatpush1.msra.mxu0 0.0
        %3895 = vmatprep.subr.mxu0 0.0
        %3896 = vmatpush1.msra.mxu0 0.0
        %3897 = vmatprep.subr.mxu0 0.0
        %3898 = vmatpush1.msra.mxu0 0.0
        %3899 = vmatprep.subr.mxu0 0.0
        %3900 = vmatpush1.msra.mxu0 0.0
        %3901 = vmatprep.subr.mxu0 0.0
        %3902 = vmatpush1.msra.mxu0 0.0
        %3903 = vmatprep.mubr.f32.mxu0 0.0
        %3904 = vmatmul.mubr.f32.gmra.mrb[0].mxu0 %v3834
        %v3905 = vpop.f32.mrb[0].mxu0
        %v3906 = vadd.f32 0.0, %v3905
        %v3907 = vpop.f32.mrb[0].mxu0
        %3908 = vdwg.mxu0
        %v3909 = vadd.f32 %v3830, %v3906
        %3910 = vst.msk [vmem:[#allocation4] sm:$0xff] %vm1605, %v3909
        %s3911 = scalar_lea.vmem %s1, 224
        %v3912 = vld [vmem:[%s3911] sm:$0xff]
        %v3913 = vld [vmem:[%s3911 + $0x8] sm:$0xff]
        %v3914 = vld [vmem:[%s3911 + $0x10] sm:$0xff]
        %v3915 = vld [vmem:[%s3911 + $0x18] sm:$0xff]
        %s3916 = scalar_lea.vmem %s2, 7
        %v3917 = vld [vmem:[%s3916] sm:$0x1]
        %v3919 = vlaneseq
        %v3920 = vshrl.u32 %v3919, 7
        %v3921 = vsub.s32 0, %v3920
        %v3922 = vrot.slane %v3917, %v3921
        %3924 = vmatprep.subr.mxu0 0.0
        %3925 = vmatpush1.msra.mxu0 %v3912
        %3926 = vmatprep.subr.mxu0 0.0
        %3927 = vmatpush1.msra.mxu0 %v3913
        %3928 = vmatprep.subr.mxu0 0.0
        %3929 = vmatpush1.msra.mxu0 %v3914
        %3930 = vmatprep.subr.mxu0 0.0
        %3931 = vmatpush1.msra.mxu0 %v3915
        %3932 = vmatprep.subr.mxu0 0.0
        %3933 = vmatpush1.msra.mxu0 0.0
        %3934 = vmatprep.subr.mxu0 0.0
        %3935 = vmatpush1.msra.mxu0 0.0
        %3936 = vmatprep.subr.mxu0 0.0
        %3937 = vmatpush1.msra.mxu0 0.0
        %3938 = vmatprep.subr.mxu0 0.0
        %3939 = vmatpush1.msra.mxu0 0.0
        %3940 = vmatprep.subr.mxu0 0.0
        %3941 = vmatpush1.msra.mxu0 0.0
        %3942 = vmatprep.subr.mxu0 0.0
        %3943 = vmatpush1.msra.mxu0 0.0
        %3944 = vmatprep.subr.mxu0 0.0
        %3945 = vmatpush1.msra.mxu0 0.0
        %3946 = vmatprep.subr.mxu0 0.0
        %3947 = vmatpush1.msra.mxu0 0.0
        %3948 = vmatprep.subr.mxu0 0.0
        %3949 = vmatpush1.msra.mxu0 0.0
        %3950 = vmatprep.subr.mxu0 0.0
        %3951 = vmatpush1.msra.mxu0 0.0
        %3952 = vmatprep.subr.mxu0 0.0
        %3953 = vmatpush1.msra.mxu0 0.0
        %3954 = vmatprep.subr.mxu0 0.0
        %3955 = vmatpush1.msra.mxu0 0.0
        %3956 = vmatprep.subr.mxu0 0.0
        %3957 = vmatpush1.msra.mxu0 0.0
        %3958 = vmatprep.subr.mxu0 0.0
        %3959 = vmatpush1.msra.mxu0 0.0
        %3960 = vmatprep.subr.mxu0 0.0
        %3961 = vmatpush1.msra.mxu0 0.0
        %3962 = vmatprep.subr.mxu0 0.0
        %3963 = vmatpush1.msra.mxu0 0.0
        %3964 = vmatprep.subr.mxu0 0.0
        %3965 = vmatpush1.msra.mxu0 0.0
        %3966 = vmatprep.subr.mxu0 0.0
        %3967 = vmatpush1.msra.mxu0 0.0
        %3968 = vmatprep.subr.mxu0 0.0
        %3969 = vmatpush1.msra.mxu0 0.0
        %3970 = vmatprep.subr.mxu0 0.0
        %3971 = vmatpush1.msra.mxu0 0.0
        %3972 = vmatprep.subr.mxu0 0.0
        %3973 = vmatpush1.msra.mxu0 0.0
        %3974 = vmatprep.subr.mxu0 0.0
        %3975 = vmatpush1.msra.mxu0 0.0
        %3976 = vmatprep.subr.mxu0 0.0
        %3977 = vmatpush1.msra.mxu0 0.0
        %3978 = vmatprep.subr.mxu0 0.0
        %3979 = vmatpush1.msra.mxu0 0.0
        %3980 = vmatprep.subr.mxu0 0.0
        %3981 = vmatpush1.msra.mxu0 0.0
        %3982 = vmatprep.subr.mxu0 0.0
        %3983 = vmatpush1.msra.mxu0 0.0
        %3984 = vmatprep.subr.mxu0 0.0
        %3985 = vmatpush1.msra.mxu0 0.0
        %3986 = vmatprep.subr.mxu0 0.0
        %3987 = vmatpush1.msra.mxu0 0.0
        %3988 = vmatprep.mubr.f32.mxu0 0.0
        %3989 = vmatmul.mubr.f32.gmra.mrb[0].mxu0 %v1619
        %v3990 = vpop.f32.mrb[0].mxu0
        %v3991 = vadd.f32 %v3922, %v3990
        %v3992 = vpop.f32.mrb[0].mxu0
        %3993 = vdwg.mxu0
        %s3994 = scalar_lea.vmem [#allocation2], 56
        %v3995 = vld [vmem:[%s3994] sm:$0xff]
        %s3996 = scalar_lea.vmem [#allocation3], 56
        %v3997 = vld [vmem:[%s3996] sm:$0xff]
        %v3999 = vsel %vm1693, %v3991, 0
        %v4002 = vsel %vm1693, %v3995, 0
        %4004 = vmatprep.subr.mxu0 0.0
        %4005 = vmatpush1.xpose.msra.mxu0 %v4002
        %4006 = vmatprep.subr.mxu0 0.0
        %4007 = vmatpush1.xpose.msra.mxu0 0.0
        %4008 = vmatprep.subr.mxu0 0.0
        %4009 = vmatpush1.xpose.msra.mxu0 0.0
        %4010 = vmatprep.subr.mxu0 0.0
        %4011 = vmatpush1.xpose.msra.mxu0 0.0
        %4012 = vmatprep.subr.mxu0 0.0
        %4013 = vmatpush1.xpose.msra.mxu0 0.0
        %4014 = vmatprep.subr.mxu0 0.0
        %4015 = vmatpush1.xpose.msra.mxu0 0.0
        %4016 = vmatprep.subr.mxu0 0.0
        %4017 = vmatpush1.xpose.msra.mxu0 0.0
        %4018 = vmatprep.subr.mxu0 0.0
        %4019 = vmatpush1.xpose.msra.mxu0 0.0
        %4020 = vmatprep.subr.mxu0 0.0
        %4021 = vmatpush1.xpose.msra.mxu0 0.0
        %4022 = vmatprep.subr.mxu0 0.0
        %4023 = vmatpush1.xpose.msra.mxu0 0.0
        %4024 = vmatprep.subr.mxu0 0.0
        %4025 = vmatpush1.xpose.msra.mxu0 0.0
        %4026 = vmatprep.subr.mxu0 0.0
        %4027 = vmatpush1.xpose.msra.mxu0 0.0
        %4028 = vmatprep.subr.mxu0 0.0
        %4029 = vmatpush1.xpose.msra.mxu0 0.0
        %4030 = vmatprep.subr.mxu0 0.0
        %4031 = vmatpush1.xpose.msra.mxu0 0.0
        %4032 = vmatprep.subr.mxu0 0.0
        %4033 = vmatpush1.xpose.msra.mxu0 0.0
        %4034 = vmatprep.subr.mxu0 0.0
        %4035 = vmatpush1.xpose.msra.mxu0 0.0
        %4036 = vmatprep.subr.mxu0 0.0
        %4037 = vmatpush1.xpose.msra.mxu0 0.0
        %4038 = vmatprep.subr.mxu0 0.0
        %4039 = vmatpush1.xpose.msra.mxu0 0.0
        %4040 = vmatprep.subr.mxu0 0.0
        %4041 = vmatpush1.xpose.msra.mxu0 0.0
        %4042 = vmatprep.subr.mxu0 0.0
        %4043 = vmatpush1.xpose.msra.mxu0 0.0
        %4044 = vmatprep.subr.mxu0 0.0
        %4045 = vmatpush1.xpose.msra.mxu0 0.0
        %4046 = vmatprep.subr.mxu0 0.0
        %4047 = vmatpush1.xpose.msra.mxu0 0.0
        %4048 = vmatprep.subr.mxu0 0.0
        %4049 = vmatpush1.xpose.msra.mxu0 0.0
        %4050 = vmatprep.subr.mxu0 0.0
        %4051 = vmatpush1.xpose.msra.mxu0 0.0
        %4052 = vmatprep.subr.mxu0 0.0
        %4053 = vmatpush1.xpose.msra.mxu0 0.0
        %4054 = vmatprep.subr.mxu0 0.0
        %4055 = vmatpush1.xpose.msra.mxu0 0.0
        %4056 = vmatprep.subr.mxu0 0.0
        %4057 = vmatpush1.xpose.msra.mxu0 0.0
        %4058 = vmatprep.subr.mxu0 0.0
        %4059 = vmatpush1.xpose.msra.mxu0 0.0
        %4060 = vmatprep.subr.mxu0 0.0
        %4061 = vmatpush1.xpose.msra.mxu0 0.0
        %4062 = vmatprep.subr.mxu0 0.0
        %4063 = vmatpush1.xpose.msra.mxu0 0.0
        %4064 = vmatprep.subr.mxu0 0.0
        %4065 = vmatpush1.xpose.msra.mxu0 0.0
        %4066 = vmatprep.subr.mxu0 0.0
        %4067 = vmatpush1.xpose.msra.mxu0 0.0
        %4068 = vmatprep.mubr.f32.mxu0 0.0
        %4069 = vmatmul.mubr.f32.gmra.mrb[0].mxu0 %v3999
        %v4070 = vpop.f32.mrb[0].mxu0
        %v4071 = vadd.f32 0.0, %v4070
        %v4072 = vpop.f32.mrb[0].mxu0
        %4073 = vdwg.mxu0
        %v4074 = vsel %vm1770, %v4071, -inf
        %4075 = vmax.xlane.f32.xlu0 %v4074
        %v4076 = vpop.xlane.xlu0 %4075
        %v4077 = vsub.f32 %v4071, %v4076
        %v4078 = vmul.f32 %v4077, 1.442695
        %v4079 = vpow.pop %v4078
        %v4080 = vsel %vm1770, %v4079, 0.0
        %4081 = vadd.xlane.f32.xlu0 %v4080
        %v4082 = vpop.xlane.xlu0 %4081
        %v4083 = vrcp.pop %v4082
        %v4084 = vmul.f32 %v4083, 0.17677669
        %v4085 = vmul.f32 %v4079, %v4084
        %v4087 = vsel %vm1770, %v4085, 0
        %4089 = vmatprep.subr.mxu0 0.0
        %4090 = vmatpush1.msra.mxu0 %v3997
        %4091 = vmatprep.subr.mxu0 0.0
        %4092 = vmatpush1.msra.mxu0 0.0
        %4093 = vmatprep.subr.mxu0 0.0
        %4094 = vmatpush1.msra.mxu0 0.0
        %4095 = vmatprep.subr.mxu0 0.0
        %4096 = vmatpush1.msra.mxu0 0.0
        %4097 = vmatprep.subr.mxu0 0.0
        %4098 = vmatpush1.msra.mxu0 0.0
        %4099 = vmatprep.subr.mxu0 0.0
        %4100 = vmatpush1.msra.mxu0 0.0
        %4101 = vmatprep.subr.mxu0 0.0
        %4102 = vmatpush1.msra.mxu0 0.0
        %4103 = vmatprep.subr.mxu0 0.0
        %4104 = vmatpush1.msra.mxu0 0.0
        %4105 = vmatprep.subr.mxu0 0.0
        %4106 = vmatpush1.msra.mxu0 0.0
        %4107 = vmatprep.subr.mxu0 0.0
        %4108 = vmatpush1.msra.mxu0 0.0
        %4109 = vmatprep.subr.mxu0 0.0
        %4110 = vmatpush1.msra.mxu0 0.0
        %4111 = vmatprep.subr.mxu0 0.0
        %4112 = vmatpush1.msra.mxu0 0.0
        %4113 = vmatprep.subr.mxu0 0.0
        %4114 = vmatpush1.msra.mxu0 0.0
        %4115 = vmatprep.subr.mxu0 0.0
        %4116 = vmatpush1.msra.mxu0 0.0
        %4117 = vmatprep.subr.mxu0 0.0
        %4118 = vmatpush1.msra.mxu0 0.0
        %4119 = vmatprep.subr.mxu0 0.0
        %4120 = vmatpush1.msra.mxu0 0.0
        %4121 = vmatprep.subr.mxu0 0.0
        %4122 = vmatpush1.msra.mxu0 0.0
        %4123 = vmatprep.subr.mxu0 0.0
        %4124 = vmatpush1.msra.mxu0 0.0
        %4125 = vmatprep.subr.mxu0 0.0
        %4126 = vmatpush1.msra.mxu0 0.0
        %4127 = vmatprep.subr.mxu0 0.0
        %4128 = vmatpush1.msra.mxu0 0.0
        %4129 = vmatprep.subr.mxu0 0.0
        %4130 = vmatpush1.msra.mxu0 0.0
        %4131 = vmatprep.subr.mxu0 0.0
        %4132 = vmatpush1.msra.mxu0 0.0
        %4133 = vmatprep.subr.mxu0 0.0
        %4134 = vmatpush1.msra.mxu0 0.0
        %4135 = vmatprep.subr.mxu0 0.0
        %4136 = vmatpush1.msra.mxu0 0.0
        %4137 = vmatprep.subr.mxu0 0.0
        %4138 = vmatpush1.msra.mxu0 0.0
        %4139 = vmatprep.subr.mxu0 0.0
        %4140 = vmatpush1.msra.mxu0 0.0
        %4141 = vmatprep.subr.mxu0 0.0
        %4142 = vmatpush1.msra.mxu0 0.0
        %4143 = vmatprep.subr.mxu0 0.0
        %4144 = vmatpush1.msra.mxu0 0.0
        %4145 = vmatprep.subr.mxu0 0.0
        %4146 = vmatpush1.msra.mxu0 0.0
        %4147 = vmatprep.subr.mxu0 0.0
        %4148 = vmatpush1.msra.mxu0 0.0
        %4149 = vmatprep.subr.mxu0 0.0
        %4150 = vmatpush1.msra.mxu0 0.0
        %4151 = vmatprep.subr.mxu0 0.0
        %4152 = vmatpush1.msra.mxu0 0.0
        %4153 = vmatprep.mubr.f32.mxu0 0.0
        %4154 = vmatmul.mubr.f32.gmra.mrb[0].mxu0 %v4087
        %v4155 = vpop.f32.mrb[0].mxu0
        %v4156 = vadd.f32 0.0, %v4155
        %v4157 = vpop.f32.mrb[0].mxu0
        %4158 = vdwg.mxu0
        %v4159 = vld [vmem:[#allocation4] sm:$0xff]
        %s4160 = scalar_lea.vmem %s3, 28
        %v4161 = vld [vmem:[%s4160] sm:$0xf]
        %v4163 = vsel %vm1693, %v4156, 0
        %v4166 = vsel %vm1861, %v4161, 0
        %4168 = vmatprep.subr.mxu0 0.0
        %4169 = vmatpush1.msra.mxu0 %v4166
        %4170 = vmatprep.subr.mxu0 0.0
        %4171 = vmatpush1.msra.mxu0 0.0
        %4172 = vmatprep.subr.mxu0 0.0
        %4173 = vmatpush1.msra.mxu0 0.0
        %4174 = vmatprep.subr.mxu0 0.0
        %4175 = vmatpush1.msra.mxu0 0.0
        %4176 = vmatprep.subr.mxu0 0.0
        %4177 = vmatpush1.msra.mxu0 0.0
        %4178 = vmatprep.subr.mxu0 0.0
        %4179 = vmatpush1.msra.mxu0 0.0
        %4180 = vmatprep.subr.mxu0 0.0
        %4181 = vmatpush1.msra.mxu0 0.0
        %4182 = vmatprep.subr.mxu0 0.0
        %4183 = vmatpush1.msra.mxu0 0.0
        %4184 = vmatprep.subr.mxu0 0.0
        %4185 = vmatpush1.msra.mxu0 0.0
        %4186 = vmatprep.subr.mxu0 0.0
        %4187 = vmatpush1.msra.mxu0 0.0
        %4188 = vmatprep.subr.mxu0 0.0
        %4189 = vmatpush1.msra.mxu0 0.0
        %4190 = vmatprep.subr.mxu0 0.0
        %4191 = vmatpush1.msra.mxu0 0.0
        %4192 = vmatprep.subr.mxu0 0.0
        %4193 = vmatpush1.msra.mxu0 0.0
        %4194 = vmatprep.subr.mxu0 0.0
        %4195 = vmatpush1.msra.mxu0 0.0
        %4196 = vmatprep.subr.mxu0 0.0
        %4197 = vmatpush1.msra.mxu0 0.0
        %4198 = vmatprep.subr.mxu0 0.0
        %4199 = vmatpush1.msra.mxu0 0.0
        %4200 = vmatprep.subr.mxu0 0.0
        %4201 = vmatpush1.msra.mxu0 0.0
        %4202 = vmatprep.subr.mxu0 0.0
        %4203 = vmatpush1.msra.mxu0 0.0
        %4204 = vmatprep.subr.mxu0 0.0
        %4205 = vmatpush1.msra.mxu0 0.0
        %4206 = vmatprep.subr.mxu0 0.0
        %4207 = vmatpush1.msra.mxu0 0.0
        %4208 = vmatprep.subr.mxu0 0.0
        %4209 = vmatpush1.msra.mxu0 0.0
        %4210 = vmatprep.subr.mxu0 0.0
        %4211 = vmatpush1.msra.mxu0 0.0
        %4212 = vmatprep.subr.mxu0 0.0
        %4213 = vmatpush1.msra.mxu0 0.0
        %4214 = vmatprep.subr.mxu0 0.0
        %4215 = vmatpush1.msra.mxu0 0.0
        %4216 = vmatprep.subr.mxu0 0.0
        %4217 = vmatpush1.msra.mxu0 0.0
        %4218 = vmatprep.subr.mxu0 0.0
        %4219 = vmatpush1.msra.mxu0 0.0
        %4220 = vmatprep.subr.mxu0 0.0
        %4221 = vmatpush1.msra.mxu0 0.0
        %4222 = vmatprep.subr.mxu0 0.0
        %4223 = vmatpush1.msra.mxu0 0.0
        %4224 = vmatprep.subr.mxu0 0.0
        %4225 = vmatpush1.msra.mxu0 0.0
        %4226 = vmatprep.subr.mxu0 0.0
        %4227 = vmatpush1.msra.mxu0 0.0
        %4228 = vmatprep.subr.mxu0 0.0
        %4229 = vmatpush1.msra.mxu0 0.0
        %4230 = vmatprep.subr.mxu0 0.0
        %4231 = vmatpush1.msra.mxu0 0.0
        %4232 = vmatprep.mubr.f32.mxu0 0.0
        %4233 = vmatmul.mubr.f32.gmra.mrb[0].mxu0 %v4163
        %v4234 = vpop.f32.mrb[0].mxu0
        %v4235 = vadd.f32 0.0, %v4234
        %v4236 = vpop.f32.mrb[0].mxu0
        %4237 = vdwg.mxu0
        %v4238 = vadd.f32 %v4159, %v4235
        %4239 = vst.msk [vmem:[#allocation4] sm:$0xff] %vm1605, %v4238
        %v4240 = vld [vmem:[#allocation4] sm:$0xff]
        %v4241 = vld [vmem:[%s4] sm:$0x1]
        %v4243 = vlaneseq
        %v4244 = vshrl.u32 %v4243, 7
        %v4245 = vsub.s32 0, %v4244
        %v4246 = vrot.slane %v4241, %v4245
        %v4248 = vadd.f32 %v4240, %v4246
        %4249 = vst.msk [vmem:[%s229] sm:$0xff] %vm1605, %v4248
        %s4250 = sand.u32 %s151, 1
        %s4251 = scalar_lea.sflag [#allocation6], %s4250
        %s4252 = sand.u32 %s151, 1
        %s4253 = smul.addr %s4252, 8
        %s4254 = scalar_lea.vmem [#allocation5], %s4253
        // Predicated region
        $region45: #{tpu_custom_call.1} parent=39 // pred_check
          %p4255 = pneg %p161
        $region46: #{tpu_custom_call.1} parent=39 // pred_check_branch
          %4257 = sbr.rel (%p4255) target = $region48
        $region47: #{tpu_custom_call.1} parent=39 // pred_region
          %s4259 = ssub.s32 128, 128
          %4260 = vsyncadd %s4251, %s4259
          %s4261 = sadd.s32 %s24, %s23
          %s4262 = smul.addr %s4261, 128
          %s4263 = scalar_lea.hbm %s5, %s4262
          %s4265 = sshll.u32 %s4254, 4
          %s4266 = int_to_ptr.vmem [resolvable:$true] %s4265
          %4268 = dma.vmem_to_hbm [thread:$0]  %s4266, 128, %s4263, %s4251
        $region48: #{tpu_custom_call.1} parent=39 // pred_fallthru
          _
      $region40: #{tpu_custom_call.1} parent=5 // pred_fallthru
        _
      %p4269 = scmp.le.s32.totalorder 2, %s14
      // Predicated region
      $region49: #{tpu_custom_call.1} parent=5 // pred_check
        %p4270 = pneg %p4269
      $region50: #{tpu_custom_call.1} parent=5 // pred_check_branch
        %4272 = sbr.rel (%p4270) target = $region52
      $region51: #{tpu_custom_call.1} parent=5 // pred_region
        %s4273 = ssub.s32 %s14, 2
        // Predicated region
        $region53: #{tpu_custom_call.1} parent=51 // pred_check
          %p4274 = pneg %p167
        $region54: #{tpu_custom_call.1} parent=51 // pred_check_branch
          %4276 = sbr.rel (%p4274) target = $region56
        $region55: #{tpu_custom_call.1} parent=51 // pred_region
          %s4277 = sand.u32 %s152, 1
          %s4278 = scalar_lea.sflag [#allocation6], %s4277
          %s4279 = sand.u32 %s152, 1
          %s4280 = smul.addr %s4279, 8
          %s4281 = scalar_lea.vmem [#allocation5], %s4280
          %4282 = dma.done %s4278, 128
        $region56: #{tpu_custom_call.1} parent=51 // pred_fallthru
          _
      $region52: #{tpu_custom_call.1} parent=5 // pred_fallthru
        _
    $region6: #{tpu_custom_call.1} parent=1 // loop_footer
      %s18 = sadd.s32 1, %s14
    $region7: #{tpu_custom_call.1} parent=1 // loop_footer_branch
      %13 = sbr.rel target = $region3
    $region8: #{tpu_custom_call.1} parent=1 // loop_exit
      _
    %4283 = vsyncpa [#allocation6], 1
    %s4284 = scalar_lea.sflag [#allocation6], 1
    %4285 = vsyncpa %s4284, 1

</llo_original>
